<compile_context>
chip_gen: v7x
topology: tpu7x:2x2x1
jax: 0.10.0
libtpu: 0.0.40
codegen_flags: <defaults>
</compile_context>

<pallas_src>
import functools

import jax
import jax.numpy as jnp
from jax.experimental import pallas as pl
from jax.experimental.pallas import tpu as pltpu

# Conservative scoped-VMEM cap valid on v5e/v6e (128 MiB physical) and
# v7x (64 MiB physical).  Tiles below are sized to fit well under this.
_VMEM_LIMIT = 48 * 1024 * 1024


def _round_up(x, m):
    return ((x + m - 1) // m) * m


def _pad_rows(x, m_pad):
    pad = m_pad - x.shape[0]
    if pad == 0:
        return x
    return jnp.pad(x, ((0, pad),) + ((0, 0),) * (x.ndim - 1))


# ----------------------------------------------------------------------------
# Kernel 1: fused 1x1 conv (+ folded bias/BN) + activation
# ----------------------------------------------------------------------------

def _pointwise_mlp_kernel(x_ref, w_ref, shift_ref, o_ref, *, activation, slope):
    y = jnp.dot(x_ref[...], w_ref[...], preferred_element_type=jnp.float32)
    y = y + shift_ref[...]
    if activation == "relu":
        y = jnp.maximum(y, 0.0)
    elif activation == "leaky_relu":
        y = jnp.where(y >= 0, y, slope * y)
    o_ref[...] = y.astype(o_ref.dtype)


def pointwise_mlp(x, w, shift, *, activation="none", slope=0.2, block_m=512):
    """x: (M, Cin), w: (Cin, Cout) with BN scale pre-folded, shift: (Cout,)."""
    M, c_in = x.shape
    c_out = w.shape[1]
    bm = min(block_m, _round_up(M, 8))          # multiple of 8, never "whole M" at scale
    m_pad = _round_up(M, bm)
    kernel = functools.partial(_pointwise_mlp_kernel,
                               activation=activation, slope=slope)
    out = pl.pallas_call(
        kernel,
        out_shape=jax.ShapeDtypeStruct((m_pad, c_out), jnp.float32),
        grid_spec=pltpu.PrefetchScalarGridSpec(
            num_scalar_prefetch=0,
            grid=(m_pad // bm,),
            in_specs=[
                pl.BlockSpec((bm, c_in), lambda i: (i, 0)),
                pl.BlockSpec((c_in, c_out), lambda i: (0, 0)),
                pl.BlockSpec((1, c_out), lambda i: (0, 0)),
            ],
            out_specs=pl.BlockSpec((bm, c_out), lambda i: (i, 0)),
        ),
        compiler_params=pltpu.CompilerParams(
            dimension_semantics=("parallel",),
            vmem_limit_bytes=_VMEM_LIMIT),
    )(_pad_rows(x, m_pad), w, shift.reshape(1, c_out))
    return out[:M]


# ----------------------------------------------------------------------------
# Kernel 2: fused LocalSpatialEncoding + AttentivePooling + post-pool SharedMLP
# ----------------------------------------------------------------------------

def _lse_pool_kernel(cen_ref, nbr_ref, dst_ref, ft_ref,
                     wcen_ref, wnbr_ref, wdst_ref, tlse_ref,
                     wsee_ref, wsef_ref, wsfe_ref, wsff_ref,
                     wpt_ref, wpb_ref, tpool_ref, o_ref):
    bm, K, _ = nbr_ref.shape
    dh = ft_ref.shape[-1]
    f32 = jnp.float32

    cen = cen_ref[...].astype(f32)                      # (bm, 3)
    nbr = nbr_ref[...].astype(f32)                      # (bm, K, 3)   (bf16 in HBM)
    dst = dst_ref[...].astype(f32)                      # (bm, K, 1)   (bf16 in HBM)
    ft = ft_ref[...].astype(f32)                        # (bm, dh)

    # LSE MLP: relu([c | n | c-n | d] @ W10 + t) without building the 10-ch
    # concat -- the concat is folded into the weight rows on the host:
    #   c @ (Wc + Wdiff) + n @ (Wn - Wdiff) + d * w_dist + t
    enc_c = jnp.dot(cen, wcen_ref[...], preferred_element_type=f32)          # (bm, dh)
    enc_n = jnp.dot(nbr.reshape(bm * K, 3), wnbr_ref[...],
                    preferred_element_type=f32).reshape(bm, K, dh)
    enc = (enc_n + enc_c[:, None, :]
           + dst * wdst_ref[...][None, :, :]
           + tlse_ref[...][None, :, :])
    enc = jnp.maximum(enc, 0.0)                                              # (bm, K, dh)
    enc2 = enc.reshape(bm * K, dh)                                           # flat GEMMs

    # Attention scores for x = [enc | ft_broadcast], with the (d, d) score
    # matrix pre-split into dh x dh blocks so no channel concat/slice happens
    # in-kernel and the MXU sees single (bm*K, dh) GEMMs.
    s_l = (jnp.dot(enc2, wsee_ref[...], preferred_element_type=f32).reshape(bm, K, dh)
           + jnp.dot(ft, wsfe_ref[...], preferred_element_type=f32)[:, None, :])
    s_r = (jnp.dot(enc2, wsef_ref[...], preferred_element_type=f32).reshape(bm, K, dh)
           + jnp.dot(ft, wsff_ref[...], preferred_element_type=f32)[:, None, :])

    def softmax_k(s):  # softmax over neighbors (axis=1), per channel
        s = s - jnp.max(s, axis=1, keepdims=True)
        e = jnp.exp(s)
        return e * pl.reciprocal(jnp.sum(e, axis=1, keepdims=True), approx=True)

    a_l = softmax_k(s_l)
    a_r = softmax_k(s_r)

    # sum_K(scores * [enc | ft]) split into the two channel halves.
    pooled_l = jnp.sum(a_l * enc, axis=1)                                    # (bm, dh)
    pooled_r = ft * jnp.sum(a_r, axis=1)                                     # (bm, dh)

    # post-pool SharedMLP (bias + BN folded): relu(pooled @ Wp + t)
    y = (jnp.dot(pooled_l, wpt_ref[...], preferred_element_type=f32)
         + jnp.dot(pooled_r, wpb_ref[...], preferred_element_type=f32)
         + tpool_ref[...])
    o_ref[...] = jnp.maximum(y, 0.0).astype(o_ref.dtype)


def lse_attentive_pool(center, neighbors, dist, feats,
                       lse_params, score_w, pool_params, *, block_m=256):
    """Fused LocalSpatialEncoding + AttentivePooling + post-pool SharedMLP.

    center (M, 3) f32, neighbors (M, K, 3) bf16, dist (M, K, 1) bf16,
    feats (M, dh) f32.  Returns (M, c_out) f32.
    """
    M, K, _ = neighbors.shape
    dh = feats.shape[-1]
    w_lse, t_lse = lse_params            # (10, dh), (dh,)      BN-folded
    w_pool, t_pool = pool_params         # (2*dh, c_out), (c_out,)  BN-folded
    c_out = w_pool.shape[1]
    assert score_w.shape == (2 * dh, 2 * dh)

    # Fold the [center | neighbor | center-neighbor | dist] concat into the
    # LSE weight rows (no (bm, K, 10) tensor is ever materialized).
    w_cen = w_lse[0:3] + w_lse[6:9]
    w_nbr = w_lse[3:6] - w_lse[6:9]
    w_dst = w_lse[9:10]

    # Split score / pooling weights along the [enc | feats] channel halves.
    ws_ee, ws_ef = score_w[:dh, :dh], score_w[:dh, dh:]
    ws_fe, ws_ff = score_w[dh:, :dh], score_w[dh:, dh:]
    wp_t, wp_b = w_pool[:dh, :], w_pool[dh:, :]

    bm = min(block_m, _round_up(M, 8))
    m_pad = _round_up(M, bm)

    out = pl.pallas_call(
        _lse_pool_kernel,
        out_shape=jax.ShapeDtypeStruct((m_pad, c_out), jnp.float32),
        grid_spec=pltpu.PrefetchScalarGridSpec(
            num_scalar_prefetch=0,
            grid=(m_pad // bm,),
            in_specs=[
                pl.BlockSpec((bm, 3), lambda i: (i, 0)),
                pl.BlockSpec((bm, K, 3), lambda i: (i, 0, 0)),
                pl.BlockSpec((bm, K, 1), lambda i: (i, 0, 0)),
                pl.BlockSpec((bm, dh), lambda i: (i, 0)),
                pl.BlockSpec((3, dh), lambda i: (0, 0)),
                pl.BlockSpec((3, dh), lambda i: (0, 0)),
                pl.BlockSpec((1, dh), lambda i: (0, 0)),
                pl.BlockSpec((1, dh), lambda i: (0, 0)),
                pl.BlockSpec((dh, dh), lambda i: (0, 0)),
                pl.BlockSpec((dh, dh), lambda i: (0, 0)),
                pl.BlockSpec((dh, dh), lambda i: (0, 0)),
                pl.BlockSpec((dh, dh), lambda i: (0, 0)),
                pl.BlockSpec((dh, c_out), lambda i: (0, 0)),
                pl.BlockSpec((dh, c_out), lambda i: (0, 0)),
                pl.BlockSpec((1, c_out), lambda i: (0, 0)),
            ],
            out_specs=pl.BlockSpec((bm, c_out), lambda i: (i, 0)),
        ),
        compiler_params=pltpu.CompilerParams(
            dimension_semantics=("parallel",),
            vmem_limit_bytes=_VMEM_LIMIT),
    )(_pad_rows(center, m_pad), _pad_rows(neighbors, m_pad),
      _pad_rows(dist, m_pad), _pad_rows(feats, m_pad),
      w_cen, w_nbr, w_dst, t_lse.reshape(1, dh),
      ws_ee, ws_ef, ws_fe, ws_ff,
      wp_t, wp_b, t_pool.reshape(1, c_out))
    return out[:M]


# ----------------------------------------------------------------------------
# Glue (plain JAX): kNN, neighbor gather, parameter setup
# ----------------------------------------------------------------------------

def knn_jax(coords, k):
    """coords (B, N, 3) -> idx (B, N, K) int32, dist (B, N, K) f32 (Euclidean)."""
    # TODO(synk): reference uses an external CPU knn(); dense O(N^2) top_k here.
    d2 = jnp.sum((coords[:, :, None, :] - coords[:, None, :, :]) ** 2, axis=-1)
    neg_d2, idx = jax.lax.top_k(-d2, k)
    dist = jnp.sqrt(jnp.maximum(-neg_d2, 0.0))
    return idx.astype(jnp.int32), dist


def local_feature_aggregation(coords, features, params, *, num_neighbors):
    """coords (B, N, 3), features (B, N, d_in) -> (B, N, 2*d_out)."""
    B, N, d_in = features.shape
    M = B * N
    K = num_neighbors

    idx, dist = knn_jax(coords, K)                                  # (B, N, K)
    neighbors = jax.vmap(lambda c, i: c[i])(coords, idx)            # (B, N, K, 3)

    center = coords.reshape(M, 3)
    # K-expanded inputs to the fused kernels travel as bf16 (halves HBM
    # traffic); all in-kernel math is f32 (v5e-friendly).
    nbr_bf = neighbors.reshape(M, K, 3).astype(jnp.bfloat16)
    dist_bf = dist.reshape(M, K, 1).astype(jnp.bfloat16)
    feat2d = features.reshape(M, d_in)

    # mlp1: d_in -> d_out//2, LeakyReLU(0.2), no BN
    w1, t1 = params["mlp1"]
    x = pointwise_mlp(feat2d, w1, t1, activation="leaky_relu", slope=0.2)

    # stage 1: lse1 + pool1 (score softmax + SharedMLP) in one fused kernel
    x = lse_attentive_pool(center, nbr_bf, dist_bf, x,
                           params["lse1"], params["pool1_score"],
                           params["pool1_mlp"])
    # stage 2: lse2 + pool2 fused
    x = lse_attentive_pool(center, nbr_bf, dist_bf, x,
                           params["lse2"], params["pool2_score"],
                           params["pool2_mlp"])

    # Residual head: LeakyReLU( mlp2(x) + shortcut(features) ) as ONE stacked
    # matmul over [x | features] with combined shift.
    w2, t2 = params["mlp2"]
    ws, ts = params["shortcut"]
    w_cat = jnp.concatenate([w2, ws], axis=0)
    t_cat = t2 + ts
    out = pointwise_mlp(jnp.concatenate([x, feat2d], axis=-1),
                        w_cat, t_cat, activation="leaky_relu", slope=0.01)
    return out.reshape(B, N, -1)


def make_shared_mlp_params(key, c_in, c_out, bn):
    """1x1-conv weight/bias with eval-mode BN folded in -> (w_folded, shift)."""
    k1, k2, k3, k4, k5, k6 = jax.random.split(key, 6)
    w = jax.random.normal(k1, (c_in, c_out), jnp.float32) / jnp.sqrt(
        jnp.asarray(c_in, jnp.float32))
    b = 0.1 * jax.random.normal(k2, (c_out,), jnp.float32)
    if not bn:
        return w, b
    gamma = 1.0 + 0.1 * jax.random.normal(k3, (c_out,), jnp.float32)
    beta = 0.1 * jax.random.normal(k4, (c_out,), jnp.float32)
    mean = 0.1 * jax.random.normal(k5, (c_out,), jnp.float32)
    var = jnp.abs(jax.random.normal(k6, (c_out,), jnp.float32)) + 0.5
    s = gamma / jnp.sqrt(var + 1e-6)   # BatchNorm2d(eps=1e-6), as in the reference
    return w * s[None, :], b * s + beta - mean * s


def init_params(key, d_in, d_out):
    ks = jax.random.split(key, 9)
    d_half = d_out // 2
    sqrt_d = jnp.sqrt(jnp.asarray(d_out, jnp.float32))
    return {
        "mlp1": make_shared_mlp_params(ks[0], d_in, d_half, bn=False),
        "lse1": make_shared_mlp_params(ks[1], 10, d_half, bn=True),
        "lse2": make_shared_mlp_params(ks[2], 10, d_half, bn=True),
        "pool1_score": jax.random.normal(ks[3], (d_out, d_out), jnp.float32) / sqrt_d,
        "pool1_mlp": make_shared_mlp_params(ks[4], d_out, d_half, bn=True),
        "pool2_score": jax.random.normal(ks[5], (d_out, d_out), jnp.float32) / sqrt_d,
        "pool2_mlp": make_shared_mlp_params(ks[6], d_out, d_out, bn=True),
        "mlp2": make_shared_mlp_params(ks[7], d_out, 2 * d_out, bn=False),
        "shortcut": make_shared_mlp_params(ks[8], d_in, 2 * d_out, bn=True),
    }


if __name__ == "__main__":
    B, N, K = 2, 16, 8
    d_in, d_out = 8, 16

    key = jax.random.PRNGKey(0)
    kc, kf, kp = jax.random.split(key, 3)
    coords = jax.random.normal(kc, (B, N, 3), jnp.float32)
    # channel-last features (B, N, d_in)  <->  PyTorch (B, d_in, N, 1)
    features = jax.random.normal(kf, (B, N, d_in), jnp.float32)
    params = init_params(kp, d_in, d_out)

    fwd = jax.jit(functools.partial(local_feature_aggregation,
                                    num_neighbors=K))
    out = fwd(coords, features, params)
    out = jax.block_until_ready(out)
    assert out.shape == (B, N, 2 * d_out), out.shape
    assert jnp.all(jnp.isfinite(out))
    print("KERNEL_OK")
</pallas_src>

<mosaic_0001>
module attributes {stable_mosaic.version = 11 : i64} {
  func.func @_pointwise_mlp_kernel(%arg0: i32, %arg1: memref<32x8xf32, #tpu.memory_space<vmem>>, %arg2: memref<8x8xf32, #tpu.memory_space<vmem>>, %arg3: memref<1x8xf32, #tpu.memory_space<vmem>>, %arg4: memref<32x8xf32, #tpu.memory_space<vmem>>) attributes {dimension_semantics = [#tpu.dimension_semantics<parallel>], iteration_bounds = array<i64: 1>, scalar_prefetch = 0 : i64, scratch_operands = 0 : i64, tpu.core_type = #tpu.core_type<tc>, window_params = [{transform_indices = @transform_0, window_bounds = array<i64: 32, 8>}, {pipeline_mode = #tpu.pipeline_mode<synchronous>, transform_indices = @transform_1, window_bounds = array<i64: 8, 8>}, {pipeline_mode = #tpu.pipeline_mode<synchronous>, transform_indices = @transform_2, window_bounds = array<i64: 1, 8>}, {transform_indices = @transform_3, window_bounds = array<i64: 32, 8>}]} {
    %c0 = arith.constant 0 : index
    %c0_0 = arith.constant 0 : index
    %0 = vector.load %arg1[%c0, %c0_0] : memref<32x8xf32, #tpu.memory_space<vmem>>, vector<32x8xf32>
    %c0_1 = arith.constant 0 : index
    %c0_2 = arith.constant 0 : index
    %1 = vector.load %arg2[%c0_1, %c0_2] : memref<8x8xf32, #tpu.memory_space<vmem>>, vector<8x8xf32>
    %cst = arith.constant dense<0.000000e+00> : vector<32x8xf32>
    %2 = tpu.matmul %0, %1, %cst {dimension_numbers = #tpu.dot_dimension_numbers<[1], [0], [0], [1], [0, 0, 1, 1], [], []>} : vector<32x8xf32>, vector<8x8xf32>, vector<32x8xf32> -> vector<32x8xf32>
    %c0_3 = arith.constant 0 : index
    %c0_4 = arith.constant 0 : index
    %3 = vector.load %arg3[%c0_3, %c0_4] : memref<1x8xf32, #tpu.memory_space<vmem>>, vector<1x8xf32>
    %4 = vector.broadcast %3 : vector<1x8xf32> to vector<32x8xf32>
    %5 = arith.addf %2, %4 : vector<32x8xf32>
    %cst_5 = arith.constant 0.000000e+00 : f32
    %6 = vector.broadcast %cst_5 : f32 to vector<32x8xf32>
    %7 = arith.cmpf oge, %5, %6 : vector<32x8xf32>
    %cst_6 = arith.constant 2.000000e-01 : f32
    %8 = vector.broadcast %cst_6 : f32 to vector<32x8xf32>
    %9 = arith.mulf %8, %5 : vector<32x8xf32>
    %10 = arith.select %7, %5, %9 : vector<32x8xi1>, vector<32x8xf32>
    %c0_7 = arith.constant 0 : index
    %c0_8 = arith.constant 0 : index
    %11 = vector.load %arg4[%c0_7, %c0_8] : memref<32x8xf32, #tpu.memory_space<vmem>>, vector<32x8xf32>
    tpu.vector_store %arg4[%c0_7, %c0_8], %10 {strides = array<i32>} : memref<32x8xf32, #tpu.memory_space<vmem>>, vector<32x8xf32>,
    return
  }
  func.func @transform_0(%arg0: i32) -> (i32, i32) {
    %c0_i32 = arith.constant 0 : i32
    %c0_i32_0 = arith.constant 0 : i32
    return %arg0, %c0_i32 : i32, i32
  }
  func.func @transform_1(%arg0: i32) -> (i32, i32) {
    %c0_i32 = arith.constant 0 : i32
    %c0_i32_0 = arith.constant 0 : i32
    %c0_i32_1 = arith.constant 0 : i32
    return %c0_i32, %c0_i32_0 : i32, i32
  }
  func.func @transform_2(%arg0: i32) -> (i32, i32) {
    %c0_i32 = arith.constant 0 : i32
    %c0_i32_0 = arith.constant 0 : i32
    %c0_i32_1 = arith.constant 0 : i32
    return %c0_i32, %c0_i32_0 : i32, i32
  }
  func.func @transform_3(%arg0: i32) -> (i32, i32) {
    %c0_i32 = arith.constant 0 : i32
    %c0_i32_0 = arith.constant 0 : i32
    return %arg0, %c0_i32 : i32, i32
  }
}

module attributes {stable_mosaic.version = 11 : i64} {
  func.func @_lse_pool_kernel(%arg0: i32, %arg1: memref<32x3xf32, #tpu.memory_space<vmem>>, %arg2: memref<32x8x3xbf16, #tpu.memory_space<vmem>>, %arg3: memref<32x8x1xbf16, #tpu.memory_space<vmem>>, %arg4: memref<32x8xf32, #tpu.memory_space<vmem>>, %arg5: memref<3x8xf32, #tpu.memory_space<vmem>>, %arg6: memref<3x8xf32, #tpu.memory_space<vmem>>, %arg7: memref<1x8xf32, #tpu.memory_space<vmem>>, %arg8: memref<1x8xf32, #tpu.memory_space<vmem>>, %arg9: memref<8x8xf32, #tpu.memory_space<vmem>>, %arg10: memref<8x8xf32, #tpu.memory_space<vmem>>, %arg11: memref<8x8xf32, #tpu.memory_space<vmem>>, %arg12: memref<8x8xf32, #tpu.memory_space<vmem>>, %arg13: memref<8x16xf32, #tpu.memory_space<vmem>>, %arg14: memref<8x16xf32, #tpu.memory_space<vmem>>, %arg15: memref<1x16xf32, #tpu.memory_space<vmem>>, %arg16: memref<32x16xf32, #tpu.memory_space<vmem>>) attributes {dimension_semantics = [#tpu.dimension_semantics<parallel>], iteration_bounds = array<i64: 1>, scalar_prefetch = 0 : i64, scratch_operands = 0 : i64, tpu.core_type = #tpu.core_type<tc>, window_params = [{transform_indices = @transform_0, window_bounds = array<i64: 32, 3>}, {transform_indices = @transform_1, window_bounds = array<i64: 32, 8, 3>}, {transform_indices = @transform_2, window_bounds = array<i64: 32, 8, 1>}, {transform_indices = @transform_3, window_bounds = array<i64: 32, 8>}, {pipeline_mode = #tpu.pipeline_mode<synchronous>, transform_indices = @transform_4, window_bounds = array<i64: 3, 8>}, {pipeline_mode = #tpu.pipeline_mode<synchronous>, transform_indices = @transform_5, window_bounds = array<i64: 3, 8>}, {pipeline_mode = #tpu.pipeline_mode<synchronous>, transform_indices = @transform_6, window_bounds = array<i64: 1, 8>}, {pipeline_mode = #tpu.pipeline_mode<synchronous>, transform_indices = @transform_7, window_bounds = array<i64: 1, 8>}, {pipeline_mode = #tpu.pipeline_mode<synchronous>, transform_indices = @transform_8, window_bounds = array<i64: 8, 8>}, {pipeline_mode = #tpu.pipeline_mode<synchronous>, transform_indices = @transform_9, window_bounds = array<i64: 8, 8>}, {pipeline_mode = #tpu.pipeline_mode<synchronous>, transform_indices = @transform_10, window_bounds = array<i64: 8, 8>}, {pipeline_mode = #tpu.pipeline_mode<synchronous>, transform_indices = @transform_11, window_bounds = array<i64: 8, 8>}, {pipeline_mode = #tpu.pipeline_mode<synchronous>, transform_indices = @transform_12, window_bounds = array<i64: 8, 16>}, {pipeline_mode = #tpu.pipeline_mode<synchronous>, transform_indices = @transform_13, window_bounds = array<i64: 8, 16>}, {pipeline_mode = #tpu.pipeline_mode<synchronous>, transform_indices = @transform_14, window_bounds = array<i64: 1, 16>}, {transform_indices = @transform_15, window_bounds = array<i64: 32, 16>}]} {
    %c0 = arith.constant 0 : index
    %c0_0 = arith.constant 0 : index
    %0 = vector.load %arg1[%c0, %c0_0] : memref<32x3xf32, #tpu.memory_space<vmem>>, vector<32x3xf32>
    %c0_1 = arith.constant 0 : index
    %c0_2 = arith.constant 0 : index
    %c0_3 = arith.constant 0 : index
    %1 = vector.load %arg2[%c0_1, %c0_2, %c0_3] : memref<32x8x3xbf16, #tpu.memory_space<vmem>>, vector<32x8x3xbf16>
    %2 = arith.extf %1 : vector<32x8x3xbf16> to vector<32x8x3xf32>
    %c0_4 = arith.constant 0 : index
    %c0_5 = arith.constant 0 : index
    %c0_6 = arith.constant 0 : index
    %3 = vector.load %arg3[%c0_4, %c0_5, %c0_6] : memref<32x8x1xbf16, #tpu.memory_space<vmem>>, vector<32x8x1xbf16>
    %4 = arith.extf %3 : vector<32x8x1xbf16> to vector<32x8x1xf32>
    %c0_7 = arith.constant 0 : index
    %c0_8 = arith.constant 0 : index
    %5 = vector.load %arg4[%c0_7, %c0_8] : memref<32x8xf32, #tpu.memory_space<vmem>>, vector<32x8xf32>
    %c0_9 = arith.constant 0 : index
    %c0_10 = arith.constant 0 : index
    %6 = vector.load %arg5[%c0_9, %c0_10] : memref<3x8xf32, #tpu.memory_space<vmem>>, vector<3x8xf32>
    %cst = arith.constant dense<0.000000e+00> : vector<32x8xf32>
    %7 = tpu.matmul %0, %6, %cst {dimension_numbers = #tpu.dot_dimension_numbers<[1], [0], [0], [1], [0, 0, 1, 1], [], []>} : vector<32x3xf32>, vector<3x8xf32>, vector<32x8xf32> -> vector<32x8xf32>
    %8 = vector.shape_cast %2 : vector<32x8x3xf32> to vector<256x3xf32>
    %c0_11 = arith.constant 0 : index
    %c0_12 = arith.constant 0 : index
    %9 = vector.load %arg6[%c0_11, %c0_12] : memref<3x8xf32, #tpu.memory_space<vmem>>, vector<3x8xf32>
    %cst_13 = arith.constant dense<0.000000e+00> : vector<256x8xf32>
    %10 = tpu.matmul %8, %9, %cst_13 {dimension_numbers = #tpu.dot_dimension_numbers<[1], [0], [0], [1], [0, 0, 1, 1], [], []>} : vector<256x3xf32>, vector<3x8xf32>, vector<256x8xf32> -> vector<256x8xf32>
    %11 = vector.shape_cast %10 : vector<256x8xf32> to vector<32x8x8xf32>
    %12 = vector.shape_cast %7 : vector<32x8xf32> to vector<32x1x8xf32>
    %13 = vector.broadcast %12 : vector<32x1x8xf32> to vector<32x8x8xf32>
    %14 = arith.addf %11, %13 : vector<32x8x8xf32>
    %c0_14 = arith.constant 0 : index
    %c0_15 = arith.constant 0 : index
    %15 = vector.load %arg7[%c0_14, %c0_15] : memref<1x8xf32, #tpu.memory_space<vmem>>, vector<1x8xf32>
    %16 = vector.shape_cast %15 : vector<1x8xf32> to vector<1x1x8xf32>
    %17 = vector.broadcast %4 : vector<32x8x1xf32> to vector<32x8x8xf32>
    %18 = vector.broadcast %16 : vector<1x1x8xf32> to vector<32x8x8xf32>
    %19 = arith.mulf %17, %18 : vector<32x8x8xf32>
    %20 = arith.addf %14, %19 : vector<32x8x8xf32>
    %c0_16 = arith.constant 0 : index
    %c0_17 = arith.constant 0 : index
    %21 = vector.load %arg8[%c0_16, %c0_17] : memref<1x8xf32, #tpu.memory_space<vmem>>, vector<1x8xf32>
    %22 = vector.shape_cast %21 : vector<1x8xf32> to vector<1x1x8xf32>
    %23 = vector.broadcast %22 : vector<1x1x8xf32> to vector<32x8x8xf32>
    %24 = arith.addf %20, %23 : vector<32x8x8xf32>
    %cst_18 = arith.constant 0.000000e+00 : f32
    %25 = vector.broadcast %cst_18 : f32 to vector<32x8x8xf32>
    %26 = arith.maximumf %24, %25 : vector<32x8x8xf32>
    %27 = vector.shape_cast %26 : vector<32x8x8xf32> to vector<256x8xf32>
    %c0_19 = arith.constant 0 : index
    %c0_20 = arith.constant 0 : index
    %28 = vector.load %arg9[%c0_19, %c0_20] : memref<8x8xf32, #tpu.memory_space<vmem>>, vector<8x8xf32>
    %cst_21 = arith.constant dense<0.000000e+00> : vector<256x8xf32>
    %29 = tpu.matmul %27, %28, %cst_21 {dimension_numbers = #tpu.dot_dimension_numbers<[1], [0], [0], [1], [0, 0, 1, 1], [], []>} : vector<256x8xf32>, vector<8x8xf32>, vector<256x8xf32> -> vector<256x8xf32>
    %30 = vector.shape_cast %29 : vector<256x8xf32> to vector<32x8x8xf32>
    %c0_22 = arith.constant 0 : index
    %c0_23 = arith.constant 0 : index
    %31 = vector.load %arg11[%c0_22, %c0_23] : memref<8x8xf32, #tpu.memory_space<vmem>>, vector<8x8xf32>
    %cst_24 = arith.constant dense<0.000000e+00> : vector<32x8xf32>
    %32 = tpu.matmul %5, %31, %cst_24 {dimension_numbers = #tpu.dot_dimension_numbers<[1], [0], [0], [1], [0, 0, 1, 1], [], []>} : vector<32x8xf32>, vector<8x8xf32>, vector<32x8xf32> -> vector<32x8xf32>
    %33 = vector.shape_cast %32 : vector<32x8xf32> to vector<32x1x8xf32>
    %34 = vector.broadcast %33 : vector<32x1x8xf32> to vector<32x8x8xf32>
    %35 = arith.addf %30, %34 : vector<32x8x8xf32>
    %c0_25 = arith.constant 0 : index
    %c0_26 = arith.constant 0 : index
    %36 = vector.load %arg10[%c0_25, %c0_26] : memref<8x8xf32, #tpu.memory_space<vmem>>, vector<8x8xf32>
    %cst_27 = arith.constant dense<0.000000e+00> : vector<256x8xf32>
    %37 = tpu.matmul %27, %36, %cst_27 {dimension_numbers = #tpu.dot_dimension_numbers<[1], [0], [0], [1], [0, 0, 1, 1], [], []>} : vector<256x8xf32>, vector<8x8xf32>, vector<256x8xf32> -> vector<256x8xf32>
    %38 = vector.shape_cast %37 : vector<256x8xf32> to vector<32x8x8xf32>
    %c0_28 = arith.constant 0 : index
    %c0_29 = arith.constant 0 : index
    %39 = vector.load %arg12[%c0_28, %c0_29] : memref<8x8xf32, #tpu.memory_space<vmem>>, vector<8x8xf32>
    %cst_30 = arith.constant dense<0.000000e+00> : vector<32x8xf32>
    %40 = tpu.matmul %5, %39, %cst_30 {dimension_numbers = #tpu.dot_dimension_numbers<[1], [0], [0], [1], [0, 0, 1, 1], [], []>} : vector<32x8xf32>, vector<8x8xf32>, vector<32x8xf32> -> vector<32x8xf32>
    %41 = vector.shape_cast %40 : vector<32x8xf32> to vector<32x1x8xf32>
    %42 = vector.broadcast %41 : vector<32x1x8xf32> to vector<32x8x8xf32>
    %43 = arith.addf %38, %42 : vector<32x8x8xf32>
    %cst_31 = arith.constant dense<0xFF800000> : vector<32x8xf32>
    %44 = vector.multi_reduction <maximumf>, %35, %cst_31 [1] : vector<32x8x8xf32> to vector<32x8xf32>
    %45 = vector.shape_cast %44 : vector<32x8xf32> to vector<32x1x8xf32>
    %46 = vector.broadcast %45 : vector<32x1x8xf32> to vector<32x8x8xf32>
    %47 = arith.subf %35, %46 : vector<32x8x8xf32>
    %48 = math.exp %47 : vector<32x8x8xf32>
    %cst_32 = arith.constant dense<0.000000e+00> : vector<32x8xf32>
    %49 = vector.multi_reduction <add>, %48, %cst_32 [1] : vector<32x8x8xf32> to vector<32x8xf32>
    %50 = vector.shape_cast %49 : vector<32x8xf32> to vector<32x1x8xf32>
    %51 = tpu.reciprocal %50 {approx = true} : vector<32x1x8xf32> -> vector<32x1x8xf32>
    %52 = vector.broadcast %51 : vector<32x1x8xf32> to vector<32x8x8xf32>
    %53 = arith.mulf %48, %52 : vector<32x8x8xf32>
    %cst_33 = arith.constant dense<0xFF800000> : vector<32x8xf32>
    %54 = vector.multi_reduction <maximumf>, %43, %cst_33 [1] : vector<32x8x8xf32> to vector<32x8xf32>
    %55 = vector.shape_cast %54 : vector<32x8xf32> to vector<32x1x8xf32>
    %56 = vector.broadcast %55 : vector<32x1x8xf32> to vector<32x8x8xf32>
    %57 = arith.subf %43, %56 : vector<32x8x8xf32>
    %58 = math.exp %57 : vector<32x8x8xf32>
    %cst_34 = arith.constant dense<0.000000e+00> : vector<32x8xf32>
    %59 = vector.multi_reduction <add>, %58, %cst_34 [1] : vector<32x8x8xf32> to vector<32x8xf32>
    %60 = vector.shape_cast %59 : vector<32x8xf32> to vector<32x1x8xf32>
    %61 = tpu.reciprocal %60 {approx = true} : vector<32x1x8xf32> -> vector<32x1x8xf32>
    %62 = vector.broadcast %61 : vector<32x1x8xf32> to vector<32x8x8xf32>
    %63 = arith.mulf %58, %62 : vector<32x8x8xf32>
    %64 = arith.mulf %53, %26 : vector<32x8x8xf32>
    %cst_35 = arith.constant dense<0.000000e+00> : vector<32x8xf32>
    %65 = vector.multi_reduction <add>, %64, %cst_35 [1] : vector<32x8x8xf32> to vector<32x8xf32>
    %cst_36 = arith.constant dense<0.000000e+00> : vector<32x8xf32>
    %66 = vector.multi_reduction <add>, %63, %cst_36 [1] : vector<32x8x8xf32> to vector<32x8xf32>
    %67 = arith.mulf %5, %66 : vector<32x8xf32>
    %c0_37 = arith.constant 0 : index
    %c0_38 = arith.constant 0 : index
    %68 = vector.load %arg13[%c0_37, %c0_38] : memref<8x16xf32, #tpu.memory_space<vmem>>, vector<8x16xf32>
    %cst_39 = arith.constant dense<0.000000e+00> : vector<32x16xf32>
    %69 = tpu.matmul %65, %68, %cst_39 {dimension_numbers = #tpu.dot_dimension_numbers<[1], [0], [0], [1], [0, 0, 1, 1], [], []>} : vector<32x8xf32>, vector<8x16xf32>, vector<32x16xf32> -> vector<32x16xf32>
    %c0_40 = arith.constant 0 : index
    %c0_41 = arith.constant 0 : index
    %70 = vector.load %arg14[%c0_40, %c0_41] : memref<8x16xf32, #tpu.memory_space<vmem>>, vector<8x16xf32>
    %cst_42 = arith.constant dense<0.000000e+00> : vector<32x16xf32>
    %71 = tpu.matmul %67, %70, %cst_42 {dimension_numbers = #tpu.dot_dimension_numbers<[1], [0], [0], [1], [0, 0, 1, 1], [], []>} : vector<32x8xf32>, vector<8x16xf32>, vector<32x16xf32> -> vector<32x16xf32>
    %72 = arith.addf %69, %71 : vector<32x16xf32>
    %c0_43 = arith.constant 0 : index
    %c0_44 = arith.constant 0 : index
    %73 = vector.load %arg15[%c0_43, %c0_44] : memref<1x16xf32, #tpu.memory_space<vmem>>, vector<1x16xf32>
    %74 = vector.broadcast %73 : vector<1x16xf32> to vector<32x16xf32>
    %75 = arith.addf %72, %74 : vector<32x16xf32>
    %cst_45 = arith.constant 0.000000e+00 : f32
    %76 = vector.broadcast %cst_45 : f32 to vector<32x16xf32>
    %77 = arith.maximumf %75, %76 : vector<32x16xf32>
    %c0_46 = arith.constant 0 : index
    %c0_47 = arith.constant 0 : index
    %78 = vector.load %arg16[%c0_46, %c0_47] : memref<32x16xf32, #tpu.memory_space<vmem>>, vector<32x16xf32>
    tpu.vector_store %arg16[%c0_46, %c0_47], %77 {strides = array<i32>} : memref<32x16xf32, #tpu.memory_space<vmem>>, vector<32x16xf32>,
    return
  }
  func.func @transform_0(%arg0: i32) -> (i32, i32) {
    %c0_i32 = arith.constant 0 : i32
    %c0_i32_0 = arith.constant 0 : i32
    return %arg0, %c0_i32 : i32, i32
  }
  func.func @transform_1(%arg0: i32) -> (i32, i32, i32) {
    %c0_i32 = arith.constant 0 : i32
    %c0_i32_0 = arith.constant 0 : i32
    %c0_i32_1 = arith.constant 0 : i32
    return %arg0, %c0_i32, %c0_i32_0 : i32, i32, i32
  }
  func.func @transform_2(%arg0: i32) -> (i32, i32, i32) {
    %c0_i32 = arith.constant 0 : i32
    %c0_i32_0 = arith.constant 0 : i32
    %c0_i32_1 = arith.constant 0 : i32
    return %arg0, %c0_i32, %c0_i32_0 : i32, i32, i32
  }
  func.func @transform_3(%arg0: i32) -> (i32, i32) {
    %c0_i32 = arith.constant 0 : i32
    %c0_i32_0 = arith.constant 0 : i32
    return %arg0, %c0_i32 : i32, i32
  }
  func.func @transform_4(%arg0: i32) -> (i32, i32) {
    %c0_i32 = arith.constant 0 : i32
    %c0_i32_0 = arith.constant 0 : i32
    %c0_i32_1 = arith.constant 0 : i32
    return %c0_i32, %c0_i32_0 : i32, i32
  }
  func.func @transform_5(%arg0: i32) -> (i32, i32) {
    %c0_i32 = arith.constant 0 : i32
    %c0_i32_0 = arith.constant 0 : i32
    %c0_i32_1 = arith.constant 0 : i32
    return %c0_i32, %c0_i32_0 : i32, i32
  }
  func.func @transform_6(%arg0: i32) -> (i32, i32) {
    %c0_i32 = arith.constant 0 : i32
    %c0_i32_0 = arith.constant 0 : i32
    %c0_i32_1 = arith.constant 0 : i32
    return %c0_i32, %c0_i32_0 : i32, i32
  }
  func.func @transform_7(%arg0: i32) -> (i32, i32) {
    %c0_i32 = arith.constant 0 : i32
    %c0_i32_0 = arith.constant 0 : i32
    %c0_i32_1 = arith.constant 0 : i32
    return %c0_i32, %c0_i32_0 : i32, i32
  }
  func.func @transform_8(%arg0: i32) -> (i32, i32) {
    %c0_i32 = arith.constant 0 : i32
    %c0_i32_0 = arith.constant 0 : i32
    %c0_i32_1 = arith.constant 0 : i32
    return %c0_i32, %c0_i32_0 : i32, i32
  }
  func.func @transform_9(%arg0: i32) -> (i32, i32) {
    %c0_i32 = arith.constant 0 : i32
    %c0_i32_0 = arith.constant 0 : i32
    %c0_i32_1 = arith.constant 0 : i32
    return %c0_i32, %c0_i32_0 : i32, i32
  }
  func.func @transform_10(%arg0: i32) -> (i32, i32) {
    %c0_i32 = arith.constant 0 : i32
    %c0_i32_0 = arith.constant 0 : i32
    %c0_i32_1 = arith.constant 0 : i32
    return %c0_i32, %c0_i32_0 : i32, i32
  }
  func.func @transform_11(%arg0: i32) -> (i32, i32) {
    %c0_i32 = arith.constant 0 : i32
    %c0_i32_0 = arith.constant 0 : i32
    %c0_i32_1 = arith.constant 0 : i32
    return %c0_i32, %c0_i32_0 : i32, i32
  }
  func.func @transform_12(%arg0: i32) -> (i32, i32) {
    %c0_i32 = arith.constant 0 : i32
    %c0_i32_0 = arith.constant 0 : i32
    %c0_i32_1 = arith.constant 0 : i32
    return %c0_i32, %c0_i32_0 : i32, i32
  }
  func.func @transform_13(%arg0: i32) -> (i32, i32) {
    %c0_i32 = arith.constant 0 : i32
    %c0_i32_0 = arith.constant 0 : i32
    %c0_i32_1 = arith.constant 0 : i32
    return %c0_i32, %c0_i32_0 : i32, i32
  }
  func.func @transform_14(%arg0: i32) -> (i32, i32) {
    %c0_i32 = arith.constant 0 : i32
    %c0_i32_0 = arith.constant 0 : i32
    %c0_i32_1 = arith.constant 0 : i32
    return %c0_i32, %c0_i32_0 : i32, i32
  }
  func.func @transform_15(%arg0: i32) -> (i32, i32) {
    %c0_i32 = arith.constant 0 : i32
    %c0_i32_0 = arith.constant 0 : i32
    return %arg0, %c0_i32 : i32, i32
  }
}

module attributes {stable_mosaic.version = 11 : i64} {
  func.func @_lse_pool_kernel(%arg0: i32, %arg1: memref<32x3xf32, #tpu.memory_space<vmem>>, %arg2: memref<32x8x3xbf16, #tpu.memory_space<vmem>>, %arg3: memref<32x8x1xbf16, #tpu.memory_space<vmem>>, %arg4: memref<32x8xf32, #tpu.memory_space<vmem>>, %arg5: memref<3x8xf32, #tpu.memory_space<vmem>>, %arg6: memref<3x8xf32, #tpu.memory_space<vmem>>, %arg7: memref<1x8xf32, #tpu.memory_space<vmem>>, %arg8: memref<1x8xf32, #tpu.memory_space<vmem>>, %arg9: memref<8x8xf32, #tpu.memory_space<vmem>>, %arg10: memref<8x8xf32, #tpu.memory_space<vmem>>, %arg11: memref<8x8xf32, #tpu.memory_space<vmem>>, %arg12: memref<8x8xf32, #tpu.memory_space<vmem>>, %arg13: memref<8x8xf32, #tpu.memory_space<vmem>>, %arg14: memref<8x8xf32, #tpu.memory_space<vmem>>, %arg15: memref<1x8xf32, #tpu.memory_space<vmem>>, %arg16: memref<32x8xf32, #tpu.memory_space<vmem>>) attributes {dimension_semantics = [#tpu.dimension_semantics<parallel>], iteration_bounds = array<i64: 1>, scalar_prefetch = 0 : i64, scratch_operands = 0 : i64, tpu.core_type = #tpu.core_type<tc>, window_params = [{transform_indices = @transform_0, window_bounds = array<i64: 32, 3>}, {transform_indices = @transform_1, window_bounds = array<i64: 32, 8, 3>}, {transform_indices = @transform_2, window_bounds = array<i64: 32, 8, 1>}, {transform_indices = @transform_3, window_bounds = array<i64: 32, 8>}, {pipeline_mode = #tpu.pipeline_mode<synchronous>, transform_indices = @transform_4, window_bounds = array<i64: 3, 8>}, {pipeline_mode = #tpu.pipeline_mode<synchronous>, transform_indices = @transform_5, window_bounds = array<i64: 3, 8>}, {pipeline_mode = #tpu.pipeline_mode<synchronous>, transform_indices = @transform_6, window_bounds = array<i64: 1, 8>}, {pipeline_mode = #tpu.pipeline_mode<synchronous>, transform_indices = @transform_7, window_bounds = array<i64: 1, 8>}, {pipeline_mode = #tpu.pipeline_mode<synchronous>, transform_indices = @transform_8, window_bounds = array<i64: 8, 8>}, {pipeline_mode = #tpu.pipeline_mode<synchronous>, transform_indices = @transform_9, window_bounds = array<i64: 8, 8>}, {pipeline_mode = #tpu.pipeline_mode<synchronous>, transform_indices = @transform_10, window_bounds = array<i64: 8, 8>}, {pipeline_mode = #tpu.pipeline_mode<synchronous>, transform_indices = @transform_11, window_bounds = array<i64: 8, 8>}, {pipeline_mode = #tpu.pipeline_mode<synchronous>, transform_indices = @transform_12, window_bounds = array<i64: 8, 8>}, {pipeline_mode = #tpu.pipeline_mode<synchronous>, transform_indices = @transform_13, window_bounds = array<i64: 8, 8>}, {pipeline_mode = #tpu.pipeline_mode<synchronous>, transform_indices = @transform_14, window_bounds = array<i64: 1, 8>}, {transform_indices = @transform_15, window_bounds = array<i64: 32, 8>}]} {
    %c0 = arith.constant 0 : index
    %c0_0 = arith.constant 0 : index
    %0 = vector.load %arg1[%c0, %c0_0] : memref<32x3xf32, #tpu.memory_space<vmem>>, vector<32x3xf32>
    %c0_1 = arith.constant 0 : index
    %c0_2 = arith.constant 0 : index
    %c0_3 = arith.constant 0 : index
    %1 = vector.load %arg2[%c0_1, %c0_2, %c0_3] : memref<32x8x3xbf16, #tpu.memory_space<vmem>>, vector<32x8x3xbf16>
    %2 = arith.extf %1 : vector<32x8x3xbf16> to vector<32x8x3xf32>
    %c0_4 = arith.constant 0 : index
    %c0_5 = arith.constant 0 : index
    %c0_6 = arith.constant 0 : index
    %3 = vector.load %arg3[%c0_4, %c0_5, %c0_6] : memref<32x8x1xbf16, #tpu.memory_space<vmem>>, vector<32x8x1xbf16>
    %4 = arith.extf %3 : vector<32x8x1xbf16> to vector<32x8x1xf32>
    %c0_7 = arith.constant 0 : index
    %c0_8 = arith.constant 0 : index
    %5 = vector.load %arg4[%c0_7, %c0_8] : memref<32x8xf32, #tpu.memory_space<vmem>>, vector<32x8xf32>
    %c0_9 = arith.constant 0 : index
    %c0_10 = arith.constant 0 : index
    %6 = vector.load %arg5[%c0_9, %c0_10] : memref<3x8xf32, #tpu.memory_space<vmem>>, vector<3x8xf32>
    %cst = arith.constant dense<0.000000e+00> : vector<32x8xf32>
    %7 = tpu.matmul %0, %6, %cst {dimension_numbers = #tpu.dot_dimension_numbers<[1], [0], [0], [1], [0, 0, 1, 1], [], []>} : vector<32x3xf32>, vector<3x8xf32>, vector<32x8xf32> -> vector<32x8xf32>
    %8 = vector.shape_cast %2 : vector<32x8x3xf32> to vector<256x3xf32>
    %c0_11 = arith.constant 0 : index
    %c0_12 = arith.constant 0 : index
    %9 = vector.load %arg6[%c0_11, %c0_12] : memref<3x8xf32, #tpu.memory_space<vmem>>, vector<3x8xf32>
    %cst_13 = arith.constant dense<0.000000e+00> : vector<256x8xf32>
    %10 = tpu.matmul %8, %9, %cst_13 {dimension_numbers = #tpu.dot_dimension_numbers<[1], [0], [0], [1], [0, 0, 1, 1], [], []>} : vector<256x3xf32>, vector<3x8xf32>, vector<256x8xf32> -> vector<256x8xf32>
    %11 = vector.shape_cast %10 : vector<256x8xf32> to vector<32x8x8xf32>
    %12 = vector.shape_cast %7 : vector<32x8xf32> to vector<32x1x8xf32>
    %13 = vector.broadcast %12 : vector<32x1x8xf32> to vector<32x8x8xf32>
    %14 = arith.addf %11, %13 : vector<32x8x8xf32>
    %c0_14 = arith.constant 0 : index
    %c0_15 = arith.constant 0 : index
    %15 = vector.load %arg7[%c0_14, %c0_15] : memref<1x8xf32, #tpu.memory_space<vmem>>, vector<1x8xf32>
    %16 = vector.shape_cast %15 : vector<1x8xf32> to vector<1x1x8xf32>
    %17 = vector.broadcast %4 : vector<32x8x1xf32> to vector<32x8x8xf32>
    %18 = vector.broadcast %16 : vector<1x1x8xf32> to vector<32x8x8xf32>
    %19 = arith.mulf %17, %18 : vector<32x8x8xf32>
    %20 = arith.addf %14, %19 : vector<32x8x8xf32>
    %c0_16 = arith.constant 0 : index
    %c0_17 = arith.constant 0 : index
    %21 = vector.load %arg8[%c0_16, %c0_17] : memref<1x8xf32, #tpu.memory_space<vmem>>, vector<1x8xf32>
    %22 = vector.shape_cast %21 : vector<1x8xf32> to vector<1x1x8xf32>
    %23 = vector.broadcast %22 : vector<1x1x8xf32> to vector<32x8x8xf32>
    %24 = arith.addf %20, %23 : vector<32x8x8xf32>
    %cst_18 = arith.constant 0.000000e+00 : f32
    %25 = vector.broadcast %cst_18 : f32 to vector<32x8x8xf32>
    %26 = arith.maximumf %24, %25 : vector<32x8x8xf32>
    %27 = vector.shape_cast %26 : vector<32x8x8xf32> to vector<256x8xf32>
    %c0_19 = arith.constant 0 : index
    %c0_20 = arith.constant 0 : index
    %28 = vector.load %arg9[%c0_19, %c0_20] : memref<8x8xf32, #tpu.memory_space<vmem>>, vector<8x8xf32>
    %cst_21 = arith.constant dense<0.000000e+00> : vector<256x8xf32>
    %29 = tpu.matmul %27, %28, %cst_21 {dimension_numbers = #tpu.dot_dimension_numbers<[1], [0], [0], [1], [0, 0, 1, 1], [], []>} : vector<256x8xf32>, vector<8x8xf32>, vector<256x8xf32> -> vector<256x8xf32>
    %30 = vector.shape_cast %29 : vector<256x8xf32> to vector<32x8x8xf32>
    %c0_22 = arith.constant 0 : index
    %c0_23 = arith.constant 0 : index
    %31 = vector.load %arg11[%c0_22, %c0_23] : memref<8x8xf32, #tpu.memory_space<vmem>>, vector<8x8xf32>
    %cst_24 = arith.constant dense<0.000000e+00> : vector<32x8xf32>
    %32 = tpu.matmul %5, %31, %cst_24 {dimension_numbers = #tpu.dot_dimension_numbers<[1], [0], [0], [1], [0, 0, 1, 1], [], []>} : vector<32x8xf32>, vector<8x8xf32>, vector<32x8xf32> -> vector<32x8xf32>
    %33 = vector.shape_cast %32 : vector<32x8xf32> to vector<32x1x8xf32>
    %34 = vector.broadcast %33 : vector<32x1x8xf32> to vector<32x8x8xf32>
    %35 = arith.addf %30, %34 : vector<32x8x8xf32>
    %c0_25 = arith.constant 0 : index
    %c0_26 = arith.constant 0 : index
    %36 = vector.load %arg10[%c0_25, %c0_26] : memref<8x8xf32, #tpu.memory_space<vmem>>, vector<8x8xf32>
    %cst_27 = arith.constant dense<0.000000e+00> : vector<256x8xf32>
    %37 = tpu.matmul %27, %36, %cst_27 {dimension_numbers = #tpu.dot_dimension_numbers<[1], [0], [0], [1], [0, 0, 1, 1], [], []>} : vector<256x8xf32>, vector<8x8xf32>, vector<256x8xf32> -> vector<256x8xf32>
    %38 = vector.shape_cast %37 : vector<256x8xf32> to vector<32x8x8xf32>
    %c0_28 = arith.constant 0 : index
    %c0_29 = arith.constant 0 : index
    %39 = vector.load %arg12[%c0_28, %c0_29] : memref<8x8xf32, #tpu.memory_space<vmem>>, vector<8x8xf32>
    %cst_30 = arith.constant dense<0.000000e+00> : vector<32x8xf32>
    %40 = tpu.matmul %5, %39, %cst_30 {dimension_numbers = #tpu.dot_dimension_numbers<[1], [0], [0], [1], [0, 0, 1, 1], [], []>} : vector<32x8xf32>, vector<8x8xf32>, vector<32x8xf32> -> vector<32x8xf32>
    %41 = vector.shape_cast %40 : vector<32x8xf32> to vector<32x1x8xf32>
    %42 = vector.broadcast %41 : vector<32x1x8xf32> to vector<32x8x8xf32>
    %43 = arith.addf %38, %42 : vector<32x8x8xf32>
    %cst_31 = arith.constant dense<0xFF800000> : vector<32x8xf32>
    %44 = vector.multi_reduction <maximumf>, %35, %cst_31 [1] : vector<32x8x8xf32> to vector<32x8xf32>
    %45 = vector.shape_cast %44 : vector<32x8xf32> to vector<32x1x8xf32>
    %46 = vector.broadcast %45 : vector<32x1x8xf32> to vector<32x8x8xf32>
    %47 = arith.subf %35, %46 : vector<32x8x8xf32>
    %48 = math.exp %47 : vector<32x8x8xf32>
    %cst_32 = arith.constant dense<0.000000e+00> : vector<32x8xf32>
    %49 = vector.multi_reduction <add>, %48, %cst_32 [1] : vector<32x8x8xf32> to vector<32x8xf32>
    %50 = vector.shape_cast %49 : vector<32x8xf32> to vector<32x1x8xf32>
    %51 = tpu.reciprocal %50 {approx = true} : vector<32x1x8xf32> -> vector<32x1x8xf32>
    %52 = vector.broadcast %51 : vector<32x1x8xf32> to vector<32x8x8xf32>
    %53 = arith.mulf %48, %52 : vector<32x8x8xf32>
    %cst_33 = arith.constant dense<0xFF800000> : vector<32x8xf32>
    %54 = vector.multi_reduction <maximumf>, %43, %cst_33 [1] : vector<32x8x8xf32> to vector<32x8xf32>
    %55 = vector.shape_cast %54 : vector<32x8xf32> to vector<32x1x8xf32>
    %56 = vector.broadcast %55 : vector<32x1x8xf32> to vector<32x8x8xf32>
    %57 = arith.subf %43, %56 : vector<32x8x8xf32>
    %58 = math.exp %57 : vector<32x8x8xf32>
    %cst_34 = arith.constant dense<0.000000e+00> : vector<32x8xf32>
    %59 = vector.multi_reduction <add>, %58, %cst_34 [1] : vector<32x8x8xf32> to vector<32x8xf32>
    %60 = vector.shape_cast %59 : vector<32x8xf32> to vector<32x1x8xf32>
    %61 = tpu.reciprocal %60 {approx = true} : vector<32x1x8xf32> -> vector<32x1x8xf32>
    %62 = vector.broadcast %61 : vector<32x1x8xf32> to vector<32x8x8xf32>
    %63 = arith.mulf %58, %62 : vector<32x8x8xf32>
    %64 = arith.mulf %53, %26 : vector<32x8x8xf32>
    %cst_35 = arith.constant dense<0.000000e+00> : vector<32x8xf32>
    %65 = vector.multi_reduction <add>, %64, %cst_35 [1] : vector<32x8x8xf32> to vector<32x8xf32>
    %cst_36 = arith.constant dense<0.000000e+00> : vector<32x8xf32>
    %66 = vector.multi_reduction <add>, %63, %cst_36 [1] : vector<32x8x8xf32> to vector<32x8xf32>
    %67 = arith.mulf %5, %66 : vector<32x8xf32>
    %c0_37 = arith.constant 0 : index
    %c0_38 = arith.constant 0 : index
    %68 = vector.load %arg13[%c0_37, %c0_38] : memref<8x8xf32, #tpu.memory_space<vmem>>, vector<8x8xf32>
    %cst_39 = arith.constant dense<0.000000e+00> : vector<32x8xf32>
    %69 = tpu.matmul %65, %68, %cst_39 {dimension_numbers = #tpu.dot_dimension_numbers<[1], [0], [0], [1], [0, 0, 1, 1], [], []>} : vector<32x8xf32>, vector<8x8xf32>, vector<32x8xf32> -> vector<32x8xf32>
    %c0_40 = arith.constant 0 : index
    %c0_41 = arith.constant 0 : index
    %70 = vector.load %arg14[%c0_40, %c0_41] : memref<8x8xf32, #tpu.memory_space<vmem>>, vector<8x8xf32>
    %cst_42 = arith.constant dense<0.000000e+00> : vector<32x8xf32>
    %71 = tpu.matmul %67, %70, %cst_42 {dimension_numbers = #tpu.dot_dimension_numbers<[1], [0], [0], [1], [0, 0, 1, 1], [], []>} : vector<32x8xf32>, vector<8x8xf32>, vector<32x8xf32> -> vector<32x8xf32>
    %72 = arith.addf %69, %71 : vector<32x8xf32>
    %c0_43 = arith.constant 0 : index
    %c0_44 = arith.constant 0 : index
    %73 = vector.load %arg15[%c0_43, %c0_44] : memref<1x8xf32, #tpu.memory_space<vmem>>, vector<1x8xf32>
    %74 = vector.broadcast %73 : vector<1x8xf32> to vector<32x8xf32>
    %75 = arith.addf %72, %74 : vector<32x8xf32>
    %cst_45 = arith.constant 0.000000e+00 : f32
    %76 = vector.broadcast %cst_45 : f32 to vector<32x8xf32>
    %77 = arith.maximumf %75, %76 : vector<32x8xf32>
    %c0_46 = arith.constant 0 : index
    %c0_47 = arith.constant 0 : index
    %78 = vector.load %arg16[%c0_46, %c0_47] : memref<32x8xf32, #tpu.memory_space<vmem>>, vector<32x8xf32>
    tpu.vector_store %arg16[%c0_46, %c0_47], %77 {strides = array<i32>} : memref<32x8xf32, #tpu.memory_space<vmem>>, vector<32x8xf32>,
    return
  }
  func.func @transform_0(%arg0: i32) -> (i32, i32) {
    %c0_i32 = arith.constant 0 : i32
    %c0_i32_0 = arith.constant 0 : i32
    return %arg0, %c0_i32 : i32, i32
  }
  func.func @transform_1(%arg0: i32) -> (i32, i32, i32) {
    %c0_i32 = arith.constant 0 : i32
    %c0_i32_0 = arith.constant 0 : i32
    %c0_i32_1 = arith.constant 0 : i32
    return %arg0, %c0_i32, %c0_i32_0 : i32, i32, i32
  }
  func.func @transform_2(%arg0: i32) -> (i32, i32, i32) {
    %c0_i32 = arith.constant 0 : i32
    %c0_i32_0 = arith.constant 0 : i32
    %c0_i32_1 = arith.constant 0 : i32
    return %arg0, %c0_i32, %c0_i32_0 : i32, i32, i32
  }
  func.func @transform_3(%arg0: i32) -> (i32, i32) {
    %c0_i32 = arith.constant 0 : i32
    %c0_i32_0 = arith.constant 0 : i32
    return %arg0, %c0_i32 : i32, i32
  }
  func.func @transform_4(%arg0: i32) -> (i32, i32) {
    %c0_i32 = arith.constant 0 : i32
    %c0_i32_0 = arith.constant 0 : i32
    %c0_i32_1 = arith.constant 0 : i32
    return %c0_i32, %c0_i32_0 : i32, i32
  }
  func.func @transform_5(%arg0: i32) -> (i32, i32) {
    %c0_i32 = arith.constant 0 : i32
    %c0_i32_0 = arith.constant 0 : i32
    %c0_i32_1 = arith.constant 0 : i32
    return %c0_i32, %c0_i32_0 : i32, i32
  }
  func.func @transform_6(%arg0: i32) -> (i32, i32) {
    %c0_i32 = arith.constant 0 : i32
    %c0_i32_0 = arith.constant 0 : i32
    %c0_i32_1 = arith.constant 0 : i32
    return %c0_i32, %c0_i32_0 : i32, i32
  }
  func.func @transform_7(%arg0: i32) -> (i32, i32) {
    %c0_i32 = arith.constant 0 : i32
    %c0_i32_0 = arith.constant 0 : i32
    %c0_i32_1 = arith.constant 0 : i32
    return %c0_i32, %c0_i32_0 : i32, i32
  }
  func.func @transform_8(%arg0: i32) -> (i32, i32) {
    %c0_i32 = arith.constant 0 : i32
    %c0_i32_0 = arith.constant 0 : i32
    %c0_i32_1 = arith.constant 0 : i32
    return %c0_i32, %c0_i32_0 : i32, i32
  }
  func.func @transform_9(%arg0: i32) -> (i32, i32) {
    %c0_i32 = arith.constant 0 : i32
    %c0_i32_0 = arith.constant 0 : i32
    %c0_i32_1 = arith.constant 0 : i32
    return %c0_i32, %c0_i32_0 : i32, i32
  }
  func.func @transform_10(%arg0: i32) -> (i32, i32) {
    %c0_i32 = arith.constant 0 : i32
    %c0_i32_0 = arith.constant 0 : i32
    %c0_i32_1 = arith.constant 0 : i32
    return %c0_i32, %c0_i32_0 : i32, i32
  }
  func.func @transform_11(%arg0: i32) -> (i32, i32) {
    %c0_i32 = arith.constant 0 : i32
    %c0_i32_0 = arith.constant 0 : i32
    %c0_i32_1 = arith.constant 0 : i32
    return %c0_i32, %c0_i32_0 : i32, i32
  }
  func.func @transform_12(%arg0: i32) -> (i32, i32) {
    %c0_i32 = arith.constant 0 : i32
    %c0_i32_0 = arith.constant 0 : i32
    %c0_i32_1 = arith.constant 0 : i32
    return %c0_i32, %c0_i32_0 : i32, i32
  }
  func.func @transform_13(%arg0: i32) -> (i32, i32) {
    %c0_i32 = arith.constant 0 : i32
    %c0_i32_0 = arith.constant 0 : i32
    %c0_i32_1 = arith.constant 0 : i32
    return %c0_i32, %c0_i32_0 : i32, i32
  }
  func.func @transform_14(%arg0: i32) -> (i32, i32) {
    %c0_i32 = arith.constant 0 : i32
    %c0_i32_0 = arith.constant 0 : i32
    %c0_i32_1 = arith.constant 0 : i32
    return %c0_i32, %c0_i32_0 : i32, i32
  }
  func.func @transform_15(%arg0: i32) -> (i32, i32) {
    %c0_i32 = arith.constant 0 : i32
    %c0_i32_0 = arith.constant 0 : i32
    return %arg0, %c0_i32 : i32, i32
  }
}

module attributes {stable_mosaic.version = 11 : i64} {
  func.func @_pointwise_mlp_kernel(%arg0: i32, %arg1: memref<32x24xf32, #tpu.memory_space<vmem>>, %arg2: memref<24x32xf32, #tpu.memory_space<vmem>>, %arg3: memref<1x32xf32, #tpu.memory_space<vmem>>, %arg4: memref<32x32xf32, #tpu.memory_space<vmem>>) attributes {dimension_semantics = [#tpu.dimension_semantics<parallel>], iteration_bounds = array<i64: 1>, scalar_prefetch = 0 : i64, scratch_operands = 0 : i64, tpu.core_type = #tpu.core_type<tc>, window_params = [{transform_indices = @transform_0, window_bounds = array<i64: 32, 24>}, {pipeline_mode = #tpu.pipeline_mode<synchronous>, transform_indices = @transform_1, window_bounds = array<i64: 24, 32>}, {pipeline_mode = #tpu.pipeline_mode<synchronous>, transform_indices = @transform_2, window_bounds = array<i64: 1, 32>}, {transform_indices = @transform_3, window_bounds = array<i64: 32, 32>}]} {
    %c0 = arith.constant 0 : index
    %c0_0 = arith.constant 0 : index
    %0 = vector.load %arg1[%c0, %c0_0] : memref<32x24xf32, #tpu.memory_space<vmem>>, vector<32x24xf32>
    %c0_1 = arith.constant 0 : index
    %c0_2 = arith.constant 0 : index
    %1 = vector.load %arg2[%c0_1, %c0_2] : memref<24x32xf32, #tpu.memory_space<vmem>>, vector<24x32xf32>
    %cst = arith.constant dense<0.000000e+00> : vector<32x32xf32>
    %2 = tpu.matmul %0, %1, %cst {dimension_numbers = #tpu.dot_dimension_numbers<[1], [0], [0], [1], [0, 0, 1, 1], [], []>} : vector<32x24xf32>, vector<24x32xf32>, vector<32x32xf32> -> vector<32x32xf32>
    %c0_3 = arith.constant 0 : index
    %c0_4 = arith.constant 0 : index
    %3 = vector.load %arg3[%c0_3, %c0_4] : memref<1x32xf32, #tpu.memory_space<vmem>>, vector<1x32xf32>
    %4 = vector.broadcast %3 : vector<1x32xf32> to vector<32x32xf32>
    %5 = arith.addf %2, %4 : vector<32x32xf32>
    %cst_5 = arith.constant 0.000000e+00 : f32
    %6 = vector.broadcast %cst_5 : f32 to vector<32x32xf32>
    %7 = arith.cmpf oge, %5, %6 : vector<32x32xf32>
    %cst_6 = arith.constant 0.00999999977 : f32
    %8 = vector.broadcast %cst_6 : f32 to vector<32x32xf32>
    %9 = arith.mulf %8, %5 : vector<32x32xf32>
    %10 = arith.select %7, %5, %9 : vector<32x32xi1>, vector<32x32xf32>
    %c0_7 = arith.constant 0 : index
    %c0_8 = arith.constant 0 : index
    %11 = vector.load %arg4[%c0_7, %c0_8] : memref<32x32xf32, #tpu.memory_space<vmem>>, vector<32x32xf32>
    tpu.vector_store %arg4[%c0_7, %c0_8], %10 {strides = array<i32>} : memref<32x32xf32, #tpu.memory_space<vmem>>, vector<32x32xf32>,
    return
  }
  func.func @transform_0(%arg0: i32) -> (i32, i32) {
    %c0_i32 = arith.constant 0 : i32
    %c0_i32_0 = arith.constant 0 : i32
    return %arg0, %c0_i32 : i32, i32
  }
  func.func @transform_1(%arg0: i32) -> (i32, i32) {
    %c0_i32 = arith.constant 0 : i32
    %c0_i32_0 = arith.constant 0 : i32
    %c0_i32_1 = arith.constant 0 : i32
    return %c0_i32, %c0_i32_0 : i32, i32
  }
  func.func @transform_2(%arg0: i32) -> (i32, i32) {
    %c0_i32 = arith.constant 0 : i32
    %c0_i32_0 = arith.constant 0 : i32
    %c0_i32_1 = arith.constant 0 : i32
    return %c0_i32, %c0_i32_0 : i32, i32
  }
  func.func @transform_3(%arg0: i32) -> (i32, i32) {
    %c0_i32 = arith.constant 0 : i32
    %c0_i32_0 = arith.constant 0 : i32
    return %arg0, %c0_i32 : i32, i32
  }
}

</mosaic_0001>

<llo_original>
// kernel: neg.2
$region0: #{neg.2}
  #allocation0 [shape = 's32[1]{0}', space=sflag, size = 0x4, scoped, tag = 'scoped memory for neg.2']
  %s0 = inlined_call_operand.vmem [shape: f32[2,16,16], index: 0, kind: input, shape index: {}]
  %s1 = inlined_call_operand.vmem [shape: f32[2,16,16], index: 1, kind: output, shape index: {}]
  %v2 = vld [vmem:[%s0] sm:$0xff]
  %3 = xla_tuple %v2
  %4 = xla_tuple %3
  %v5 = vxor.u32 %v2, 2147483648
  %6 = xla_tuple %v5
  %7 = vst [vmem:[%s1] sm:$0xff] %v5
  %s8 = scalar_lea.vmem %s0, 16
  %v9 = vld [vmem:[%s8] sm:$0xff]
  %10 = xla_tuple %v9
  %11 = xla_tuple %10
  %v12 = vxor.u32 %v9, 2147483648
  %13 = xla_tuple %v12
  %s14 = scalar_lea.vmem %s1, 16
  %15 = vst [vmem:[%s14] sm:$0xff] %v12
  %s16 = scalar_lea.vmem %s0, 8
  %v17 = vld [vmem:[%s16] sm:$0xff]
  %18 = xla_tuple %v17
  %19 = xla_tuple %18
  %v20 = vxor.u32 %v17, 2147483648
  %21 = xla_tuple %v20
  %s22 = scalar_lea.vmem %s1, 8
  %23 = vst [vmem:[%s22] sm:$0xff] %v20
  %s24 = scalar_lea.vmem %s0, 24
  %v25 = vld [vmem:[%s24] sm:$0xff]
  %26 = xla_tuple %v25
  %27 = xla_tuple %26
  %v28 = vxor.u32 %v25, 2147483648
  %29 = xla_tuple %v28
  %s30 = scalar_lea.vmem %s1, 24
  %31 = vst [vmem:[%s30] sm:$0xff] %v28

// kernel: local_feature_aggregation.4
$region0: #{local_feature_aggregation.4}
  #allocation0 [shape = 'u32[]', space=smem, size = 0x4, offset = 0x4, fixed_abs, tag = 'smem constant byte address 0x4 - core index']
  #allocation1 [shape = 'u32[144,128]{1,0:T(1,128)}', space=vmem, size = 0x12000, scoped, tag = 'internal scratch']
  %s0 = inlined_call_operand.vmem [shape: f32[32,8], index: 0, kind: input, shape index: {}]
  %s1 = inlined_call_operand.vmem [shape: f32[8,8], index: 1, kind: input, shape index: {}]
  %s2 = inlined_call_operand.vmem [shape: f32[1,8], index: 2, kind: input, shape index: {}]
  %s3 = inlined_call_operand.vmem [shape: f32[32,8], index: 3, kind: output, shape index: {}]
  %s4 = sld [smem:[#allocation0]]
  $region22: #{local_feature_aggregation.4} parent=0
    _
  %s6 = ssub.s32 1, %s4
  %s7 = scalar_select 0, %s6, %s4
  // Predicated region
  $region2: #{local_feature_aggregation.4} parent=0 // pred_check
    _
  $region3: #{local_feature_aggregation.4} parent=0 // pred_check_branch
    %9 = sbr.rel (0) target = $region5
  $region4: #{local_feature_aggregation.4} parent=0 // pred_region
    _
  $region5: #{local_feature_aggregation.4} parent=0 // pred_fallthru
    _
  // Predicated region
  $region6: #{local_feature_aggregation.4} parent=0 // pred_check
    _
  $region7: #{local_feature_aggregation.4} parent=0 // pred_check_branch
    %11 = sbr.rel (0) target = $region9
  $region8: #{local_feature_aggregation.4} parent=0 // pred_region
    _
  $region9: #{local_feature_aggregation.4} parent=0 // pred_fallthru
    _
  // Predicated region
  $region10: #{local_feature_aggregation.4} parent=0 // pred_check
    _
  $region11: #{local_feature_aggregation.4} parent=0 // pred_check_branch
    %13 = sbr.rel (0) target = $region13
  $region12: #{local_feature_aggregation.4} parent=0 // pred_region
    _
  $region13: #{local_feature_aggregation.4} parent=0 // pred_fallthru
    _
  %v14 = vld [vmem:[%s0] sm:$0xff]
  %v15 = vld [vmem:[%s0 + $0x8] sm:$0xff]
  %v16 = vld [vmem:[%s0 + $0x10] sm:$0xff]
  %v17 = vld [vmem:[%s0 + $0x18] sm:$0xff]
  %v18 = vld [vmem:[%s1] sm:$0xff]
  %v19 = vld [vmem:[%s2] sm:$0x1]
  %v21 = vlaneseq
  %v22 = vshrl.u32 %v21, 7
  %v23 = vsub.s32 0, %v22
  %v24 = vrot.slane %v19, %v23
  %vm26 = vcmask 64512
  %v28 = vsel %vm26, %v14, 0
  %v31 = vsel %vm26, %v15, 0
  %v34 = vsel %vm26, %v16, 0
  %v37 = vsel %vm26, %v17, 0
  %39 = vmatprep.subr.mxu0 0.0
  %40 = vmatpush1.msra.mxu0 %v18
  %41 = vmatprep.subr.mxu0 0.0
  %42 = vmatpush1.msra.mxu0 0.0
  %43 = vmatprep.subr.mxu0 0.0
  %44 = vmatpush1.msra.mxu0 0.0
  %45 = vmatprep.subr.mxu0 0.0
  %46 = vmatpush1.msra.mxu0 0.0
  %47 = vmatprep.subr.mxu0 0.0
  %48 = vmatpush1.msra.mxu0 0.0
  %49 = vmatprep.subr.mxu0 0.0
  %50 = vmatpush1.msra.mxu0 0.0
  %51 = vmatprep.subr.mxu0 0.0
  %52 = vmatpush1.msra.mxu0 0.0
  %53 = vmatprep.subr.mxu0 0.0
  %54 = vmatpush1.msra.mxu0 0.0
  %55 = vmatprep.subr.mxu0 0.0
  %56 = vmatpush1.msra.mxu0 0.0
  %57 = vmatprep.subr.mxu0 0.0
  %58 = vmatpush1.msra.mxu0 0.0
  %59 = vmatprep.subr.mxu0 0.0
  %60 = vmatpush1.msra.mxu0 0.0
  %61 = vmatprep.subr.mxu0 0.0
  %62 = vmatpush1.msra.mxu0 0.0
  %63 = vmatprep.subr.mxu0 0.0
  %64 = vmatpush1.msra.mxu0 0.0
  %65 = vmatprep.subr.mxu0 0.0
  %66 = vmatpush1.msra.mxu0 0.0
  %67 = vmatprep.subr.mxu0 0.0
  %68 = vmatpush1.msra.mxu0 0.0
  %69 = vmatprep.subr.mxu0 0.0
  %70 = vmatpush1.msra.mxu0 0.0
  %71 = vmatprep.subr.mxu0 0.0
  %72 = vmatpush1.msra.mxu0 0.0
  %73 = vmatprep.subr.mxu0 0.0
  %74 = vmatpush1.msra.mxu0 0.0
  %75 = vmatprep.subr.mxu0 0.0
  %76 = vmatpush1.msra.mxu0 0.0
  %77 = vmatprep.subr.mxu0 0.0
  %78 = vmatpush1.msra.mxu0 0.0
  %79 = vmatprep.subr.mxu0 0.0
  %80 = vmatpush1.msra.mxu0 0.0
  %81 = vmatprep.subr.mxu0 0.0
  %82 = vmatpush1.msra.mxu0 0.0
  %83 = vmatprep.subr.mxu0 0.0
  %84 = vmatpush1.msra.mxu0 0.0
  %85 = vmatprep.subr.mxu0 0.0
  %86 = vmatpush1.msra.mxu0 0.0
  %87 = vmatprep.subr.mxu0 0.0
  %88 = vmatpush1.msra.mxu0 0.0
  %89 = vmatprep.subr.mxu0 0.0
  %90 = vmatpush1.msra.mxu0 0.0
  %91 = vmatprep.subr.mxu0 0.0
  %92 = vmatpush1.msra.mxu0 0.0
  %93 = vmatprep.subr.mxu0 0.0
  %94 = vmatpush1.msra.mxu0 0.0
  %95 = vmatprep.subr.mxu0 0.0
  %96 = vmatpush1.msra.mxu0 0.0
  %97 = vmatprep.subr.mxu0 0.0
  %98 = vmatpush1.msra.mxu0 0.0
  %99 = vmatprep.subr.mxu0 0.0
  %100 = vmatpush1.msra.mxu0 0.0
  %101 = vmatprep.subr.mxu0 0.0
  %102 = vmatpush1.msra.mxu0 0.0
  %103 = vmatprep.mubr.f32.mxu0 0.0
  %104 = vmatmul.mubr.f32.gmra.mrb[0].mxu0 %v28
  %v105 = vpop.f32.mrb[0].mxu0
  %v106 = vadd.f32 %v24, %v105
  %v107 = vpop.f32.mrb[0].mxu0
  %108 = vmatprep.mubr.f32.mxu0 0.0
  %109 = vmatmul.mubr.f32.gmra.mrb[0].mxu0 %v31
  %v110 = vpop.f32.mrb[0].mxu0
  %v111 = vadd.f32 %v24, %v110
  %v112 = vpop.f32.mrb[0].mxu0
  %113 = vmatprep.mubr.f32.mxu0 0.0
  %114 = vmatmul.mubr.f32.gmra.mrb[0].mxu0 %v34
  %v115 = vpop.f32.mrb[0].mxu0
  %v116 = vadd.f32 %v24, %v115
  %v117 = vpop.f32.mrb[0].mxu0
  %118 = vmatprep.mubr.f32.mxu0 0.0
  %119 = vmatmul.mubr.f32.gmra.mrb[0].mxu0 %v37
  %v120 = vpop.f32.mrb[0].mxu0
  %v121 = vadd.f32 %v24, %v120
  %v122 = vpop.f32.mrb[0].mxu0
  %123 = vdwg.mxu0
  %vm124 = vcmp.ge.f32.partialorder %v106, 0.0
  %vm125 = vcmp.ge.f32.partialorder %v111, 0.0
  %vm126 = vcmp.ge.f32.partialorder %v116, 0.0
  %vm127 = vcmp.ge.f32.partialorder %v121, 0.0
  %v128 = vmul.f32 %v106, 0.2
  %v129 = vmul.f32 %v111, 0.2
  %v130 = vmul.f32 %v116, 0.2
  %v131 = vmul.f32 %v121, 0.2
  %v132 = vsel %vm124, %v106, %v128
  %v133 = vsel %vm125, %v111, %v129
  %v134 = vsel %vm126, %v116, %v130
  %v135 = vsel %vm127, %v121, %v131
  %136 = vst.msk [vmem:[%s3] sm:$0xff] %vm26, %v132
  %137 = vst.msk [vmem:[%s3 + $0x8] sm:$0xff] %vm26, %v133
  %138 = vst.msk [vmem:[%s3 + $0x10] sm:$0xff] %vm26, %v134
  %139 = vst.msk [vmem:[%s3 + $0x18] sm:$0xff] %vm26, %v135
  // Predicated region
  $region14: #{local_feature_aggregation.4} parent=0 // pred_check
    _
  $region15: #{local_feature_aggregation.4} parent=0 // pred_check_branch
    %141 = sbr.rel (0) target = $region17
  $region16: #{local_feature_aggregation.4} parent=0 // pred_region
    _
  $region17: #{local_feature_aggregation.4} parent=0 // pred_fallthru
    _
  // Predicated region
  $region18: #{local_feature_aggregation.4} parent=0 // pred_check
    _
  $region19: #{local_feature_aggregation.4} parent=0 // pred_check_branch
    %143 = sbr.rel (0) target = $region21
  $region20: #{local_feature_aggregation.4} parent=0 // pred_region
    _
  $region21: #{local_feature_aggregation.4} parent=0 // pred_fallthru
    _

// kernel: local_feature_aggregation.7
$region0: #{local_feature_aggregation.7}
  #allocation0 [shape = 'u32[]', space=smem, size = 0x4, offset = 0x4, fixed_abs, tag = 'smem constant byte address 0x4 - core index']
  #allocation1 [shape = 'u32[144,128]{1,0:T(1,128)}', space=vmem, size = 0x12000, scoped, tag = 'internal scratch']
  %s0 = inlined_call_operand.vmem [shape: f32[32,24], index: 0, kind: input, shape index: {}]
  %s1 = inlined_call_operand.vmem [shape: f32[24,32], index: 1, kind: input, shape index: {}]
  %s2 = inlined_call_operand.vmem [shape: f32[1,32], index: 2, kind: input, shape index: {}]
  %s3 = inlined_call_operand.hbm [shape: f32[32,32], index: 3, kind: output, shape index: {}]
  %s4 = sld [smem:[#allocation0]]
  $region22: #{local_feature_aggregation.7} parent=0
    _
  %s6 = ssub.s32 1, %s4
  %s7 = scalar_select 0, %s6, %s4
  $region1: #{local_feature_aggregation.7} parent=0
    #allocation2 [shape = 'u8[16384]{0}', space=vmem, size = 0x4000, scoped, tag = 'output window, operand 0, single buffered']
    #allocation3 [shape = 's32[1]{0}', space=sflag, size = 0x4, scoped, tag = 'scoped memory for local_feature_aggregation.7']
    %8 = vsyncpa [#allocation3], 0
    // Predicated region
    $region2: #{local_feature_aggregation.7} parent=1 // pred_check
      _
    $region3: #{local_feature_aggregation.7} parent=1 // pred_check_branch
      %10 = sbr.rel (0) target = $region5
    $region4: #{local_feature_aggregation.7} parent=1 // pred_region
      _
    $region5: #{local_feature_aggregation.7} parent=1 // pred_fallthru
      _
    // Predicated region
    $region6: #{local_feature_aggregation.7} parent=1 // pred_check
      _
    $region7: #{local_feature_aggregation.7} parent=1 // pred_check_branch
      %12 = sbr.rel (0) target = $region9
    $region8: #{local_feature_aggregation.7} parent=1 // pred_region
      _
    $region9: #{local_feature_aggregation.7} parent=1 // pred_fallthru
      _
    // Predicated region
    $region10: #{local_feature_aggregation.7} parent=1 // pred_check
      _
    $region11: #{local_feature_aggregation.7} parent=1 // pred_check_branch
      %14 = sbr.rel (0) target = $region13
    $region12: #{local_feature_aggregation.7} parent=1 // pred_region
      _
    $region13: #{local_feature_aggregation.7} parent=1 // pred_fallthru
      _
    %v15 = vld [vmem:[%s0] sm:$0xff]
    %v16 = vld [vmem:[%s0 + $0x8] sm:$0xff]
    %v17 = vld [vmem:[%s0 + $0x10] sm:$0xff]
    %v18 = vld [vmem:[%s0 + $0x18] sm:$0xff]
    %v19 = vld [vmem:[%s1] sm:$0xff]
    %v20 = vld [vmem:[%s1 + $0x8] sm:$0xff]
    %v21 = vld [vmem:[%s1 + $0x10] sm:$0xff]
    %v22 = vld [vmem:[%s2] sm:$0x1]
    %v24 = vlaneseq
    %v25 = vshrl.u32 %v24, 7
    %v26 = vsub.s32 0, %v25
    %v27 = vrot.slane %v22, %v26
    %vm29 = vcmask 195584
    %v31 = vsel %vm29, %v15, 0
    %v34 = vsel %vm29, %v16, 0
    %v37 = vsel %vm29, %v17, 0
    %v40 = vsel %vm29, %v18, 0
    %42 = vmatprep.subr.mxu0 0.0
    %43 = vmatpush1.msra.mxu0 %v19
    %44 = vmatprep.subr.mxu0 0.0
    %45 = vmatpush1.msra.mxu0 %v20
    %46 = vmatprep.subr.mxu0 0.0
    %47 = vmatpush1.msra.mxu0 %v21
    %48 = vmatprep.subr.mxu0 0.0
    %49 = vmatpush1.msra.mxu0 0.0
    %50 = vmatprep.subr.mxu0 0.0
    %51 = vmatpush1.msra.mxu0 0.0
    %52 = vmatprep.subr.mxu0 0.0
    %53 = vmatpush1.msra.mxu0 0.0
    %54 = vmatprep.subr.mxu0 0.0
    %55 = vmatpush1.msra.mxu0 0.0
    %56 = vmatprep.subr.mxu0 0.0
    %57 = vmatpush1.msra.mxu0 0.0
    %58 = vmatprep.subr.mxu0 0.0
    %59 = vmatpush1.msra.mxu0 0.0
    %60 = vmatprep.subr.mxu0 0.0
    %61 = vmatpush1.msra.mxu0 0.0
    %62 = vmatprep.subr.mxu0 0.0
    %63 = vmatpush1.msra.mxu0 0.0
    %64 = vmatprep.subr.mxu0 0.0
    %65 = vmatpush1.msra.mxu0 0.0
    %66 = vmatprep.subr.mxu0 0.0
    %67 = vmatpush1.msra.mxu0 0.0
    %68 = vmatprep.subr.mxu0 0.0
    %69 = vmatpush1.msra.mxu0 0.0
    %70 = vmatprep.subr.mxu0 0.0
    %71 = vmatpush1.msra.mxu0 0.0
    %72 = vmatprep.subr.mxu0 0.0
    %73 = vmatpush1.msra.mxu0 0.0
    %74 = vmatprep.subr.mxu0 0.0
    %75 = vmatpush1.msra.mxu0 0.0
    %76 = vmatprep.subr.mxu0 0.0
    %77 = vmatpush1.msra.mxu0 0.0
    %78 = vmatprep.subr.mxu0 0.0
    %79 = vmatpush1.msra.mxu0 0.0
    %80 = vmatprep.subr.mxu0 0.0
    %81 = vmatpush1.msra.mxu0 0.0
    %82 = vmatprep.subr.mxu0 0.0
    %83 = vmatpush1.msra.mxu0 0.0
    %84 = vmatprep.subr.mxu0 0.0
    %85 = vmatpush1.msra.mxu0 0.0
    %86 = vmatprep.subr.mxu0 0.0
    %87 = vmatpush1.msra.mxu0 0.0
    %88 = vmatprep.subr.mxu0 0.0
    %89 = vmatpush1.msra.mxu0 0.0
    %90 = vmatprep.subr.mxu0 0.0
    %91 = vmatpush1.msra.mxu0 0.0
    %92 = vmatprep.subr.mxu0 0.0
    %93 = vmatpush1.msra.mxu0 0.0
    %94 = vmatprep.subr.mxu0 0.0
    %95 = vmatpush1.msra.mxu0 0.0
    %96 = vmatprep.subr.mxu0 0.0
    %97 = vmatpush1.msra.mxu0 0.0
    %98 = vmatprep.subr.mxu0 0.0
    %99 = vmatpush1.msra.mxu0 0.0
    %100 = vmatprep.subr.mxu0 0.0
    %101 = vmatpush1.msra.mxu0 0.0
    %102 = vmatprep.subr.mxu0 0.0
    %103 = vmatpush1.msra.mxu0 0.0
    %104 = vmatprep.subr.mxu0 0.0
    %105 = vmatpush1.msra.mxu0 0.0
    %106 = vmatprep.mubr.f32.mxu0 0.0
    %107 = vmatmul.mubr.f32.gmra.mrb[0].mxu0 %v31
    %v108 = vpop.f32.mrb[0].mxu0
    %v109 = vadd.f32 %v27, %v108
    %v110 = vpop.f32.mrb[0].mxu0
    %111 = vmatprep.mubr.f32.mxu0 0.0
    %112 = vmatmul.mubr.f32.gmra.mrb[0].mxu0 %v34
    %v113 = vpop.f32.mrb[0].mxu0
    %v114 = vadd.f32 %v27, %v113
    %v115 = vpop.f32.mrb[0].mxu0
    %116 = vmatprep.mubr.f32.mxu0 0.0
    %117 = vmatmul.mubr.f32.gmra.mrb[0].mxu0 %v37
    %v118 = vpop.f32.mrb[0].mxu0
    %v119 = vadd.f32 %v27, %v118
    %v120 = vpop.f32.mrb[0].mxu0
    %121 = vmatprep.mubr.f32.mxu0 0.0
    %122 = vmatmul.mubr.f32.gmra.mrb[0].mxu0 %v40
    %v123 = vpop.f32.mrb[0].mxu0
    %v124 = vadd.f32 %v27, %v123
    %v125 = vpop.f32.mrb[0].mxu0
    %126 = vdwg.mxu0
    %vm127 = vcmp.ge.f32.partialorder %v109, 0.0
    %vm128 = vcmp.ge.f32.partialorder %v114, 0.0
    %vm129 = vcmp.ge.f32.partialorder %v119, 0.0
    %vm130 = vcmp.ge.f32.partialorder %v124, 0.0
    %v131 = vmul.f32 %v109, 0.01
    %v132 = vmul.f32 %v114, 0.01
    %v133 = vmul.f32 %v119, 0.01
    %v134 = vmul.f32 %v124, 0.01
    %v135 = vsel %vm127, %v109, %v131
    %v136 = vsel %vm128, %v114, %v132
    %v137 = vsel %vm129, %v119, %v133
    %v138 = vsel %vm130, %v124, %v134
    %vm139 = vcmask 261120
    %140 = vst.msk [vmem:[#allocation2] sm:$0xff] %vm139, %v135
    %141 = vst.msk [vmem:[#allocation2 + $0x8] sm:$0xff] %vm139, %v136
    %142 = vst.msk [vmem:[#allocation2 + $0x10] sm:$0xff] %vm139, %v137
    %143 = vst.msk [vmem:[#allocation2 + $0x18] sm:$0xff] %vm139, %v138
    // Predicated region
    $region14: #{local_feature_aggregation.7} parent=1 // pred_check
      _
    $region15: #{local_feature_aggregation.7} parent=1 // pred_check_branch
      %145 = sbr.rel (0) target = $region17
    $region16: #{local_feature_aggregation.7} parent=1 // pred_region
      %s147 = ssub.s32 512, 512
      %148 = vsyncadd [#allocation3], %s147
      %s149 = sshll.u32 [#allocation2], 4
      %s150 = int_to_ptr.vmem [resolvable:$true] %s149
      %155 = dma.vmem_to_hbm [thread:$0]  %s150, 512, %s3, [#allocation3], 128, 128, 8
    $region17: #{local_feature_aggregation.7} parent=1 // pred_fallthru
      _
    // Predicated region
    $region18: #{local_feature_aggregation.7} parent=1 // pred_check
      _
    $region19: #{local_feature_aggregation.7} parent=1 // pred_check_branch
      %157 = sbr.rel (0) target = $region21
    $region20: #{local_feature_aggregation.7} parent=1 // pred_region
      %158 = dma.done [#allocation3], 512
    $region21: #{local_feature_aggregation.7} parent=1 // pred_fallthru
      _
    %159 = vsyncpa [#allocation3], 1

// kernel: local_feature_aggregation.6
$region0: #{local_feature_aggregation.6}
  #allocation0 [shape = 'u32[]', space=smem, size = 0x4, offset = 0x4, fixed_abs, tag = 'smem constant byte address 0x4 - core index']
  #allocation1 [shape = 'u32[144,128]{1,0:T(1,128)}', space=vmem, size = 0x12000, scoped, tag = 'internal scratch']
  %s0 = inlined_call_operand.vmem [shape: f32[32,3], index: 0, kind: input, shape index: {}]
  %s1 = inlined_call_operand.vmem [shape: bf16[32,8,3], index: 1, kind: input, shape index: {}]
  %s2 = inlined_call_operand.vmem [shape: bf16[32,8,1], index: 2, kind: input, shape index: {}]
  %s3 = inlined_call_operand.vmem [shape: f32[32,8], index: 3, kind: input, shape index: {}]
  %s4 = inlined_call_operand.vmem [shape: f32[3,8], index: 4, kind: input, shape index: {}]
  %s5 = inlined_call_operand.vmem [shape: f32[3,8], index: 5, kind: input, shape index: {}]
  %s6 = inlined_call_operand.vmem [shape: f32[1,8], index: 6, kind: input, shape index: {}]
  %s7 = inlined_call_operand.vmem [shape: f32[1,8], index: 7, kind: input, shape index: {}]
  %s8 = inlined_call_operand.vmem [shape: f32[8,8], index: 8, kind: input, shape index: {}]
  %s9 = inlined_call_operand.vmem [shape: f32[8,8], index: 9, kind: input, shape index: {}]
  %s10 = inlined_call_operand.vmem [shape: f32[8,8], index: 10, kind: input, shape index: {}]
  %s11 = inlined_call_operand.vmem [shape: f32[8,8], index: 11, kind: input, shape index: {}]
  %s12 = inlined_call_operand.vmem [shape: f32[8,16], index: 12, kind: input, shape index: {}]
  %s13 = inlined_call_operand.vmem [shape: f32[8,16], index: 13, kind: input, shape index: {}]
  %s14 = inlined_call_operand.vmem [shape: f32[1,16], index: 14, kind: input, shape index: {}]
  %s15 = inlined_call_operand.vmem [shape: f32[32,16], index: 15, kind: output, shape index: {}]
  %s16 = sld [smem:[#allocation0]]
  $region70: #{local_feature_aggregation.6} parent=0
    _
  %s18 = ssub.s32 1, %s16
  %s19 = scalar_select 0, %s18, %s16
  // Predicated region
  $region2: #{local_feature_aggregation.6} parent=0 // pred_check
    _
  $region3: #{local_feature_aggregation.6} parent=0 // pred_check_branch
    %21 = sbr.rel (0) target = $region5
  $region4: #{local_feature_aggregation.6} parent=0 // pred_region
    _
  $region5: #{local_feature_aggregation.6} parent=0 // pred_fallthru
    _
  // Predicated region
  $region6: #{local_feature_aggregation.6} parent=0 // pred_check
    _
  $region7: #{local_feature_aggregation.6} parent=0 // pred_check_branch
    %23 = sbr.rel (0) target = $region9
  $region8: #{local_feature_aggregation.6} parent=0 // pred_region
    _
  $region9: #{local_feature_aggregation.6} parent=0 // pred_fallthru
    _
  // Predicated region
  $region10: #{local_feature_aggregation.6} parent=0 // pred_check
    _
  $region11: #{local_feature_aggregation.6} parent=0 // pred_check_branch
    %25 = sbr.rel (0) target = $region13
  $region12: #{local_feature_aggregation.6} parent=0 // pred_region
    _
  $region13: #{local_feature_aggregation.6} parent=0 // pred_fallthru
    _
  // Predicated region
  $region14: #{local_feature_aggregation.6} parent=0 // pred_check
    _
  $region15: #{local_feature_aggregation.6} parent=0 // pred_check_branch
    %27 = sbr.rel (0) target = $region17
  $region16: #{local_feature_aggregation.6} parent=0 // pred_region
    _
  $region17: #{local_feature_aggregation.6} parent=0 // pred_fallthru
    _
  // Predicated region
  $region18: #{local_feature_aggregation.6} parent=0 // pred_check
    _
  $region19: #{local_feature_aggregation.6} parent=0 // pred_check_branch
    %29 = sbr.rel (0) target = $region21
  $region20: #{local_feature_aggregation.6} parent=0 // pred_region
    _
  $region21: #{local_feature_aggregation.6} parent=0 // pred_fallthru
    _
  // Predicated region
  $region22: #{local_feature_aggregation.6} parent=0 // pred_check
    _
  $region23: #{local_feature_aggregation.6} parent=0 // pred_check_branch
    %31 = sbr.rel (0) target = $region25
  $region24: #{local_feature_aggregation.6} parent=0 // pred_region
    _
  $region25: #{local_feature_aggregation.6} parent=0 // pred_fallthru
    _
  // Predicated region
  $region26: #{local_feature_aggregation.6} parent=0 // pred_check
    _
  $region27: #{local_feature_aggregation.6} parent=0 // pred_check_branch
    %33 = sbr.rel (0) target = $region29
  $region28: #{local_feature_aggregation.6} parent=0 // pred_region
    _
  $region29: #{local_feature_aggregation.6} parent=0 // pred_fallthru
    _
  // Predicated region
  $region30: #{local_feature_aggregation.6} parent=0 // pred_check
    _
  $region31: #{local_feature_aggregation.6} parent=0 // pred_check_branch
    %35 = sbr.rel (0) target = $region33
  $region32: #{local_feature_aggregation.6} parent=0 // pred_region
    _
  $region33: #{local_feature_aggregation.6} parent=0 // pred_fallthru
    _
  // Predicated region
  $region34: #{local_feature_aggregation.6} parent=0 // pred_check
    _
  $region35: #{local_feature_aggregation.6} parent=0 // pred_check_branch
    %37 = sbr.rel (0) target = $region37
  $region36: #{local_feature_aggregation.6} parent=0 // pred_region
    _
  $region37: #{local_feature_aggregation.6} parent=0 // pred_fallthru
    _
  // Predicated region
  $region38: #{local_feature_aggregation.6} parent=0 // pred_check
    _
  $region39: #{local_feature_aggregation.6} parent=0 // pred_check_branch
    %39 = sbr.rel (0) target = $region41
  $region40: #{local_feature_aggregation.6} parent=0 // pred_region
    _
  $region41: #{local_feature_aggregation.6} parent=0 // pred_fallthru
    _
  // Predicated region
  $region42: #{local_feature_aggregation.6} parent=0 // pred_check
    _
  $region43: #{local_feature_aggregation.6} parent=0 // pred_check_branch
    %41 = sbr.rel (0) target = $region45
  $region44: #{local_feature_aggregation.6} parent=0 // pred_region
    _
  $region45: #{local_feature_aggregation.6} parent=0 // pred_fallthru
    _
  // Predicated region
  $region46: #{local_feature_aggregation.6} parent=0 // pred_check
    _
  $region47: #{local_feature_aggregation.6} parent=0 // pred_check_branch
    %43 = sbr.rel (0) target = $region49
  $region48: #{local_feature_aggregation.6} parent=0 // pred_region
    _
  $region49: #{local_feature_aggregation.6} parent=0 // pred_fallthru
    _
  // Predicated region
  $region50: #{local_feature_aggregation.6} parent=0 // pred_check
    _
  $region51: #{local_feature_aggregation.6} parent=0 // pred_check_branch
    %45 = sbr.rel (0) target = $region53
  $region52: #{local_feature_aggregation.6} parent=0 // pred_region
    _
  $region53: #{local_feature_aggregation.6} parent=0 // pred_fallthru
    _
  // Predicated region
  $region54: #{local_feature_aggregation.6} parent=0 // pred_check
    _
  $region55: #{local_feature_aggregation.6} parent=0 // pred_check_branch
    %47 = sbr.rel (0) target = $region57
  $region56: #{local_feature_aggregation.6} parent=0 // pred_region
    _
  $region57: #{local_feature_aggregation.6} parent=0 // pred_fallthru
    _
  // Predicated region
  $region58: #{local_feature_aggregation.6} parent=0 // pred_check
    _
  $region59: #{local_feature_aggregation.6} parent=0 // pred_check_branch
    %49 = sbr.rel (0) target = $region61
  $region60: #{local_feature_aggregation.6} parent=0 // pred_region
    _
  $region61: #{local_feature_aggregation.6} parent=0 // pred_fallthru
    _
  %v50 = vld [vmem:[%s0] sm:$0xff]
  %v51 = vld [vmem:[%s0 + $0x8] sm:$0xff]
  %v52 = vld [vmem:[%s0 + $0x10] sm:$0xff]
  %v53 = vld [vmem:[%s0 + $0x18] sm:$0xff]
  %v54 = vld [vmem:[%s1] sm:$0xf]
  %v55 = vld [vmem:[%s1 + $0x4] sm:$0xf]
  %v56 = vld [vmem:[%s1 + $0x8] sm:$0xf]
  %v57 = vld [vmem:[%s1 + $0xc] sm:$0xf]
  %v58 = vld [vmem:[%s1 + $0x10] sm:$0xf]
  %v59 = vld [vmem:[%s1 + $0x14] sm:$0xf]
  %v60 = vld [vmem:[%s1 + $0x18] sm:$0xf]
  %v61 = vld [vmem:[%s1 + $0x1c] sm:$0xf]
  %v62 = vld [vmem:[%s1 + $0x20] sm:$0xf]
  %v63 = vld [vmem:[%s1 + $0x24] sm:$0xf]
  %v64 = vld [vmem:[%s1 + $0x28] sm:$0xf]
  %v65 = vld [vmem:[%s1 + $0x2c] sm:$0xf]
  %v66 = vld [vmem:[%s1 + $0x30] sm:$0xf]
  %v67 = vld [vmem:[%s1 + $0x34] sm:$0xf]
  %v68 = vld [vmem:[%s1 + $0x38] sm:$0xf]
  %v69 = vld [vmem:[%s1 + $0x3c] sm:$0xf]
  %v70 = vld [vmem:[%s1 + $0x40] sm:$0xf]
  %v71 = vld [vmem:[%s1 + $0x44] sm:$0xf]
  %v72 = vld [vmem:[%s1 + $0x48] sm:$0xf]
  %v73 = vld [vmem:[%s1 + $0x4c] sm:$0xf]
  %v74 = vld [vmem:[%s1 + $0x50] sm:$0xf]
  %v75 = vld [vmem:[%s1 + $0x54] sm:$0xf]
  %v76 = vld [vmem:[%s1 + $0x58] sm:$0xf]
  %v77 = vld [vmem:[%s1 + $0x5c] sm:$0xf]
  %v78 = vld [vmem:[%s1 + $0x60] sm:$0xf]
  %v79 = vld [vmem:[%s1 + $0x64] sm:$0xf]
  %v80 = vld [vmem:[%s1 + $0x68] sm:$0xf]
  %v81 = vld [vmem:[%s1 + $0x6c] sm:$0xf]
  %v82 = vld [vmem:[%s1 + $0x70] sm:$0xf]
  %v83 = vld [vmem:[%s1 + $0x74] sm:$0xf]
  %v84 = vld [vmem:[%s1 + $0x78] sm:$0xf]
  %v85 = vld [vmem:[%s1 + $0x7c] sm:$0xf]
  %v86 = vunpack.c.l.bf16 %v54
  %v87 = vunpack.c.l.bf16 %v55
  %v88 = vunpack.c.l.bf16 %v56
  %v89 = vunpack.c.l.bf16 %v57
  %v90 = vunpack.c.l.bf16 %v58
  %v91 = vunpack.c.l.bf16 %v59
  %v92 = vunpack.c.l.bf16 %v60
  %v93 = vunpack.c.l.bf16 %v61
  %v94 = vunpack.c.l.bf16 %v62
  %v95 = vunpack.c.l.bf16 %v63
  %v96 = vunpack.c.l.bf16 %v64
  %v97 = vunpack.c.l.bf16 %v65
  %v98 = vunpack.c.l.bf16 %v66
  %v99 = vunpack.c.l.bf16 %v67
  %v100 = vunpack.c.l.bf16 %v68
  %v101 = vunpack.c.l.bf16 %v69
  %v102 = vunpack.c.l.bf16 %v70
  %v103 = vunpack.c.l.bf16 %v71
  %v104 = vunpack.c.l.bf16 %v72
  %v105 = vunpack.c.l.bf16 %v73
  %v106 = vunpack.c.l.bf16 %v74
  %v107 = vunpack.c.l.bf16 %v75
  %v108 = vunpack.c.l.bf16 %v76
  %v109 = vunpack.c.l.bf16 %v77
  %v110 = vunpack.c.l.bf16 %v78
  %v111 = vunpack.c.l.bf16 %v79
  %v112 = vunpack.c.l.bf16 %v80
  %v113 = vunpack.c.l.bf16 %v81
  %v114 = vunpack.c.l.bf16 %v82
  %v115 = vunpack.c.l.bf16 %v83
  %v116 = vunpack.c.l.bf16 %v84
  %v117 = vunpack.c.l.bf16 %v85
  %v118 = vld [vmem:[%s2] sm:$0xf]
  %v119 = vld [vmem:[%s2 + $0x4] sm:$0xf]
  %v120 = vld [vmem:[%s2 + $0x8] sm:$0xf]
  %v121 = vld [vmem:[%s2 + $0xc] sm:$0xf]
  %v122 = vld [vmem:[%s2 + $0x10] sm:$0xf]
  %v123 = vld [vmem:[%s2 + $0x14] sm:$0xf]
  %v124 = vld [vmem:[%s2 + $0x18] sm:$0xf]
  %v125 = vld [vmem:[%s2 + $0x1c] sm:$0xf]
  %v126 = vld [vmem:[%s2 + $0x20] sm:$0xf]
  %v127 = vld [vmem:[%s2 + $0x24] sm:$0xf]
  %v128 = vld [vmem:[%s2 + $0x28] sm:$0xf]
  %v129 = vld [vmem:[%s2 + $0x2c] sm:$0xf]
  %v130 = vld [vmem:[%s2 + $0x30] sm:$0xf]
  %v131 = vld [vmem:[%s2 + $0x34] sm:$0xf]
  %v132 = vld [vmem:[%s2 + $0x38] sm:$0xf]
  %v133 = vld [vmem:[%s2 + $0x3c] sm:$0xf]
  %v134 = vld [vmem:[%s2 + $0x40] sm:$0xf]
  %v135 = vld [vmem:[%s2 + $0x44] sm:$0xf]
  %v136 = vld [vmem:[%s2 + $0x48] sm:$0xf]
  %v137 = vld [vmem:[%s2 + $0x4c] sm:$0xf]
  %v138 = vld [vmem:[%s2 + $0x50] sm:$0xf]
  %v139 = vld [vmem:[%s2 + $0x54] sm:$0xf]
  %v140 = vld [vmem:[%s2 + $0x58] sm:$0xf]
  %v141 = vld [vmem:[%s2 + $0x5c] sm:$0xf]
  %v142 = vld [vmem:[%s2 + $0x60] sm:$0xf]
  %v143 = vld [vmem:[%s2 + $0x64] sm:$0xf]
  %v144 = vld [vmem:[%s2 + $0x68] sm:$0xf]
  %v145 = vld [vmem:[%s2 + $0x6c] sm:$0xf]
  %v146 = vld [vmem:[%s2 + $0x70] sm:$0xf]
  %v147 = vld [vmem:[%s2 + $0x74] sm:$0xf]
  %v148 = vld [vmem:[%s2 + $0x78] sm:$0xf]
  %v149 = vld [vmem:[%s2 + $0x7c] sm:$0xf]
  %v150 = vunpack.c.l.bf16 %v118
  %v151 = vunpack.c.l.bf16 %v119
  %v152 = vunpack.c.l.bf16 %v120
  %v153 = vunpack.c.l.bf16 %v121
  %v154 = vunpack.c.l.bf16 %v122
  %v155 = vunpack.c.l.bf16 %v123
  %v156 = vunpack.c.l.bf16 %v124
  %v157 = vunpack.c.l.bf16 %v125
  %v158 = vunpack.c.l.bf16 %v126
  %v159 = vunpack.c.l.bf16 %v127
  %v160 = vunpack.c.l.bf16 %v128
  %v161 = vunpack.c.l.bf16 %v129
  %v162 = vunpack.c.l.bf16 %v130
  %v163 = vunpack.c.l.bf16 %v131
  %v164 = vunpack.c.l.bf16 %v132
  %v165 = vunpack.c.l.bf16 %v133
  %v166 = vunpack.c.l.bf16 %v134
  %v167 = vunpack.c.l.bf16 %v135
  %v168 = vunpack.c.l.bf16 %v136
  %v169 = vunpack.c.l.bf16 %v137
  %v170 = vunpack.c.l.bf16 %v138
  %v171 = vunpack.c.l.bf16 %v139
  %v172 = vunpack.c.l.bf16 %v140
  %v173 = vunpack.c.l.bf16 %v141
  %v174 = vunpack.c.l.bf16 %v142
  %v175 = vunpack.c.l.bf16 %v143
  %v176 = vunpack.c.l.bf16 %v144
  %v177 = vunpack.c.l.bf16 %v145
  %v178 = vunpack.c.l.bf16 %v146
  %v179 = vunpack.c.l.bf16 %v147
  %v180 = vunpack.c.l.bf16 %v148
  %v181 = vunpack.c.l.bf16 %v149
  %v182 = vld [vmem:[%s3] sm:$0xff]
  %v183 = vld [vmem:[%s3 + $0x8] sm:$0xff]
  %v184 = vld [vmem:[%s3 + $0x10] sm:$0xff]
  %v185 = vld [vmem:[%s3 + $0x18] sm:$0xff]
  %v186 = vld [vmem:[%s4] sm:$0x7]
  %vm187 = vcmask 23552
  %v189 = vsel %vm187, %v50, 0
  %v192 = vsel %vm187, %v51, 0
  %v195 = vsel %vm187, %v52, 0
  %v198 = vsel %vm187, %v53, 0
  %vm200 = vcmask 1042432
  %v202 = vsel %vm200, %v186, 0
  %204 = vmatprep.subr.mxu0 0.0
  %205 = vmatpush1.msra.mxu0 %v202
  %206 = vmatprep.subr.mxu0 0.0
  %207 = vmatpush1.msra.mxu0 0.0
  %208 = vmatprep.subr.mxu0 0.0
  %209 = vmatpush1.msra.mxu0 0.0
  %210 = vmatprep.subr.mxu0 0.0
  %211 = vmatpush1.msra.mxu0 0.0
  %212 = vmatprep.subr.mxu0 0.0
  %213 = vmatpush1.msra.mxu0 0.0
  %214 = vmatprep.subr.mxu0 0.0
  %215 = vmatpush1.msra.mxu0 0.0
  %216 = vmatprep.subr.mxu0 0.0
  %217 = vmatpush1.msra.mxu0 0.0
  %218 = vmatprep.subr.mxu0 0.0
  %219 = vmatpush1.msra.mxu0 0.0
  %220 = vmatprep.subr.mxu0 0.0
  %221 = vmatpush1.msra.mxu0 0.0
  %222 = vmatprep.subr.mxu0 0.0
  %223 = vmatpush1.msra.mxu0 0.0
  %224 = vmatprep.subr.mxu0 0.0
  %225 = vmatpush1.msra.mxu0 0.0
  %226 = vmatprep.subr.mxu0 0.0
  %227 = vmatpush1.msra.mxu0 0.0
  %228 = vmatprep.subr.mxu0 0.0
  %229 = vmatpush1.msra.mxu0 0.0
  %230 = vmatprep.subr.mxu0 0.0
  %231 = vmatpush1.msra.mxu0 0.0
  %232 = vmatprep.subr.mxu0 0.0
  %233 = vmatpush1.msra.mxu0 0.0
  %234 = vmatprep.subr.mxu0 0.0
  %235 = vmatpush1.msra.mxu0 0.0
  %236 = vmatprep.subr.mxu0 0.0
  %237 = vmatpush1.msra.mxu0 0.0
  %238 = vmatprep.subr.mxu0 0.0
  %239 = vmatpush1.msra.mxu0 0.0
  %240 = vmatprep.subr.mxu0 0.0
  %241 = vmatpush1.msra.mxu0 0.0
  %242 = vmatprep.subr.mxu0 0.0
  %243 = vmatpush1.msra.mxu0 0.0
  %244 = vmatprep.subr.mxu0 0.0
  %245 = vmatpush1.msra.mxu0 0.0
  %246 = vmatprep.subr.mxu0 0.0
  %247 = vmatpush1.msra.mxu0 0.0
  %248 = vmatprep.subr.mxu0 0.0
  %249 = vmatpush1.msra.mxu0 0.0
  %250 = vmatprep.subr.mxu0 0.0
  %251 = vmatpush1.msra.mxu0 0.0
  %252 = vmatprep.subr.mxu0 0.0
  %253 = vmatpush1.msra.mxu0 0.0
  %254 = vmatprep.subr.mxu0 0.0
  %255 = vmatpush1.msra.mxu0 0.0
  %256 = vmatprep.subr.mxu0 0.0
  %257 = vmatpush1.msra.mxu0 0.0
  %258 = vmatprep.subr.mxu0 0.0
  %259 = vmatpush1.msra.mxu0 0.0
  %260 = vmatprep.subr.mxu0 0.0
  %261 = vmatpush1.msra.mxu0 0.0
  %262 = vmatprep.subr.mxu0 0.0
  %263 = vmatpush1.msra.mxu0 0.0
  %264 = vmatprep.subr.mxu0 0.0
  %265 = vmatpush1.msra.mxu0 0.0
  %266 = vmatprep.subr.mxu0 0.0
  %267 = vmatpush1.msra.mxu0 0.0
  %268 = vmatprep.mubr.f32.mxu0 0.0
  %269 = vmatmul.mubr.f32.gmra.mrb[0].mxu0 %v189
  %v270 = vpop.f32.mrb[0].mxu0
  %v271 = vadd.f32 0.0, %v270
  %v272 = vpop.f32.mrb[0].mxu0
  %273 = vmatprep.mubr.f32.mxu0 0.0
  %274 = vmatmul.mubr.f32.gmra.mrb[0].mxu0 %v192
  %v275 = vpop.f32.mrb[0].mxu0
  %v276 = vadd.f32 0.0, %v275
  %v277 = vpop.f32.mrb[0].mxu0
  %278 = vmatprep.mubr.f32.mxu0 0.0
  %279 = vmatmul.mubr.f32.gmra.mrb[0].mxu0 %v195
  %v280 = vpop.f32.mrb[0].mxu0
  %v281 = vadd.f32 0.0, %v280
  %v282 = vpop.f32.mrb[0].mxu0
  %283 = vmatprep.mubr.f32.mxu0 0.0
  %284 = vmatmul.mubr.f32.gmra.mrb[0].mxu0 %v198
  %v285 = vpop.f32.mrb[0].mxu0
  %v286 = vadd.f32 0.0, %v285
  %v287 = vpop.f32.mrb[0].mxu0
  %288 = vdwg.mxu0
  %v289 = vld [vmem:[%s5] sm:$0x7]
  %v291 = vsel %vm187, %v86, 0
  %v294 = vsel %vm187, %v87, 0
  %v297 = vsel %vm187, %v88, 0
  %v300 = vsel %vm187, %v89, 0
  %v303 = vsel %vm187, %v90, 0
  %v306 = vsel %vm187, %v91, 0
  %v309 = vsel %vm187, %v92, 0
  %v312 = vsel %vm187, %v93, 0
  %v315 = vsel %vm187, %v94, 0
  %v318 = vsel %vm187, %v95, 0
  %v321 = vsel %vm187, %v96, 0
  %v324 = vsel %vm187, %v97, 0
  %v327 = vsel %vm187, %v98, 0
  %v330 = vsel %vm187, %v99, 0
  %v333 = vsel %vm187, %v100, 0
  %v336 = vsel %vm187, %v101, 0
  %v339 = vsel %vm187, %v102, 0
  %v342 = vsel %vm187, %v103, 0
  %v345 = vsel %vm187, %v104, 0
  %v348 = vsel %vm187, %v105, 0
  %v351 = vsel %vm187, %v106, 0
  %v354 = vsel %vm187, %v107, 0
  %v357 = vsel %vm187, %v108, 0
  %v360 = vsel %vm187, %v109, 0
  %v363 = vsel %vm187, %v110, 0
  %v366 = vsel %vm187, %v111, 0
  %v369 = vsel %vm187, %v112, 0
  %v372 = vsel %vm187, %v113, 0
  %v375 = vsel %vm187, %v114, 0
  %v378 = vsel %vm187, %v115, 0
  %v381 = vsel %vm187, %v116, 0
  %v384 = vsel %vm187, %v117, 0
  %v387 = vsel %vm200, %v289, 0
  %389 = vmatprep.subr.mxu0 0.0
  %390 = vmatpush1.msra.mxu0 %v387
  %391 = vmatprep.subr.mxu0 0.0
  %392 = vmatpush1.msra.mxu0 0.0
  %393 = vmatprep.subr.mxu0 0.0
  %394 = vmatpush1.msra.mxu0 0.0
  %395 = vmatprep.subr.mxu0 0.0
  %396 = vmatpush1.msra.mxu0 0.0
  %397 = vmatprep.subr.mxu0 0.0
  %398 = vmatpush1.msra.mxu0 0.0
  %399 = vmatprep.subr.mxu0 0.0
  %400 = vmatpush1.msra.mxu0 0.0
  %401 = vmatprep.subr.mxu0 0.0
  %402 = vmatpush1.msra.mxu0 0.0
  %403 = vmatprep.subr.mxu0 0.0
  %404 = vmatpush1.msra.mxu0 0.0
  %405 = vmatprep.subr.mxu0 0.0
  %406 = vmatpush1.msra.mxu0 0.0
  %407 = vmatprep.subr.mxu0 0.0
  %408 = vmatpush1.msra.mxu0 0.0
  %409 = vmatprep.subr.mxu0 0.0
  %410 = vmatpush1.msra.mxu0 0.0
  %411 = vmatprep.subr.mxu0 0.0
  %412 = vmatpush1.msra.mxu0 0.0
  %413 = vmatprep.subr.mxu0 0.0
  %414 = vmatpush1.msra.mxu0 0.0
  %415 = vmatprep.subr.mxu0 0.0
  %416 = vmatpush1.msra.mxu0 0.0
  %417 = vmatprep.subr.mxu0 0.0
  %418 = vmatpush1.msra.mxu0 0.0
  %419 = vmatprep.subr.mxu0 0.0
  %420 = vmatpush1.msra.mxu0 0.0
  %421 = vmatprep.subr.mxu0 0.0
  %422 = vmatpush1.msra.mxu0 0.0
  %423 = vmatprep.subr.mxu0 0.0
  %424 = vmatpush1.msra.mxu0 0.0
  %425 = vmatprep.subr.mxu0 0.0
  %426 = vmatpush1.msra.mxu0 0.0
  %427 = vmatprep.subr.mxu0 0.0
  %428 = vmatpush1.msra.mxu0 0.0
  %429 = vmatprep.subr.mxu0 0.0
  %430 = vmatpush1.msra.mxu0 0.0
  %431 = vmatprep.subr.mxu0 0.0
  %432 = vmatpush1.msra.mxu0 0.0
  %433 = vmatprep.subr.mxu0 0.0
  %434 = vmatpush1.msra.mxu0 0.0
  %435 = vmatprep.subr.mxu0 0.0
  %436 = vmatpush1.msra.mxu0 0.0
  %437 = vmatprep.subr.mxu0 0.0
  %438 = vmatpush1.msra.mxu0 0.0
  %439 = vmatprep.subr.mxu0 0.0
  %440 = vmatpush1.msra.mxu0 0.0
  %441 = vmatprep.subr.mxu0 0.0
  %442 = vmatpush1.msra.mxu0 0.0
  %443 = vmatprep.subr.mxu0 0.0
  %444 = vmatpush1.msra.mxu0 0.0
  %445 = vmatprep.subr.mxu0 0.0
  %446 = vmatpush1.msra.mxu0 0.0
  %447 = vmatprep.subr.mxu0 0.0
  %448 = vmatpush1.msra.mxu0 0.0
  %449 = vmatprep.subr.mxu0 0.0
  %450 = vmatpush1.msra.mxu0 0.0
  %451 = vmatprep.subr.mxu0 0.0
  %452 = vmatpush1.msra.mxu0 0.0
  %453 = vmatprep.mubr.f32.mxu0 0.0
  %454 = vmatmul.mubr.f32.gmra.mrb[0].mxu0 %v291
  %v455 = vpop.f32.mrb[0].mxu0
  %v456 = vadd.f32 0.0, %v455
  %v457 = vpop.f32.mrb[0].mxu0
  %458 = vmatprep.mubr.f32.mxu0 0.0
  %459 = vmatmul.mubr.f32.gmra.mrb[0].mxu0 %v294
  %v460 = vpop.f32.mrb[0].mxu0
  %v461 = vadd.f32 0.0, %v460
  %v462 = vpop.f32.mrb[0].mxu0
  %463 = vmatprep.mubr.f32.mxu0 0.0
  %464 = vmatmul.mubr.f32.gmra.mrb[0].mxu0 %v297
  %v465 = vpop.f32.mrb[0].mxu0
  %v466 = vadd.f32 0.0, %v465
  %v467 = vpop.f32.mrb[0].mxu0
  %468 = vmatprep.mubr.f32.mxu0 0.0
  %469 = vmatmul.mubr.f32.gmra.mrb[0].mxu0 %v300
  %v470 = vpop.f32.mrb[0].mxu0
  %v471 = vadd.f32 0.0, %v470
  %v472 = vpop.f32.mrb[0].mxu0
  %473 = vmatprep.mubr.f32.mxu0 0.0
  %474 = vmatmul.mubr.f32.gmra.mrb[0].mxu0 %v303
  %v475 = vpop.f32.mrb[0].mxu0
  %v476 = vadd.f32 0.0, %v475
  %v477 = vpop.f32.mrb[0].mxu0
  %478 = vmatprep.mubr.f32.mxu0 0.0
  %479 = vmatmul.mubr.f32.gmra.mrb[0].mxu0 %v306
  %v480 = vpop.f32.mrb[0].mxu0
  %v481 = vadd.f32 0.0, %v480
  %v482 = vpop.f32.mrb[0].mxu0
  %483 = vmatprep.mubr.f32.mxu0 0.0
  %484 = vmatmul.mubr.f32.gmra.mrb[0].mxu0 %v309
  %v485 = vpop.f32.mrb[0].mxu0
  %v486 = vadd.f32 0.0, %v485
  %v487 = vpop.f32.mrb[0].mxu0
  %488 = vmatprep.mubr.f32.mxu0 0.0
  %489 = vmatmul.mubr.f32.gmra.mrb[0].mxu0 %v312
  %v490 = vpop.f32.mrb[0].mxu0
  %v491 = vadd.f32 0.0, %v490
  %v492 = vpop.f32.mrb[0].mxu0
  %493 = vmatprep.mubr.f32.mxu0 0.0
  %494 = vmatmul.mubr.f32.gmra.mrb[0].mxu0 %v315
  %v495 = vpop.f32.mrb[0].mxu0
  %v496 = vadd.f32 0.0, %v495
  %v497 = vpop.f32.mrb[0].mxu0
  %498 = vmatprep.mubr.f32.mxu0 0.0
  %499 = vmatmul.mubr.f32.gmra.mrb[0].mxu0 %v318
  %v500 = vpop.f32.mrb[0].mxu0
  %v501 = vadd.f32 0.0, %v500
  %v502 = vpop.f32.mrb[0].mxu0
  %503 = vmatprep.mubr.f32.mxu0 0.0
  %504 = vmatmul.mubr.f32.gmra.mrb[0].mxu0 %v321
  %v505 = vpop.f32.mrb[0].mxu0
  %v506 = vadd.f32 0.0, %v505
  %v507 = vpop.f32.mrb[0].mxu0
  %508 = vmatprep.mubr.f32.mxu0 0.0
  %509 = vmatmul.mubr.f32.gmra.mrb[0].mxu0 %v324
  %v510 = vpop.f32.mrb[0].mxu0
  %v511 = vadd.f32 0.0, %v510
  %v512 = vpop.f32.mrb[0].mxu0
  %513 = vmatprep.mubr.f32.mxu0 0.0
  %514 = vmatmul.mubr.f32.gmra.mrb[0].mxu0 %v327
  %v515 = vpop.f32.mrb[0].mxu0
  %v516 = vadd.f32 0.0, %v515
  %v517 = vpop.f32.mrb[0].mxu0
  %518 = vmatprep.mubr.f32.mxu0 0.0
  %519 = vmatmul.mubr.f32.gmra.mrb[0].mxu0 %v330
  %v520 = vpop.f32.mrb[0].mxu0
  %v521 = vadd.f32 0.0, %v520
  %v522 = vpop.f32.mrb[0].mxu0
  %523 = vmatprep.mubr.f32.mxu0 0.0
  %524 = vmatmul.mubr.f32.gmra.mrb[0].mxu0 %v333
  %v525 = vpop.f32.mrb[0].mxu0
  %v526 = vadd.f32 0.0, %v525
  %v527 = vpop.f32.mrb[0].mxu0
  %528 = vmatprep.mubr.f32.mxu0 0.0
  %529 = vmatmul.mubr.f32.gmra.mrb[0].mxu0 %v336
  %v530 = vpop.f32.mrb[0].mxu0
  %v531 = vadd.f32 0.0, %v530
  %v532 = vpop.f32.mrb[0].mxu0
  %533 = vmatprep.mubr.f32.mxu0 0.0
  %534 = vmatmul.mubr.f32.gmra.mrb[0].mxu0 %v339
  %v535 = vpop.f32.mrb[0].mxu0
  %v536 = vadd.f32 0.0, %v535
  %v537 = vpop.f32.mrb[0].mxu0
  %538 = vmatprep.mubr.f32.mxu0 0.0
  %539 = vmatmul.mubr.f32.gmra.mrb[0].mxu0 %v342
  %v540 = vpop.f32.mrb[0].mxu0
  %v541 = vadd.f32 0.0, %v540
  %v542 = vpop.f32.mrb[0].mxu0
  %543 = vmatprep.mubr.f32.mxu0 0.0
  %544 = vmatmul.mubr.f32.gmra.mrb[0].mxu0 %v345
  %v545 = vpop.f32.mrb[0].mxu0
  %v546 = vadd.f32 0.0, %v545
  %v547 = vpop.f32.mrb[0].mxu0
  %548 = vmatprep.mubr.f32.mxu0 0.0
  %549 = vmatmul.mubr.f32.gmra.mrb[0].mxu0 %v348
  %v550 = vpop.f32.mrb[0].mxu0
  %v551 = vadd.f32 0.0, %v550
  %v552 = vpop.f32.mrb[0].mxu0
  %553 = vmatprep.mubr.f32.mxu0 0.0
  %554 = vmatmul.mubr.f32.gmra.mrb[0].mxu0 %v351
  %v555 = vpop.f32.mrb[0].mxu0
  %v556 = vadd.f32 0.0, %v555
  %v557 = vpop.f32.mrb[0].mxu0
  %558 = vmatprep.mubr.f32.mxu0 0.0
  %559 = vmatmul.mubr.f32.gmra.mrb[0].mxu0 %v354
  %v560 = vpop.f32.mrb[0].mxu0
  %v561 = vadd.f32 0.0, %v560
  %v562 = vpop.f32.mrb[0].mxu0
  %563 = vmatprep.mubr.f32.mxu0 0.0
  %564 = vmatmul.mubr.f32.gmra.mrb[0].mxu0 %v357
  %v565 = vpop.f32.mrb[0].mxu0
  %v566 = vadd.f32 0.0, %v565
  %v567 = vpop.f32.mrb[0].mxu0
  %568 = vmatprep.mubr.f32.mxu0 0.0
  %569 = vmatmul.mubr.f32.gmra.mrb[0].mxu0 %v360
  %v570 = vpop.f32.mrb[0].mxu0
  %v571 = vadd.f32 0.0, %v570
  %v572 = vpop.f32.mrb[0].mxu0
  %573 = vmatprep.mubr.f32.mxu0 0.0
  %574 = vmatmul.mubr.f32.gmra.mrb[0].mxu0 %v363
  %v575 = vpop.f32.mrb[0].mxu0
  %v576 = vadd.f32 0.0, %v575
  %v577 = vpop.f32.mrb[0].mxu0
  %578 = vmatprep.mubr.f32.mxu0 0.0
  %579 = vmatmul.mubr.f32.gmra.mrb[0].mxu0 %v366
  %v580 = vpop.f32.mrb[0].mxu0
  %v581 = vadd.f32 0.0, %v580
  %v582 = vpop.f32.mrb[0].mxu0
  %583 = vmatprep.mubr.f32.mxu0 0.0
  %584 = vmatmul.mubr.f32.gmra.mrb[0].mxu0 %v369
  %v585 = vpop.f32.mrb[0].mxu0
  %v586 = vadd.f32 0.0, %v585
  %v587 = vpop.f32.mrb[0].mxu0
  %588 = vmatprep.mubr.f32.mxu0 0.0
  %589 = vmatmul.mubr.f32.gmra.mrb[0].mxu0 %v372
  %v590 = vpop.f32.mrb[0].mxu0
  %v591 = vadd.f32 0.0, %v590
  %v592 = vpop.f32.mrb[0].mxu0
  %593 = vmatprep.mubr.f32.mxu0 0.0
  %594 = vmatmul.mubr.f32.gmra.mrb[0].mxu0 %v375
  %v595 = vpop.f32.mrb[0].mxu0
  %v596 = vadd.f32 0.0, %v595
  %v597 = vpop.f32.mrb[0].mxu0
  %598 = vmatprep.mubr.f32.mxu0 0.0
  %599 = vmatmul.mubr.f32.gmra.mrb[0].mxu0 %v378
  %v600 = vpop.f32.mrb[0].mxu0
  %v601 = vadd.f32 0.0, %v600
  %v602 = vpop.f32.mrb[0].mxu0
  %603 = vmatprep.mubr.f32.mxu0 0.0
  %604 = vmatmul.mubr.f32.gmra.mrb[0].mxu0 %v381
  %v605 = vpop.f32.mrb[0].mxu0
  %v606 = vadd.f32 0.0, %v605
  %v607 = vpop.f32.mrb[0].mxu0
  %608 = vmatprep.mubr.f32.mxu0 0.0
  %609 = vmatmul.mubr.f32.gmra.mrb[0].mxu0 %v384
  %v610 = vpop.f32.mrb[0].mxu0
  %v611 = vadd.f32 0.0, %v610
  %v612 = vpop.f32.mrb[0].mxu0
  %613 = vdwg.mxu0
  %v618 = vcombine.high %v271, %v271
  %v620 = vunpack.c.l.s4 1966171168
  %v621 = vunpack.c.0.s8 %v620
  %v622 = vlaneseq
  %v623 = vshrl.u32 %v622, 7
  %v624 = vsub.s32 %v621, %v623
  %v625 = vrot.slane %v271, %v624
  %v627 = vunpack.c.l.s4 1966171168
  %v628 = vunpack.c.0.s8 %v627
  %v629 = vlaneseq
  %v630 = vshrl.u32 %v629, 7
  %v631 = vsub.s32 %v628, %v630
  %v632 = vrot.slane %v618, %v631
  %v633 = vcombine.high %v625, %v625
  %v634 = vcombine.high %v632, %v632
  %v636 = vunpack.c.l.s4 1966171168
  %v637 = vunpack.c.0.s8 %v636
  %v638 = vlaneseq
  %v639 = vshrl.u32 %v638, 7
  %v640 = vsub.s32 %v637, %v639
  %v641 = vrot.slane %v625, %v640
  %v643 = vunpack.c.l.s4 1966171168
  %v644 = vunpack.c.0.s8 %v643
  %v645 = vlaneseq
  %v646 = vshrl.u32 %v645, 7
  %v647 = vsub.s32 %v644, %v646
  %v648 = vrot.slane %v632, %v647
  %v650 = vunpack.c.l.s4 1966171168
  %v651 = vunpack.c.0.s8 %v650
  %v652 = vlaneseq
  %v653 = vshrl.u32 %v652, 7
  %v654 = vsub.s32 %v651, %v653
  %v655 = vrot.slane %v633, %v654
  %v657 = vunpack.c.l.s4 1966171168
  %v658 = vunpack.c.0.s8 %v657
  %v659 = vlaneseq
  %v660 = vshrl.u32 %v659, 7
  %v661 = vsub.s32 %v658, %v660
  %v662 = vrot.slane %v634, %v661
  %v663 = vcombine.high %v641, %v641
  %v664 = vcombine.high %v648, %v648
  %v665 = vcombine.high %v655, %v655
  %v666 = vcombine.high %v662, %v662
  %v667 = vcombine.high %v276, %v276
  %v669 = vunpack.c.l.s4 1966171168
  %v670 = vunpack.c.0.s8 %v669
  %v671 = vlaneseq
  %v672 = vshrl.u32 %v671, 7
  %v673 = vsub.s32 %v670, %v672
  %v674 = vrot.slane %v276, %v673
  %v676 = vunpack.c.l.s4 1966171168
  %v677 = vunpack.c.0.s8 %v676
  %v678 = vlaneseq
  %v679 = vshrl.u32 %v678, 7
  %v680 = vsub.s32 %v677, %v679
  %v681 = vrot.slane %v667, %v680
  %v682 = vcombine.high %v674, %v674
  %v683 = vcombine.high %v681, %v681
  %v685 = vunpack.c.l.s4 1966171168
  %v686 = vunpack.c.0.s8 %v685
  %v687 = vlaneseq
  %v688 = vshrl.u32 %v687, 7
  %v689 = vsub.s32 %v686, %v688
  %v690 = vrot.slane %v674, %v689
  %v692 = vunpack.c.l.s4 1966171168
  %v693 = vunpack.c.0.s8 %v692
  %v694 = vlaneseq
  %v695 = vshrl.u32 %v694, 7
  %v696 = vsub.s32 %v693, %v695
  %v697 = vrot.slane %v681, %v696
  %v699 = vunpack.c.l.s4 1966171168
  %v700 = vunpack.c.0.s8 %v699
  %v701 = vlaneseq
  %v702 = vshrl.u32 %v701, 7
  %v703 = vsub.s32 %v700, %v702
  %v704 = vrot.slane %v682, %v703
  %v706 = vunpack.c.l.s4 1966171168
  %v707 = vunpack.c.0.s8 %v706
  %v708 = vlaneseq
  %v709 = vshrl.u32 %v708, 7
  %v710 = vsub.s32 %v707, %v709
  %v711 = vrot.slane %v683, %v710
  %v712 = vcombine.high %v690, %v690
  %v713 = vcombine.high %v697, %v697
  %v714 = vcombine.high %v704, %v704
  %v715 = vcombine.high %v711, %v711
  %v716 = vcombine.high %v281, %v281
  %v718 = vunpack.c.l.s4 1966171168
  %v719 = vunpack.c.0.s8 %v718
  %v720 = vlaneseq
  %v721 = vshrl.u32 %v720, 7
  %v722 = vsub.s32 %v719, %v721
  %v723 = vrot.slane %v281, %v722
  %v725 = vunpack.c.l.s4 1966171168
  %v726 = vunpack.c.0.s8 %v725
  %v727 = vlaneseq
  %v728 = vshrl.u32 %v727, 7
  %v729 = vsub.s32 %v726, %v728
  %v730 = vrot.slane %v716, %v729
  %v731 = vcombine.high %v723, %v723
  %v732 = vcombine.high %v730, %v730
  %v734 = vunpack.c.l.s4 1966171168
  %v735 = vunpack.c.0.s8 %v734
  %v736 = vlaneseq
  %v737 = vshrl.u32 %v736, 7
  %v738 = vsub.s32 %v735, %v737
  %v739 = vrot.slane %v723, %v738
  %v741 = vunpack.c.l.s4 1966171168
  %v742 = vunpack.c.0.s8 %v741
  %v743 = vlaneseq
  %v744 = vshrl.u32 %v743, 7
  %v745 = vsub.s32 %v742, %v744
  %v746 = vrot.slane %v730, %v745
  %v748 = vunpack.c.l.s4 1966171168
  %v749 = vunpack.c.0.s8 %v748
  %v750 = vlaneseq
  %v751 = vshrl.u32 %v750, 7
  %v752 = vsub.s32 %v749, %v751
  %v753 = vrot.slane %v731, %v752
  %v755 = vunpack.c.l.s4 1966171168
  %v756 = vunpack.c.0.s8 %v755
  %v757 = vlaneseq
  %v758 = vshrl.u32 %v757, 7
  %v759 = vsub.s32 %v756, %v758
  %v760 = vrot.slane %v732, %v759
  %v761 = vcombine.high %v739, %v739
  %v762 = vcombine.high %v746, %v746
  %v763 = vcombine.high %v753, %v753
  %v764 = vcombine.high %v760, %v760
  %v765 = vcombine.high %v286, %v286
  %v767 = vunpack.c.l.s4 1966171168
  %v768 = vunpack.c.0.s8 %v767
  %v769 = vlaneseq
  %v770 = vshrl.u32 %v769, 7
  %v771 = vsub.s32 %v768, %v770
  %v772 = vrot.slane %v286, %v771
  %v774 = vunpack.c.l.s4 1966171168
  %v775 = vunpack.c.0.s8 %v774
  %v776 = vlaneseq
  %v777 = vshrl.u32 %v776, 7
  %v778 = vsub.s32 %v775, %v777
  %v779 = vrot.slane %v765, %v778
  %v780 = vcombine.high %v772, %v772
  %v781 = vcombine.high %v779, %v779
  %v783 = vunpack.c.l.s4 1966171168
  %v784 = vunpack.c.0.s8 %v783
  %v785 = vlaneseq
  %v786 = vshrl.u32 %v785, 7
  %v787 = vsub.s32 %v784, %v786
  %v788 = vrot.slane %v772, %v787
  %v790 = vunpack.c.l.s4 1966171168
  %v791 = vunpack.c.0.s8 %v790
  %v792 = vlaneseq
  %v793 = vshrl.u32 %v792, 7
  %v794 = vsub.s32 %v791, %v793
  %v795 = vrot.slane %v779, %v794
  %v797 = vunpack.c.l.s4 1966171168
  %v798 = vunpack.c.0.s8 %v797
  %v799 = vlaneseq
  %v800 = vshrl.u32 %v799, 7
  %v801 = vsub.s32 %v798, %v800
  %v802 = vrot.slane %v780, %v801
  %v804 = vunpack.c.l.s4 1966171168
  %v805 = vunpack.c.0.s8 %v804
  %v806 = vlaneseq
  %v807 = vshrl.u32 %v806, 7
  %v808 = vsub.s32 %v805, %v807
  %v809 = vrot.slane %v781, %v808
  %v810 = vcombine.high %v788, %v788
  %v811 = vcombine.high %v795, %v795
  %v812 = vcombine.high %v802, %v802
  %v813 = vcombine.high %v809, %v809
  %v814 = vlaneseq
  %v815 = vshrl.u32 %v814, 7
  %v816 = vsub.s32 0, %v815
  %v817 = vrot.slane %v641, %v816
  %v818 = vlaneseq
  %v819 = vshrl.u32 %v818, 7
  %v820 = vsub.s32 0, %v819
  %v821 = vrot.slane %v655, %v820
  %v822 = vlaneseq
  %v823 = vshrl.u32 %v822, 7
  %v824 = vsub.s32 0, %v823
  %v825 = vrot.slane %v663, %v824
  %v826 = vlaneseq
  %v827 = vshrl.u32 %v826, 7
  %v828 = vsub.s32 0, %v827
  %v829 = vrot.slane %v665, %v828
  %v830 = vlaneseq
  %v831 = vshrl.u32 %v830, 7
  %v832 = vsub.s32 0, %v831
  %v833 = vrot.slane %v648, %v832
  %v834 = vlaneseq
  %v835 = vshrl.u32 %v834, 7
  %v836 = vsub.s32 0, %v835
  %v837 = vrot.slane %v662, %v836
  %v838 = vlaneseq
  %v839 = vshrl.u32 %v838, 7
  %v840 = vsub.s32 0, %v839
  %v841 = vrot.slane %v664, %v840
  %v842 = vlaneseq
  %v843 = vshrl.u32 %v842, 7
  %v844 = vsub.s32 0, %v843
  %v845 = vrot.slane %v666, %v844
  %v846 = vlaneseq
  %v847 = vshrl.u32 %v846, 7
  %v848 = vsub.s32 0, %v847
  %v849 = vrot.slane %v690, %v848
  %v850 = vlaneseq
  %v851 = vshrl.u32 %v850, 7
  %v852 = vsub.s32 0, %v851
  %v853 = vrot.slane %v704, %v852
  %v854 = vlaneseq
  %v855 = vshrl.u32 %v854, 7
  %v856 = vsub.s32 0, %v855
  %v857 = vrot.slane %v712, %v856
  %v858 = vlaneseq
  %v859 = vshrl.u32 %v858, 7
  %v860 = vsub.s32 0, %v859
  %v861 = vrot.slane %v714, %v860
  %v862 = vlaneseq
  %v863 = vshrl.u32 %v862, 7
  %v864 = vsub.s32 0, %v863
  %v865 = vrot.slane %v697, %v864
  %v866 = vlaneseq
  %v867 = vshrl.u32 %v866, 7
  %v868 = vsub.s32 0, %v867
  %v869 = vrot.slane %v711, %v868
  %v870 = vlaneseq
  %v871 = vshrl.u32 %v870, 7
  %v872 = vsub.s32 0, %v871
  %v873 = vrot.slane %v713, %v872
  %v874 = vlaneseq
  %v875 = vshrl.u32 %v874, 7
  %v876 = vsub.s32 0, %v875
  %v877 = vrot.slane %v715, %v876
  %v878 = vlaneseq
  %v879 = vshrl.u32 %v878, 7
  %v880 = vsub.s32 0, %v879
  %v881 = vrot.slane %v739, %v880
  %v882 = vlaneseq
  %v883 = vshrl.u32 %v882, 7
  %v884 = vsub.s32 0, %v883
  %v885 = vrot.slane %v753, %v884
  %v886 = vlaneseq
  %v887 = vshrl.u32 %v886, 7
  %v888 = vsub.s32 0, %v887
  %v889 = vrot.slane %v761, %v888
  %v890 = vlaneseq
  %v891 = vshrl.u32 %v890, 7
  %v892 = vsub.s32 0, %v891
  %v893 = vrot.slane %v763, %v892
  %v894 = vlaneseq
  %v895 = vshrl.u32 %v894, 7
  %v896 = vsub.s32 0, %v895
  %v897 = vrot.slane %v746, %v896
  %v898 = vlaneseq
  %v899 = vshrl.u32 %v898, 7
  %v900 = vsub.s32 0, %v899
  %v901 = vrot.slane %v760, %v900
  %v902 = vlaneseq
  %v903 = vshrl.u32 %v902, 7
  %v904 = vsub.s32 0, %v903
  %v905 = vrot.slane %v762, %v904
  %v906 = vlaneseq
  %v907 = vshrl.u32 %v906, 7
  %v908 = vsub.s32 0, %v907
  %v909 = vrot.slane %v764, %v908
  %v910 = vlaneseq
  %v911 = vshrl.u32 %v910, 7
  %v912 = vsub.s32 0, %v911
  %v913 = vrot.slane %v788, %v912
  %v914 = vlaneseq
  %v915 = vshrl.u32 %v914, 7
  %v916 = vsub.s32 0, %v915
  %v917 = vrot.slane %v802, %v916
  %v918 = vlaneseq
  %v919 = vshrl.u32 %v918, 7
  %v920 = vsub.s32 0, %v919
  %v921 = vrot.slane %v810, %v920
  %v922 = vlaneseq
  %v923 = vshrl.u32 %v922, 7
  %v924 = vsub.s32 0, %v923
  %v925 = vrot.slane %v812, %v924
  %v926 = vlaneseq
  %v927 = vshrl.u32 %v926, 7
  %v928 = vsub.s32 0, %v927
  %v929 = vrot.slane %v795, %v928
  %v930 = vlaneseq
  %v931 = vshrl.u32 %v930, 7
  %v932 = vsub.s32 0, %v931
  %v933 = vrot.slane %v809, %v932
  %v934 = vlaneseq
  %v935 = vshrl.u32 %v934, 7
  %v936 = vsub.s32 0, %v935
  %v937 = vrot.slane %v811, %v936
  %v938 = vlaneseq
  %v939 = vshrl.u32 %v938, 7
  %v940 = vsub.s32 0, %v939
  %v941 = vrot.slane %v813, %v940
  %v974 = vadd.f32 %v456, %v817
  %v975 = vadd.f32 %v461, %v821
  %v976 = vadd.f32 %v466, %v825
  %v977 = vadd.f32 %v471, %v829
  %v978 = vadd.f32 %v476, %v833
  %v979 = vadd.f32 %v481, %v837
  %v980 = vadd.f32 %v486, %v841
  %v981 = vadd.f32 %v491, %v845
  %v982 = vadd.f32 %v496, %v849
  %v983 = vadd.f32 %v501, %v853
  %v984 = vadd.f32 %v506, %v857
  %v985 = vadd.f32 %v511, %v861
  %v986 = vadd.f32 %v516, %v865
  %v987 = vadd.f32 %v521, %v869
  %v988 = vadd.f32 %v526, %v873
  %v989 = vadd.f32 %v531, %v877
  %v990 = vadd.f32 %v536, %v881
  %v991 = vadd.f32 %v541, %v885
  %v992 = vadd.f32 %v546, %v889
  %v993 = vadd.f32 %v551, %v893
  %v994 = vadd.f32 %v556, %v897
  %v995 = vadd.f32 %v561, %v901
  %v996 = vadd.f32 %v566, %v905
  %v997 = vadd.f32 %v571, %v909
  %v998 = vadd.f32 %v576, %v913
  %v999 = vadd.f32 %v581, %v917
  %v1000 = vadd.f32 %v586, %v921
  %v1001 = vadd.f32 %v591, %v925
  %v1002 = vadd.f32 %v596, %v929
  %v1003 = vadd.f32 %v601, %v933
  %v1004 = vadd.f32 %v606, %v937
  %v1005 = vadd.f32 %v611, %v941
  %v1006 = vld [vmem:[%s6] sm:$0x1]
  %1008 = vset.pattern.permute.xlu0 0
  %1009 = vperm.xlu0 %1008, %v150
  %v1010 = vpop.permute.xlu0 %1009
  %1013 = vset.pattern.permute.xlu0 0
  %1014 = vperm.xlu0 %1013, %v151
  %v1015 = vpop.permute.xlu0 %1014
  %1018 = vset.pattern.permute.xlu0 0
  %1019 = vperm.xlu0 %1018, %v152
  %v1020 = vpop.permute.xlu0 %1019
  %1023 = vset.pattern.permute.xlu0 0
  %1024 = vperm.xlu0 %1023, %v153
  %v1025 = vpop.permute.xlu0 %1024
  %1028 = vset.pattern.permute.xlu0 0
  %1029 = vperm.xlu0 %1028, %v154
  %v1030 = vpop.permute.xlu0 %1029
  %1033 = vset.pattern.permute.xlu0 0
  %1034 = vperm.xlu0 %1033, %v155
  %v1035 = vpop.permute.xlu0 %1034
  %1038 = vset.pattern.permute.xlu0 0
  %1039 = vperm.xlu0 %1038, %v156
  %v1040 = vpop.permute.xlu0 %1039
  %1043 = vset.pattern.permute.xlu0 0
  %1044 = vperm.xlu0 %1043, %v157
  %v1045 = vpop.permute.xlu0 %1044
  %1048 = vset.pattern.permute.xlu0 0
  %1049 = vperm.xlu0 %1048, %v158
  %v1050 = vpop.permute.xlu0 %1049
  %1053 = vset.pattern.permute.xlu0 0
  %1054 = vperm.xlu0 %1053, %v159
  %v1055 = vpop.permute.xlu0 %1054
  %1058 = vset.pattern.permute.xlu0 0
  %1059 = vperm.xlu0 %1058, %v160
  %v1060 = vpop.permute.xlu0 %1059
  %1063 = vset.pattern.permute.xlu0 0
  %1064 = vperm.xlu0 %1063, %v161
  %v1065 = vpop.permute.xlu0 %1064
  %1068 = vset.pattern.permute.xlu0 0
  %1069 = vperm.xlu0 %1068, %v162
  %v1070 = vpop.permute.xlu0 %1069
  %1073 = vset.pattern.permute.xlu0 0
  %1074 = vperm.xlu0 %1073, %v163
  %v1075 = vpop.permute.xlu0 %1074
  %1078 = vset.pattern.permute.xlu0 0
  %1079 = vperm.xlu0 %1078, %v164
  %v1080 = vpop.permute.xlu0 %1079
  %1083 = vset.pattern.permute.xlu0 0
  %1084 = vperm.xlu0 %1083, %v165
  %v1085 = vpop.permute.xlu0 %1084
  %1088 = vset.pattern.permute.xlu0 0
  %1089 = vperm.xlu0 %1088, %v166
  %v1090 = vpop.permute.xlu0 %1089
  %1093 = vset.pattern.permute.xlu0 0
  %1094 = vperm.xlu0 %1093, %v167
  %v1095 = vpop.permute.xlu0 %1094
  %1098 = vset.pattern.permute.xlu0 0
  %1099 = vperm.xlu0 %1098, %v168
  %v1100 = vpop.permute.xlu0 %1099
  %1103 = vset.pattern.permute.xlu0 0
  %1104 = vperm.xlu0 %1103, %v169
  %v1105 = vpop.permute.xlu0 %1104
  %1108 = vset.pattern.permute.xlu0 0
  %1109 = vperm.xlu0 %1108, %v170
  %v1110 = vpop.permute.xlu0 %1109
  %1113 = vset.pattern.permute.xlu0 0
  %1114 = vperm.xlu0 %1113, %v171
  %v1115 = vpop.permute.xlu0 %1114
  %1118 = vset.pattern.permute.xlu0 0
  %1119 = vperm.xlu0 %1118, %v172
  %v1120 = vpop.permute.xlu0 %1119
  %1123 = vset.pattern.permute.xlu0 0
  %1124 = vperm.xlu0 %1123, %v173
  %v1125 = vpop.permute.xlu0 %1124
  %1128 = vset.pattern.permute.xlu0 0
  %1129 = vperm.xlu0 %1128, %v174
  %v1130 = vpop.permute.xlu0 %1129
  %1133 = vset.pattern.permute.xlu0 0
  %1134 = vperm.xlu0 %1133, %v175
  %v1135 = vpop.permute.xlu0 %1134
  %1138 = vset.pattern.permute.xlu0 0
  %1139 = vperm.xlu0 %1138, %v176
  %v1140 = vpop.permute.xlu0 %1139
  %1143 = vset.pattern.permute.xlu0 0
  %1144 = vperm.xlu0 %1143, %v177
  %v1145 = vpop.permute.xlu0 %1144
  %1148 = vset.pattern.permute.xlu0 0
  %1149 = vperm.xlu0 %1148, %v178
  %v1150 = vpop.permute.xlu0 %1149
  %1153 = vset.pattern.permute.xlu0 0
  %1154 = vperm.xlu0 %1153, %v179
  %v1155 = vpop.permute.xlu0 %1154
  %1158 = vset.pattern.permute.xlu0 0
  %1159 = vperm.xlu0 %1158, %v180
  %v1160 = vpop.permute.xlu0 %1159
  %1163 = vset.pattern.permute.xlu0 0
  %1164 = vperm.xlu0 %1163, %v181
  %v1165 = vpop.permute.xlu0 %1164
  %v1168 = vlaneseq
  %v1169 = vshrl.u32 %v1168, 7
  %v1170 = vsub.s32 0, %v1169
  %v1171 = vrot.slane %v1006, %v1170
  %v1173 = vmul.f32 %v1010, %v1171
  %v1174 = vmul.f32 %v1015, %v1171
  %v1175 = vmul.f32 %v1020, %v1171
  %v1176 = vmul.f32 %v1025, %v1171
  %v1177 = vmul.f32 %v1030, %v1171
  %v1178 = vmul.f32 %v1035, %v1171
  %v1179 = vmul.f32 %v1040, %v1171
  %v1180 = vmul.f32 %v1045, %v1171
  %v1181 = vmul.f32 %v1050, %v1171
  %v1182 = vmul.f32 %v1055, %v1171
  %v1183 = vmul.f32 %v1060, %v1171
  %v1184 = vmul.f32 %v1065, %v1171
  %v1185 = vmul.f32 %v1070, %v1171
  %v1186 = vmul.f32 %v1075, %v1171
  %v1187 = vmul.f32 %v1080, %v1171
  %v1188 = vmul.f32 %v1085, %v1171
  %v1189 = vmul.f32 %v1090, %v1171
  %v1190 = vmul.f32 %v1095, %v1171
  %v1191 = vmul.f32 %v1100, %v1171
  %v1192 = vmul.f32 %v1105, %v1171
  %v1193 = vmul.f32 %v1110, %v1171
  %v1194 = vmul.f32 %v1115, %v1171
  %v1195 = vmul.f32 %v1120, %v1171
  %v1196 = vmul.f32 %v1125, %v1171
  %v1197 = vmul.f32 %v1130, %v1171
  %v1198 = vmul.f32 %v1135, %v1171
  %v1199 = vmul.f32 %v1140, %v1171
  %v1200 = vmul.f32 %v1145, %v1171
  %v1201 = vmul.f32 %v1150, %v1171
  %v1202 = vmul.f32 %v1155, %v1171
  %v1203 = vmul.f32 %v1160, %v1171
  %v1204 = vmul.f32 %v1165, %v1171
  %v1205 = vadd.f32 %v974, %v1173
  %v1206 = vadd.f32 %v975, %v1174
  %v1207 = vadd.f32 %v976, %v1175
  %v1208 = vadd.f32 %v977, %v1176
  %v1209 = vadd.f32 %v978, %v1177
  %v1210 = vadd.f32 %v979, %v1178
  %v1211 = vadd.f32 %v980, %v1179
  %v1212 = vadd.f32 %v981, %v1180
  %v1213 = vadd.f32 %v982, %v1181
  %v1214 = vadd.f32 %v983, %v1182
  %v1215 = vadd.f32 %v984, %v1183
  %v1216 = vadd.f32 %v985, %v1184
  %v1217 = vadd.f32 %v986, %v1185
  %v1218 = vadd.f32 %v987, %v1186
  %v1219 = vadd.f32 %v988, %v1187
  %v1220 = vadd.f32 %v989, %v1188
  %v1221 = vadd.f32 %v990, %v1189
  %v1222 = vadd.f32 %v991, %v1190
  %v1223 = vadd.f32 %v992, %v1191
  %v1224 = vadd.f32 %v993, %v1192
  %v1225 = vadd.f32 %v994, %v1193
  %v1226 = vadd.f32 %v995, %v1194
  %v1227 = vadd.f32 %v996, %v1195
  %v1228 = vadd.f32 %v997, %v1196
  %v1229 = vadd.f32 %v998, %v1197
  %v1230 = vadd.f32 %v999, %v1198
  %v1231 = vadd.f32 %v1000, %v1199
  %v1232 = vadd.f32 %v1001, %v1200
  %v1233 = vadd.f32 %v1002, %v1201
  %v1234 = vadd.f32 %v1003, %v1202
  %v1235 = vadd.f32 %v1004, %v1203
  %v1236 = vadd.f32 %v1005, %v1204
  %v1237 = vld [vmem:[%s7] sm:$0x1]
  %v1239 = vlaneseq
  %v1240 = vshrl.u32 %v1239, 7
  %v1241 = vsub.s32 0, %v1240
  %v1242 = vrot.slane %v1237, %v1241
  %v1244 = vadd.f32 %v1205, %v1242
  %v1245 = vadd.f32 %v1206, %v1242
  %v1246 = vadd.f32 %v1207, %v1242
  %v1247 = vadd.f32 %v1208, %v1242
  %v1248 = vadd.f32 %v1209, %v1242
  %v1249 = vadd.f32 %v1210, %v1242
  %v1250 = vadd.f32 %v1211, %v1242
  %v1251 = vadd.f32 %v1212, %v1242
  %v1252 = vadd.f32 %v1213, %v1242
  %v1253 = vadd.f32 %v1214, %v1242
  %v1254 = vadd.f32 %v1215, %v1242
  %v1255 = vadd.f32 %v1216, %v1242
  %v1256 = vadd.f32 %v1217, %v1242
  %v1257 = vadd.f32 %v1218, %v1242
  %v1258 = vadd.f32 %v1219, %v1242
  %v1259 = vadd.f32 %v1220, %v1242
  %v1260 = vadd.f32 %v1221, %v1242
  %v1261 = vadd.f32 %v1222, %v1242
  %v1262 = vadd.f32 %v1223, %v1242
  %v1263 = vadd.f32 %v1224, %v1242
  %v1264 = vadd.f32 %v1225, %v1242
  %v1265 = vadd.f32 %v1226, %v1242
  %v1266 = vadd.f32 %v1227, %v1242
  %v1267 = vadd.f32 %v1228, %v1242
  %v1268 = vadd.f32 %v1229, %v1242
  %v1269 = vadd.f32 %v1230, %v1242
  %v1270 = vadd.f32 %v1231, %v1242
  %v1271 = vadd.f32 %v1232, %v1242
  %v1272 = vadd.f32 %v1233, %v1242
  %v1273 = vadd.f32 %v1234, %v1242
  %v1274 = vadd.f32 %v1235, %v1242
  %v1275 = vadd.f32 %v1236, %v1242
  %v1276 = vmax.f32 %v1244, 0.0
  %v1277 = vmax.f32 %v1245, 0.0
  %v1278 = vmax.f32 %v1246, 0.0
  %v1279 = vmax.f32 %v1247, 0.0
  %v1280 = vmax.f32 %v1248, 0.0
  %v1281 = vmax.f32 %v1249, 0.0
  %v1282 = vmax.f32 %v1250, 0.0
  %v1283 = vmax.f32 %v1251, 0.0
  %v1284 = vmax.f32 %v1252, 0.0
  %v1285 = vmax.f32 %v1253, 0.0
  %v1286 = vmax.f32 %v1254, 0.0
  %v1287 = vmax.f32 %v1255, 0.0
  %v1288 = vmax.f32 %v1256, 0.0
  %v1289 = vmax.f32 %v1257, 0.0
  %v1290 = vmax.f32 %v1258, 0.0
  %v1291 = vmax.f32 %v1259, 0.0
  %v1292 = vmax.f32 %v1260, 0.0
  %v1293 = vmax.f32 %v1261, 0.0
  %v1294 = vmax.f32 %v1262, 0.0
  %v1295 = vmax.f32 %v1263, 0.0
  %v1296 = vmax.f32 %v1264, 0.0
  %v1297 = vmax.f32 %v1265, 0.0
  %v1298 = vmax.f32 %v1266, 0.0
  %v1299 = vmax.f32 %v1267, 0.0
  %v1300 = vmax.f32 %v1268, 0.0
  %v1301 = vmax.f32 %v1269, 0.0
  %v1302 = vmax.f32 %v1270, 0.0
  %v1303 = vmax.f32 %v1271, 0.0
  %v1304 = vmax.f32 %v1272, 0.0
  %v1305 = vmax.f32 %v1273, 0.0
  %v1306 = vmax.f32 %v1274, 0.0
  %v1307 = vmax.f32 %v1275, 0.0
  %v1308 = vld [vmem:[%s8] sm:$0xff]
  %vm1309 = vcmask 64512
  %v1311 = vsel %vm1309, %v1276, 0
  %v1314 = vsel %vm1309, %v1277, 0
  %v1317 = vsel %vm1309, %v1278, 0
  %v1320 = vsel %vm1309, %v1279, 0
  %v1323 = vsel %vm1309, %v1280, 0
  %v1326 = vsel %vm1309, %v1281, 0
  %v1329 = vsel %vm1309, %v1282, 0
  %v1332 = vsel %vm1309, %v1283, 0
  %v1335 = vsel %vm1309, %v1284, 0
  %v1338 = vsel %vm1309, %v1285, 0
  %v1341 = vsel %vm1309, %v1286, 0
  %v1344 = vsel %vm1309, %v1287, 0
  %v1347 = vsel %vm1309, %v1288, 0
  %v1350 = vsel %vm1309, %v1289, 0
  %v1353 = vsel %vm1309, %v1290, 0
  %v1356 = vsel %vm1309, %v1291, 0
  %v1359 = vsel %vm1309, %v1292, 0
  %v1362 = vsel %vm1309, %v1293, 0
  %v1365 = vsel %vm1309, %v1294, 0
  %v1368 = vsel %vm1309, %v1295, 0
  %v1371 = vsel %vm1309, %v1296, 0
  %v1374 = vsel %vm1309, %v1297, 0
  %v1377 = vsel %vm1309, %v1298, 0
  %v1380 = vsel %vm1309, %v1299, 0
  %v1383 = vsel %vm1309, %v1300, 0
  %v1386 = vsel %vm1309, %v1301, 0
  %v1389 = vsel %vm1309, %v1302, 0
  %v1392 = vsel %vm1309, %v1303, 0
  %v1395 = vsel %vm1309, %v1304, 0
  %v1398 = vsel %vm1309, %v1305, 0
  %v1401 = vsel %vm1309, %v1306, 0
  %v1404 = vsel %vm1309, %v1307, 0
  %1406 = vmatprep.subr.mxu0 0.0
  %1407 = vmatpush1.msra.mxu0 %v1308
  %1408 = vmatprep.subr.mxu0 0.0
  %1409 = vmatpush1.msra.mxu0 0.0
  %1410 = vmatprep.subr.mxu0 0.0
  %1411 = vmatpush1.msra.mxu0 0.0
  %1412 = vmatprep.subr.mxu0 0.0
  %1413 = vmatpush1.msra.mxu0 0.0
  %1414 = vmatprep.subr.mxu0 0.0
  %1415 = vmatpush1.msra.mxu0 0.0
  %1416 = vmatprep.subr.mxu0 0.0
  %1417 = vmatpush1.msra.mxu0 0.0
  %1418 = vmatprep.subr.mxu0 0.0
  %1419 = vmatpush1.msra.mxu0 0.0
  %1420 = vmatprep.subr.mxu0 0.0
  %1421 = vmatpush1.msra.mxu0 0.0
  %1422 = vmatprep.subr.mxu0 0.0
  %1423 = vmatpush1.msra.mxu0 0.0
  %1424 = vmatprep.subr.mxu0 0.0
  %1425 = vmatpush1.msra.mxu0 0.0
  %1426 = vmatprep.subr.mxu0 0.0
  %1427 = vmatpush1.msra.mxu0 0.0
  %1428 = vmatprep.subr.mxu0 0.0
  %1429 = vmatpush1.msra.mxu0 0.0
  %1430 = vmatprep.subr.mxu0 0.0
  %1431 = vmatpush1.msra.mxu0 0.0
  %1432 = vmatprep.subr.mxu0 0.0
  %1433 = vmatpush1.msra.mxu0 0.0
  %1434 = vmatprep.subr.mxu0 0.0
  %1435 = vmatpush1.msra.mxu0 0.0
  %1436 = vmatprep.subr.mxu0 0.0
  %1437 = vmatpush1.msra.mxu0 0.0
  %1438 = vmatprep.subr.mxu0 0.0
  %1439 = vmatpush1.msra.mxu0 0.0
  %1440 = vmatprep.subr.mxu0 0.0
  %1441 = vmatpush1.msra.mxu0 0.0
  %1442 = vmatprep.subr.mxu0 0.0
  %1443 = vmatpush1.msra.mxu0 0.0
  %1444 = vmatprep.subr.mxu0 0.0
  %1445 = vmatpush1.msra.mxu0 0.0
  %1446 = vmatprep.subr.mxu0 0.0
  %1447 = vmatpush1.msra.mxu0 0.0
  %1448 = vmatprep.subr.mxu0 0.0
  %1449 = vmatpush1.msra.mxu0 0.0
  %1450 = vmatprep.subr.mxu0 0.0
  %1451 = vmatpush1.msra.mxu0 0.0
  %1452 = vmatprep.subr.mxu0 0.0
  %1453 = vmatpush1.msra.mxu0 0.0
  %1454 = vmatprep.subr.mxu0 0.0
  %1455 = vmatpush1.msra.mxu0 0.0
  %1456 = vmatprep.subr.mxu0 0.0
  %1457 = vmatpush1.msra.mxu0 0.0
  %1458 = vmatprep.subr.mxu0 0.0
  %1459 = vmatpush1.msra.mxu0 0.0
  %1460 = vmatprep.subr.mxu0 0.0
  %1461 = vmatpush1.msra.mxu0 0.0
  %1462 = vmatprep.subr.mxu0 0.0
  %1463 = vmatpush1.msra.mxu0 0.0
  %1464 = vmatprep.subr.mxu0 0.0
  %1465 = vmatpush1.msra.mxu0 0.0
  %1466 = vmatprep.subr.mxu0 0.0
  %1467 = vmatpush1.msra.mxu0 0.0
  %1468 = vmatprep.subr.mxu0 0.0
  %1469 = vmatpush1.msra.mxu0 0.0
  %1470 = vmatprep.mubr.f32.mxu0 0.0
  %1471 = vmatmul.mubr.f32.gmra.mrb[0].mxu0 %v1311
  %v1472 = vpop.f32.mrb[0].mxu0
  %v1473 = vadd.f32 0.0, %v1472
  %v1474 = vpop.f32.mrb[0].mxu0
  %1475 = vmatprep.mubr.f32.mxu0 0.0
  %1476 = vmatmul.mubr.f32.gmra.mrb[0].mxu0 %v1314
  %v1477 = vpop.f32.mrb[0].mxu0
  %v1478 = vadd.f32 0.0, %v1477
  %v1479 = vpop.f32.mrb[0].mxu0
  %1480 = vmatprep.mubr.f32.mxu0 0.0
  %1481 = vmatmul.mubr.f32.gmra.mrb[0].mxu0 %v1317
  %v1482 = vpop.f32.mrb[0].mxu0
  %v1483 = vadd.f32 0.0, %v1482
  %v1484 = vpop.f32.mrb[0].mxu0
  %1485 = vmatprep.mubr.f32.mxu0 0.0
  %1486 = vmatmul.mubr.f32.gmra.mrb[0].mxu0 %v1320
  %v1487 = vpop.f32.mrb[0].mxu0
  %v1488 = vadd.f32 0.0, %v1487
  %v1489 = vpop.f32.mrb[0].mxu0
  %1490 = vmatprep.mubr.f32.mxu0 0.0
  %1491 = vmatmul.mubr.f32.gmra.mrb[0].mxu0 %v1323
  %v1492 = vpop.f32.mrb[0].mxu0
  %v1493 = vadd.f32 0.0, %v1492
  %v1494 = vpop.f32.mrb[0].mxu0
  %1495 = vmatprep.mubr.f32.mxu0 0.0
  %1496 = vmatmul.mubr.f32.gmra.mrb[0].mxu0 %v1326
  %v1497 = vpop.f32.mrb[0].mxu0
  %v1498 = vadd.f32 0.0, %v1497
  %v1499 = vpop.f32.mrb[0].mxu0
  %1500 = vmatprep.mubr.f32.mxu0 0.0
  %1501 = vmatmul.mubr.f32.gmra.mrb[0].mxu0 %v1329
  %v1502 = vpop.f32.mrb[0].mxu0
  %v1503 = vadd.f32 0.0, %v1502
  %v1504 = vpop.f32.mrb[0].mxu0
  %1505 = vmatprep.mubr.f32.mxu0 0.0
  %1506 = vmatmul.mubr.f32.gmra.mrb[0].mxu0 %v1332
  %v1507 = vpop.f32.mrb[0].mxu0
  %v1508 = vadd.f32 0.0, %v1507
  %v1509 = vpop.f32.mrb[0].mxu0
  %1510 = vmatprep.mubr.f32.mxu0 0.0
  %1511 = vmatmul.mubr.f32.gmra.mrb[0].mxu0 %v1335
  %v1512 = vpop.f32.mrb[0].mxu0
  %v1513 = vadd.f32 0.0, %v1512
  %v1514 = vpop.f32.mrb[0].mxu0
  %1515 = vmatprep.mubr.f32.mxu0 0.0
  %1516 = vmatmul.mubr.f32.gmra.mrb[0].mxu0 %v1338
  %v1517 = vpop.f32.mrb[0].mxu0
  %v1518 = vadd.f32 0.0, %v1517
  %v1519 = vpop.f32.mrb[0].mxu0
  %1520 = vmatprep.mubr.f32.mxu0 0.0
  %1521 = vmatmul.mubr.f32.gmra.mrb[0].mxu0 %v1341
  %v1522 = vpop.f32.mrb[0].mxu0
  %v1523 = vadd.f32 0.0, %v1522
  %v1524 = vpop.f32.mrb[0].mxu0
  %1525 = vmatprep.mubr.f32.mxu0 0.0
  %1526 = vmatmul.mubr.f32.gmra.mrb[0].mxu0 %v1344
  %v1527 = vpop.f32.mrb[0].mxu0
  %v1528 = vadd.f32 0.0, %v1527
  %v1529 = vpop.f32.mrb[0].mxu0
  %1530 = vmatprep.mubr.f32.mxu0 0.0
  %1531 = vmatmul.mubr.f32.gmra.mrb[0].mxu0 %v1347
  %v1532 = vpop.f32.mrb[0].mxu0
  %v1533 = vadd.f32 0.0, %v1532
  %v1534 = vpop.f32.mrb[0].mxu0
  %1535 = vmatprep.mubr.f32.mxu0 0.0
  %1536 = vmatmul.mubr.f32.gmra.mrb[0].mxu0 %v1350
  %v1537 = vpop.f32.mrb[0].mxu0
  %v1538 = vadd.f32 0.0, %v1537
  %v1539 = vpop.f32.mrb[0].mxu0
  %1540 = vmatprep.mubr.f32.mxu0 0.0
  %1541 = vmatmul.mubr.f32.gmra.mrb[0].mxu0 %v1353
  %v1542 = vpop.f32.mrb[0].mxu0
  %v1543 = vadd.f32 0.0, %v1542
  %v1544 = vpop.f32.mrb[0].mxu0
  %1545 = vmatprep.mubr.f32.mxu0 0.0
  %1546 = vmatmul.mubr.f32.gmra.mrb[0].mxu0 %v1356
  %v1547 = vpop.f32.mrb[0].mxu0
  %v1548 = vadd.f32 0.0, %v1547
  %v1549 = vpop.f32.mrb[0].mxu0
  %1550 = vmatprep.mubr.f32.mxu0 0.0
  %1551 = vmatmul.mubr.f32.gmra.mrb[0].mxu0 %v1359
  %v1552 = vpop.f32.mrb[0].mxu0
  %v1553 = vadd.f32 0.0, %v1552
  %v1554 = vpop.f32.mrb[0].mxu0
  %1555 = vmatprep.mubr.f32.mxu0 0.0
  %1556 = vmatmul.mubr.f32.gmra.mrb[0].mxu0 %v1362
  %v1557 = vpop.f32.mrb[0].mxu0
  %v1558 = vadd.f32 0.0, %v1557
  %v1559 = vpop.f32.mrb[0].mxu0
  %1560 = vmatprep.mubr.f32.mxu0 0.0
  %1561 = vmatmul.mubr.f32.gmra.mrb[0].mxu0 %v1365
  %v1562 = vpop.f32.mrb[0].mxu0
  %v1563 = vadd.f32 0.0, %v1562
  %v1564 = vpop.f32.mrb[0].mxu0
  %1565 = vmatprep.mubr.f32.mxu0 0.0
  %1566 = vmatmul.mubr.f32.gmra.mrb[0].mxu0 %v1368
  %v1567 = vpop.f32.mrb[0].mxu0
  %v1568 = vadd.f32 0.0, %v1567
  %v1569 = vpop.f32.mrb[0].mxu0
  %1570 = vmatprep.mubr.f32.mxu0 0.0
  %1571 = vmatmul.mubr.f32.gmra.mrb[0].mxu0 %v1371
  %v1572 = vpop.f32.mrb[0].mxu0
  %v1573 = vadd.f32 0.0, %v1572
  %v1574 = vpop.f32.mrb[0].mxu0
  %1575 = vmatprep.mubr.f32.mxu0 0.0
  %1576 = vmatmul.mubr.f32.gmra.mrb[0].mxu0 %v1374
  %v1577 = vpop.f32.mrb[0].mxu0
  %v1578 = vadd.f32 0.0, %v1577
  %v1579 = vpop.f32.mrb[0].mxu0
  %1580 = vmatprep.mubr.f32.mxu0 0.0
  %1581 = vmatmul.mubr.f32.gmra.mrb[0].mxu0 %v1377
  %v1582 = vpop.f32.mrb[0].mxu0
  %v1583 = vadd.f32 0.0, %v1582
  %v1584 = vpop.f32.mrb[0].mxu0
  %1585 = vmatprep.mubr.f32.mxu0 0.0
  %1586 = vmatmul.mubr.f32.gmra.mrb[0].mxu0 %v1380
  %v1587 = vpop.f32.mrb[0].mxu0
  %v1588 = vadd.f32 0.0, %v1587
  %v1589 = vpop.f32.mrb[0].mxu0
  %1590 = vmatprep.mubr.f32.mxu0 0.0
  %1591 = vmatmul.mubr.f32.gmra.mrb[0].mxu0 %v1383
  %v1592 = vpop.f32.mrb[0].mxu0
  %v1593 = vadd.f32 0.0, %v1592
  %v1594 = vpop.f32.mrb[0].mxu0
  %1595 = vmatprep.mubr.f32.mxu0 0.0
  %1596 = vmatmul.mubr.f32.gmra.mrb[0].mxu0 %v1386
  %v1597 = vpop.f32.mrb[0].mxu0
  %v1598 = vadd.f32 0.0, %v1597
  %v1599 = vpop.f32.mrb[0].mxu0
  %1600 = vmatprep.mubr.f32.mxu0 0.0
  %1601 = vmatmul.mubr.f32.gmra.mrb[0].mxu0 %v1389
  %v1602 = vpop.f32.mrb[0].mxu0
  %v1603 = vadd.f32 0.0, %v1602
  %v1604 = vpop.f32.mrb[0].mxu0
  %1605 = vmatprep.mubr.f32.mxu0 0.0
  %1606 = vmatmul.mubr.f32.gmra.mrb[0].mxu0 %v1392
  %v1607 = vpop.f32.mrb[0].mxu0
  %v1608 = vadd.f32 0.0, %v1607
  %v1609 = vpop.f32.mrb[0].mxu0
  %1610 = vmatprep.mubr.f32.mxu0 0.0
  %1611 = vmatmul.mubr.f32.gmra.mrb[0].mxu0 %v1395
  %v1612 = vpop.f32.mrb[0].mxu0
  %v1613 = vadd.f32 0.0, %v1612
  %v1614 = vpop.f32.mrb[0].mxu0
  %1615 = vmatprep.mubr.f32.mxu0 0.0
  %1616 = vmatmul.mubr.f32.gmra.mrb[0].mxu0 %v1398
  %v1617 = vpop.f32.mrb[0].mxu0
  %v1618 = vadd.f32 0.0, %v1617
  %v1619 = vpop.f32.mrb[0].mxu0
  %1620 = vmatprep.mubr.f32.mxu0 0.0
  %1621 = vmatmul.mubr.f32.gmra.mrb[0].mxu0 %v1401
  %v1622 = vpop.f32.mrb[0].mxu0
  %v1623 = vadd.f32 0.0, %v1622
  %v1624 = vpop.f32.mrb[0].mxu0
  %1625 = vmatprep.mubr.f32.mxu0 0.0
  %1626 = vmatmul.mubr.f32.gmra.mrb[0].mxu0 %v1404
  %v1627 = vpop.f32.mrb[0].mxu0
  %v1628 = vadd.f32 0.0, %v1627
  %v1629 = vpop.f32.mrb[0].mxu0
  %1630 = vdwg.mxu0
  %v1631 = vld [vmem:[%s10] sm:$0xff]
  %v1633 = vsel %vm1309, %v182, 0
  %v1636 = vsel %vm1309, %v183, 0
  %v1639 = vsel %vm1309, %v184, 0
  %v1642 = vsel %vm1309, %v185, 0
  %1644 = vmatprep.subr.mxu0 0.0
  %1645 = vmatpush1.msra.mxu0 %v1631
  %1646 = vmatprep.subr.mxu0 0.0
  %1647 = vmatpush1.msra.mxu0 0.0
  %1648 = vmatprep.subr.mxu0 0.0
  %1649 = vmatpush1.msra.mxu0 0.0
  %1650 = vmatprep.subr.mxu0 0.0
  %1651 = vmatpush1.msra.mxu0 0.0
  %1652 = vmatprep.subr.mxu0 0.0
  %1653 = vmatpush1.msra.mxu0 0.0
  %1654 = vmatprep.subr.mxu0 0.0
  %1655 = vmatpush1.msra.mxu0 0.0
  %1656 = vmatprep.subr.mxu0 0.0
  %1657 = vmatpush1.msra.mxu0 0.0
  %1658 = vmatprep.subr.mxu0 0.0
  %1659 = vmatpush1.msra.mxu0 0.0
  %1660 = vmatprep.subr.mxu0 0.0
  %1661 = vmatpush1.msra.mxu0 0.0
  %1662 = vmatprep.subr.mxu0 0.0
  %1663 = vmatpush1.msra.mxu0 0.0
  %1664 = vmatprep.subr.mxu0 0.0
  %1665 = vmatpush1.msra.mxu0 0.0
  %1666 = vmatprep.subr.mxu0 0.0
  %1667 = vmatpush1.msra.mxu0 0.0
  %1668 = vmatprep.subr.mxu0 0.0
  %1669 = vmatpush1.msra.mxu0 0.0
  %1670 = vmatprep.subr.mxu0 0.0
  %1671 = vmatpush1.msra.mxu0 0.0
  %1672 = vmatprep.subr.mxu0 0.0
  %1673 = vmatpush1.msra.mxu0 0.0
  %1674 = vmatprep.subr.mxu0 0.0
  %1675 = vmatpush1.msra.mxu0 0.0
  %1676 = vmatprep.subr.mxu0 0.0
  %1677 = vmatpush1.msra.mxu0 0.0
  %1678 = vmatprep.subr.mxu0 0.0
  %1679 = vmatpush1.msra.mxu0 0.0
  %1680 = vmatprep.subr.mxu0 0.0
  %1681 = vmatpush1.msra.mxu0 0.0
  %1682 = vmatprep.subr.mxu0 0.0
  %1683 = vmatpush1.msra.mxu0 0.0
  %1684 = vmatprep.subr.mxu0 0.0
  %1685 = vmatpush1.msra.mxu0 0.0
  %1686 = vmatprep.subr.mxu0 0.0
  %1687 = vmatpush1.msra.mxu0 0.0
  %1688 = vmatprep.subr.mxu0 0.0
  %1689 = vmatpush1.msra.mxu0 0.0
  %1690 = vmatprep.subr.mxu0 0.0
  %1691 = vmatpush1.msra.mxu0 0.0
  %1692 = vmatprep.subr.mxu0 0.0
  %1693 = vmatpush1.msra.mxu0 0.0
  %1694 = vmatprep.subr.mxu0 0.0
  %1695 = vmatpush1.msra.mxu0 0.0
  %1696 = vmatprep.subr.mxu0 0.0
  %1697 = vmatpush1.msra.mxu0 0.0
  %1698 = vmatprep.subr.mxu0 0.0
  %1699 = vmatpush1.msra.mxu0 0.0
  %1700 = vmatprep.subr.mxu0 0.0
  %1701 = vmatpush1.msra.mxu0 0.0
  %1702 = vmatprep.subr.mxu0 0.0
  %1703 = vmatpush1.msra.mxu0 0.0
  %1704 = vmatprep.subr.mxu0 0.0
  %1705 = vmatpush1.msra.mxu0 0.0
  %1706 = vmatprep.subr.mxu0 0.0
  %1707 = vmatpush1.msra.mxu0 0.0
  %1708 = vmatprep.mubr.f32.mxu0 0.0
  %1709 = vmatmul.mubr.f32.gmra.mrb[0].mxu0 %v1633
  %v1710 = vpop.f32.mrb[0].mxu0
  %v1711 = vadd.f32 0.0, %v1710
  %v1712 = vpop.f32.mrb[0].mxu0
  %1713 = vmatprep.mubr.f32.mxu0 0.0
  %1714 = vmatmul.mubr.f32.gmra.mrb[0].mxu0 %v1636
  %v1715 = vpop.f32.mrb[0].mxu0
  %v1716 = vadd.f32 0.0, %v1715
  %v1717 = vpop.f32.mrb[0].mxu0
  %1718 = vmatprep.mubr.f32.mxu0 0.0
  %1719 = vmatmul.mubr.f32.gmra.mrb[0].mxu0 %v1639
  %v1720 = vpop.f32.mrb[0].mxu0
  %v1721 = vadd.f32 0.0, %v1720
  %v1722 = vpop.f32.mrb[0].mxu0
  %1723 = vmatprep.mubr.f32.mxu0 0.0
  %1724 = vmatmul.mubr.f32.gmra.mrb[0].mxu0 %v1642
  %v1725 = vpop.f32.mrb[0].mxu0
  %v1726 = vadd.f32 0.0, %v1725
  %v1727 = vpop.f32.mrb[0].mxu0
  %1728 = vdwg.mxu0
  %v1733 = vcombine.high %v1711, %v1711
  %v1735 = vunpack.c.l.s4 1966171168
  %v1736 = vunpack.c.0.s8 %v1735
  %v1737 = vlaneseq
  %v1738 = vshrl.u32 %v1737, 7
  %v1739 = vsub.s32 %v1736, %v1738
  %v1740 = vrot.slane %v1711, %v1739
  %v1742 = vunpack.c.l.s4 1966171168
  %v1743 = vunpack.c.0.s8 %v1742
  %v1744 = vlaneseq
  %v1745 = vshrl.u32 %v1744, 7
  %v1746 = vsub.s32 %v1743, %v1745
  %v1747 = vrot.slane %v1733, %v1746
  %v1748 = vcombine.high %v1740, %v1740
  %v1749 = vcombine.high %v1747, %v1747
  %v1751 = vunpack.c.l.s4 1966171168
  %v1752 = vunpack.c.0.s8 %v1751
  %v1753 = vlaneseq
  %v1754 = vshrl.u32 %v1753, 7
  %v1755 = vsub.s32 %v1752, %v1754
  %v1756 = vrot.slane %v1740, %v1755
  %v1758 = vunpack.c.l.s4 1966171168
  %v1759 = vunpack.c.0.s8 %v1758
  %v1760 = vlaneseq
  %v1761 = vshrl.u32 %v1760, 7
  %v1762 = vsub.s32 %v1759, %v1761
  %v1763 = vrot.slane %v1747, %v1762
  %v1765 = vunpack.c.l.s4 1966171168
  %v1766 = vunpack.c.0.s8 %v1765
  %v1767 = vlaneseq
  %v1768 = vshrl.u32 %v1767, 7
  %v1769 = vsub.s32 %v1766, %v1768
  %v1770 = vrot.slane %v1748, %v1769
  %v1772 = vunpack.c.l.s4 1966171168
  %v1773 = vunpack.c.0.s8 %v1772
  %v1774 = vlaneseq
  %v1775 = vshrl.u32 %v1774, 7
  %v1776 = vsub.s32 %v1773, %v1775
  %v1777 = vrot.slane %v1749, %v1776
  %v1778 = vcombine.high %v1756, %v1756
  %v1779 = vcombine.high %v1763, %v1763
  %v1780 = vcombine.high %v1770, %v1770
  %v1781 = vcombine.high %v1777, %v1777
  %v1782 = vcombine.high %v1716, %v1716
  %v1784 = vunpack.c.l.s4 1966171168
  %v1785 = vunpack.c.0.s8 %v1784
  %v1786 = vlaneseq
  %v1787 = vshrl.u32 %v1786, 7
  %v1788 = vsub.s32 %v1785, %v1787
  %v1789 = vrot.slane %v1716, %v1788
  %v1791 = vunpack.c.l.s4 1966171168
  %v1792 = vunpack.c.0.s8 %v1791
  %v1793 = vlaneseq
  %v1794 = vshrl.u32 %v1793, 7
  %v1795 = vsub.s32 %v1792, %v1794
  %v1796 = vrot.slane %v1782, %v1795
  %v1797 = vcombine.high %v1789, %v1789
  %v1798 = vcombine.high %v1796, %v1796
  %v1800 = vunpack.c.l.s4 1966171168
  %v1801 = vunpack.c.0.s8 %v1800
  %v1802 = vlaneseq
  %v1803 = vshrl.u32 %v1802, 7
  %v1804 = vsub.s32 %v1801, %v1803
  %v1805 = vrot.slane %v1789, %v1804
  %v1807 = vunpack.c.l.s4 1966171168
  %v1808 = vunpack.c.0.s8 %v1807
  %v1809 = vlaneseq
  %v1810 = vshrl.u32 %v1809, 7
  %v1811 = vsub.s32 %v1808, %v1810
  %v1812 = vrot.slane %v1796, %v1811
  %v1814 = vunpack.c.l.s4 1966171168
  %v1815 = vunpack.c.0.s8 %v1814
  %v1816 = vlaneseq
  %v1817 = vshrl.u32 %v1816, 7
  %v1818 = vsub.s32 %v1815, %v1817
  %v1819 = vrot.slane %v1797, %v1818
  %v1821 = vunpack.c.l.s4 1966171168
  %v1822 = vunpack.c.0.s8 %v1821
  %v1823 = vlaneseq
  %v1824 = vshrl.u32 %v1823, 7
  %v1825 = vsub.s32 %v1822, %v1824
  %v1826 = vrot.slane %v1798, %v1825
  %v1827 = vcombine.high %v1805, %v1805
  %v1828 = vcombine.high %v1812, %v1812
  %v1829 = vcombine.high %v1819, %v1819
  %v1830 = vcombine.high %v1826, %v1826
  %v1831 = vcombine.high %v1721, %v1721
  %v1833 = vunpack.c.l.s4 1966171168
  %v1834 = vunpack.c.0.s8 %v1833
  %v1835 = vlaneseq
  %v1836 = vshrl.u32 %v1835, 7
  %v1837 = vsub.s32 %v1834, %v1836
  %v1838 = vrot.slane %v1721, %v1837
  %v1840 = vunpack.c.l.s4 1966171168
  %v1841 = vunpack.c.0.s8 %v1840
  %v1842 = vlaneseq
  %v1843 = vshrl.u32 %v1842, 7
  %v1844 = vsub.s32 %v1841, %v1843
  %v1845 = vrot.slane %v1831, %v1844
  %v1846 = vcombine.high %v1838, %v1838
  %v1847 = vcombine.high %v1845, %v1845
  %v1849 = vunpack.c.l.s4 1966171168
  %v1850 = vunpack.c.0.s8 %v1849
  %v1851 = vlaneseq
  %v1852 = vshrl.u32 %v1851, 7
  %v1853 = vsub.s32 %v1850, %v1852
  %v1854 = vrot.slane %v1838, %v1853
  %v1856 = vunpack.c.l.s4 1966171168
  %v1857 = vunpack.c.0.s8 %v1856
  %v1858 = vlaneseq
  %v1859 = vshrl.u32 %v1858, 7
  %v1860 = vsub.s32 %v1857, %v1859
  %v1861 = vrot.slane %v1845, %v1860
  %v1863 = vunpack.c.l.s4 1966171168
  %v1864 = vunpack.c.0.s8 %v1863
  %v1865 = vlaneseq
  %v1866 = vshrl.u32 %v1865, 7
  %v1867 = vsub.s32 %v1864, %v1866
  %v1868 = vrot.slane %v1846, %v1867
  %v1870 = vunpack.c.l.s4 1966171168
  %v1871 = vunpack.c.0.s8 %v1870
  %v1872 = vlaneseq
  %v1873 = vshrl.u32 %v1872, 7
  %v1874 = vsub.s32 %v1871, %v1873
  %v1875 = vrot.slane %v1847, %v1874
  %v1876 = vcombine.high %v1854, %v1854
  %v1877 = vcombine.high %v1861, %v1861
  %v1878 = vcombine.high %v1868, %v1868
  %v1879 = vcombine.high %v1875, %v1875
  %v1880 = vcombine.high %v1726, %v1726
  %v1882 = vunpack.c.l.s4 1966171168
  %v1883 = vunpack.c.0.s8 %v1882
  %v1884 = vlaneseq
  %v1885 = vshrl.u32 %v1884, 7
  %v1886 = vsub.s32 %v1883, %v1885
  %v1887 = vrot.slane %v1726, %v1886
  %v1889 = vunpack.c.l.s4 1966171168
  %v1890 = vunpack.c.0.s8 %v1889
  %v1891 = vlaneseq
  %v1892 = vshrl.u32 %v1891, 7
  %v1893 = vsub.s32 %v1890, %v1892
  %v1894 = vrot.slane %v1880, %v1893
  %v1895 = vcombine.high %v1887, %v1887
  %v1896 = vcombine.high %v1894, %v1894
  %v1898 = vunpack.c.l.s4 1966171168
  %v1899 = vunpack.c.0.s8 %v1898
  %v1900 = vlaneseq
  %v1901 = vshrl.u32 %v1900, 7
  %v1902 = vsub.s32 %v1899, %v1901
  %v1903 = vrot.slane %v1887, %v1902
  %v1905 = vunpack.c.l.s4 1966171168
  %v1906 = vunpack.c.0.s8 %v1905
  %v1907 = vlaneseq
  %v1908 = vshrl.u32 %v1907, 7
  %v1909 = vsub.s32 %v1906, %v1908
  %v1910 = vrot.slane %v1894, %v1909
  %v1912 = vunpack.c.l.s4 1966171168
  %v1913 = vunpack.c.0.s8 %v1912
  %v1914 = vlaneseq
  %v1915 = vshrl.u32 %v1914, 7
  %v1916 = vsub.s32 %v1913, %v1915
  %v1917 = vrot.slane %v1895, %v1916
  %v1919 = vunpack.c.l.s4 1966171168
  %v1920 = vunpack.c.0.s8 %v1919
  %v1921 = vlaneseq
  %v1922 = vshrl.u32 %v1921, 7
  %v1923 = vsub.s32 %v1920, %v1922
  %v1924 = vrot.slane %v1896, %v1923
  %v1925 = vcombine.high %v1903, %v1903
  %v1926 = vcombine.high %v1910, %v1910
  %v1927 = vcombine.high %v1917, %v1917
  %v1928 = vcombine.high %v1924, %v1924
  %v1929 = vlaneseq
  %v1930 = vshrl.u32 %v1929, 7
  %v1931 = vsub.s32 0, %v1930
  %v1932 = vrot.slane %v1756, %v1931
  %v1933 = vlaneseq
  %v1934 = vshrl.u32 %v1933, 7
  %v1935 = vsub.s32 0, %v1934
  %v1936 = vrot.slane %v1770, %v1935
  %v1937 = vlaneseq
  %v1938 = vshrl.u32 %v1937, 7
  %v1939 = vsub.s32 0, %v1938
  %v1940 = vrot.slane %v1778, %v1939
  %v1941 = vlaneseq
  %v1942 = vshrl.u32 %v1941, 7
  %v1943 = vsub.s32 0, %v1942
  %v1944 = vrot.slane %v1780, %v1943
  %v1945 = vlaneseq
  %v1946 = vshrl.u32 %v1945, 7
  %v1947 = vsub.s32 0, %v1946
  %v1948 = vrot.slane %v1763, %v1947
  %v1949 = vlaneseq
  %v1950 = vshrl.u32 %v1949, 7
  %v1951 = vsub.s32 0, %v1950
  %v1952 = vrot.slane %v1777, %v1951
  %v1953 = vlaneseq
  %v1954 = vshrl.u32 %v1953, 7
  %v1955 = vsub.s32 0, %v1954
  %v1956 = vrot.slane %v1779, %v1955
  %v1957 = vlaneseq
  %v1958 = vshrl.u32 %v1957, 7
  %v1959 = vsub.s32 0, %v1958
  %v1960 = vrot.slane %v1781, %v1959
  %v1961 = vlaneseq
  %v1962 = vshrl.u32 %v1961, 7
  %v1963 = vsub.s32 0, %v1962
  %v1964 = vrot.slane %v1805, %v1963
  %v1965 = vlaneseq
  %v1966 = vshrl.u32 %v1965, 7
  %v1967 = vsub.s32 0, %v1966
  %v1968 = vrot.slane %v1819, %v1967
  %v1969 = vlaneseq
  %v1970 = vshrl.u32 %v1969, 7
  %v1971 = vsub.s32 0, %v1970
  %v1972 = vrot.slane %v1827, %v1971
  %v1973 = vlaneseq
  %v1974 = vshrl.u32 %v1973, 7
  %v1975 = vsub.s32 0, %v1974
  %v1976 = vrot.slane %v1829, %v1975
  %v1977 = vlaneseq
  %v1978 = vshrl.u32 %v1977, 7
  %v1979 = vsub.s32 0, %v1978
  %v1980 = vrot.slane %v1812, %v1979
  %v1981 = vlaneseq
  %v1982 = vshrl.u32 %v1981, 7
  %v1983 = vsub.s32 0, %v1982
  %v1984 = vrot.slane %v1826, %v1983
  %v1985 = vlaneseq
  %v1986 = vshrl.u32 %v1985, 7
  %v1987 = vsub.s32 0, %v1986
  %v1988 = vrot.slane %v1828, %v1987
  %v1989 = vlaneseq
  %v1990 = vshrl.u32 %v1989, 7
  %v1991 = vsub.s32 0, %v1990
  %v1992 = vrot.slane %v1830, %v1991
  %v1993 = vlaneseq
  %v1994 = vshrl.u32 %v1993, 7
  %v1995 = vsub.s32 0, %v1994
  %v1996 = vrot.slane %v1854, %v1995
  %v1997 = vlaneseq
  %v1998 = vshrl.u32 %v1997, 7
  %v1999 = vsub.s32 0, %v1998
  %v2000 = vrot.slane %v1868, %v1999
  %v2001 = vlaneseq
  %v2002 = vshrl.u32 %v2001, 7
  %v2003 = vsub.s32 0, %v2002
  %v2004 = vrot.slane %v1876, %v2003
  %v2005 = vlaneseq
  %v2006 = vshrl.u32 %v2005, 7
  %v2007 = vsub.s32 0, %v2006
  %v2008 = vrot.slane %v1878, %v2007
  %v2009 = vlaneseq
  %v2010 = vshrl.u32 %v2009, 7
  %v2011 = vsub.s32 0, %v2010
  %v2012 = vrot.slane %v1861, %v2011
  %v2013 = vlaneseq
  %v2014 = vshrl.u32 %v2013, 7
  %v2015 = vsub.s32 0, %v2014
  %v2016 = vrot.slane %v1875, %v2015
  %v2017 = vlaneseq
  %v2018 = vshrl.u32 %v2017, 7
  %v2019 = vsub.s32 0, %v2018
  %v2020 = vrot.slane %v1877, %v2019
  %v2021 = vlaneseq
  %v2022 = vshrl.u32 %v2021, 7
  %v2023 = vsub.s32 0, %v2022
  %v2024 = vrot.slane %v1879, %v2023
  %v2025 = vlaneseq
  %v2026 = vshrl.u32 %v2025, 7
  %v2027 = vsub.s32 0, %v2026
  %v2028 = vrot.slane %v1903, %v2027
  %v2029 = vlaneseq
  %v2030 = vshrl.u32 %v2029, 7
  %v2031 = vsub.s32 0, %v2030
  %v2032 = vrot.slane %v1917, %v2031
  %v2033 = vlaneseq
  %v2034 = vshrl.u32 %v2033, 7
  %v2035 = vsub.s32 0, %v2034
  %v2036 = vrot.slane %v1925, %v2035
  %v2037 = vlaneseq
  %v2038 = vshrl.u32 %v2037, 7
  %v2039 = vsub.s32 0, %v2038
  %v2040 = vrot.slane %v1927, %v2039
  %v2041 = vlaneseq
  %v2042 = vshrl.u32 %v2041, 7
  %v2043 = vsub.s32 0, %v2042
  %v2044 = vrot.slane %v1910, %v2043
  %v2045 = vlaneseq
  %v2046 = vshrl.u32 %v2045, 7
  %v2047 = vsub.s32 0, %v2046
  %v2048 = vrot.slane %v1924, %v2047
  %v2049 = vlaneseq
  %v2050 = vshrl.u32 %v2049, 7
  %v2051 = vsub.s32 0, %v2050
  %v2052 = vrot.slane %v1926, %v2051
  %v2053 = vlaneseq
  %v2054 = vshrl.u32 %v2053, 7
  %v2055 = vsub.s32 0, %v2054
  %v2056 = vrot.slane %v1928, %v2055
  %v2089 = vadd.f32 %v1473, %v1932
  %v2090 = vadd.f32 %v1478, %v1936
  %v2091 = vadd.f32 %v1483, %v1940
  %v2092 = vadd.f32 %v1488, %v1944
  %v2093 = vadd.f32 %v1493, %v1948
  %v2094 = vadd.f32 %v1498, %v1952
  %v2095 = vadd.f32 %v1503, %v1956
  %v2096 = vadd.f32 %v1508, %v1960
  %v2097 = vadd.f32 %v1513, %v1964
  %v2098 = vadd.f32 %v1518, %v1968
  %v2099 = vadd.f32 %v1523, %v1972
  %v2100 = vadd.f32 %v1528, %v1976
  %v2101 = vadd.f32 %v1533, %v1980
  %v2102 = vadd.f32 %v1538, %v1984
  %v2103 = vadd.f32 %v1543, %v1988
  %v2104 = vadd.f32 %v1548, %v1992
  %v2105 = vadd.f32 %v1553, %v1996
  %v2106 = vadd.f32 %v1558, %v2000
  %v2107 = vadd.f32 %v1563, %v2004
  %v2108 = vadd.f32 %v1568, %v2008
  %v2109 = vadd.f32 %v1573, %v2012
  %v2110 = vadd.f32 %v1578, %v2016
  %v2111 = vadd.f32 %v1583, %v2020
  %v2112 = vadd.f32 %v1588, %v2024
  %v2113 = vadd.f32 %v1593, %v2028
  %v2114 = vadd.f32 %v1598, %v2032
  %v2115 = vadd.f32 %v1603, %v2036
  %v2116 = vadd.f32 %v1608, %v2040
  %v2117 = vadd.f32 %v1613, %v2044
  %v2118 = vadd.f32 %v1618, %v2048
  %v2119 = vadd.f32 %v1623, %v2052
  %v2120 = vadd.f32 %v1628, %v2056
  %v2121 = vld [vmem:[%s9] sm:$0xff]
  %2122 = vmatprep.subr.mxu0 0.0
  %2123 = vmatpush1.msra.mxu0 %v2121
  %2124 = vmatprep.subr.mxu0 0.0
  %2125 = vmatpush1.msra.mxu0 0.0
  %2126 = vmatprep.subr.mxu0 0.0
  %2127 = vmatpush1.msra.mxu0 0.0
  %2128 = vmatprep.subr.mxu0 0.0
  %2129 = vmatpush1.msra.mxu0 0.0
  %2130 = vmatprep.subr.mxu0 0.0
  %2131 = vmatpush1.msra.mxu0 0.0
  %2132 = vmatprep.subr.mxu0 0.0
  %2133 = vmatpush1.msra.mxu0 0.0
  %2134 = vmatprep.subr.mxu0 0.0
  %2135 = vmatpush1.msra.mxu0 0.0
  %2136 = vmatprep.subr.mxu0 0.0
  %2137 = vmatpush1.msra.mxu0 0.0
  %2138 = vmatprep.subr.mxu0 0.0
  %2139 = vmatpush1.msra.mxu0 0.0
  %2140 = vmatprep.subr.mxu0 0.0
  %2141 = vmatpush1.msra.mxu0 0.0
  %2142 = vmatprep.subr.mxu0 0.0
  %2143 = vmatpush1.msra.mxu0 0.0
  %2144 = vmatprep.subr.mxu0 0.0
  %2145 = vmatpush1.msra.mxu0 0.0
  %2146 = vmatprep.subr.mxu0 0.0
  %2147 = vmatpush1.msra.mxu0 0.0
  %2148 = vmatprep.subr.mxu0 0.0
  %2149 = vmatpush1.msra.mxu0 0.0
  %2150 = vmatprep.subr.mxu0 0.0
  %2151 = vmatpush1.msra.mxu0 0.0
  %2152 = vmatprep.subr.mxu0 0.0
  %2153 = vmatpush1.msra.mxu0 0.0
  %2154 = vmatprep.subr.mxu0 0.0
  %2155 = vmatpush1.msra.mxu0 0.0
  %2156 = vmatprep.subr.mxu0 0.0
  %2157 = vmatpush1.msra.mxu0 0.0
  %2158 = vmatprep.subr.mxu0 0.0
  %2159 = vmatpush1.msra.mxu0 0.0
  %2160 = vmatprep.subr.mxu0 0.0
  %2161 = vmatpush1.msra.mxu0 0.0
  %2162 = vmatprep.subr.mxu0 0.0
  %2163 = vmatpush1.msra.mxu0 0.0
  %2164 = vmatprep.subr.mxu0 0.0
  %2165 = vmatpush1.msra.mxu0 0.0
  %2166 = vmatprep.subr.mxu0 0.0
  %2167 = vmatpush1.msra.mxu0 0.0
  %2168 = vmatprep.subr.mxu0 0.0
  %2169 = vmatpush1.msra.mxu0 0.0
  %2170 = vmatprep.subr.mxu0 0.0
  %2171 = vmatpush1.msra.mxu0 0.0
  %2172 = vmatprep.subr.mxu0 0.0
  %2173 = vmatpush1.msra.mxu0 0.0
  %2174 = vmatprep.subr.mxu0 0.0
  %2175 = vmatpush1.msra.mxu0 0.0
  %2176 = vmatprep.subr.mxu0 0.0
  %2177 = vmatpush1.msra.mxu0 0.0
  %2178 = vmatprep.subr.mxu0 0.0
  %2179 = vmatpush1.msra.mxu0 0.0
  %2180 = vmatprep.subr.mxu0 0.0
  %2181 = vmatpush1.msra.mxu0 0.0
  %2182 = vmatprep.subr.mxu0 0.0
  %2183 = vmatpush1.msra.mxu0 0.0
  %2184 = vmatprep.subr.mxu0 0.0
  %2185 = vmatpush1.msra.mxu0 0.0
  %2186 = vmatprep.mubr.f32.mxu0 0.0
  %2187 = vmatmul.mubr.f32.gmra.mrb[0].mxu0 %v1311
  %v2188 = vpop.f32.mrb[0].mxu0
  %v2189 = vadd.f32 0.0, %v2188
  %v2190 = vpop.f32.mrb[0].mxu0
  %2191 = vmatprep.mubr.f32.mxu0 0.0
  %2192 = vmatmul.mubr.f32.gmra.mrb[0].mxu0 %v1314
  %v2193 = vpop.f32.mrb[0].mxu0
  %v2194 = vadd.f32 0.0, %v2193
  %v2195 = vpop.f32.mrb[0].mxu0
  %2196 = vmatprep.mubr.f32.mxu0 0.0
  %2197 = vmatmul.mubr.f32.gmra.mrb[0].mxu0 %v1317
  %v2198 = vpop.f32.mrb[0].mxu0
  %v2199 = vadd.f32 0.0, %v2198
  %v2200 = vpop.f32.mrb[0].mxu0
  %2201 = vmatprep.mubr.f32.mxu0 0.0
  %2202 = vmatmul.mubr.f32.gmra.mrb[0].mxu0 %v1320
  %v2203 = vpop.f32.mrb[0].mxu0
  %v2204 = vadd.f32 0.0, %v2203
  %v2205 = vpop.f32.mrb[0].mxu0
  %2206 = vmatprep.mubr.f32.mxu0 0.0
  %2207 = vmatmul.mubr.f32.gmra.mrb[0].mxu0 %v1323
  %v2208 = vpop.f32.mrb[0].mxu0
  %v2209 = vadd.f32 0.0, %v2208
  %v2210 = vpop.f32.mrb[0].mxu0
  %2211 = vmatprep.mubr.f32.mxu0 0.0
  %2212 = vmatmul.mubr.f32.gmra.mrb[0].mxu0 %v1326
  %v2213 = vpop.f32.mrb[0].mxu0
  %v2214 = vadd.f32 0.0, %v2213
  %v2215 = vpop.f32.mrb[0].mxu0
  %2216 = vmatprep.mubr.f32.mxu0 0.0
  %2217 = vmatmul.mubr.f32.gmra.mrb[0].mxu0 %v1329
  %v2218 = vpop.f32.mrb[0].mxu0
  %v2219 = vadd.f32 0.0, %v2218
  %v2220 = vpop.f32.mrb[0].mxu0
  %2221 = vmatprep.mubr.f32.mxu0 0.0
  %2222 = vmatmul.mubr.f32.gmra.mrb[0].mxu0 %v1332
  %v2223 = vpop.f32.mrb[0].mxu0
  %v2224 = vadd.f32 0.0, %v2223
  %v2225 = vpop.f32.mrb[0].mxu0
  %2226 = vmatprep.mubr.f32.mxu0 0.0
  %2227 = vmatmul.mubr.f32.gmra.mrb[0].mxu0 %v1335
  %v2228 = vpop.f32.mrb[0].mxu0
  %v2229 = vadd.f32 0.0, %v2228
  %v2230 = vpop.f32.mrb[0].mxu0
  %2231 = vmatprep.mubr.f32.mxu0 0.0
  %2232 = vmatmul.mubr.f32.gmra.mrb[0].mxu0 %v1338
  %v2233 = vpop.f32.mrb[0].mxu0
  %v2234 = vadd.f32 0.0, %v2233
  %v2235 = vpop.f32.mrb[0].mxu0
  %2236 = vmatprep.mubr.f32.mxu0 0.0
  %2237 = vmatmul.mubr.f32.gmra.mrb[0].mxu0 %v1341
  %v2238 = vpop.f32.mrb[0].mxu0
  %v2239 = vadd.f32 0.0, %v2238
  %v2240 = vpop.f32.mrb[0].mxu0
  %2241 = vmatprep.mubr.f32.mxu0 0.0
  %2242 = vmatmul.mubr.f32.gmra.mrb[0].mxu0 %v1344
  %v2243 = vpop.f32.mrb[0].mxu0
  %v2244 = vadd.f32 0.0, %v2243
  %v2245 = vpop.f32.mrb[0].mxu0
  %2246 = vmatprep.mubr.f32.mxu0 0.0
  %2247 = vmatmul.mubr.f32.gmra.mrb[0].mxu0 %v1347
  %v2248 = vpop.f32.mrb[0].mxu0
  %v2249 = vadd.f32 0.0, %v2248
  %v2250 = vpop.f32.mrb[0].mxu0
  %2251 = vmatprep.mubr.f32.mxu0 0.0
  %2252 = vmatmul.mubr.f32.gmra.mrb[0].mxu0 %v1350
  %v2253 = vpop.f32.mrb[0].mxu0
  %v2254 = vadd.f32 0.0, %v2253
  %v2255 = vpop.f32.mrb[0].mxu0
  %2256 = vmatprep.mubr.f32.mxu0 0.0
  %2257 = vmatmul.mubr.f32.gmra.mrb[0].mxu0 %v1353
  %v2258 = vpop.f32.mrb[0].mxu0
  %v2259 = vadd.f32 0.0, %v2258
  %v2260 = vpop.f32.mrb[0].mxu0
  %2261 = vmatprep.mubr.f32.mxu0 0.0
  %2262 = vmatmul.mubr.f32.gmra.mrb[0].mxu0 %v1356
  %v2263 = vpop.f32.mrb[0].mxu0
  %v2264 = vadd.f32 0.0, %v2263
  %v2265 = vpop.f32.mrb[0].mxu0
  %2266 = vmatprep.mubr.f32.mxu0 0.0
  %2267 = vmatmul.mubr.f32.gmra.mrb[0].mxu0 %v1359
  %v2268 = vpop.f32.mrb[0].mxu0
  %v2269 = vadd.f32 0.0, %v2268
  %v2270 = vpop.f32.mrb[0].mxu0
  %2271 = vmatprep.mubr.f32.mxu0 0.0
  %2272 = vmatmul.mubr.f32.gmra.mrb[0].mxu0 %v1362
  %v2273 = vpop.f32.mrb[0].mxu0
  %v2274 = vadd.f32 0.0, %v2273
  %v2275 = vpop.f32.mrb[0].mxu0
  %2276 = vmatprep.mubr.f32.mxu0 0.0
  %2277 = vmatmul.mubr.f32.gmra.mrb[0].mxu0 %v1365
  %v2278 = vpop.f32.mrb[0].mxu0
  %v2279 = vadd.f32 0.0, %v2278
  %v2280 = vpop.f32.mrb[0].mxu0
  %2281 = vmatprep.mubr.f32.mxu0 0.0
  %2282 = vmatmul.mubr.f32.gmra.mrb[0].mxu0 %v1368
  %v2283 = vpop.f32.mrb[0].mxu0
  %v2284 = vadd.f32 0.0, %v2283
  %v2285 = vpop.f32.mrb[0].mxu0
  %2286 = vmatprep.mubr.f32.mxu0 0.0
  %2287 = vmatmul.mubr.f32.gmra.mrb[0].mxu0 %v1371
  %v2288 = vpop.f32.mrb[0].mxu0
  %v2289 = vadd.f32 0.0, %v2288
  %v2290 = vpop.f32.mrb[0].mxu0
  %2291 = vmatprep.mubr.f32.mxu0 0.0
  %2292 = vmatmul.mubr.f32.gmra.mrb[0].mxu0 %v1374
  %v2293 = vpop.f32.mrb[0].mxu0
  %v2294 = vadd.f32 0.0, %v2293
  %v2295 = vpop.f32.mrb[0].mxu0
  %2296 = vmatprep.mubr.f32.mxu0 0.0
  %2297 = vmatmul.mubr.f32.gmra.mrb[0].mxu0 %v1377
  %v2298 = vpop.f32.mrb[0].mxu0
  %v2299 = vadd.f32 0.0, %v2298
  %v2300 = vpop.f32.mrb[0].mxu0
  %2301 = vmatprep.mubr.f32.mxu0 0.0
  %2302 = vmatmul.mubr.f32.gmra.mrb[0].mxu0 %v1380
  %v2303 = vpop.f32.mrb[0].mxu0
  %v2304 = vadd.f32 0.0, %v2303
  %v2305 = vpop.f32.mrb[0].mxu0
  %2306 = vmatprep.mubr.f32.mxu0 0.0
  %2307 = vmatmul.mubr.f32.gmra.mrb[0].mxu0 %v1383
  %v2308 = vpop.f32.mrb[0].mxu0
  %v2309 = vadd.f32 0.0, %v2308
  %v2310 = vpop.f32.mrb[0].mxu0
  %2311 = vmatprep.mubr.f32.mxu0 0.0
  %2312 = vmatmul.mubr.f32.gmra.mrb[0].mxu0 %v1386
  %v2313 = vpop.f32.mrb[0].mxu0
  %v2314 = vadd.f32 0.0, %v2313
  %v2315 = vpop.f32.mrb[0].mxu0
  %2316 = vmatprep.mubr.f32.mxu0 0.0
  %2317 = vmatmul.mubr.f32.gmra.mrb[0].mxu0 %v1389
  %v2318 = vpop.f32.mrb[0].mxu0
  %v2319 = vadd.f32 0.0, %v2318
  %v2320 = vpop.f32.mrb[0].mxu0
  %2321 = vmatprep.mubr.f32.mxu0 0.0
  %2322 = vmatmul.mubr.f32.gmra.mrb[0].mxu0 %v1392
  %v2323 = vpop.f32.mrb[0].mxu0
  %v2324 = vadd.f32 0.0, %v2323
  %v2325 = vpop.f32.mrb[0].mxu0
  %2326 = vmatprep.mubr.f32.mxu0 0.0
  %2327 = vmatmul.mubr.f32.gmra.mrb[0].mxu0 %v1395
  %v2328 = vpop.f32.mrb[0].mxu0
  %v2329 = vadd.f32 0.0, %v2328
  %v2330 = vpop.f32.mrb[0].mxu0
  %2331 = vmatprep.mubr.f32.mxu0 0.0
  %2332 = vmatmul.mubr.f32.gmra.mrb[0].mxu0 %v1398
  %v2333 = vpop.f32.mrb[0].mxu0
  %v2334 = vadd.f32 0.0, %v2333
  %v2335 = vpop.f32.mrb[0].mxu0
  %2336 = vmatprep.mubr.f32.mxu0 0.0
  %2337 = vmatmul.mubr.f32.gmra.mrb[0].mxu0 %v1401
  %v2338 = vpop.f32.mrb[0].mxu0
  %v2339 = vadd.f32 0.0, %v2338
  %v2340 = vpop.f32.mrb[0].mxu0
  %2341 = vmatprep.mubr.f32.mxu0 0.0
  %2342 = vmatmul.mubr.f32.gmra.mrb[0].mxu0 %v1404
  %v2343 = vpop.f32.mrb[0].mxu0
  %v2344 = vadd.f32 0.0, %v2343
  %v2345 = vpop.f32.mrb[0].mxu0
  %2346 = vdwg.mxu0
  %v2347 = vld [vmem:[%s11] sm:$0xff]
  %2348 = vmatprep.subr.mxu0 0.0
  %2349 = vmatpush1.msra.mxu0 %v2347
  %2350 = vmatprep.subr.mxu0 0.0
  %2351 = vmatpush1.msra.mxu0 0.0
  %2352 = vmatprep.subr.mxu0 0.0
  %2353 = vmatpush1.msra.mxu0 0.0
  %2354 = vmatprep.subr.mxu0 0.0
  %2355 = vmatpush1.msra.mxu0 0.0
  %2356 = vmatprep.subr.mxu0 0.0
  %2357 = vmatpush1.msra.mxu0 0.0
  %2358 = vmatprep.subr.mxu0 0.0
  %2359 = vmatpush1.msra.mxu0 0.0
  %2360 = vmatprep.subr.mxu0 0.0
  %2361 = vmatpush1.msra.mxu0 0.0
  %2362 = vmatprep.subr.mxu0 0.0
  %2363 = vmatpush1.msra.mxu0 0.0
  %2364 = vmatprep.subr.mxu0 0.0
  %2365 = vmatpush1.msra.mxu0 0.0
  %2366 = vmatprep.subr.mxu0 0.0
  %2367 = vmatpush1.msra.mxu0 0.0
  %2368 = vmatprep.subr.mxu0 0.0
  %2369 = vmatpush1.msra.mxu0 0.0
  %2370 = vmatprep.subr.mxu0 0.0
  %2371 = vmatpush1.msra.mxu0 0.0
  %2372 = vmatprep.subr.mxu0 0.0
  %2373 = vmatpush1.msra.mxu0 0.0
  %2374 = vmatprep.subr.mxu0 0.0
  %2375 = vmatpush1.msra.mxu0 0.0
  %2376 = vmatprep.subr.mxu0 0.0
  %2377 = vmatpush1.msra.mxu0 0.0
  %2378 = vmatprep.subr.mxu0 0.0
  %2379 = vmatpush1.msra.mxu0 0.0
  %2380 = vmatprep.subr.mxu0 0.0
  %2381 = vmatpush1.msra.mxu0 0.0
  %2382 = vmatprep.subr.mxu0 0.0
  %2383 = vmatpush1.msra.mxu0 0.0
  %2384 = vmatprep.subr.mxu0 0.0
  %2385 = vmatpush1.msra.mxu0 0.0
  %2386 = vmatprep.subr.mxu0 0.0
  %2387 = vmatpush1.msra.mxu0 0.0
  %2388 = vmatprep.subr.mxu0 0.0
  %2389 = vmatpush1.msra.mxu0 0.0
  %2390 = vmatprep.subr.mxu0 0.0
  %2391 = vmatpush1.msra.mxu0 0.0
  %2392 = vmatprep.subr.mxu0 0.0
  %2393 = vmatpush1.msra.mxu0 0.0
  %2394 = vmatprep.subr.mxu0 0.0
  %2395 = vmatpush1.msra.mxu0 0.0
  %2396 = vmatprep.subr.mxu0 0.0
  %2397 = vmatpush1.msra.mxu0 0.0
  %2398 = vmatprep.subr.mxu0 0.0
  %2399 = vmatpush1.msra.mxu0 0.0
  %2400 = vmatprep.subr.mxu0 0.0
  %2401 = vmatpush1.msra.mxu0 0.0
  %2402 = vmatprep.subr.mxu0 0.0
  %2403 = vmatpush1.msra.mxu0 0.0
  %2404 = vmatprep.subr.mxu0 0.0
  %2405 = vmatpush1.msra.mxu0 0.0
  %2406 = vmatprep.subr.mxu0 0.0
  %2407 = vmatpush1.msra.mxu0 0.0
  %2408 = vmatprep.subr.mxu0 0.0
  %2409 = vmatpush1.msra.mxu0 0.0
  %2410 = vmatprep.subr.mxu0 0.0
  %2411 = vmatpush1.msra.mxu0 0.0
  %2412 = vmatprep.mubr.f32.mxu0 0.0
  %2413 = vmatmul.mubr.f32.gmra.mrb[0].mxu0 %v1633
  %v2414 = vpop.f32.mrb[0].mxu0
  %v2415 = vadd.f32 0.0, %v2414
  %v2416 = vpop.f32.mrb[0].mxu0
  %2417 = vmatprep.mubr.f32.mxu0 0.0
  %2418 = vmatmul.mubr.f32.gmra.mrb[0].mxu0 %v1636
  %v2419 = vpop.f32.mrb[0].mxu0
  %v2420 = vadd.f32 0.0, %v2419
  %v2421 = vpop.f32.mrb[0].mxu0
  %2422 = vmatprep.mubr.f32.mxu0 0.0
  %2423 = vmatmul.mubr.f32.gmra.mrb[0].mxu0 %v1639
  %v2424 = vpop.f32.mrb[0].mxu0
  %v2425 = vadd.f32 0.0, %v2424
  %v2426 = vpop.f32.mrb[0].mxu0
  %2427 = vmatprep.mubr.f32.mxu0 0.0
  %2428 = vmatmul.mubr.f32.gmra.mrb[0].mxu0 %v1642
  %v2429 = vpop.f32.mrb[0].mxu0
  %v2430 = vadd.f32 0.0, %v2429
  %v2431 = vpop.f32.mrb[0].mxu0
  %2432 = vdwg.mxu0
  %v2437 = vcombine.high %v2415, %v2415
  %v2439 = vunpack.c.l.s4 1966171168
  %v2440 = vunpack.c.0.s8 %v2439
  %v2441 = vlaneseq
  %v2442 = vshrl.u32 %v2441, 7
  %v2443 = vsub.s32 %v2440, %v2442
  %v2444 = vrot.slane %v2415, %v2443
  %v2446 = vunpack.c.l.s4 1966171168
  %v2447 = vunpack.c.0.s8 %v2446
  %v2448 = vlaneseq
  %v2449 = vshrl.u32 %v2448, 7
  %v2450 = vsub.s32 %v2447, %v2449
  %v2451 = vrot.slane %v2437, %v2450
  %v2452 = vcombine.high %v2444, %v2444
  %v2453 = vcombine.high %v2451, %v2451
  %v2455 = vunpack.c.l.s4 1966171168
  %v2456 = vunpack.c.0.s8 %v2455
  %v2457 = vlaneseq
  %v2458 = vshrl.u32 %v2457, 7
  %v2459 = vsub.s32 %v2456, %v2458
  %v2460 = vrot.slane %v2444, %v2459
  %v2462 = vunpack.c.l.s4 1966171168
  %v2463 = vunpack.c.0.s8 %v2462
  %v2464 = vlaneseq
  %v2465 = vshrl.u32 %v2464, 7
  %v2466 = vsub.s32 %v2463, %v2465
  %v2467 = vrot.slane %v2451, %v2466
  %v2469 = vunpack.c.l.s4 1966171168
  %v2470 = vunpack.c.0.s8 %v2469
  %v2471 = vlaneseq
  %v2472 = vshrl.u32 %v2471, 7
  %v2473 = vsub.s32 %v2470, %v2472
  %v2474 = vrot.slane %v2452, %v2473
  %v2476 = vunpack.c.l.s4 1966171168
  %v2477 = vunpack.c.0.s8 %v2476
  %v2478 = vlaneseq
  %v2479 = vshrl.u32 %v2478, 7
  %v2480 = vsub.s32 %v2477, %v2479
  %v2481 = vrot.slane %v2453, %v2480
  %v2482 = vcombine.high %v2460, %v2460
  %v2483 = vcombine.high %v2467, %v2467
  %v2484 = vcombine.high %v2474, %v2474
  %v2485 = vcombine.high %v2481, %v2481
  %v2486 = vcombine.high %v2420, %v2420
  %v2488 = vunpack.c.l.s4 1966171168
  %v2489 = vunpack.c.0.s8 %v2488
  %v2490 = vlaneseq
  %v2491 = vshrl.u32 %v2490, 7
  %v2492 = vsub.s32 %v2489, %v2491
  %v2493 = vrot.slane %v2420, %v2492
  %v2495 = vunpack.c.l.s4 1966171168
  %v2496 = vunpack.c.0.s8 %v2495
  %v2497 = vlaneseq
  %v2498 = vshrl.u32 %v2497, 7
  %v2499 = vsub.s32 %v2496, %v2498
  %v2500 = vrot.slane %v2486, %v2499
  %v2501 = vcombine.high %v2493, %v2493
  %v2502 = vcombine.high %v2500, %v2500
  %v2504 = vunpack.c.l.s4 1966171168
  %v2505 = vunpack.c.0.s8 %v2504
  %v2506 = vlaneseq
  %v2507 = vshrl.u32 %v2506, 7
  %v2508 = vsub.s32 %v2505, %v2507
  %v2509 = vrot.slane %v2493, %v2508
  %v2511 = vunpack.c.l.s4 1966171168
  %v2512 = vunpack.c.0.s8 %v2511
  %v2513 = vlaneseq
  %v2514 = vshrl.u32 %v2513, 7
  %v2515 = vsub.s32 %v2512, %v2514
  %v2516 = vrot.slane %v2500, %v2515
  %v2518 = vunpack.c.l.s4 1966171168
  %v2519 = vunpack.c.0.s8 %v2518
  %v2520 = vlaneseq
  %v2521 = vshrl.u32 %v2520, 7
  %v2522 = vsub.s32 %v2519, %v2521
  %v2523 = vrot.slane %v2501, %v2522
  %v2525 = vunpack.c.l.s4 1966171168
  %v2526 = vunpack.c.0.s8 %v2525
  %v2527 = vlaneseq
  %v2528 = vshrl.u32 %v2527, 7
  %v2529 = vsub.s32 %v2526, %v2528
  %v2530 = vrot.slane %v2502, %v2529
  %v2531 = vcombine.high %v2509, %v2509
  %v2532 = vcombine.high %v2516, %v2516
  %v2533 = vcombine.high %v2523, %v2523
  %v2534 = vcombine.high %v2530, %v2530
  %v2535 = vcombine.high %v2425, %v2425
  %v2537 = vunpack.c.l.s4 1966171168
  %v2538 = vunpack.c.0.s8 %v2537
  %v2539 = vlaneseq
  %v2540 = vshrl.u32 %v2539, 7
  %v2541 = vsub.s32 %v2538, %v2540
  %v2542 = vrot.slane %v2425, %v2541
  %v2544 = vunpack.c.l.s4 1966171168
  %v2545 = vunpack.c.0.s8 %v2544
  %v2546 = vlaneseq
  %v2547 = vshrl.u32 %v2546, 7
  %v2548 = vsub.s32 %v2545, %v2547
  %v2549 = vrot.slane %v2535, %v2548
  %v2550 = vcombine.high %v2542, %v2542
  %v2551 = vcombine.high %v2549, %v2549
  %v2553 = vunpack.c.l.s4 1966171168
  %v2554 = vunpack.c.0.s8 %v2553
  %v2555 = vlaneseq
  %v2556 = vshrl.u32 %v2555, 7
  %v2557 = vsub.s32 %v2554, %v2556
  %v2558 = vrot.slane %v2542, %v2557
  %v2560 = vunpack.c.l.s4 1966171168
  %v2561 = vunpack.c.0.s8 %v2560
  %v2562 = vlaneseq
  %v2563 = vshrl.u32 %v2562, 7
  %v2564 = vsub.s32 %v2561, %v2563
  %v2565 = vrot.slane %v2549, %v2564
  %v2567 = vunpack.c.l.s4 1966171168
  %v2568 = vunpack.c.0.s8 %v2567
  %v2569 = vlaneseq
  %v2570 = vshrl.u32 %v2569, 7
  %v2571 = vsub.s32 %v2568, %v2570
  %v2572 = vrot.slane %v2550, %v2571
  %v2574 = vunpack.c.l.s4 1966171168
  %v2575 = vunpack.c.0.s8 %v2574
  %v2576 = vlaneseq
  %v2577 = vshrl.u32 %v2576, 7
  %v2578 = vsub.s32 %v2575, %v2577
  %v2579 = vrot.slane %v2551, %v2578
  %v2580 = vcombine.high %v2558, %v2558
  %v2581 = vcombine.high %v2565, %v2565
  %v2582 = vcombine.high %v2572, %v2572
  %v2583 = vcombine.high %v2579, %v2579
  %v2584 = vcombine.high %v2430, %v2430
  %v2586 = vunpack.c.l.s4 1966171168
  %v2587 = vunpack.c.0.s8 %v2586
  %v2588 = vlaneseq
  %v2589 = vshrl.u32 %v2588, 7
  %v2590 = vsub.s32 %v2587, %v2589
  %v2591 = vrot.slane %v2430, %v2590
  %v2593 = vunpack.c.l.s4 1966171168
  %v2594 = vunpack.c.0.s8 %v2593
  %v2595 = vlaneseq
  %v2596 = vshrl.u32 %v2595, 7
  %v2597 = vsub.s32 %v2594, %v2596
  %v2598 = vrot.slane %v2584, %v2597
  %v2599 = vcombine.high %v2591, %v2591
  %v2600 = vcombine.high %v2598, %v2598
  %v2602 = vunpack.c.l.s4 1966171168
  %v2603 = vunpack.c.0.s8 %v2602
  %v2604 = vlaneseq
  %v2605 = vshrl.u32 %v2604, 7
  %v2606 = vsub.s32 %v2603, %v2605
  %v2607 = vrot.slane %v2591, %v2606
  %v2609 = vunpack.c.l.s4 1966171168
  %v2610 = vunpack.c.0.s8 %v2609
  %v2611 = vlaneseq
  %v2612 = vshrl.u32 %v2611, 7
  %v2613 = vsub.s32 %v2610, %v2612
  %v2614 = vrot.slane %v2598, %v2613
  %v2616 = vunpack.c.l.s4 1966171168
  %v2617 = vunpack.c.0.s8 %v2616
  %v2618 = vlaneseq
  %v2619 = vshrl.u32 %v2618, 7
  %v2620 = vsub.s32 %v2617, %v2619
  %v2621 = vrot.slane %v2599, %v2620
  %v2623 = vunpack.c.l.s4 1966171168
  %v2624 = vunpack.c.0.s8 %v2623
  %v2625 = vlaneseq
  %v2626 = vshrl.u32 %v2625, 7
  %v2627 = vsub.s32 %v2624, %v2626
  %v2628 = vrot.slane %v2600, %v2627
  %v2629 = vcombine.high %v2607, %v2607
  %v2630 = vcombine.high %v2614, %v2614
  %v2631 = vcombine.high %v2621, %v2621
  %v2632 = vcombine.high %v2628, %v2628
  %v2633 = vlaneseq
  %v2634 = vshrl.u32 %v2633, 7
  %v2635 = vsub.s32 0, %v2634
  %v2636 = vrot.slane %v2460, %v2635
  %v2637 = vlaneseq
  %v2638 = vshrl.u32 %v2637, 7
  %v2639 = vsub.s32 0, %v2638
  %v2640 = vrot.slane %v2474, %v2639
  %v2641 = vlaneseq
  %v2642 = vshrl.u32 %v2641, 7
  %v2643 = vsub.s32 0, %v2642
  %v2644 = vrot.slane %v2482, %v2643
  %v2645 = vlaneseq
  %v2646 = vshrl.u32 %v2645, 7
  %v2647 = vsub.s32 0, %v2646
  %v2648 = vrot.slane %v2484, %v2647
  %v2649 = vlaneseq
  %v2650 = vshrl.u32 %v2649, 7
  %v2651 = vsub.s32 0, %v2650
  %v2652 = vrot.slane %v2467, %v2651
  %v2653 = vlaneseq
  %v2654 = vshrl.u32 %v2653, 7
  %v2655 = vsub.s32 0, %v2654
  %v2656 = vrot.slane %v2481, %v2655
  %v2657 = vlaneseq
  %v2658 = vshrl.u32 %v2657, 7
  %v2659 = vsub.s32 0, %v2658
  %v2660 = vrot.slane %v2483, %v2659
  %v2661 = vlaneseq
  %v2662 = vshrl.u32 %v2661, 7
  %v2663 = vsub.s32 0, %v2662
  %v2664 = vrot.slane %v2485, %v2663
  %v2665 = vlaneseq
  %v2666 = vshrl.u32 %v2665, 7
  %v2667 = vsub.s32 0, %v2666
  %v2668 = vrot.slane %v2509, %v2667
  %v2669 = vlaneseq
  %v2670 = vshrl.u32 %v2669, 7
  %v2671 = vsub.s32 0, %v2670
  %v2672 = vrot.slane %v2523, %v2671
  %v2673 = vlaneseq
  %v2674 = vshrl.u32 %v2673, 7
  %v2675 = vsub.s32 0, %v2674
  %v2676 = vrot.slane %v2531, %v2675
  %v2677 = vlaneseq
  %v2678 = vshrl.u32 %v2677, 7
  %v2679 = vsub.s32 0, %v2678
  %v2680 = vrot.slane %v2533, %v2679
  %v2681 = vlaneseq
  %v2682 = vshrl.u32 %v2681, 7
  %v2683 = vsub.s32 0, %v2682
  %v2684 = vrot.slane %v2516, %v2683
  %v2685 = vlaneseq
  %v2686 = vshrl.u32 %v2685, 7
  %v2687 = vsub.s32 0, %v2686
  %v2688 = vrot.slane %v2530, %v2687
  %v2689 = vlaneseq
  %v2690 = vshrl.u32 %v2689, 7
  %v2691 = vsub.s32 0, %v2690
  %v2692 = vrot.slane %v2532, %v2691
  %v2693 = vlaneseq
  %v2694 = vshrl.u32 %v2693, 7
  %v2695 = vsub.s32 0, %v2694
  %v2696 = vrot.slane %v2534, %v2695
  %v2697 = vlaneseq
  %v2698 = vshrl.u32 %v2697, 7
  %v2699 = vsub.s32 0, %v2698
  %v2700 = vrot.slane %v2558, %v2699
  %v2701 = vlaneseq
  %v2702 = vshrl.u32 %v2701, 7
  %v2703 = vsub.s32 0, %v2702
  %v2704 = vrot.slane %v2572, %v2703
  %v2705 = vlaneseq
  %v2706 = vshrl.u32 %v2705, 7
  %v2707 = vsub.s32 0, %v2706
  %v2708 = vrot.slane %v2580, %v2707
  %v2709 = vlaneseq
  %v2710 = vshrl.u32 %v2709, 7
  %v2711 = vsub.s32 0, %v2710
  %v2712 = vrot.slane %v2582, %v2711
  %v2713 = vlaneseq
  %v2714 = vshrl.u32 %v2713, 7
  %v2715 = vsub.s32 0, %v2714
  %v2716 = vrot.slane %v2565, %v2715
  %v2717 = vlaneseq
  %v2718 = vshrl.u32 %v2717, 7
  %v2719 = vsub.s32 0, %v2718
  %v2720 = vrot.slane %v2579, %v2719
  %v2721 = vlaneseq
  %v2722 = vshrl.u32 %v2721, 7
  %v2723 = vsub.s32 0, %v2722
  %v2724 = vrot.slane %v2581, %v2723
  %v2725 = vlaneseq
  %v2726 = vshrl.u32 %v2725, 7
  %v2727 = vsub.s32 0, %v2726
  %v2728 = vrot.slane %v2583, %v2727
  %v2729 = vlaneseq
  %v2730 = vshrl.u32 %v2729, 7
  %v2731 = vsub.s32 0, %v2730
  %v2732 = vrot.slane %v2607, %v2731
  %v2733 = vlaneseq
  %v2734 = vshrl.u32 %v2733, 7
  %v2735 = vsub.s32 0, %v2734
  %v2736 = vrot.slane %v2621, %v2735
  %v2737 = vlaneseq
  %v2738 = vshrl.u32 %v2737, 7
  %v2739 = vsub.s32 0, %v2738
  %v2740 = vrot.slane %v2629, %v2739
  %v2741 = vlaneseq
  %v2742 = vshrl.u32 %v2741, 7
  %v2743 = vsub.s32 0, %v2742
  %v2744 = vrot.slane %v2631, %v2743
  %v2745 = vlaneseq
  %v2746 = vshrl.u32 %v2745, 7
  %v2747 = vsub.s32 0, %v2746
  %v2748 = vrot.slane %v2614, %v2747
  %v2749 = vlaneseq
  %v2750 = vshrl.u32 %v2749, 7
  %v2751 = vsub.s32 0, %v2750
  %v2752 = vrot.slane %v2628, %v2751
  %v2753 = vlaneseq
  %v2754 = vshrl.u32 %v2753, 7
  %v2755 = vsub.s32 0, %v2754
  %v2756 = vrot.slane %v2630, %v2755
  %v2757 = vlaneseq
  %v2758 = vshrl.u32 %v2757, 7
  %v2759 = vsub.s32 0, %v2758
  %v2760 = vrot.slane %v2632, %v2759
  %v2793 = vadd.f32 %v2189, %v2636
  %v2794 = vadd.f32 %v2194, %v2640
  %v2795 = vadd.f32 %v2199, %v2644
  %v2796 = vadd.f32 %v2204, %v2648
  %v2797 = vadd.f32 %v2209, %v2652
  %v2798 = vadd.f32 %v2214, %v2656
  %v2799 = vadd.f32 %v2219, %v2660
  %v2800 = vadd.f32 %v2224, %v2664
  %v2801 = vadd.f32 %v2229, %v2668
  %v2802 = vadd.f32 %v2234, %v2672
  %v2803 = vadd.f32 %v2239, %v2676
  %v2804 = vadd.f32 %v2244, %v2680
  %v2805 = vadd.f32 %v2249, %v2684
  %v2806 = vadd.f32 %v2254, %v2688
  %v2807 = vadd.f32 %v2259, %v2692
  %v2808 = vadd.f32 %v2264, %v2696
  %v2809 = vadd.f32 %v2269, %v2700
  %v2810 = vadd.f32 %v2274, %v2704
  %v2811 = vadd.f32 %v2279, %v2708
  %v2812 = vadd.f32 %v2284, %v2712
  %v2813 = vadd.f32 %v2289, %v2716
  %v2814 = vadd.f32 %v2294, %v2720
  %v2815 = vadd.f32 %v2299, %v2724
  %v2816 = vadd.f32 %v2304, %v2728
  %v2817 = vadd.f32 %v2309, %v2732
  %v2818 = vadd.f32 %v2314, %v2736
  %v2819 = vadd.f32 %v2319, %v2740
  %v2820 = vadd.f32 %v2324, %v2744
  %v2821 = vadd.f32 %v2329, %v2748
  %v2822 = vadd.f32 %v2334, %v2752
  %v2823 = vadd.f32 %v2339, %v2756
  %v2824 = vadd.f32 %v2344, %v2760
  %v2825 = vsel %vm1309, %v2089, -inf
  %v2826 = vrot.slane %v2825, 4
  %v2827 = vmax.f32 %v2825, %v2826
  %v2828 = vrot.slane %v2827, 2
  %v2829 = vmax.f32 %v2827, %v2828
  %v2830 = vrot.slane %v2829, 1
  %v2831 = vmax.f32 %v2829, %v2830
  %v2832 = vsel %vm1309, %v2090, -inf
  %v2833 = vrot.slane %v2832, 4
  %v2834 = vmax.f32 %v2832, %v2833
  %v2835 = vrot.slane %v2834, 2
  %v2836 = vmax.f32 %v2834, %v2835
  %v2837 = vrot.slane %v2836, 1
  %v2838 = vmax.f32 %v2836, %v2837
  %v2839 = vsel %vm1309, %v2091, -inf
  %v2840 = vrot.slane %v2839, 4
  %v2841 = vmax.f32 %v2839, %v2840
  %v2842 = vrot.slane %v2841, 2
  %v2843 = vmax.f32 %v2841, %v2842
  %v2844 = vrot.slane %v2843, 1
  %v2845 = vmax.f32 %v2843, %v2844
  %v2846 = vsel %vm1309, %v2092, -inf
  %v2847 = vrot.slane %v2846, 4
  %v2848 = vmax.f32 %v2846, %v2847
  %v2849 = vrot.slane %v2848, 2
  %v2850 = vmax.f32 %v2848, %v2849
  %v2851 = vrot.slane %v2850, 1
  %v2852 = vmax.f32 %v2850, %v2851
  %v2853 = vsel %vm1309, %v2093, -inf
  %v2854 = vrot.slane %v2853, 4
  %v2855 = vmax.f32 %v2853, %v2854
  %v2856 = vrot.slane %v2855, 2
  %v2857 = vmax.f32 %v2855, %v2856
  %v2858 = vrot.slane %v2857, 1
  %v2859 = vmax.f32 %v2857, %v2858
  %v2860 = vsel %vm1309, %v2094, -inf
  %v2861 = vrot.slane %v2860, 4
  %v2862 = vmax.f32 %v2860, %v2861
  %v2863 = vrot.slane %v2862, 2
  %v2864 = vmax.f32 %v2862, %v2863
  %v2865 = vrot.slane %v2864, 1
  %v2866 = vmax.f32 %v2864, %v2865
  %v2867 = vsel %vm1309, %v2095, -inf
  %v2868 = vrot.slane %v2867, 4
  %v2869 = vmax.f32 %v2867, %v2868
  %v2870 = vrot.slane %v2869, 2
  %v2871 = vmax.f32 %v2869, %v2870
  %v2872 = vrot.slane %v2871, 1
  %v2873 = vmax.f32 %v2871, %v2872
  %v2874 = vsel %vm1309, %v2096, -inf
  %v2875 = vrot.slane %v2874, 4
  %v2876 = vmax.f32 %v2874, %v2875
  %v2877 = vrot.slane %v2876, 2
  %v2878 = vmax.f32 %v2876, %v2877
  %v2879 = vrot.slane %v2878, 1
  %v2880 = vmax.f32 %v2878, %v2879
  %v2881 = vsel %vm1309, %v2097, -inf
  %v2882 = vrot.slane %v2881, 4
  %v2883 = vmax.f32 %v2881, %v2882
  %v2884 = vrot.slane %v2883, 2
  %v2885 = vmax.f32 %v2883, %v2884
  %v2886 = vrot.slane %v2885, 1
  %v2887 = vmax.f32 %v2885, %v2886
  %v2888 = vsel %vm1309, %v2098, -inf
  %v2889 = vrot.slane %v2888, 4
  %v2890 = vmax.f32 %v2888, %v2889
  %v2891 = vrot.slane %v2890, 2
  %v2892 = vmax.f32 %v2890, %v2891
  %v2893 = vrot.slane %v2892, 1
  %v2894 = vmax.f32 %v2892, %v2893
  %v2895 = vsel %vm1309, %v2099, -inf
  %v2896 = vrot.slane %v2895, 4
  %v2897 = vmax.f32 %v2895, %v2896
  %v2898 = vrot.slane %v2897, 2
  %v2899 = vmax.f32 %v2897, %v2898
  %v2900 = vrot.slane %v2899, 1
  %v2901 = vmax.f32 %v2899, %v2900
  %v2902 = vsel %vm1309, %v2100, -inf
  %v2903 = vrot.slane %v2902, 4
  %v2904 = vmax.f32 %v2902, %v2903
  %v2905 = vrot.slane %v2904, 2
  %v2906 = vmax.f32 %v2904, %v2905
  %v2907 = vrot.slane %v2906, 1
  %v2908 = vmax.f32 %v2906, %v2907
  %v2909 = vsel %vm1309, %v2101, -inf
  %v2910 = vrot.slane %v2909, 4
  %v2911 = vmax.f32 %v2909, %v2910
  %v2912 = vrot.slane %v2911, 2
  %v2913 = vmax.f32 %v2911, %v2912
  %v2914 = vrot.slane %v2913, 1
  %v2915 = vmax.f32 %v2913, %v2914
  %v2916 = vsel %vm1309, %v2102, -inf
  %v2917 = vrot.slane %v2916, 4
  %v2918 = vmax.f32 %v2916, %v2917
  %v2919 = vrot.slane %v2918, 2
  %v2920 = vmax.f32 %v2918, %v2919
  %v2921 = vrot.slane %v2920, 1
  %v2922 = vmax.f32 %v2920, %v2921
  %v2923 = vsel %vm1309, %v2103, -inf
  %v2924 = vrot.slane %v2923, 4
  %v2925 = vmax.f32 %v2923, %v2924
  %v2926 = vrot.slane %v2925, 2
  %v2927 = vmax.f32 %v2925, %v2926
  %v2928 = vrot.slane %v2927, 1
  %v2929 = vmax.f32 %v2927, %v2928
  %v2930 = vsel %vm1309, %v2104, -inf
  %v2931 = vrot.slane %v2930, 4
  %v2932 = vmax.f32 %v2930, %v2931
  %v2933 = vrot.slane %v2932, 2
  %v2934 = vmax.f32 %v2932, %v2933
  %v2935 = vrot.slane %v2934, 1
  %v2936 = vmax.f32 %v2934, %v2935
  %v2937 = vsel %vm1309, %v2105, -inf
  %v2938 = vrot.slane %v2937, 4
  %v2939 = vmax.f32 %v2937, %v2938
  %v2940 = vrot.slane %v2939, 2
  %v2941 = vmax.f32 %v2939, %v2940
  %v2942 = vrot.slane %v2941, 1
  %v2943 = vmax.f32 %v2941, %v2942
  %v2944 = vsel %vm1309, %v2106, -inf
  %v2945 = vrot.slane %v2944, 4
  %v2946 = vmax.f32 %v2944, %v2945
  %v2947 = vrot.slane %v2946, 2
  %v2948 = vmax.f32 %v2946, %v2947
  %v2949 = vrot.slane %v2948, 1
  %v2950 = vmax.f32 %v2948, %v2949
  %v2951 = vsel %vm1309, %v2107, -inf
  %v2952 = vrot.slane %v2951, 4
  %v2953 = vmax.f32 %v2951, %v2952
  %v2954 = vrot.slane %v2953, 2
  %v2955 = vmax.f32 %v2953, %v2954
  %v2956 = vrot.slane %v2955, 1
  %v2957 = vmax.f32 %v2955, %v2956
  %v2958 = vsel %vm1309, %v2108, -inf
  %v2959 = vrot.slane %v2958, 4
  %v2960 = vmax.f32 %v2958, %v2959
  %v2961 = vrot.slane %v2960, 2
  %v2962 = vmax.f32 %v2960, %v2961
  %v2963 = vrot.slane %v2962, 1
  %v2964 = vmax.f32 %v2962, %v2963
  %v2965 = vsel %vm1309, %v2109, -inf
  %v2966 = vrot.slane %v2965, 4
  %v2967 = vmax.f32 %v2965, %v2966
  %v2968 = vrot.slane %v2967, 2
  %v2969 = vmax.f32 %v2967, %v2968
  %v2970 = vrot.slane %v2969, 1
  %v2971 = vmax.f32 %v2969, %v2970
  %v2972 = vsel %vm1309, %v2110, -inf
  %v2973 = vrot.slane %v2972, 4
  %v2974 = vmax.f32 %v2972, %v2973
  %v2975 = vrot.slane %v2974, 2
  %v2976 = vmax.f32 %v2974, %v2975
  %v2977 = vrot.slane %v2976, 1
  %v2978 = vmax.f32 %v2976, %v2977
  %v2979 = vsel %vm1309, %v2111, -inf
  %v2980 = vrot.slane %v2979, 4
  %v2981 = vmax.f32 %v2979, %v2980
  %v2982 = vrot.slane %v2981, 2
  %v2983 = vmax.f32 %v2981, %v2982
  %v2984 = vrot.slane %v2983, 1
  %v2985 = vmax.f32 %v2983, %v2984
  %v2986 = vsel %vm1309, %v2112, -inf
  %v2987 = vrot.slane %v2986, 4
  %v2988 = vmax.f32 %v2986, %v2987
  %v2989 = vrot.slane %v2988, 2
  %v2990 = vmax.f32 %v2988, %v2989
  %v2991 = vrot.slane %v2990, 1
  %v2992 = vmax.f32 %v2990, %v2991
  %v2993 = vsel %vm1309, %v2113, -inf
  %v2994 = vrot.slane %v2993, 4
  %v2995 = vmax.f32 %v2993, %v2994
  %v2996 = vrot.slane %v2995, 2
  %v2997 = vmax.f32 %v2995, %v2996
  %v2998 = vrot.slane %v2997, 1
  %v2999 = vmax.f32 %v2997, %v2998
  %v3000 = vsel %vm1309, %v2114, -inf
  %v3001 = vrot.slane %v3000, 4
  %v3002 = vmax.f32 %v3000, %v3001
  %v3003 = vrot.slane %v3002, 2
  %v3004 = vmax.f32 %v3002, %v3003
  %v3005 = vrot.slane %v3004, 1
  %v3006 = vmax.f32 %v3004, %v3005
  %v3007 = vsel %vm1309, %v2115, -inf
  %v3008 = vrot.slane %v3007, 4
  %v3009 = vmax.f32 %v3007, %v3008
  %v3010 = vrot.slane %v3009, 2
  %v3011 = vmax.f32 %v3009, %v3010
  %v3012 = vrot.slane %v3011, 1
  %v3013 = vmax.f32 %v3011, %v3012
  %v3014 = vsel %vm1309, %v2116, -inf
  %v3015 = vrot.slane %v3014, 4
  %v3016 = vmax.f32 %v3014, %v3015
  %v3017 = vrot.slane %v3016, 2
  %v3018 = vmax.f32 %v3016, %v3017
  %v3019 = vrot.slane %v3018, 1
  %v3020 = vmax.f32 %v3018, %v3019
  %v3021 = vsel %vm1309, %v2117, -inf
  %v3022 = vrot.slane %v3021, 4
  %v3023 = vmax.f32 %v3021, %v3022
  %v3024 = vrot.slane %v3023, 2
  %v3025 = vmax.f32 %v3023, %v3024
  %v3026 = vrot.slane %v3025, 1
  %v3027 = vmax.f32 %v3025, %v3026
  %v3028 = vsel %vm1309, %v2118, -inf
  %v3029 = vrot.slane %v3028, 4
  %v3030 = vmax.f32 %v3028, %v3029
  %v3031 = vrot.slane %v3030, 2
  %v3032 = vmax.f32 %v3030, %v3031
  %v3033 = vrot.slane %v3032, 1
  %v3034 = vmax.f32 %v3032, %v3033
  %v3035 = vsel %vm1309, %v2119, -inf
  %v3036 = vrot.slane %v3035, 4
  %v3037 = vmax.f32 %v3035, %v3036
  %v3038 = vrot.slane %v3037, 2
  %v3039 = vmax.f32 %v3037, %v3038
  %v3040 = vrot.slane %v3039, 1
  %v3041 = vmax.f32 %v3039, %v3040
  %v3042 = vsel %vm1309, %v2120, -inf
  %v3043 = vrot.slane %v3042, 4
  %v3044 = vmax.f32 %v3042, %v3043
  %v3045 = vrot.slane %v3044, 2
  %v3046 = vmax.f32 %v3044, %v3045
  %v3047 = vrot.slane %v3046, 1
  %v3048 = vmax.f32 %v3046, %v3047
  %v3049 = vsub.f32 %v2089, %v2831
  %v3050 = vsub.f32 %v2090, %v2838
  %v3051 = vsub.f32 %v2091, %v2845
  %v3052 = vsub.f32 %v2092, %v2852
  %v3053 = vsub.f32 %v2093, %v2859
  %v3054 = vsub.f32 %v2094, %v2866
  %v3055 = vsub.f32 %v2095, %v2873
  %v3056 = vsub.f32 %v2096, %v2880
  %v3057 = vsub.f32 %v2097, %v2887
  %v3058 = vsub.f32 %v2098, %v2894
  %v3059 = vsub.f32 %v2099, %v2901
  %v3060 = vsub.f32 %v2100, %v2908
  %v3061 = vsub.f32 %v2101, %v2915
  %v3062 = vsub.f32 %v2102, %v2922
  %v3063 = vsub.f32 %v2103, %v2929
  %v3064 = vsub.f32 %v2104, %v2936
  %v3065 = vsub.f32 %v2105, %v2943
  %v3066 = vsub.f32 %v2106, %v2950
  %v3067 = vsub.f32 %v2107, %v2957
  %v3068 = vsub.f32 %v2108, %v2964
  %v3069 = vsub.f32 %v2109, %v2971
  %v3070 = vsub.f32 %v2110, %v2978
  %v3071 = vsub.f32 %v2111, %v2985
  %v3072 = vsub.f32 %v2112, %v2992
  %v3073 = vsub.f32 %v2113, %v2999
  %v3074 = vsub.f32 %v2114, %v3006
  %v3075 = vsub.f32 %v2115, %v3013
  %v3076 = vsub.f32 %v2116, %v3020
  %v3077 = vsub.f32 %v2117, %v3027
  %v3078 = vsub.f32 %v2118, %v3034
  %v3079 = vsub.f32 %v2119, %v3041
  %v3080 = vsub.f32 %v2120, %v3048
  %v3081 = vmul.f32 %v3049, 1.442695
  %v3082 = vpow.pop %v3081
  %v3083 = vmul.f32 %v3050, 1.442695
  %v3084 = vpow.pop %v3083
  %v3085 = vmul.f32 %v3051, 1.442695
  %v3086 = vpow.pop %v3085
  %v3087 = vmul.f32 %v3052, 1.442695
  %v3088 = vpow.pop %v3087
  %v3089 = vmul.f32 %v3053, 1.442695
  %v3090 = vpow.pop %v3089
  %v3091 = vmul.f32 %v3054, 1.442695
  %v3092 = vpow.pop %v3091
  %v3093 = vmul.f32 %v3055, 1.442695
  %v3094 = vpow.pop %v3093
  %v3095 = vmul.f32 %v3056, 1.442695
  %v3096 = vpow.pop %v3095
  %v3097 = vmul.f32 %v3057, 1.442695
  %v3098 = vpow.pop %v3097
  %v3099 = vmul.f32 %v3058, 1.442695
  %v3100 = vpow.pop %v3099
  %v3101 = vmul.f32 %v3059, 1.442695
  %v3102 = vpow.pop %v3101
  %v3103 = vmul.f32 %v3060, 1.442695
  %v3104 = vpow.pop %v3103
  %v3105 = vmul.f32 %v3061, 1.442695
  %v3106 = vpow.pop %v3105
  %v3107 = vmul.f32 %v3062, 1.442695
  %v3108 = vpow.pop %v3107
  %v3109 = vmul.f32 %v3063, 1.442695
  %v3110 = vpow.pop %v3109
  %v3111 = vmul.f32 %v3064, 1.442695
  %v3112 = vpow.pop %v3111
  %v3113 = vmul.f32 %v3065, 1.442695
  %v3114 = vpow.pop %v3113
  %v3115 = vmul.f32 %v3066, 1.442695
  %v3116 = vpow.pop %v3115
  %v3117 = vmul.f32 %v3067, 1.442695
  %v3118 = vpow.pop %v3117
  %v3119 = vmul.f32 %v3068, 1.442695
  %v3120 = vpow.pop %v3119
  %v3121 = vmul.f32 %v3069, 1.442695
  %v3122 = vpow.pop %v3121
  %v3123 = vmul.f32 %v3070, 1.442695
  %v3124 = vpow.pop %v3123
  %v3125 = vmul.f32 %v3071, 1.442695
  %v3126 = vpow.pop %v3125
  %v3127 = vmul.f32 %v3072, 1.442695
  %v3128 = vpow.pop %v3127
  %v3129 = vmul.f32 %v3073, 1.442695
  %v3130 = vpow.pop %v3129
  %v3131 = vmul.f32 %v3074, 1.442695
  %v3132 = vpow.pop %v3131
  %v3133 = vmul.f32 %v3075, 1.442695
  %v3134 = vpow.pop %v3133
  %v3135 = vmul.f32 %v3076, 1.442695
  %v3136 = vpow.pop %v3135
  %v3137 = vmul.f32 %v3077, 1.442695
  %v3138 = vpow.pop %v3137
  %v3139 = vmul.f32 %v3078, 1.442695
  %v3140 = vpow.pop %v3139
  %v3141 = vmul.f32 %v3079, 1.442695
  %v3142 = vpow.pop %v3141
  %v3143 = vmul.f32 %v3080, 1.442695
  %v3144 = vpow.pop %v3143
  %v3145 = vsel %vm1309, %v3082, 0.0
  %v3146 = vrot.slane %v3145, 4
  %v3147 = vadd.f32 %v3145, %v3146
  %v3148 = vrot.slane %v3147, 2
  %v3149 = vadd.f32 %v3147, %v3148
  %v3150 = vrot.slane %v3149, 1
  %v3151 = vadd.f32 %v3149, %v3150
  %v3152 = vsel %vm1309, %v3084, 0.0
  %v3153 = vrot.slane %v3152, 4
  %v3154 = vadd.f32 %v3152, %v3153
  %v3155 = vrot.slane %v3154, 2
  %v3156 = vadd.f32 %v3154, %v3155
  %v3157 = vrot.slane %v3156, 1
  %v3158 = vadd.f32 %v3156, %v3157
  %v3159 = vsel %vm1309, %v3086, 0.0
  %v3160 = vrot.slane %v3159, 4
  %v3161 = vadd.f32 %v3159, %v3160
  %v3162 = vrot.slane %v3161, 2
  %v3163 = vadd.f32 %v3161, %v3162
  %v3164 = vrot.slane %v3163, 1
  %v3165 = vadd.f32 %v3163, %v3164
  %v3166 = vsel %vm1309, %v3088, 0.0
  %v3167 = vrot.slane %v3166, 4
  %v3168 = vadd.f32 %v3166, %v3167
  %v3169 = vrot.slane %v3168, 2
  %v3170 = vadd.f32 %v3168, %v3169
  %v3171 = vrot.slane %v3170, 1
  %v3172 = vadd.f32 %v3170, %v3171
  %v3173 = vsel %vm1309, %v3090, 0.0
  %v3174 = vrot.slane %v3173, 4
  %v3175 = vadd.f32 %v3173, %v3174
  %v3176 = vrot.slane %v3175, 2
  %v3177 = vadd.f32 %v3175, %v3176
  %v3178 = vrot.slane %v3177, 1
  %v3179 = vadd.f32 %v3177, %v3178
  %v3180 = vsel %vm1309, %v3092, 0.0
  %v3181 = vrot.slane %v3180, 4
  %v3182 = vadd.f32 %v3180, %v3181
  %v3183 = vrot.slane %v3182, 2
  %v3184 = vadd.f32 %v3182, %v3183
  %v3185 = vrot.slane %v3184, 1
  %v3186 = vadd.f32 %v3184, %v3185
  %v3187 = vsel %vm1309, %v3094, 0.0
  %v3188 = vrot.slane %v3187, 4
  %v3189 = vadd.f32 %v3187, %v3188
  %v3190 = vrot.slane %v3189, 2
  %v3191 = vadd.f32 %v3189, %v3190
  %v3192 = vrot.slane %v3191, 1
  %v3193 = vadd.f32 %v3191, %v3192
  %v3194 = vsel %vm1309, %v3096, 0.0
  %v3195 = vrot.slane %v3194, 4
  %v3196 = vadd.f32 %v3194, %v3195
  %v3197 = vrot.slane %v3196, 2
  %v3198 = vadd.f32 %v3196, %v3197
  %v3199 = vrot.slane %v3198, 1
  %v3200 = vadd.f32 %v3198, %v3199
  %v3201 = vsel %vm1309, %v3098, 0.0
  %v3202 = vrot.slane %v3201, 4
  %v3203 = vadd.f32 %v3201, %v3202
  %v3204 = vrot.slane %v3203, 2
  %v3205 = vadd.f32 %v3203, %v3204
  %v3206 = vrot.slane %v3205, 1
  %v3207 = vadd.f32 %v3205, %v3206
  %v3208 = vsel %vm1309, %v3100, 0.0
  %v3209 = vrot.slane %v3208, 4
  %v3210 = vadd.f32 %v3208, %v3209
  %v3211 = vrot.slane %v3210, 2
  %v3212 = vadd.f32 %v3210, %v3211
  %v3213 = vrot.slane %v3212, 1
  %v3214 = vadd.f32 %v3212, %v3213
  %v3215 = vsel %vm1309, %v3102, 0.0
  %v3216 = vrot.slane %v3215, 4
  %v3217 = vadd.f32 %v3215, %v3216
  %v3218 = vrot.slane %v3217, 2
  %v3219 = vadd.f32 %v3217, %v3218
  %v3220 = vrot.slane %v3219, 1
  %v3221 = vadd.f32 %v3219, %v3220
  %v3222 = vsel %vm1309, %v3104, 0.0
  %v3223 = vrot.slane %v3222, 4
  %v3224 = vadd.f32 %v3222, %v3223
  %v3225 = vrot.slane %v3224, 2
  %v3226 = vadd.f32 %v3224, %v3225
  %v3227 = vrot.slane %v3226, 1
  %v3228 = vadd.f32 %v3226, %v3227
  %v3229 = vsel %vm1309, %v3106, 0.0
  %v3230 = vrot.slane %v3229, 4
  %v3231 = vadd.f32 %v3229, %v3230
  %v3232 = vrot.slane %v3231, 2
  %v3233 = vadd.f32 %v3231, %v3232
  %v3234 = vrot.slane %v3233, 1
  %v3235 = vadd.f32 %v3233, %v3234
  %v3236 = vsel %vm1309, %v3108, 0.0
  %v3237 = vrot.slane %v3236, 4
  %v3238 = vadd.f32 %v3236, %v3237
  %v3239 = vrot.slane %v3238, 2
  %v3240 = vadd.f32 %v3238, %v3239
  %v3241 = vrot.slane %v3240, 1
  %v3242 = vadd.f32 %v3240, %v3241
  %v3243 = vsel %vm1309, %v3110, 0.0
  %v3244 = vrot.slane %v3243, 4
  %v3245 = vadd.f32 %v3243, %v3244
  %v3246 = vrot.slane %v3245, 2
  %v3247 = vadd.f32 %v3245, %v3246
  %v3248 = vrot.slane %v3247, 1
  %v3249 = vadd.f32 %v3247, %v3248
  %v3250 = vsel %vm1309, %v3112, 0.0
  %v3251 = vrot.slane %v3250, 4
  %v3252 = vadd.f32 %v3250, %v3251
  %v3253 = vrot.slane %v3252, 2
  %v3254 = vadd.f32 %v3252, %v3253
  %v3255 = vrot.slane %v3254, 1
  %v3256 = vadd.f32 %v3254, %v3255
  %v3257 = vsel %vm1309, %v3114, 0.0
  %v3258 = vrot.slane %v3257, 4
  %v3259 = vadd.f32 %v3257, %v3258
  %v3260 = vrot.slane %v3259, 2
  %v3261 = vadd.f32 %v3259, %v3260
  %v3262 = vrot.slane %v3261, 1
  %v3263 = vadd.f32 %v3261, %v3262
  %v3264 = vsel %vm1309, %v3116, 0.0
  %v3265 = vrot.slane %v3264, 4
  %v3266 = vadd.f32 %v3264, %v3265
  %v3267 = vrot.slane %v3266, 2
  %v3268 = vadd.f32 %v3266, %v3267
  %v3269 = vrot.slane %v3268, 1
  %v3270 = vadd.f32 %v3268, %v3269
  %v3271 = vsel %vm1309, %v3118, 0.0
  %v3272 = vrot.slane %v3271, 4
  %v3273 = vadd.f32 %v3271, %v3272
  %v3274 = vrot.slane %v3273, 2
  %v3275 = vadd.f32 %v3273, %v3274
  %v3276 = vrot.slane %v3275, 1
  %v3277 = vadd.f32 %v3275, %v3276
  %v3278 = vsel %vm1309, %v3120, 0.0
  %v3279 = vrot.slane %v3278, 4
  %v3280 = vadd.f32 %v3278, %v3279
  %v3281 = vrot.slane %v3280, 2
  %v3282 = vadd.f32 %v3280, %v3281
  %v3283 = vrot.slane %v3282, 1
  %v3284 = vadd.f32 %v3282, %v3283
  %v3285 = vsel %vm1309, %v3122, 0.0
  %v3286 = vrot.slane %v3285, 4
  %v3287 = vadd.f32 %v3285, %v3286
  %v3288 = vrot.slane %v3287, 2
  %v3289 = vadd.f32 %v3287, %v3288
  %v3290 = vrot.slane %v3289, 1
  %v3291 = vadd.f32 %v3289, %v3290
  %v3292 = vsel %vm1309, %v3124, 0.0
  %v3293 = vrot.slane %v3292, 4
  %v3294 = vadd.f32 %v3292, %v3293
  %v3295 = vrot.slane %v3294, 2
  %v3296 = vadd.f32 %v3294, %v3295
  %v3297 = vrot.slane %v3296, 1
  %v3298 = vadd.f32 %v3296, %v3297
  %v3299 = vsel %vm1309, %v3126, 0.0
  %v3300 = vrot.slane %v3299, 4
  %v3301 = vadd.f32 %v3299, %v3300
  %v3302 = vrot.slane %v3301, 2
  %v3303 = vadd.f32 %v3301, %v3302
  %v3304 = vrot.slane %v3303, 1
  %v3305 = vadd.f32 %v3303, %v3304
  %v3306 = vsel %vm1309, %v3128, 0.0
  %v3307 = vrot.slane %v3306, 4
  %v3308 = vadd.f32 %v3306, %v3307
  %v3309 = vrot.slane %v3308, 2
  %v3310 = vadd.f32 %v3308, %v3309
  %v3311 = vrot.slane %v3310, 1
  %v3312 = vadd.f32 %v3310, %v3311
  %v3313 = vsel %vm1309, %v3130, 0.0
  %v3314 = vrot.slane %v3313, 4
  %v3315 = vadd.f32 %v3313, %v3314
  %v3316 = vrot.slane %v3315, 2
  %v3317 = vadd.f32 %v3315, %v3316
  %v3318 = vrot.slane %v3317, 1
  %v3319 = vadd.f32 %v3317, %v3318
  %v3320 = vsel %vm1309, %v3132, 0.0
  %v3321 = vrot.slane %v3320, 4
  %v3322 = vadd.f32 %v3320, %v3321
  %v3323 = vrot.slane %v3322, 2
  %v3324 = vadd.f32 %v3322, %v3323
  %v3325 = vrot.slane %v3324, 1
  %v3326 = vadd.f32 %v3324, %v3325
  %v3327 = vsel %vm1309, %v3134, 0.0
  %v3328 = vrot.slane %v3327, 4
  %v3329 = vadd.f32 %v3327, %v3328
  %v3330 = vrot.slane %v3329, 2
  %v3331 = vadd.f32 %v3329, %v3330
  %v3332 = vrot.slane %v3331, 1
  %v3333 = vadd.f32 %v3331, %v3332
  %v3334 = vsel %vm1309, %v3136, 0.0
  %v3335 = vrot.slane %v3334, 4
  %v3336 = vadd.f32 %v3334, %v3335
  %v3337 = vrot.slane %v3336, 2
  %v3338 = vadd.f32 %v3336, %v3337
  %v3339 = vrot.slane %v3338, 1
  %v3340 = vadd.f32 %v3338, %v3339
  %v3341 = vsel %vm1309, %v3138, 0.0
  %v3342 = vrot.slane %v3341, 4
  %v3343 = vadd.f32 %v3341, %v3342
  %v3344 = vrot.slane %v3343, 2
  %v3345 = vadd.f32 %v3343, %v3344
  %v3346 = vrot.slane %v3345, 1
  %v3347 = vadd.f32 %v3345, %v3346
  %v3348 = vsel %vm1309, %v3140, 0.0
  %v3349 = vrot.slane %v3348, 4
  %v3350 = vadd.f32 %v3348, %v3349
  %v3351 = vrot.slane %v3350, 2
  %v3352 = vadd.f32 %v3350, %v3351
  %v3353 = vrot.slane %v3352, 1
  %v3354 = vadd.f32 %v3352, %v3353
  %v3355 = vsel %vm1309, %v3142, 0.0
  %v3356 = vrot.slane %v3355, 4
  %v3357 = vadd.f32 %v3355, %v3356
  %v3358 = vrot.slane %v3357, 2
  %v3359 = vadd.f32 %v3357, %v3358
  %v3360 = vrot.slane %v3359, 1
  %v3361 = vadd.f32 %v3359, %v3360
  %v3362 = vsel %vm1309, %v3144, 0.0
  %v3363 = vrot.slane %v3362, 4
  %v3364 = vadd.f32 %v3362, %v3363
  %v3365 = vrot.slane %v3364, 2
  %v3366 = vadd.f32 %v3364, %v3365
  %v3367 = vrot.slane %v3366, 1
  %v3368 = vadd.f32 %v3366, %v3367
  %v3369 = vrcp.pop %v3151
  %v3370 = vrcp.pop %v3158
  %v3371 = vrcp.pop %v3165
  %v3372 = vrcp.pop %v3172
  %v3373 = vrcp.pop %v3179
  %v3374 = vrcp.pop %v3186
  %v3375 = vrcp.pop %v3193
  %v3376 = vrcp.pop %v3200
  %v3377 = vrcp.pop %v3207
  %v3378 = vrcp.pop %v3214
  %v3379 = vrcp.pop %v3221
  %v3380 = vrcp.pop %v3228
  %v3381 = vrcp.pop %v3235
  %v3382 = vrcp.pop %v3242
  %v3383 = vrcp.pop %v3249
  %v3384 = vrcp.pop %v3256
  %v3385 = vrcp.pop %v3263
  %v3386 = vrcp.pop %v3270
  %v3387 = vrcp.pop %v3277
  %v3388 = vrcp.pop %v3284
  %v3389 = vrcp.pop %v3291
  %v3390 = vrcp.pop %v3298
  %v3391 = vrcp.pop %v3305
  %v3392 = vrcp.pop %v3312
  %v3393 = vrcp.pop %v3319
  %v3394 = vrcp.pop %v3326
  %v3395 = vrcp.pop %v3333
  %v3396 = vrcp.pop %v3340
  %v3397 = vrcp.pop %v3347
  %v3398 = vrcp.pop %v3354
  %v3399 = vrcp.pop %v3361
  %v3400 = vrcp.pop %v3368
  %v3401 = vmul.f32 %v3082, %v3369
  %v3402 = vmul.f32 %v3084, %v3370
  %v3403 = vmul.f32 %v3086, %v3371
  %v3404 = vmul.f32 %v3088, %v3372
  %v3405 = vmul.f32 %v3090, %v3373
  %v3406 = vmul.f32 %v3092, %v3374
  %v3407 = vmul.f32 %v3094, %v3375
  %v3408 = vmul.f32 %v3096, %v3376
  %v3409 = vmul.f32 %v3098, %v3377
  %v3410 = vmul.f32 %v3100, %v3378
  %v3411 = vmul.f32 %v3102, %v3379
  %v3412 = vmul.f32 %v3104, %v3380
  %v3413 = vmul.f32 %v3106, %v3381
  %v3414 = vmul.f32 %v3108, %v3382
  %v3415 = vmul.f32 %v3110, %v3383
  %v3416 = vmul.f32 %v3112, %v3384
  %v3417 = vmul.f32 %v3114, %v3385
  %v3418 = vmul.f32 %v3116, %v3386
  %v3419 = vmul.f32 %v3118, %v3387
  %v3420 = vmul.f32 %v3120, %v3388
  %v3421 = vmul.f32 %v3122, %v3389
  %v3422 = vmul.f32 %v3124, %v3390
  %v3423 = vmul.f32 %v3126, %v3391
  %v3424 = vmul.f32 %v3128, %v3392
  %v3425 = vmul.f32 %v3130, %v3393
  %v3426 = vmul.f32 %v3132, %v3394
  %v3427 = vmul.f32 %v3134, %v3395
  %v3428 = vmul.f32 %v3136, %v3396
  %v3429 = vmul.f32 %v3138, %v3397
  %v3430 = vmul.f32 %v3140, %v3398
  %v3431 = vmul.f32 %v3142, %v3399
  %v3432 = vmul.f32 %v3144, %v3400
  %v3433 = vsel %vm1309, %v2793, -inf
  %v3434 = vrot.slane %v3433, 4
  %v3435 = vmax.f32 %v3433, %v3434
  %v3436 = vrot.slane %v3435, 2
  %v3437 = vmax.f32 %v3435, %v3436
  %v3438 = vrot.slane %v3437, 1
  %v3439 = vmax.f32 %v3437, %v3438
  %v3440 = vsel %vm1309, %v2794, -inf
  %v3441 = vrot.slane %v3440, 4
  %v3442 = vmax.f32 %v3440, %v3441
  %v3443 = vrot.slane %v3442, 2
  %v3444 = vmax.f32 %v3442, %v3443
  %v3445 = vrot.slane %v3444, 1
  %v3446 = vmax.f32 %v3444, %v3445
  %v3447 = vsel %vm1309, %v2795, -inf
  %v3448 = vrot.slane %v3447, 4
  %v3449 = vmax.f32 %v3447, %v3448
  %v3450 = vrot.slane %v3449, 2
  %v3451 = vmax.f32 %v3449, %v3450
  %v3452 = vrot.slane %v3451, 1
  %v3453 = vmax.f32 %v3451, %v3452
  %v3454 = vsel %vm1309, %v2796, -inf
  %v3455 = vrot.slane %v3454, 4
  %v3456 = vmax.f32 %v3454, %v3455
  %v3457 = vrot.slane %v3456, 2
  %v3458 = vmax.f32 %v3456, %v3457
  %v3459 = vrot.slane %v3458, 1
  %v3460 = vmax.f32 %v3458, %v3459
  %v3461 = vsel %vm1309, %v2797, -inf
  %v3462 = vrot.slane %v3461, 4
  %v3463 = vmax.f32 %v3461, %v3462
  %v3464 = vrot.slane %v3463, 2
  %v3465 = vmax.f32 %v3463, %v3464
  %v3466 = vrot.slane %v3465, 1
  %v3467 = vmax.f32 %v3465, %v3466
  %v3468 = vsel %vm1309, %v2798, -inf
  %v3469 = vrot.slane %v3468, 4
  %v3470 = vmax.f32 %v3468, %v3469
  %v3471 = vrot.slane %v3470, 2
  %v3472 = vmax.f32 %v3470, %v3471
  %v3473 = vrot.slane %v3472, 1
  %v3474 = vmax.f32 %v3472, %v3473
  %v3475 = vsel %vm1309, %v2799, -inf
  %v3476 = vrot.slane %v3475, 4
  %v3477 = vmax.f32 %v3475, %v3476
  %v3478 = vrot.slane %v3477, 2
  %v3479 = vmax.f32 %v3477, %v3478
  %v3480 = vrot.slane %v3479, 1
  %v3481 = vmax.f32 %v3479, %v3480
  %v3482 = vsel %vm1309, %v2800, -inf
  %v3483 = vrot.slane %v3482, 4
  %v3484 = vmax.f32 %v3482, %v3483
  %v3485 = vrot.slane %v3484, 2
  %v3486 = vmax.f32 %v3484, %v3485
  %v3487 = vrot.slane %v3486, 1
  %v3488 = vmax.f32 %v3486, %v3487
  %v3489 = vsel %vm1309, %v2801, -inf
  %v3490 = vrot.slane %v3489, 4
  %v3491 = vmax.f32 %v3489, %v3490
  %v3492 = vrot.slane %v3491, 2
  %v3493 = vmax.f32 %v3491, %v3492
  %v3494 = vrot.slane %v3493, 1
  %v3495 = vmax.f32 %v3493, %v3494
  %v3496 = vsel %vm1309, %v2802, -inf
  %v3497 = vrot.slane %v3496, 4
  %v3498 = vmax.f32 %v3496, %v3497
  %v3499 = vrot.slane %v3498, 2
  %v3500 = vmax.f32 %v3498, %v3499
  %v3501 = vrot.slane %v3500, 1
  %v3502 = vmax.f32 %v3500, %v3501
  %v3503 = vsel %vm1309, %v2803, -inf
  %v3504 = vrot.slane %v3503, 4
  %v3505 = vmax.f32 %v3503, %v3504
  %v3506 = vrot.slane %v3505, 2
  %v3507 = vmax.f32 %v3505, %v3506
  %v3508 = vrot.slane %v3507, 1
  %v3509 = vmax.f32 %v3507, %v3508
  %v3510 = vsel %vm1309, %v2804, -inf
  %v3511 = vrot.slane %v3510, 4
  %v3512 = vmax.f32 %v3510, %v3511
  %v3513 = vrot.slane %v3512, 2
  %v3514 = vmax.f32 %v3512, %v3513
  %v3515 = vrot.slane %v3514, 1
  %v3516 = vmax.f32 %v3514, %v3515
  %v3517 = vsel %vm1309, %v2805, -inf
  %v3518 = vrot.slane %v3517, 4
  %v3519 = vmax.f32 %v3517, %v3518
  %v3520 = vrot.slane %v3519, 2
  %v3521 = vmax.f32 %v3519, %v3520
  %v3522 = vrot.slane %v3521, 1
  %v3523 = vmax.f32 %v3521, %v3522
  %v3524 = vsel %vm1309, %v2806, -inf
  %v3525 = vrot.slane %v3524, 4
  %v3526 = vmax.f32 %v3524, %v3525
  %v3527 = vrot.slane %v3526, 2
  %v3528 = vmax.f32 %v3526, %v3527
  %v3529 = vrot.slane %v3528, 1
  %v3530 = vmax.f32 %v3528, %v3529
  %v3531 = vsel %vm1309, %v2807, -inf
  %v3532 = vrot.slane %v3531, 4
  %v3533 = vmax.f32 %v3531, %v3532
  %v3534 = vrot.slane %v3533, 2
  %v3535 = vmax.f32 %v3533, %v3534
  %v3536 = vrot.slane %v3535, 1
  %v3537 = vmax.f32 %v3535, %v3536
  %v3538 = vsel %vm1309, %v2808, -inf
  %v3539 = vrot.slane %v3538, 4
  %v3540 = vmax.f32 %v3538, %v3539
  %v3541 = vrot.slane %v3540, 2
  %v3542 = vmax.f32 %v3540, %v3541
  %v3543 = vrot.slane %v3542, 1
  %v3544 = vmax.f32 %v3542, %v3543
  %v3545 = vsel %vm1309, %v2809, -inf
  %v3546 = vrot.slane %v3545, 4
  %v3547 = vmax.f32 %v3545, %v3546
  %v3548 = vrot.slane %v3547, 2
  %v3549 = vmax.f32 %v3547, %v3548
  %v3550 = vrot.slane %v3549, 1
  %v3551 = vmax.f32 %v3549, %v3550
  %v3552 = vsel %vm1309, %v2810, -inf
  %v3553 = vrot.slane %v3552, 4
  %v3554 = vmax.f32 %v3552, %v3553
  %v3555 = vrot.slane %v3554, 2
  %v3556 = vmax.f32 %v3554, %v3555
  %v3557 = vrot.slane %v3556, 1
  %v3558 = vmax.f32 %v3556, %v3557
  %v3559 = vsel %vm1309, %v2811, -inf
  %v3560 = vrot.slane %v3559, 4
  %v3561 = vmax.f32 %v3559, %v3560
  %v3562 = vrot.slane %v3561, 2
  %v3563 = vmax.f32 %v3561, %v3562
  %v3564 = vrot.slane %v3563, 1
  %v3565 = vmax.f32 %v3563, %v3564
  %v3566 = vsel %vm1309, %v2812, -inf
  %v3567 = vrot.slane %v3566, 4
  %v3568 = vmax.f32 %v3566, %v3567
  %v3569 = vrot.slane %v3568, 2
  %v3570 = vmax.f32 %v3568, %v3569
  %v3571 = vrot.slane %v3570, 1
  %v3572 = vmax.f32 %v3570, %v3571
  %v3573 = vsel %vm1309, %v2813, -inf
  %v3574 = vrot.slane %v3573, 4
  %v3575 = vmax.f32 %v3573, %v3574
  %v3576 = vrot.slane %v3575, 2
  %v3577 = vmax.f32 %v3575, %v3576
  %v3578 = vrot.slane %v3577, 1
  %v3579 = vmax.f32 %v3577, %v3578
  %v3580 = vsel %vm1309, %v2814, -inf
  %v3581 = vrot.slane %v3580, 4
  %v3582 = vmax.f32 %v3580, %v3581
  %v3583 = vrot.slane %v3582, 2
  %v3584 = vmax.f32 %v3582, %v3583
  %v3585 = vrot.slane %v3584, 1
  %v3586 = vmax.f32 %v3584, %v3585
  %v3587 = vsel %vm1309, %v2815, -inf
  %v3588 = vrot.slane %v3587, 4
  %v3589 = vmax.f32 %v3587, %v3588
  %v3590 = vrot.slane %v3589, 2
  %v3591 = vmax.f32 %v3589, %v3590
  %v3592 = vrot.slane %v3591, 1
  %v3593 = vmax.f32 %v3591, %v3592
  %v3594 = vsel %vm1309, %v2816, -inf
  %v3595 = vrot.slane %v3594, 4
  %v3596 = vmax.f32 %v3594, %v3595
  %v3597 = vrot.slane %v3596, 2
  %v3598 = vmax.f32 %v3596, %v3597
  %v3599 = vrot.slane %v3598, 1
  %v3600 = vmax.f32 %v3598, %v3599
  %v3601 = vsel %vm1309, %v2817, -inf
  %v3602 = vrot.slane %v3601, 4
  %v3603 = vmax.f32 %v3601, %v3602
  %v3604 = vrot.slane %v3603, 2
  %v3605 = vmax.f32 %v3603, %v3604
  %v3606 = vrot.slane %v3605, 1
  %v3607 = vmax.f32 %v3605, %v3606
  %v3608 = vsel %vm1309, %v2818, -inf
  %v3609 = vrot.slane %v3608, 4
  %v3610 = vmax.f32 %v3608, %v3609
  %v3611 = vrot.slane %v3610, 2
  %v3612 = vmax.f32 %v3610, %v3611
  %v3613 = vrot.slane %v3612, 1
  %v3614 = vmax.f32 %v3612, %v3613
  %v3615 = vsel %vm1309, %v2819, -inf
  %v3616 = vrot.slane %v3615, 4
  %v3617 = vmax.f32 %v3615, %v3616
  %v3618 = vrot.slane %v3617, 2
  %v3619 = vmax.f32 %v3617, %v3618
  %v3620 = vrot.slane %v3619, 1
  %v3621 = vmax.f32 %v3619, %v3620
  %v3622 = vsel %vm1309, %v2820, -inf
  %v3623 = vrot.slane %v3622, 4
  %v3624 = vmax.f32 %v3622, %v3623
  %v3625 = vrot.slane %v3624, 2
  %v3626 = vmax.f32 %v3624, %v3625
  %v3627 = vrot.slane %v3626, 1
  %v3628 = vmax.f32 %v3626, %v3627
  %v3629 = vsel %vm1309, %v2821, -inf
  %v3630 = vrot.slane %v3629, 4
  %v3631 = vmax.f32 %v3629, %v3630
  %v3632 = vrot.slane %v3631, 2
  %v3633 = vmax.f32 %v3631, %v3632
  %v3634 = vrot.slane %v3633, 1
  %v3635 = vmax.f32 %v3633, %v3634
  %v3636 = vsel %vm1309, %v2822, -inf
  %v3637 = vrot.slane %v3636, 4
  %v3638 = vmax.f32 %v3636, %v3637
  %v3639 = vrot.slane %v3638, 2
  %v3640 = vmax.f32 %v3638, %v3639
  %v3641 = vrot.slane %v3640, 1
  %v3642 = vmax.f32 %v3640, %v3641
  %v3643 = vsel %vm1309, %v2823, -inf
  %v3644 = vrot.slane %v3643, 4
  %v3645 = vmax.f32 %v3643, %v3644
  %v3646 = vrot.slane %v3645, 2
  %v3647 = vmax.f32 %v3645, %v3646
  %v3648 = vrot.slane %v3647, 1
  %v3649 = vmax.f32 %v3647, %v3648
  %v3650 = vsel %vm1309, %v2824, -inf
  %v3651 = vrot.slane %v3650, 4
  %v3652 = vmax.f32 %v3650, %v3651
  %v3653 = vrot.slane %v3652, 2
  %v3654 = vmax.f32 %v3652, %v3653
  %v3655 = vrot.slane %v3654, 1
  %v3656 = vmax.f32 %v3654, %v3655
  %v3657 = vsub.f32 %v2793, %v3439
  %v3658 = vsub.f32 %v2794, %v3446
  %v3659 = vsub.f32 %v2795, %v3453
  %v3660 = vsub.f32 %v2796, %v3460
  %v3661 = vsub.f32 %v2797, %v3467
  %v3662 = vsub.f32 %v2798, %v3474
  %v3663 = vsub.f32 %v2799, %v3481
  %v3664 = vsub.f32 %v2800, %v3488
  %v3665 = vsub.f32 %v2801, %v3495
  %v3666 = vsub.f32 %v2802, %v3502
  %v3667 = vsub.f32 %v2803, %v3509
  %v3668 = vsub.f32 %v2804, %v3516
  %v3669 = vsub.f32 %v2805, %v3523
  %v3670 = vsub.f32 %v2806, %v3530
  %v3671 = vsub.f32 %v2807, %v3537
  %v3672 = vsub.f32 %v2808, %v3544
  %v3673 = vsub.f32 %v2809, %v3551
  %v3674 = vsub.f32 %v2810, %v3558
  %v3675 = vsub.f32 %v2811, %v3565
  %v3676 = vsub.f32 %v2812, %v3572
  %v3677 = vsub.f32 %v2813, %v3579
  %v3678 = vsub.f32 %v2814, %v3586
  %v3679 = vsub.f32 %v2815, %v3593
  %v3680 = vsub.f32 %v2816, %v3600
  %v3681 = vsub.f32 %v2817, %v3607
  %v3682 = vsub.f32 %v2818, %v3614
  %v3683 = vsub.f32 %v2819, %v3621
  %v3684 = vsub.f32 %v2820, %v3628
  %v3685 = vsub.f32 %v2821, %v3635
  %v3686 = vsub.f32 %v2822, %v3642
  %v3687 = vsub.f32 %v2823, %v3649
  %v3688 = vsub.f32 %v2824, %v3656
  %v3689 = vmul.f32 %v3657, 1.442695
  %v3690 = vpow.pop %v3689
  %v3691 = vmul.f32 %v3658, 1.442695
  %v3692 = vpow.pop %v3691
  %v3693 = vmul.f32 %v3659, 1.442695
  %v3694 = vpow.pop %v3693
  %v3695 = vmul.f32 %v3660, 1.442695
  %v3696 = vpow.pop %v3695
  %v3697 = vmul.f32 %v3661, 1.442695
  %v3698 = vpow.pop %v3697
  %v3699 = vmul.f32 %v3662, 1.442695
  %v3700 = vpow.pop %v3699
  %v3701 = vmul.f32 %v3663, 1.442695
  %v3702 = vpow.pop %v3701
  %v3703 = vmul.f32 %v3664, 1.442695
  %v3704 = vpow.pop %v3703
  %v3705 = vmul.f32 %v3665, 1.442695
  %v3706 = vpow.pop %v3705
  %v3707 = vmul.f32 %v3666, 1.442695
  %v3708 = vpow.pop %v3707
  %v3709 = vmul.f32 %v3667, 1.442695
  %v3710 = vpow.pop %v3709
  %v3711 = vmul.f32 %v3668, 1.442695
  %v3712 = vpow.pop %v3711
  %v3713 = vmul.f32 %v3669, 1.442695
  %v3714 = vpow.pop %v3713
  %v3715 = vmul.f32 %v3670, 1.442695
  %v3716 = vpow.pop %v3715
  %v3717 = vmul.f32 %v3671, 1.442695
  %v3718 = vpow.pop %v3717
  %v3719 = vmul.f32 %v3672, 1.442695
  %v3720 = vpow.pop %v3719
  %v3721 = vmul.f32 %v3673, 1.442695
  %v3722 = vpow.pop %v3721
  %v3723 = vmul.f32 %v3674, 1.442695
  %v3724 = vpow.pop %v3723
  %v3725 = vmul.f32 %v3675, 1.442695
  %v3726 = vpow.pop %v3725
  %v3727 = vmul.f32 %v3676, 1.442695
  %v3728 = vpow.pop %v3727
  %v3729 = vmul.f32 %v3677, 1.442695
  %v3730 = vpow.pop %v3729
  %v3731 = vmul.f32 %v3678, 1.442695
  %v3732 = vpow.pop %v3731
  %v3733 = vmul.f32 %v3679, 1.442695
  %v3734 = vpow.pop %v3733
  %v3735 = vmul.f32 %v3680, 1.442695
  %v3736 = vpow.pop %v3735
  %v3737 = vmul.f32 %v3681, 1.442695
  %v3738 = vpow.pop %v3737
  %v3739 = vmul.f32 %v3682, 1.442695
  %v3740 = vpow.pop %v3739
  %v3741 = vmul.f32 %v3683, 1.442695
  %v3742 = vpow.pop %v3741
  %v3743 = vmul.f32 %v3684, 1.442695
  %v3744 = vpow.pop %v3743
  %v3745 = vmul.f32 %v3685, 1.442695
  %v3746 = vpow.pop %v3745
  %v3747 = vmul.f32 %v3686, 1.442695
  %v3748 = vpow.pop %v3747
  %v3749 = vmul.f32 %v3687, 1.442695
  %v3750 = vpow.pop %v3749
  %v3751 = vmul.f32 %v3688, 1.442695
  %v3752 = vpow.pop %v3751
  %v3753 = vsel %vm1309, %v3690, 0.0
  %v3754 = vrot.slane %v3753, 4
  %v3755 = vadd.f32 %v3753, %v3754
  %v3756 = vrot.slane %v3755, 2
  %v3757 = vadd.f32 %v3755, %v3756
  %v3758 = vrot.slane %v3757, 1
  %v3759 = vadd.f32 %v3757, %v3758
  %v3760 = vsel %vm1309, %v3692, 0.0
  %v3761 = vrot.slane %v3760, 4
  %v3762 = vadd.f32 %v3760, %v3761
  %v3763 = vrot.slane %v3762, 2
  %v3764 = vadd.f32 %v3762, %v3763
  %v3765 = vrot.slane %v3764, 1
  %v3766 = vadd.f32 %v3764, %v3765
  %v3767 = vsel %vm1309, %v3694, 0.0
  %v3768 = vrot.slane %v3767, 4
  %v3769 = vadd.f32 %v3767, %v3768
  %v3770 = vrot.slane %v3769, 2
  %v3771 = vadd.f32 %v3769, %v3770
  %v3772 = vrot.slane %v3771, 1
  %v3773 = vadd.f32 %v3771, %v3772
  %v3774 = vsel %vm1309, %v3696, 0.0
  %v3775 = vrot.slane %v3774, 4
  %v3776 = vadd.f32 %v3774, %v3775
  %v3777 = vrot.slane %v3776, 2
  %v3778 = vadd.f32 %v3776, %v3777
  %v3779 = vrot.slane %v3778, 1
  %v3780 = vadd.f32 %v3778, %v3779
  %v3781 = vsel %vm1309, %v3698, 0.0
  %v3782 = vrot.slane %v3781, 4
  %v3783 = vadd.f32 %v3781, %v3782
  %v3784 = vrot.slane %v3783, 2
  %v3785 = vadd.f32 %v3783, %v3784
  %v3786 = vrot.slane %v3785, 1
  %v3787 = vadd.f32 %v3785, %v3786
  %v3788 = vsel %vm1309, %v3700, 0.0
  %v3789 = vrot.slane %v3788, 4
  %v3790 = vadd.f32 %v3788, %v3789
  %v3791 = vrot.slane %v3790, 2
  %v3792 = vadd.f32 %v3790, %v3791
  %v3793 = vrot.slane %v3792, 1
  %v3794 = vadd.f32 %v3792, %v3793
  %v3795 = vsel %vm1309, %v3702, 0.0
  %v3796 = vrot.slane %v3795, 4
  %v3797 = vadd.f32 %v3795, %v3796
  %v3798 = vrot.slane %v3797, 2
  %v3799 = vadd.f32 %v3797, %v3798
  %v3800 = vrot.slane %v3799, 1
  %v3801 = vadd.f32 %v3799, %v3800
  %v3802 = vsel %vm1309, %v3704, 0.0
  %v3803 = vrot.slane %v3802, 4
  %v3804 = vadd.f32 %v3802, %v3803
  %v3805 = vrot.slane %v3804, 2
  %v3806 = vadd.f32 %v3804, %v3805
  %v3807 = vrot.slane %v3806, 1
  %v3808 = vadd.f32 %v3806, %v3807
  %v3809 = vsel %vm1309, %v3706, 0.0
  %v3810 = vrot.slane %v3809, 4
  %v3811 = vadd.f32 %v3809, %v3810
  %v3812 = vrot.slane %v3811, 2
  %v3813 = vadd.f32 %v3811, %v3812
  %v3814 = vrot.slane %v3813, 1
  %v3815 = vadd.f32 %v3813, %v3814
  %v3816 = vsel %vm1309, %v3708, 0.0
  %v3817 = vrot.slane %v3816, 4
  %v3818 = vadd.f32 %v3816, %v3817
  %v3819 = vrot.slane %v3818, 2
  %v3820 = vadd.f32 %v3818, %v3819
  %v3821 = vrot.slane %v3820, 1
  %v3822 = vadd.f32 %v3820, %v3821
  %v3823 = vsel %vm1309, %v3710, 0.0
  %v3824 = vrot.slane %v3823, 4
  %v3825 = vadd.f32 %v3823, %v3824
  %v3826 = vrot.slane %v3825, 2
  %v3827 = vadd.f32 %v3825, %v3826
  %v3828 = vrot.slane %v3827, 1
  %v3829 = vadd.f32 %v3827, %v3828
  %v3830 = vsel %vm1309, %v3712, 0.0
  %v3831 = vrot.slane %v3830, 4
  %v3832 = vadd.f32 %v3830, %v3831
  %v3833 = vrot.slane %v3832, 2
  %v3834 = vadd.f32 %v3832, %v3833
  %v3835 = vrot.slane %v3834, 1
  %v3836 = vadd.f32 %v3834, %v3835
  %v3837 = vsel %vm1309, %v3714, 0.0
  %v3838 = vrot.slane %v3837, 4
  %v3839 = vadd.f32 %v3837, %v3838
  %v3840 = vrot.slane %v3839, 2
  %v3841 = vadd.f32 %v3839, %v3840
  %v3842 = vrot.slane %v3841, 1
  %v3843 = vadd.f32 %v3841, %v3842
  %v3844 = vsel %vm1309, %v3716, 0.0
  %v3845 = vrot.slane %v3844, 4
  %v3846 = vadd.f32 %v3844, %v3845
  %v3847 = vrot.slane %v3846, 2
  %v3848 = vadd.f32 %v3846, %v3847
  %v3849 = vrot.slane %v3848, 1
  %v3850 = vadd.f32 %v3848, %v3849
  %v3851 = vsel %vm1309, %v3718, 0.0
  %v3852 = vrot.slane %v3851, 4
  %v3853 = vadd.f32 %v3851, %v3852
  %v3854 = vrot.slane %v3853, 2
  %v3855 = vadd.f32 %v3853, %v3854
  %v3856 = vrot.slane %v3855, 1
  %v3857 = vadd.f32 %v3855, %v3856
  %v3858 = vsel %vm1309, %v3720, 0.0
  %v3859 = vrot.slane %v3858, 4
  %v3860 = vadd.f32 %v3858, %v3859
  %v3861 = vrot.slane %v3860, 2
  %v3862 = vadd.f32 %v3860, %v3861
  %v3863 = vrot.slane %v3862, 1
  %v3864 = vadd.f32 %v3862, %v3863
  %v3865 = vsel %vm1309, %v3722, 0.0
  %v3866 = vrot.slane %v3865, 4
  %v3867 = vadd.f32 %v3865, %v3866
  %v3868 = vrot.slane %v3867, 2
  %v3869 = vadd.f32 %v3867, %v3868
  %v3870 = vrot.slane %v3869, 1
  %v3871 = vadd.f32 %v3869, %v3870
  %v3872 = vsel %vm1309, %v3724, 0.0
  %v3873 = vrot.slane %v3872, 4
  %v3874 = vadd.f32 %v3872, %v3873
  %v3875 = vrot.slane %v3874, 2
  %v3876 = vadd.f32 %v3874, %v3875
  %v3877 = vrot.slane %v3876, 1
  %v3878 = vadd.f32 %v3876, %v3877
  %v3879 = vsel %vm1309, %v3726, 0.0
  %v3880 = vrot.slane %v3879, 4
  %v3881 = vadd.f32 %v3879, %v3880
  %v3882 = vrot.slane %v3881, 2
  %v3883 = vadd.f32 %v3881, %v3882
  %v3884 = vrot.slane %v3883, 1
  %v3885 = vadd.f32 %v3883, %v3884
  %v3886 = vsel %vm1309, %v3728, 0.0
  %v3887 = vrot.slane %v3886, 4
  %v3888 = vadd.f32 %v3886, %v3887
  %v3889 = vrot.slane %v3888, 2
  %v3890 = vadd.f32 %v3888, %v3889
  %v3891 = vrot.slane %v3890, 1
  %v3892 = vadd.f32 %v3890, %v3891
  %v3893 = vsel %vm1309, %v3730, 0.0
  %v3894 = vrot.slane %v3893, 4
  %v3895 = vadd.f32 %v3893, %v3894
  %v3896 = vrot.slane %v3895, 2
  %v3897 = vadd.f32 %v3895, %v3896
  %v3898 = vrot.slane %v3897, 1
  %v3899 = vadd.f32 %v3897, %v3898
  %v3900 = vsel %vm1309, %v3732, 0.0
  %v3901 = vrot.slane %v3900, 4
  %v3902 = vadd.f32 %v3900, %v3901
  %v3903 = vrot.slane %v3902, 2
  %v3904 = vadd.f32 %v3902, %v3903
  %v3905 = vrot.slane %v3904, 1
  %v3906 = vadd.f32 %v3904, %v3905
  %v3907 = vsel %vm1309, %v3734, 0.0
  %v3908 = vrot.slane %v3907, 4
  %v3909 = vadd.f32 %v3907, %v3908
  %v3910 = vrot.slane %v3909, 2
  %v3911 = vadd.f32 %v3909, %v3910
  %v3912 = vrot.slane %v3911, 1
  %v3913 = vadd.f32 %v3911, %v3912
  %v3914 = vsel %vm1309, %v3736, 0.0
  %v3915 = vrot.slane %v3914, 4
  %v3916 = vadd.f32 %v3914, %v3915
  %v3917 = vrot.slane %v3916, 2
  %v3918 = vadd.f32 %v3916, %v3917
  %v3919 = vrot.slane %v3918, 1
  %v3920 = vadd.f32 %v3918, %v3919
  %v3921 = vsel %vm1309, %v3738, 0.0
  %v3922 = vrot.slane %v3921, 4
  %v3923 = vadd.f32 %v3921, %v3922
  %v3924 = vrot.slane %v3923, 2
  %v3925 = vadd.f32 %v3923, %v3924
  %v3926 = vrot.slane %v3925, 1
  %v3927 = vadd.f32 %v3925, %v3926
  %v3928 = vsel %vm1309, %v3740, 0.0
  %v3929 = vrot.slane %v3928, 4
  %v3930 = vadd.f32 %v3928, %v3929
  %v3931 = vrot.slane %v3930, 2
  %v3932 = vadd.f32 %v3930, %v3931
  %v3933 = vrot.slane %v3932, 1
  %v3934 = vadd.f32 %v3932, %v3933
  %v3935 = vsel %vm1309, %v3742, 0.0
  %v3936 = vrot.slane %v3935, 4
  %v3937 = vadd.f32 %v3935, %v3936
  %v3938 = vrot.slane %v3937, 2
  %v3939 = vadd.f32 %v3937, %v3938
  %v3940 = vrot.slane %v3939, 1
  %v3941 = vadd.f32 %v3939, %v3940
  %v3942 = vsel %vm1309, %v3744, 0.0
  %v3943 = vrot.slane %v3942, 4
  %v3944 = vadd.f32 %v3942, %v3943
  %v3945 = vrot.slane %v3944, 2
  %v3946 = vadd.f32 %v3944, %v3945
  %v3947 = vrot.slane %v3946, 1
  %v3948 = vadd.f32 %v3946, %v3947
  %v3949 = vsel %vm1309, %v3746, 0.0
  %v3950 = vrot.slane %v3949, 4
  %v3951 = vadd.f32 %v3949, %v3950
  %v3952 = vrot.slane %v3951, 2
  %v3953 = vadd.f32 %v3951, %v3952
  %v3954 = vrot.slane %v3953, 1
  %v3955 = vadd.f32 %v3953, %v3954
  %v3956 = vsel %vm1309, %v3748, 0.0
  %v3957 = vrot.slane %v3956, 4
  %v3958 = vadd.f32 %v3956, %v3957
  %v3959 = vrot.slane %v3958, 2
  %v3960 = vadd.f32 %v3958, %v3959
  %v3961 = vrot.slane %v3960, 1
  %v3962 = vadd.f32 %v3960, %v3961
  %v3963 = vsel %vm1309, %v3750, 0.0
  %v3964 = vrot.slane %v3963, 4
  %v3965 = vadd.f32 %v3963, %v3964
  %v3966 = vrot.slane %v3965, 2
  %v3967 = vadd.f32 %v3965, %v3966
  %v3968 = vrot.slane %v3967, 1
  %v3969 = vadd.f32 %v3967, %v3968
  %v3970 = vsel %vm1309, %v3752, 0.0
  %v3971 = vrot.slane %v3970, 4
  %v3972 = vadd.f32 %v3970, %v3971
  %v3973 = vrot.slane %v3972, 2
  %v3974 = vadd.f32 %v3972, %v3973
  %v3975 = vrot.slane %v3974, 1
  %v3976 = vadd.f32 %v3974, %v3975
  %v3977 = vrcp.pop %v3759
  %v3978 = vrcp.pop %v3766
  %v3979 = vrcp.pop %v3773
  %v3980 = vrcp.pop %v3780
  %v3981 = vrcp.pop %v3787
  %v3982 = vrcp.pop %v3794
  %v3983 = vrcp.pop %v3801
  %v3984 = vrcp.pop %v3808
  %v3985 = vrcp.pop %v3815
  %v3986 = vrcp.pop %v3822
  %v3987 = vrcp.pop %v3829
  %v3988 = vrcp.pop %v3836
  %v3989 = vrcp.pop %v3843
  %v3990 = vrcp.pop %v3850
  %v3991 = vrcp.pop %v3857
  %v3992 = vrcp.pop %v3864
  %v3993 = vrcp.pop %v3871
  %v3994 = vrcp.pop %v3878
  %v3995 = vrcp.pop %v3885
  %v3996 = vrcp.pop %v3892
  %v3997 = vrcp.pop %v3899
  %v3998 = vrcp.pop %v3906
  %v3999 = vrcp.pop %v3913
  %v4000 = vrcp.pop %v3920
  %v4001 = vrcp.pop %v3927
  %v4002 = vrcp.pop %v3934
  %v4003 = vrcp.pop %v3941
  %v4004 = vrcp.pop %v3948
  %v4005 = vrcp.pop %v3955
  %v4006 = vrcp.pop %v3962
  %v4007 = vrcp.pop %v3969
  %v4008 = vrcp.pop %v3976
  %v4009 = vmul.f32 %v3690, %v3977
  %v4010 = vmul.f32 %v3692, %v3978
  %v4011 = vmul.f32 %v3694, %v3979
  %v4012 = vmul.f32 %v3696, %v3980
  %v4013 = vmul.f32 %v3698, %v3981
  %v4014 = vmul.f32 %v3700, %v3982
  %v4015 = vmul.f32 %v3702, %v3983
  %v4016 = vmul.f32 %v3704, %v3984
  %v4017 = vmul.f32 %v3706, %v3985
  %v4018 = vmul.f32 %v3708, %v3986
  %v4019 = vmul.f32 %v3710, %v3987
  %v4020 = vmul.f32 %v3712, %v3988
  %v4021 = vmul.f32 %v3714, %v3989
  %v4022 = vmul.f32 %v3716, %v3990
  %v4023 = vmul.f32 %v3718, %v3991
  %v4024 = vmul.f32 %v3720, %v3992
  %v4025 = vmul.f32 %v3722, %v3993
  %v4026 = vmul.f32 %v3724, %v3994
  %v4027 = vmul.f32 %v3726, %v3995
  %v4028 = vmul.f32 %v3728, %v3996
  %v4029 = vmul.f32 %v3730, %v3997
  %v4030 = vmul.f32 %v3732, %v3998
  %v4031 = vmul.f32 %v3734, %v3999
  %v4032 = vmul.f32 %v3736, %v4000
  %v4033 = vmul.f32 %v3738, %v4001
  %v4034 = vmul.f32 %v3740, %v4002
  %v4035 = vmul.f32 %v3742, %v4003
  %v4036 = vmul.f32 %v3744, %v4004
  %v4037 = vmul.f32 %v3746, %v4005
  %v4038 = vmul.f32 %v3748, %v4006
  %v4039 = vmul.f32 %v3750, %v4007
  %v4040 = vmul.f32 %v3752, %v4008
  %v4041 = vmul.f32 %v3401, %v1276
  %v4042 = vmul.f32 %v3402, %v1277
  %v4043 = vmul.f32 %v3403, %v1278
  %v4044 = vmul.f32 %v3404, %v1279
  %v4045 = vmul.f32 %v3405, %v1280
  %v4046 = vmul.f32 %v3406, %v1281
  %v4047 = vmul.f32 %v3407, %v1282
  %v4048 = vmul.f32 %v3408, %v1283
  %v4049 = vmul.f32 %v3409, %v1284
  %v4050 = vmul.f32 %v3410, %v1285
  %v4051 = vmul.f32 %v3411, %v1286
  %v4052 = vmul.f32 %v3412, %v1287
  %v4053 = vmul.f32 %v3413, %v1288
  %v4054 = vmul.f32 %v3414, %v1289
  %v4055 = vmul.f32 %v3415, %v1290
  %v4056 = vmul.f32 %v3416, %v1291
  %v4057 = vmul.f32 %v3417, %v1292
  %v4058 = vmul.f32 %v3418, %v1293
  %v4059 = vmul.f32 %v3419, %v1294
  %v4060 = vmul.f32 %v3420, %v1295
  %v4061 = vmul.f32 %v3421, %v1296
  %v4062 = vmul.f32 %v3422, %v1297
  %v4063 = vmul.f32 %v3423, %v1298
  %v4064 = vmul.f32 %v3424, %v1299
  %v4065 = vmul.f32 %v3425, %v1300
  %v4066 = vmul.f32 %v3426, %v1301
  %v4067 = vmul.f32 %v3427, %v1302
  %v4068 = vmul.f32 %v3428, %v1303
  %v4069 = vmul.f32 %v3429, %v1304
  %v4070 = vmul.f32 %v3430, %v1305
  %v4071 = vmul.f32 %v3431, %v1306
  %v4072 = vmul.f32 %v3432, %v1307
  %v4073 = vsel %vm1309, %v4041, 0.0
  %v4074 = vrot.slane %v4073, 4
  %v4075 = vadd.f32 %v4073, %v4074
  %v4076 = vrot.slane %v4075, 2
  %v4077 = vadd.f32 %v4075, %v4076
  %v4078 = vrot.slane %v4077, 1
  %v4079 = vadd.f32 %v4077, %v4078
  %v4080 = vsel %vm1309, %v4042, 0.0
  %v4081 = vrot.slane %v4080, 4
  %v4082 = vadd.f32 %v4080, %v4081
  %v4083 = vrot.slane %v4082, 2
  %v4084 = vadd.f32 %v4082, %v4083
  %v4085 = vrot.slane %v4084, 1
  %v4086 = vadd.f32 %v4084, %v4085
  %v4087 = vsel %vm1309, %v4043, 0.0
  %v4088 = vrot.slane %v4087, 4
  %v4089 = vadd.f32 %v4087, %v4088
  %v4090 = vrot.slane %v4089, 2
  %v4091 = vadd.f32 %v4089, %v4090
  %v4092 = vrot.slane %v4091, 1
  %v4093 = vadd.f32 %v4091, %v4092
  %v4094 = vsel %vm1309, %v4044, 0.0
  %v4095 = vrot.slane %v4094, 4
  %v4096 = vadd.f32 %v4094, %v4095
  %v4097 = vrot.slane %v4096, 2
  %v4098 = vadd.f32 %v4096, %v4097
  %v4099 = vrot.slane %v4098, 1
  %v4100 = vadd.f32 %v4098, %v4099
  %v4101 = vsel %vm1309, %v4045, 0.0
  %v4102 = vrot.slane %v4101, 4
  %v4103 = vadd.f32 %v4101, %v4102
  %v4104 = vrot.slane %v4103, 2
  %v4105 = vadd.f32 %v4103, %v4104
  %v4106 = vrot.slane %v4105, 1
  %v4107 = vadd.f32 %v4105, %v4106
  %v4108 = vsel %vm1309, %v4046, 0.0
  %v4109 = vrot.slane %v4108, 4
  %v4110 = vadd.f32 %v4108, %v4109
  %v4111 = vrot.slane %v4110, 2
  %v4112 = vadd.f32 %v4110, %v4111
  %v4113 = vrot.slane %v4112, 1
  %v4114 = vadd.f32 %v4112, %v4113
  %v4115 = vsel %vm1309, %v4047, 0.0
  %v4116 = vrot.slane %v4115, 4
  %v4117 = vadd.f32 %v4115, %v4116
  %v4118 = vrot.slane %v4117, 2
  %v4119 = vadd.f32 %v4117, %v4118
  %v4120 = vrot.slane %v4119, 1
  %v4121 = vadd.f32 %v4119, %v4120
  %v4122 = vsel %vm1309, %v4048, 0.0
  %v4123 = vrot.slane %v4122, 4
  %v4124 = vadd.f32 %v4122, %v4123
  %v4125 = vrot.slane %v4124, 2
  %v4126 = vadd.f32 %v4124, %v4125
  %v4127 = vrot.slane %v4126, 1
  %v4128 = vadd.f32 %v4126, %v4127
  %v4129 = vsel %vm1309, %v4049, 0.0
  %v4130 = vrot.slane %v4129, 4
  %v4131 = vadd.f32 %v4129, %v4130
  %v4132 = vrot.slane %v4131, 2
  %v4133 = vadd.f32 %v4131, %v4132
  %v4134 = vrot.slane %v4133, 1
  %v4135 = vadd.f32 %v4133, %v4134
  %v4136 = vsel %vm1309, %v4050, 0.0
  %v4137 = vrot.slane %v4136, 4
  %v4138 = vadd.f32 %v4136, %v4137
  %v4139 = vrot.slane %v4138, 2
  %v4140 = vadd.f32 %v4138, %v4139
  %v4141 = vrot.slane %v4140, 1
  %v4142 = vadd.f32 %v4140, %v4141
  %v4143 = vsel %vm1309, %v4051, 0.0
  %v4144 = vrot.slane %v4143, 4
  %v4145 = vadd.f32 %v4143, %v4144
  %v4146 = vrot.slane %v4145, 2
  %v4147 = vadd.f32 %v4145, %v4146
  %v4148 = vrot.slane %v4147, 1
  %v4149 = vadd.f32 %v4147, %v4148
  %v4150 = vsel %vm1309, %v4052, 0.0
  %v4151 = vrot.slane %v4150, 4
  %v4152 = vadd.f32 %v4150, %v4151
  %v4153 = vrot.slane %v4152, 2
  %v4154 = vadd.f32 %v4152, %v4153
  %v4155 = vrot.slane %v4154, 1
  %v4156 = vadd.f32 %v4154, %v4155
  %v4157 = vsel %vm1309, %v4053, 0.0
  %v4158 = vrot.slane %v4157, 4
  %v4159 = vadd.f32 %v4157, %v4158
  %v4160 = vrot.slane %v4159, 2
  %v4161 = vadd.f32 %v4159, %v4160
  %v4162 = vrot.slane %v4161, 1
  %v4163 = vadd.f32 %v4161, %v4162
  %v4164 = vsel %vm1309, %v4054, 0.0
  %v4165 = vrot.slane %v4164, 4
  %v4166 = vadd.f32 %v4164, %v4165
  %v4167 = vrot.slane %v4166, 2
  %v4168 = vadd.f32 %v4166, %v4167
  %v4169 = vrot.slane %v4168, 1
  %v4170 = vadd.f32 %v4168, %v4169
  %v4171 = vsel %vm1309, %v4055, 0.0
  %v4172 = vrot.slane %v4171, 4
  %v4173 = vadd.f32 %v4171, %v4172
  %v4174 = vrot.slane %v4173, 2
  %v4175 = vadd.f32 %v4173, %v4174
  %v4176 = vrot.slane %v4175, 1
  %v4177 = vadd.f32 %v4175, %v4176
  %v4178 = vsel %vm1309, %v4056, 0.0
  %v4179 = vrot.slane %v4178, 4
  %v4180 = vadd.f32 %v4178, %v4179
  %v4181 = vrot.slane %v4180, 2
  %v4182 = vadd.f32 %v4180, %v4181
  %v4183 = vrot.slane %v4182, 1
  %v4184 = vadd.f32 %v4182, %v4183
  %v4185 = vsel %vm1309, %v4057, 0.0
  %v4186 = vrot.slane %v4185, 4
  %v4187 = vadd.f32 %v4185, %v4186
  %v4188 = vrot.slane %v4187, 2
  %v4189 = vadd.f32 %v4187, %v4188
  %v4190 = vrot.slane %v4189, 1
  %v4191 = vadd.f32 %v4189, %v4190
  %v4192 = vsel %vm1309, %v4058, 0.0
  %v4193 = vrot.slane %v4192, 4
  %v4194 = vadd.f32 %v4192, %v4193
  %v4195 = vrot.slane %v4194, 2
  %v4196 = vadd.f32 %v4194, %v4195
  %v4197 = vrot.slane %v4196, 1
  %v4198 = vadd.f32 %v4196, %v4197
  %v4199 = vsel %vm1309, %v4059, 0.0
  %v4200 = vrot.slane %v4199, 4
  %v4201 = vadd.f32 %v4199, %v4200
  %v4202 = vrot.slane %v4201, 2
  %v4203 = vadd.f32 %v4201, %v4202
  %v4204 = vrot.slane %v4203, 1
  %v4205 = vadd.f32 %v4203, %v4204
  %v4206 = vsel %vm1309, %v4060, 0.0
  %v4207 = vrot.slane %v4206, 4
  %v4208 = vadd.f32 %v4206, %v4207
  %v4209 = vrot.slane %v4208, 2
  %v4210 = vadd.f32 %v4208, %v4209
  %v4211 = vrot.slane %v4210, 1
  %v4212 = vadd.f32 %v4210, %v4211
  %v4213 = vsel %vm1309, %v4061, 0.0
  %v4214 = vrot.slane %v4213, 4
  %v4215 = vadd.f32 %v4213, %v4214
  %v4216 = vrot.slane %v4215, 2
  %v4217 = vadd.f32 %v4215, %v4216
  %v4218 = vrot.slane %v4217, 1
  %v4219 = vadd.f32 %v4217, %v4218
  %v4220 = vsel %vm1309, %v4062, 0.0
  %v4221 = vrot.slane %v4220, 4
  %v4222 = vadd.f32 %v4220, %v4221
  %v4223 = vrot.slane %v4222, 2
  %v4224 = vadd.f32 %v4222, %v4223
  %v4225 = vrot.slane %v4224, 1
  %v4226 = vadd.f32 %v4224, %v4225
  %v4227 = vsel %vm1309, %v4063, 0.0
  %v4228 = vrot.slane %v4227, 4
  %v4229 = vadd.f32 %v4227, %v4228
  %v4230 = vrot.slane %v4229, 2
  %v4231 = vadd.f32 %v4229, %v4230
  %v4232 = vrot.slane %v4231, 1
  %v4233 = vadd.f32 %v4231, %v4232
  %v4234 = vsel %vm1309, %v4064, 0.0
  %v4235 = vrot.slane %v4234, 4
  %v4236 = vadd.f32 %v4234, %v4235
  %v4237 = vrot.slane %v4236, 2
  %v4238 = vadd.f32 %v4236, %v4237
  %v4239 = vrot.slane %v4238, 1
  %v4240 = vadd.f32 %v4238, %v4239
  %v4241 = vsel %vm1309, %v4065, 0.0
  %v4242 = vrot.slane %v4241, 4
  %v4243 = vadd.f32 %v4241, %v4242
  %v4244 = vrot.slane %v4243, 2
  %v4245 = vadd.f32 %v4243, %v4244
  %v4246 = vrot.slane %v4245, 1
  %v4247 = vadd.f32 %v4245, %v4246
  %v4248 = vsel %vm1309, %v4066, 0.0
  %v4249 = vrot.slane %v4248, 4
  %v4250 = vadd.f32 %v4248, %v4249
  %v4251 = vrot.slane %v4250, 2
  %v4252 = vadd.f32 %v4250, %v4251
  %v4253 = vrot.slane %v4252, 1
  %v4254 = vadd.f32 %v4252, %v4253
  %v4255 = vsel %vm1309, %v4067, 0.0
  %v4256 = vrot.slane %v4255, 4
  %v4257 = vadd.f32 %v4255, %v4256
  %v4258 = vrot.slane %v4257, 2
  %v4259 = vadd.f32 %v4257, %v4258
  %v4260 = vrot.slane %v4259, 1
  %v4261 = vadd.f32 %v4259, %v4260
  %v4262 = vsel %vm1309, %v4068, 0.0
  %v4263 = vrot.slane %v4262, 4
  %v4264 = vadd.f32 %v4262, %v4263
  %v4265 = vrot.slane %v4264, 2
  %v4266 = vadd.f32 %v4264, %v4265
  %v4267 = vrot.slane %v4266, 1
  %v4268 = vadd.f32 %v4266, %v4267
  %v4269 = vsel %vm1309, %v4069, 0.0
  %v4270 = vrot.slane %v4269, 4
  %v4271 = vadd.f32 %v4269, %v4270
  %v4272 = vrot.slane %v4271, 2
  %v4273 = vadd.f32 %v4271, %v4272
  %v4274 = vrot.slane %v4273, 1
  %v4275 = vadd.f32 %v4273, %v4274
  %v4276 = vsel %vm1309, %v4070, 0.0
  %v4277 = vrot.slane %v4276, 4
  %v4278 = vadd.f32 %v4276, %v4277
  %v4279 = vrot.slane %v4278, 2
  %v4280 = vadd.f32 %v4278, %v4279
  %v4281 = vrot.slane %v4280, 1
  %v4282 = vadd.f32 %v4280, %v4281
  %v4283 = vsel %vm1309, %v4071, 0.0
  %v4284 = vrot.slane %v4283, 4
  %v4285 = vadd.f32 %v4283, %v4284
  %v4286 = vrot.slane %v4285, 2
  %v4287 = vadd.f32 %v4285, %v4286
  %v4288 = vrot.slane %v4287, 1
  %v4289 = vadd.f32 %v4287, %v4288
  %v4290 = vsel %vm1309, %v4072, 0.0
  %v4291 = vrot.slane %v4290, 4
  %v4292 = vadd.f32 %v4290, %v4291
  %v4293 = vrot.slane %v4292, 2
  %v4294 = vadd.f32 %v4292, %v4293
  %v4295 = vrot.slane %v4294, 1
  %v4296 = vadd.f32 %v4294, %v4295
  %v4297 = vsel %vm1309, %v4009, 0.0
  %v4298 = vrot.slane %v4297, 4
  %v4299 = vadd.f32 %v4297, %v4298
  %v4300 = vrot.slane %v4299, 2
  %v4301 = vadd.f32 %v4299, %v4300
  %v4302 = vrot.slane %v4301, 1
  %v4303 = vadd.f32 %v4301, %v4302
  %v4304 = vsel %vm1309, %v4010, 0.0
  %v4305 = vrot.slane %v4304, 4
  %v4306 = vadd.f32 %v4304, %v4305
  %v4307 = vrot.slane %v4306, 2
  %v4308 = vadd.f32 %v4306, %v4307
  %v4309 = vrot.slane %v4308, 1
  %v4310 = vadd.f32 %v4308, %v4309
  %v4311 = vsel %vm1309, %v4011, 0.0
  %v4312 = vrot.slane %v4311, 4
  %v4313 = vadd.f32 %v4311, %v4312
  %v4314 = vrot.slane %v4313, 2
  %v4315 = vadd.f32 %v4313, %v4314
  %v4316 = vrot.slane %v4315, 1
  %v4317 = vadd.f32 %v4315, %v4316
  %v4318 = vsel %vm1309, %v4012, 0.0
  %v4319 = vrot.slane %v4318, 4
  %v4320 = vadd.f32 %v4318, %v4319
  %v4321 = vrot.slane %v4320, 2
  %v4322 = vadd.f32 %v4320, %v4321
  %v4323 = vrot.slane %v4322, 1
  %v4324 = vadd.f32 %v4322, %v4323
  %v4325 = vsel %vm1309, %v4013, 0.0
  %v4326 = vrot.slane %v4325, 4
  %v4327 = vadd.f32 %v4325, %v4326
  %v4328 = vrot.slane %v4327, 2
  %v4329 = vadd.f32 %v4327, %v4328
  %v4330 = vrot.slane %v4329, 1
  %v4331 = vadd.f32 %v4329, %v4330
  %v4332 = vsel %vm1309, %v4014, 0.0
  %v4333 = vrot.slane %v4332, 4
  %v4334 = vadd.f32 %v4332, %v4333
  %v4335 = vrot.slane %v4334, 2
  %v4336 = vadd.f32 %v4334, %v4335
  %v4337 = vrot.slane %v4336, 1
  %v4338 = vadd.f32 %v4336, %v4337
  %v4339 = vsel %vm1309, %v4015, 0.0
  %v4340 = vrot.slane %v4339, 4
  %v4341 = vadd.f32 %v4339, %v4340
  %v4342 = vrot.slane %v4341, 2
  %v4343 = vadd.f32 %v4341, %v4342
  %v4344 = vrot.slane %v4343, 1
  %v4345 = vadd.f32 %v4343, %v4344
  %v4346 = vsel %vm1309, %v4016, 0.0
  %v4347 = vrot.slane %v4346, 4
  %v4348 = vadd.f32 %v4346, %v4347
  %v4349 = vrot.slane %v4348, 2
  %v4350 = vadd.f32 %v4348, %v4349
  %v4351 = vrot.slane %v4350, 1
  %v4352 = vadd.f32 %v4350, %v4351
  %v4353 = vsel %vm1309, %v4017, 0.0
  %v4354 = vrot.slane %v4353, 4
  %v4355 = vadd.f32 %v4353, %v4354
  %v4356 = vrot.slane %v4355, 2
  %v4357 = vadd.f32 %v4355, %v4356
  %v4358 = vrot.slane %v4357, 1
  %v4359 = vadd.f32 %v4357, %v4358
  %v4360 = vsel %vm1309, %v4018, 0.0
  %v4361 = vrot.slane %v4360, 4
  %v4362 = vadd.f32 %v4360, %v4361
  %v4363 = vrot.slane %v4362, 2
  %v4364 = vadd.f32 %v4362, %v4363
  %v4365 = vrot.slane %v4364, 1
  %v4366 = vadd.f32 %v4364, %v4365
  %v4367 = vsel %vm1309, %v4019, 0.0
  %v4368 = vrot.slane %v4367, 4
  %v4369 = vadd.f32 %v4367, %v4368
  %v4370 = vrot.slane %v4369, 2
  %v4371 = vadd.f32 %v4369, %v4370
  %v4372 = vrot.slane %v4371, 1
  %v4373 = vadd.f32 %v4371, %v4372
  %v4374 = vsel %vm1309, %v4020, 0.0
  %v4375 = vrot.slane %v4374, 4
  %v4376 = vadd.f32 %v4374, %v4375
  %v4377 = vrot.slane %v4376, 2
  %v4378 = vadd.f32 %v4376, %v4377
  %v4379 = vrot.slane %v4378, 1
  %v4380 = vadd.f32 %v4378, %v4379
  %v4381 = vsel %vm1309, %v4021, 0.0
  %v4382 = vrot.slane %v4381, 4
  %v4383 = vadd.f32 %v4381, %v4382
  %v4384 = vrot.slane %v4383, 2
  %v4385 = vadd.f32 %v4383, %v4384
  %v4386 = vrot.slane %v4385, 1
  %v4387 = vadd.f32 %v4385, %v4386
  %v4388 = vsel %vm1309, %v4022, 0.0
  %v4389 = vrot.slane %v4388, 4
  %v4390 = vadd.f32 %v4388, %v4389
  %v4391 = vrot.slane %v4390, 2
  %v4392 = vadd.f32 %v4390, %v4391
  %v4393 = vrot.slane %v4392, 1
  %v4394 = vadd.f32 %v4392, %v4393
  %v4395 = vsel %vm1309, %v4023, 0.0
  %v4396 = vrot.slane %v4395, 4
  %v4397 = vadd.f32 %v4395, %v4396
  %v4398 = vrot.slane %v4397, 2
  %v4399 = vadd.f32 %v4397, %v4398
  %v4400 = vrot.slane %v4399, 1
  %v4401 = vadd.f32 %v4399, %v4400
  %v4402 = vsel %vm1309, %v4024, 0.0
  %v4403 = vrot.slane %v4402, 4
  %v4404 = vadd.f32 %v4402, %v4403
  %v4405 = vrot.slane %v4404, 2
  %v4406 = vadd.f32 %v4404, %v4405
  %v4407 = vrot.slane %v4406, 1
  %v4408 = vadd.f32 %v4406, %v4407
  %v4409 = vsel %vm1309, %v4025, 0.0
  %v4410 = vrot.slane %v4409, 4
  %v4411 = vadd.f32 %v4409, %v4410
  %v4412 = vrot.slane %v4411, 2
  %v4413 = vadd.f32 %v4411, %v4412
  %v4414 = vrot.slane %v4413, 1
  %v4415 = vadd.f32 %v4413, %v4414
  %v4416 = vsel %vm1309, %v4026, 0.0
  %v4417 = vrot.slane %v4416, 4
  %v4418 = vadd.f32 %v4416, %v4417
  %v4419 = vrot.slane %v4418, 2
  %v4420 = vadd.f32 %v4418, %v4419
  %v4421 = vrot.slane %v4420, 1
  %v4422 = vadd.f32 %v4420, %v4421
  %v4423 = vsel %vm1309, %v4027, 0.0
  %v4424 = vrot.slane %v4423, 4
  %v4425 = vadd.f32 %v4423, %v4424
  %v4426 = vrot.slane %v4425, 2
  %v4427 = vadd.f32 %v4425, %v4426
  %v4428 = vrot.slane %v4427, 1
  %v4429 = vadd.f32 %v4427, %v4428
  %v4430 = vsel %vm1309, %v4028, 0.0
  %v4431 = vrot.slane %v4430, 4
  %v4432 = vadd.f32 %v4430, %v4431
  %v4433 = vrot.slane %v4432, 2
  %v4434 = vadd.f32 %v4432, %v4433
  %v4435 = vrot.slane %v4434, 1
  %v4436 = vadd.f32 %v4434, %v4435
  %v4437 = vsel %vm1309, %v4029, 0.0
  %v4438 = vrot.slane %v4437, 4
  %v4439 = vadd.f32 %v4437, %v4438
  %v4440 = vrot.slane %v4439, 2
  %v4441 = vadd.f32 %v4439, %v4440
  %v4442 = vrot.slane %v4441, 1
  %v4443 = vadd.f32 %v4441, %v4442
  %v4444 = vsel %vm1309, %v4030, 0.0
  %v4445 = vrot.slane %v4444, 4
  %v4446 = vadd.f32 %v4444, %v4445
  %v4447 = vrot.slane %v4446, 2
  %v4448 = vadd.f32 %v4446, %v4447
  %v4449 = vrot.slane %v4448, 1
  %v4450 = vadd.f32 %v4448, %v4449
  %v4451 = vsel %vm1309, %v4031, 0.0
  %v4452 = vrot.slane %v4451, 4
  %v4453 = vadd.f32 %v4451, %v4452
  %v4454 = vrot.slane %v4453, 2
  %v4455 = vadd.f32 %v4453, %v4454
  %v4456 = vrot.slane %v4455, 1
  %v4457 = vadd.f32 %v4455, %v4456
  %v4458 = vsel %vm1309, %v4032, 0.0
  %v4459 = vrot.slane %v4458, 4
  %v4460 = vadd.f32 %v4458, %v4459
  %v4461 = vrot.slane %v4460, 2
  %v4462 = vadd.f32 %v4460, %v4461
  %v4463 = vrot.slane %v4462, 1
  %v4464 = vadd.f32 %v4462, %v4463
  %v4465 = vsel %vm1309, %v4033, 0.0
  %v4466 = vrot.slane %v4465, 4
  %v4467 = vadd.f32 %v4465, %v4466
  %v4468 = vrot.slane %v4467, 2
  %v4469 = vadd.f32 %v4467, %v4468
  %v4470 = vrot.slane %v4469, 1
  %v4471 = vadd.f32 %v4469, %v4470
  %v4472 = vsel %vm1309, %v4034, 0.0
  %v4473 = vrot.slane %v4472, 4
  %v4474 = vadd.f32 %v4472, %v4473
  %v4475 = vrot.slane %v4474, 2
  %v4476 = vadd.f32 %v4474, %v4475
  %v4477 = vrot.slane %v4476, 1
  %v4478 = vadd.f32 %v4476, %v4477
  %v4479 = vsel %vm1309, %v4035, 0.0
  %v4480 = vrot.slane %v4479, 4
  %v4481 = vadd.f32 %v4479, %v4480
  %v4482 = vrot.slane %v4481, 2
  %v4483 = vadd.f32 %v4481, %v4482
  %v4484 = vrot.slane %v4483, 1
  %v4485 = vadd.f32 %v4483, %v4484
  %v4486 = vsel %vm1309, %v4036, 0.0
  %v4487 = vrot.slane %v4486, 4
  %v4488 = vadd.f32 %v4486, %v4487
  %v4489 = vrot.slane %v4488, 2
  %v4490 = vadd.f32 %v4488, %v4489
  %v4491 = vrot.slane %v4490, 1
  %v4492 = vadd.f32 %v4490, %v4491
  %v4493 = vsel %vm1309, %v4037, 0.0
  %v4494 = vrot.slane %v4493, 4
  %v4495 = vadd.f32 %v4493, %v4494
  %v4496 = vrot.slane %v4495, 2
  %v4497 = vadd.f32 %v4495, %v4496
  %v4498 = vrot.slane %v4497, 1
  %v4499 = vadd.f32 %v4497, %v4498
  %v4500 = vsel %vm1309, %v4038, 0.0
  %v4501 = vrot.slane %v4500, 4
  %v4502 = vadd.f32 %v4500, %v4501
  %v4503 = vrot.slane %v4502, 2
  %v4504 = vadd.f32 %v4502, %v4503
  %v4505 = vrot.slane %v4504, 1
  %v4506 = vadd.f32 %v4504, %v4505
  %v4507 = vsel %vm1309, %v4039, 0.0
  %v4508 = vrot.slane %v4507, 4
  %v4509 = vadd.f32 %v4507, %v4508
  %v4510 = vrot.slane %v4509, 2
  %v4511 = vadd.f32 %v4509, %v4510
  %v4512 = vrot.slane %v4511, 1
  %v4513 = vadd.f32 %v4511, %v4512
  %v4514 = vsel %vm1309, %v4040, 0.0
  %v4515 = vrot.slane %v4514, 4
  %v4516 = vadd.f32 %v4514, %v4515
  %v4517 = vrot.slane %v4516, 2
  %v4518 = vadd.f32 %v4516, %v4517
  %v4519 = vrot.slane %v4518, 1
  %v4520 = vadd.f32 %v4518, %v4519
  %vm4553 = vcmask 1041409
  %v4554 = vsel %vm4553, %v4310, %v4303
  %vm4555 = vcmask 1042434
  %v4556 = vsel %vm4555, %v4317, %v4554
  %vm4557 = vcmask 1043459
  %v4558 = vsel %vm4557, %v4324, %v4556
  %vm4559 = vcmask 1044484
  %v4560 = vsel %vm4559, %v4331, %v4558
  %vm4561 = vcmask 1045509
  %v4562 = vsel %vm4561, %v4338, %v4560
  %vm4563 = vcmask 1046534
  %v4564 = vsel %vm4563, %v4345, %v4562
  %vm4565 = vcmask 1047559
  %v4566 = vsel %vm4565, %v4352, %v4564
  %v4567 = vsel %vm4553, %v4366, %v4359
  %v4568 = vsel %vm4555, %v4373, %v4567
  %v4569 = vsel %vm4557, %v4380, %v4568
  %v4570 = vsel %vm4559, %v4387, %v4569
  %v4571 = vsel %vm4561, %v4394, %v4570
  %v4572 = vsel %vm4563, %v4401, %v4571
  %v4573 = vsel %vm4565, %v4408, %v4572
  %v4574 = vsel %vm4553, %v4422, %v4415
  %v4575 = vsel %vm4555, %v4429, %v4574
  %v4576 = vsel %vm4557, %v4436, %v4575
  %v4577 = vsel %vm4559, %v4443, %v4576
  %v4578 = vsel %vm4561, %v4450, %v4577
  %v4579 = vsel %vm4563, %v4457, %v4578
  %v4580 = vsel %vm4565, %v4464, %v4579
  %v4581 = vsel %vm4553, %v4478, %v4471
  %v4582 = vsel %vm4555, %v4485, %v4581
  %v4583 = vsel %vm4557, %v4492, %v4582
  %v4584 = vsel %vm4559, %v4499, %v4583
  %v4585 = vsel %vm4561, %v4506, %v4584
  %v4586 = vsel %vm4563, %v4513, %v4585
  %v4587 = vsel %vm4565, %v4520, %v4586
  %v4592 = vmul.f32 %v182, %v4566
  %v4593 = vmul.f32 %v183, %v4573
  %v4594 = vmul.f32 %v184, %v4580
  %v4595 = vmul.f32 %v185, %v4587
  %v4596 = vld [vmem:[%s12] sm:$0xff]
  %v4597 = vld [vmem:[%s13] sm:$0xff]
  %v4599 = vsel %vm1309, %v4592, 0
  %v4602 = vsel %vm1309, %v4593, 0
  %v4605 = vsel %vm1309, %v4594, 0
  %v4608 = vsel %vm1309, %v4595, 0
  %4610 = vmatprep.subr.mxu0 0.0
  %4611 = vmatpush1.msra.mxu0 %v4597
  %4612 = vmatprep.subr.mxu0 0.0
  %4613 = vmatpush1.msra.mxu0 0.0
  %4614 = vmatprep.subr.mxu0 0.0
  %4615 = vmatpush1.msra.mxu0 0.0
  %4616 = vmatprep.subr.mxu0 0.0
  %4617 = vmatpush1.msra.mxu0 0.0
  %4618 = vmatprep.subr.mxu0 0.0
  %4619 = vmatpush1.msra.mxu0 0.0
  %4620 = vmatprep.subr.mxu0 0.0
  %4621 = vmatpush1.msra.mxu0 0.0
  %4622 = vmatprep.subr.mxu0 0.0
  %4623 = vmatpush1.msra.mxu0 0.0
  %4624 = vmatprep.subr.mxu0 0.0
  %4625 = vmatpush1.msra.mxu0 0.0
  %4626 = vmatprep.subr.mxu0 0.0
  %4627 = vmatpush1.msra.mxu0 0.0
  %4628 = vmatprep.subr.mxu0 0.0
  %4629 = vmatpush1.msra.mxu0 0.0
  %4630 = vmatprep.subr.mxu0 0.0
  %4631 = vmatpush1.msra.mxu0 0.0
  %4632 = vmatprep.subr.mxu0 0.0
  %4633 = vmatpush1.msra.mxu0 0.0
  %4634 = vmatprep.subr.mxu0 0.0
  %4635 = vmatpush1.msra.mxu0 0.0
  %4636 = vmatprep.subr.mxu0 0.0
  %4637 = vmatpush1.msra.mxu0 0.0
  %4638 = vmatprep.subr.mxu0 0.0
  %4639 = vmatpush1.msra.mxu0 0.0
  %4640 = vmatprep.subr.mxu0 0.0
  %4641 = vmatpush1.msra.mxu0 0.0
  %4642 = vmatprep.subr.mxu0 0.0
  %4643 = vmatpush1.msra.mxu0 0.0
  %4644 = vmatprep.subr.mxu0 0.0
  %4645 = vmatpush1.msra.mxu0 0.0
  %4646 = vmatprep.subr.mxu0 0.0
  %4647 = vmatpush1.msra.mxu0 0.0
  %4648 = vmatprep.subr.mxu0 0.0
  %4649 = vmatpush1.msra.mxu0 0.0
  %4650 = vmatprep.subr.mxu0 0.0
  %4651 = vmatpush1.msra.mxu0 0.0
  %4652 = vmatprep.subr.mxu0 0.0
  %4653 = vmatpush1.msra.mxu0 0.0
  %4654 = vmatprep.subr.mxu0 0.0
  %4655 = vmatpush1.msra.mxu0 0.0
  %4656 = vmatprep.subr.mxu0 0.0
  %4657 = vmatpush1.msra.mxu0 0.0
  %4658 = vmatprep.subr.mxu0 0.0
  %4659 = vmatpush1.msra.mxu0 0.0
  %4660 = vmatprep.subr.mxu0 0.0
  %4661 = vmatpush1.msra.mxu0 0.0
  %4662 = vmatprep.subr.mxu0 0.0
  %4663 = vmatpush1.msra.mxu0 0.0
  %4664 = vmatprep.subr.mxu0 0.0
  %4665 = vmatpush1.msra.mxu0 0.0
  %4666 = vmatprep.subr.mxu0 0.0
  %4667 = vmatpush1.msra.mxu0 0.0
  %4668 = vmatprep.subr.mxu0 0.0
  %4669 = vmatpush1.msra.mxu0 0.0
  %4670 = vmatprep.subr.mxu0 0.0
  %4671 = vmatpush1.msra.mxu0 0.0
  %4672 = vmatprep.subr.mxu0 0.0
  %4673 = vmatpush1.msra.mxu0 0.0
  %4674 = vmatprep.mubr.f32.mxu0 0.0
  %4675 = vmatmul.mubr.f32.gmra.mrb[0].mxu0 %v4599
  %v4676 = vpop.f32.mrb[0].mxu0
  %v4677 = vadd.f32 0.0, %v4676
  %v4678 = vpop.f32.mrb[0].mxu0
  %4679 = vmatprep.mubr.f32.mxu0 0.0
  %4680 = vmatmul.mubr.f32.gmra.mrb[0].mxu0 %v4602
  %v4681 = vpop.f32.mrb[0].mxu0
  %v4682 = vadd.f32 0.0, %v4681
  %v4683 = vpop.f32.mrb[0].mxu0
  %4684 = vmatprep.mubr.f32.mxu0 0.0
  %4685 = vmatmul.mubr.f32.gmra.mrb[0].mxu0 %v4605
  %v4686 = vpop.f32.mrb[0].mxu0
  %v4687 = vadd.f32 0.0, %v4686
  %v4688 = vpop.f32.mrb[0].mxu0
  %4689 = vmatprep.mubr.f32.mxu0 0.0
  %4690 = vmatmul.mubr.f32.gmra.mrb[0].mxu0 %v4608
  %v4691 = vpop.f32.mrb[0].mxu0
  %v4692 = vadd.f32 0.0, %v4691
  %v4693 = vpop.f32.mrb[0].mxu0
  %4694 = vdwg.mxu0
  %v4727 = vsel %vm4553, %v4086, %v4079
  %v4728 = vsel %vm4555, %v4093, %v4727
  %v4729 = vsel %vm4557, %v4100, %v4728
  %v4730 = vsel %vm4559, %v4107, %v4729
  %v4731 = vsel %vm4561, %v4114, %v4730
  %v4732 = vsel %vm4563, %v4121, %v4731
  %v4733 = vsel %vm4565, %v4128, %v4732
  %v4734 = vsel %vm4553, %v4142, %v4135
  %v4735 = vsel %vm4555, %v4149, %v4734
  %v4736 = vsel %vm4557, %v4156, %v4735
  %v4737 = vsel %vm4559, %v4163, %v4736
  %v4738 = vsel %vm4561, %v4170, %v4737
  %v4739 = vsel %vm4563, %v4177, %v4738
  %v4740 = vsel %vm4565, %v4184, %v4739
  %v4741 = vsel %vm4553, %v4198, %v4191
  %v4742 = vsel %vm4555, %v4205, %v4741
  %v4743 = vsel %vm4557, %v4212, %v4742
  %v4744 = vsel %vm4559, %v4219, %v4743
  %v4745 = vsel %vm4561, %v4226, %v4744
  %v4746 = vsel %vm4563, %v4233, %v4745
  %v4747 = vsel %vm4565, %v4240, %v4746
  %v4748 = vsel %vm4553, %v4254, %v4247
  %v4749 = vsel %vm4555, %v4261, %v4748
  %v4750 = vsel %vm4557, %v4268, %v4749
  %v4751 = vsel %vm4559, %v4275, %v4750
  %v4752 = vsel %vm4561, %v4282, %v4751
  %v4753 = vsel %vm4563, %v4289, %v4752
  %v4754 = vsel %vm4565, %v4296, %v4753
  %v4755 = vsel %vm1309, %v4733, 0
  %v4757 = vsel %vm1309, %v4740, 0
  %v4759 = vsel %vm1309, %v4747, 0
  %v4761 = vsel %vm1309, %v4754, 0
  %4763 = vmatprep.subr.mxu0 0.0
  %4764 = vmatpush1.msra.mxu0 %v4596
  %4765 = vmatprep.subr.mxu0 0.0
  %4766 = vmatpush1.msra.mxu0 0.0
  %4767 = vmatprep.subr.mxu0 0.0
  %4768 = vmatpush1.msra.mxu0 0.0
  %4769 = vmatprep.subr.mxu0 0.0
  %4770 = vmatpush1.msra.mxu0 0.0
  %4771 = vmatprep.subr.mxu0 0.0
  %4772 = vmatpush1.msra.mxu0 0.0
  %4773 = vmatprep.subr.mxu0 0.0
  %4774 = vmatpush1.msra.mxu0 0.0
  %4775 = vmatprep.subr.mxu0 0.0
  %4776 = vmatpush1.msra.mxu0 0.0
  %4777 = vmatprep.subr.mxu0 0.0
  %4778 = vmatpush1.msra.mxu0 0.0
  %4779 = vmatprep.subr.mxu0 0.0
  %4780 = vmatpush1.msra.mxu0 0.0
  %4781 = vmatprep.subr.mxu0 0.0
  %4782 = vmatpush1.msra.mxu0 0.0
  %4783 = vmatprep.subr.mxu0 0.0
  %4784 = vmatpush1.msra.mxu0 0.0
  %4785 = vmatprep.subr.mxu0 0.0
  %4786 = vmatpush1.msra.mxu0 0.0
  %4787 = vmatprep.subr.mxu0 0.0
  %4788 = vmatpush1.msra.mxu0 0.0
  %4789 = vmatprep.subr.mxu0 0.0
  %4790 = vmatpush1.msra.mxu0 0.0
  %4791 = vmatprep.subr.mxu0 0.0
  %4792 = vmatpush1.msra.mxu0 0.0
  %4793 = vmatprep.subr.mxu0 0.0
  %4794 = vmatpush1.msra.mxu0 0.0
  %4795 = vmatprep.subr.mxu0 0.0
  %4796 = vmatpush1.msra.mxu0 0.0
  %4797 = vmatprep.subr.mxu0 0.0
  %4798 = vmatpush1.msra.mxu0 0.0
  %4799 = vmatprep.subr.mxu0 0.0
  %4800 = vmatpush1.msra.mxu0 0.0
  %4801 = vmatprep.subr.mxu0 0.0
  %4802 = vmatpush1.msra.mxu0 0.0
  %4803 = vmatprep.subr.mxu0 0.0
  %4804 = vmatpush1.msra.mxu0 0.0
  %4805 = vmatprep.subr.mxu0 0.0
  %4806 = vmatpush1.msra.mxu0 0.0
  %4807 = vmatprep.subr.mxu0 0.0
  %4808 = vmatpush1.msra.mxu0 0.0
  %4809 = vmatprep.subr.mxu0 0.0
  %4810 = vmatpush1.msra.mxu0 0.0
  %4811 = vmatprep.subr.mxu0 0.0
  %4812 = vmatpush1.msra.mxu0 0.0
  %4813 = vmatprep.subr.mxu0 0.0
  %4814 = vmatpush1.msra.mxu0 0.0
  %4815 = vmatprep.subr.mxu0 0.0
  %4816 = vmatpush1.msra.mxu0 0.0
  %4817 = vmatprep.subr.mxu0 0.0
  %4818 = vmatpush1.msra.mxu0 0.0
  %4819 = vmatprep.subr.mxu0 0.0
  %4820 = vmatpush1.msra.mxu0 0.0
  %4821 = vmatprep.subr.mxu0 0.0
  %4822 = vmatpush1.msra.mxu0 0.0
  %4823 = vmatprep.subr.mxu0 0.0
  %4824 = vmatpush1.msra.mxu0 0.0
  %4825 = vmatprep.subr.mxu0 0.0
  %4826 = vmatpush1.msra.mxu0 0.0
  %4827 = vmatprep.mubr.f32.mxu0 0.0
  %4828 = vmatmul.mubr.f32.gmra.mrb[0].mxu0 %v4755
  %v4829 = vpop.f32.mrb[0].mxu0
  %v4830 = vadd.f32 %v4677, %v4829
  %v4831 = vpop.f32.mrb[0].mxu0
  %4832 = vmatprep.mubr.f32.mxu0 0.0
  %4833 = vmatmul.mubr.f32.gmra.mrb[0].mxu0 %v4757
  %v4834 = vpop.f32.mrb[0].mxu0
  %v4835 = vadd.f32 %v4682, %v4834
  %v4836 = vpop.f32.mrb[0].mxu0
  %4837 = vmatprep.mubr.f32.mxu0 0.0
  %4838 = vmatmul.mubr.f32.gmra.mrb[0].mxu0 %v4759
  %v4839 = vpop.f32.mrb[0].mxu0
  %v4840 = vadd.f32 %v4687, %v4839
  %v4841 = vpop.f32.mrb[0].mxu0
  %4842 = vmatprep.mubr.f32.mxu0 0.0
  %4843 = vmatmul.mubr.f32.gmra.mrb[0].mxu0 %v4761
  %v4844 = vpop.f32.mrb[0].mxu0
  %v4845 = vadd.f32 %v4692, %v4844
  %v4846 = vpop.f32.mrb[0].mxu0
  %4847 = vdwg.mxu0
  %v4848 = vld [vmem:[%s14] sm:$0x1]
  %v4850 = vlaneseq
  %v4851 = vshrl.u32 %v4850, 7
  %v4852 = vsub.s32 0, %v4851
  %v4853 = vrot.slane %v4848, %v4852
  %v4855 = vadd.f32 %v4830, %v4853
  %v4856 = vadd.f32 %v4835, %v4853
  %v4857 = vadd.f32 %v4840, %v4853
  %v4858 = vadd.f32 %v4845, %v4853
  %v4859 = vmax.f32 %v4855, 0.0
  %v4860 = vmax.f32 %v4856, 0.0
  %v4861 = vmax.f32 %v4857, 0.0
  %v4862 = vmax.f32 %v4858, 0.0
  %vm4863 = vcmask 130048
  %4864 = vst.msk [vmem:[%s15] sm:$0xff] %vm4863, %v4859
  %4865 = vst.msk [vmem:[%s15 + $0x8] sm:$0xff] %vm4863, %v4860
  %4866 = vst.msk [vmem:[%s15 + $0x10] sm:$0xff] %vm4863, %v4861
  %4867 = vst.msk [vmem:[%s15 + $0x18] sm:$0xff] %vm4863, %v4862
  // Predicated region
  $region62: #{local_feature_aggregation.6} parent=0 // pred_check
    _
  $region63: #{local_feature_aggregation.6} parent=0 // pred_check_branch
    %4869 = sbr.rel (0) target = $region65
  $region64: #{local_feature_aggregation.6} parent=0 // pred_region
    _
  $region65: #{local_feature_aggregation.6} parent=0 // pred_fallthru
    _
  // Predicated region
  $region66: #{local_feature_aggregation.6} parent=0 // pred_check
    _
  $region67: #{local_feature_aggregation.6} parent=0 // pred_check_branch
    %4871 = sbr.rel (0) target = $region69
  $region68: #{local_feature_aggregation.6} parent=0 // pred_region
    _
  $region69: #{local_feature_aggregation.6} parent=0 // pred_fallthru
    _

// kernel: local_feature_aggregation.5
$region0: #{local_feature_aggregation.5}
  #allocation0 [shape = 'u32[]', space=smem, size = 0x4, offset = 0x4, fixed_abs, tag = 'smem constant byte address 0x4 - core index']
  #allocation1 [shape = 'u32[144,128]{1,0:T(1,128)}', space=vmem, size = 0x12000, scoped, tag = 'internal scratch']
  %s0 = inlined_call_operand.vmem [shape: f32[32,3], index: 0, kind: input, shape index: {}]
  %s1 = inlined_call_operand.vmem [shape: bf16[32,8,3], index: 1, kind: input, shape index: {}]
  %s2 = inlined_call_operand.vmem [shape: bf16[32,8,1], index: 2, kind: input, shape index: {}]
  %s3 = inlined_call_operand.vmem [shape: f32[32,8], index: 3, kind: input, shape index: {}]
  %s4 = inlined_call_operand.vmem [shape: f32[3,8], index: 4, kind: input, shape index: {}]
  %s5 = inlined_call_operand.vmem [shape: f32[3,8], index: 5, kind: input, shape index: {}]
  %s6 = inlined_call_operand.vmem [shape: f32[1,8], index: 6, kind: input, shape index: {}]
  %s7 = inlined_call_operand.vmem [shape: f32[1,8], index: 7, kind: input, shape index: {}]
  %s8 = inlined_call_operand.vmem [shape: f32[8,8], index: 8, kind: input, shape index: {}]
  %s9 = inlined_call_operand.vmem [shape: f32[8,8], index: 9, kind: input, shape index: {}]
  %s10 = inlined_call_operand.vmem [shape: f32[8,8], index: 10, kind: input, shape index: {}]
  %s11 = inlined_call_operand.vmem [shape: f32[8,8], index: 11, kind: input, shape index: {}]
  %s12 = inlined_call_operand.vmem [shape: f32[8,8], index: 12, kind: input, shape index: {}]
  %s13 = inlined_call_operand.vmem [shape: f32[8,8], index: 13, kind: input, shape index: {}]
  %s14 = inlined_call_operand.vmem [shape: f32[1,8], index: 14, kind: input, shape index: {}]
  %s15 = inlined_call_operand.vmem [shape: f32[32,8], index: 15, kind: output, shape index: {}]
  %s16 = sld [smem:[#allocation0]]
  $region70: #{local_feature_aggregation.5} parent=0
    _
  %s18 = ssub.s32 1, %s16
  %s19 = scalar_select 0, %s18, %s16
  // Predicated region
  $region2: #{local_feature_aggregation.5} parent=0 // pred_check
    _
  $region3: #{local_feature_aggregation.5} parent=0 // pred_check_branch
    %21 = sbr.rel (0) target = $region5
  $region4: #{local_feature_aggregation.5} parent=0 // pred_region
    _
  $region5: #{local_feature_aggregation.5} parent=0 // pred_fallthru
    _
  // Predicated region
  $region6: #{local_feature_aggregation.5} parent=0 // pred_check
    _
  $region7: #{local_feature_aggregation.5} parent=0 // pred_check_branch
    %23 = sbr.rel (0) target = $region9
  $region8: #{local_feature_aggregation.5} parent=0 // pred_region
    _
  $region9: #{local_feature_aggregation.5} parent=0 // pred_fallthru
    _
  // Predicated region
  $region10: #{local_feature_aggregation.5} parent=0 // pred_check
    _
  $region11: #{local_feature_aggregation.5} parent=0 // pred_check_branch
    %25 = sbr.rel (0) target = $region13
  $region12: #{local_feature_aggregation.5} parent=0 // pred_region
    _
  $region13: #{local_feature_aggregation.5} parent=0 // pred_fallthru
    _
  // Predicated region
  $region14: #{local_feature_aggregation.5} parent=0 // pred_check
    _
  $region15: #{local_feature_aggregation.5} parent=0 // pred_check_branch
    %27 = sbr.rel (0) target = $region17
  $region16: #{local_feature_aggregation.5} parent=0 // pred_region
    _
  $region17: #{local_feature_aggregation.5} parent=0 // pred_fallthru
    _
  // Predicated region
  $region18: #{local_feature_aggregation.5} parent=0 // pred_check
    _
  $region19: #{local_feature_aggregation.5} parent=0 // pred_check_branch
    %29 = sbr.rel (0) target = $region21
  $region20: #{local_feature_aggregation.5} parent=0 // pred_region
    _
  $region21: #{local_feature_aggregation.5} parent=0 // pred_fallthru
    _
  // Predicated region
  $region22: #{local_feature_aggregation.5} parent=0 // pred_check
    _
  $region23: #{local_feature_aggregation.5} parent=0 // pred_check_branch
    %31 = sbr.rel (0) target = $region25
  $region24: #{local_feature_aggregation.5} parent=0 // pred_region
    _
  $region25: #{local_feature_aggregation.5} parent=0 // pred_fallthru
    _
  // Predicated region
  $region26: #{local_feature_aggregation.5} parent=0 // pred_check
    _
  $region27: #{local_feature_aggregation.5} parent=0 // pred_check_branch
    %33 = sbr.rel (0) target = $region29
  $region28: #{local_feature_aggregation.5} parent=0 // pred_region
    _
  $region29: #{local_feature_aggregation.5} parent=0 // pred_fallthru
    _
  // Predicated region
  $region30: #{local_feature_aggregation.5} parent=0 // pred_check
    _
  $region31: #{local_feature_aggregation.5} parent=0 // pred_check_branch
    %35 = sbr.rel (0) target = $region33
  $region32: #{local_feature_aggregation.5} parent=0 // pred_region
    _
  $region33: #{local_feature_aggregation.5} parent=0 // pred_fallthru
    _
  // Predicated region
  $region34: #{local_feature_aggregation.5} parent=0 // pred_check
    _
  $region35: #{local_feature_aggregation.5} parent=0 // pred_check_branch
    %37 = sbr.rel (0) target = $region37
  $region36: #{local_feature_aggregation.5} parent=0 // pred_region
    _
  $region37: #{local_feature_aggregation.5} parent=0 // pred_fallthru
    _
  // Predicated region
  $region38: #{local_feature_aggregation.5} parent=0 // pred_check
    _
  $region39: #{local_feature_aggregation.5} parent=0 // pred_check_branch
    %39 = sbr.rel (0) target = $region41
  $region40: #{local_feature_aggregation.5} parent=0 // pred_region
    _
  $region41: #{local_feature_aggregation.5} parent=0 // pred_fallthru
    _
  // Predicated region
  $region42: #{local_feature_aggregation.5} parent=0 // pred_check
    _
  $region43: #{local_feature_aggregation.5} parent=0 // pred_check_branch
    %41 = sbr.rel (0) target = $region45
  $region44: #{local_feature_aggregation.5} parent=0 // pred_region
    _
  $region45: #{local_feature_aggregation.5} parent=0 // pred_fallthru
    _
  // Predicated region
  $region46: #{local_feature_aggregation.5} parent=0 // pred_check
    _
  $region47: #{local_feature_aggregation.5} parent=0 // pred_check_branch
    %43 = sbr.rel (0) target = $region49
  $region48: #{local_feature_aggregation.5} parent=0 // pred_region
    _
  $region49: #{local_feature_aggregation.5} parent=0 // pred_fallthru
    _
  // Predicated region
  $region50: #{local_feature_aggregation.5} parent=0 // pred_check
    _
  $region51: #{local_feature_aggregation.5} parent=0 // pred_check_branch
    %45 = sbr.rel (0) target = $region53
  $region52: #{local_feature_aggregation.5} parent=0 // pred_region
    _
  $region53: #{local_feature_aggregation.5} parent=0 // pred_fallthru
    _
  // Predicated region
  $region54: #{local_feature_aggregation.5} parent=0 // pred_check
    _
  $region55: #{local_feature_aggregation.5} parent=0 // pred_check_branch
    %47 = sbr.rel (0) target = $region57
  $region56: #{local_feature_aggregation.5} parent=0 // pred_region
    _
  $region57: #{local_feature_aggregation.5} parent=0 // pred_fallthru
    _
  // Predicated region
  $region58: #{local_feature_aggregation.5} parent=0 // pred_check
    _
  $region59: #{local_feature_aggregation.5} parent=0 // pred_check_branch
    %49 = sbr.rel (0) target = $region61
  $region60: #{local_feature_aggregation.5} parent=0 // pred_region
    _
  $region61: #{local_feature_aggregation.5} parent=0 // pred_fallthru
    _
  %v50 = vld [vmem:[%s0] sm:$0xff]
  %v51 = vld [vmem:[%s0 + $0x8] sm:$0xff]
  %v52 = vld [vmem:[%s0 + $0x10] sm:$0xff]
  %v53 = vld [vmem:[%s0 + $0x18] sm:$0xff]
  %v54 = vld [vmem:[%s1] sm:$0xf]
  %v55 = vld [vmem:[%s1 + $0x4] sm:$0xf]
  %v56 = vld [vmem:[%s1 + $0x8] sm:$0xf]
  %v57 = vld [vmem:[%s1 + $0xc] sm:$0xf]
  %v58 = vld [vmem:[%s1 + $0x10] sm:$0xf]
  %v59 = vld [vmem:[%s1 + $0x14] sm:$0xf]
  %v60 = vld [vmem:[%s1 + $0x18] sm:$0xf]
  %v61 = vld [vmem:[%s1 + $0x1c] sm:$0xf]
  %v62 = vld [vmem:[%s1 + $0x20] sm:$0xf]
  %v63 = vld [vmem:[%s1 + $0x24] sm:$0xf]
  %v64 = vld [vmem:[%s1 + $0x28] sm:$0xf]
  %v65 = vld [vmem:[%s1 + $0x2c] sm:$0xf]
  %v66 = vld [vmem:[%s1 + $0x30] sm:$0xf]
  %v67 = vld [vmem:[%s1 + $0x34] sm:$0xf]
  %v68 = vld [vmem:[%s1 + $0x38] sm:$0xf]
  %v69 = vld [vmem:[%s1 + $0x3c] sm:$0xf]
  %v70 = vld [vmem:[%s1 + $0x40] sm:$0xf]
  %v71 = vld [vmem:[%s1 + $0x44] sm:$0xf]
  %v72 = vld [vmem:[%s1 + $0x48] sm:$0xf]
  %v73 = vld [vmem:[%s1 + $0x4c] sm:$0xf]
  %v74 = vld [vmem:[%s1 + $0x50] sm:$0xf]
  %v75 = vld [vmem:[%s1 + $0x54] sm:$0xf]
  %v76 = vld [vmem:[%s1 + $0x58] sm:$0xf]
  %v77 = vld [vmem:[%s1 + $0x5c] sm:$0xf]
  %v78 = vld [vmem:[%s1 + $0x60] sm:$0xf]
  %v79 = vld [vmem:[%s1 + $0x64] sm:$0xf]
  %v80 = vld [vmem:[%s1 + $0x68] sm:$0xf]
  %v81 = vld [vmem:[%s1 + $0x6c] sm:$0xf]
  %v82 = vld [vmem:[%s1 + $0x70] sm:$0xf]
  %v83 = vld [vmem:[%s1 + $0x74] sm:$0xf]
  %v84 = vld [vmem:[%s1 + $0x78] sm:$0xf]
  %v85 = vld [vmem:[%s1 + $0x7c] sm:$0xf]
  %v86 = vunpack.c.l.bf16 %v54
  %v87 = vunpack.c.l.bf16 %v55
  %v88 = vunpack.c.l.bf16 %v56
  %v89 = vunpack.c.l.bf16 %v57
  %v90 = vunpack.c.l.bf16 %v58
  %v91 = vunpack.c.l.bf16 %v59
  %v92 = vunpack.c.l.bf16 %v60
  %v93 = vunpack.c.l.bf16 %v61
  %v94 = vunpack.c.l.bf16 %v62
  %v95 = vunpack.c.l.bf16 %v63
  %v96 = vunpack.c.l.bf16 %v64
  %v97 = vunpack.c.l.bf16 %v65
  %v98 = vunpack.c.l.bf16 %v66
  %v99 = vunpack.c.l.bf16 %v67
  %v100 = vunpack.c.l.bf16 %v68
  %v101 = vunpack.c.l.bf16 %v69
  %v102 = vunpack.c.l.bf16 %v70
  %v103 = vunpack.c.l.bf16 %v71
  %v104 = vunpack.c.l.bf16 %v72
  %v105 = vunpack.c.l.bf16 %v73
  %v106 = vunpack.c.l.bf16 %v74
  %v107 = vunpack.c.l.bf16 %v75
  %v108 = vunpack.c.l.bf16 %v76
  %v109 = vunpack.c.l.bf16 %v77
  %v110 = vunpack.c.l.bf16 %v78
  %v111 = vunpack.c.l.bf16 %v79
  %v112 = vunpack.c.l.bf16 %v80
  %v113 = vunpack.c.l.bf16 %v81
  %v114 = vunpack.c.l.bf16 %v82
  %v115 = vunpack.c.l.bf16 %v83
  %v116 = vunpack.c.l.bf16 %v84
  %v117 = vunpack.c.l.bf16 %v85
  %v118 = vld [vmem:[%s2] sm:$0xf]
  %v119 = vld [vmem:[%s2 + $0x4] sm:$0xf]
  %v120 = vld [vmem:[%s2 + $0x8] sm:$0xf]
  %v121 = vld [vmem:[%s2 + $0xc] sm:$0xf]
  %v122 = vld [vmem:[%s2 + $0x10] sm:$0xf]
  %v123 = vld [vmem:[%s2 + $0x14] sm:$0xf]
  %v124 = vld [vmem:[%s2 + $0x18] sm:$0xf]
  %v125 = vld [vmem:[%s2 + $0x1c] sm:$0xf]
  %v126 = vld [vmem:[%s2 + $0x20] sm:$0xf]
  %v127 = vld [vmem:[%s2 + $0x24] sm:$0xf]
  %v128 = vld [vmem:[%s2 + $0x28] sm:$0xf]
  %v129 = vld [vmem:[%s2 + $0x2c] sm:$0xf]
  %v130 = vld [vmem:[%s2 + $0x30] sm:$0xf]
  %v131 = vld [vmem:[%s2 + $0x34] sm:$0xf]
  %v132 = vld [vmem:[%s2 + $0x38] sm:$0xf]
  %v133 = vld [vmem:[%s2 + $0x3c] sm:$0xf]
  %v134 = vld [vmem:[%s2 + $0x40] sm:$0xf]
  %v135 = vld [vmem:[%s2 + $0x44] sm:$0xf]
  %v136 = vld [vmem:[%s2 + $0x48] sm:$0xf]
  %v137 = vld [vmem:[%s2 + $0x4c] sm:$0xf]
  %v138 = vld [vmem:[%s2 + $0x50] sm:$0xf]
  %v139 = vld [vmem:[%s2 + $0x54] sm:$0xf]
  %v140 = vld [vmem:[%s2 + $0x58] sm:$0xf]
  %v141 = vld [vmem:[%s2 + $0x5c] sm:$0xf]
  %v142 = vld [vmem:[%s2 + $0x60] sm:$0xf]
  %v143 = vld [vmem:[%s2 + $0x64] sm:$0xf]
  %v144 = vld [vmem:[%s2 + $0x68] sm:$0xf]
  %v145 = vld [vmem:[%s2 + $0x6c] sm:$0xf]
  %v146 = vld [vmem:[%s2 + $0x70] sm:$0xf]
  %v147 = vld [vmem:[%s2 + $0x74] sm:$0xf]
  %v148 = vld [vmem:[%s2 + $0x78] sm:$0xf]
  %v149 = vld [vmem:[%s2 + $0x7c] sm:$0xf]
  %v150 = vunpack.c.l.bf16 %v118
  %v151 = vunpack.c.l.bf16 %v119
  %v152 = vunpack.c.l.bf16 %v120
  %v153 = vunpack.c.l.bf16 %v121
  %v154 = vunpack.c.l.bf16 %v122
  %v155 = vunpack.c.l.bf16 %v123
  %v156 = vunpack.c.l.bf16 %v124
  %v157 = vunpack.c.l.bf16 %v125
  %v158 = vunpack.c.l.bf16 %v126
  %v159 = vunpack.c.l.bf16 %v127
  %v160 = vunpack.c.l.bf16 %v128
  %v161 = vunpack.c.l.bf16 %v129
  %v162 = vunpack.c.l.bf16 %v130
  %v163 = vunpack.c.l.bf16 %v131
  %v164 = vunpack.c.l.bf16 %v132
  %v165 = vunpack.c.l.bf16 %v133
  %v166 = vunpack.c.l.bf16 %v134
  %v167 = vunpack.c.l.bf16 %v135
  %v168 = vunpack.c.l.bf16 %v136
  %v169 = vunpack.c.l.bf16 %v137
  %v170 = vunpack.c.l.bf16 %v138
  %v171 = vunpack.c.l.bf16 %v139
  %v172 = vunpack.c.l.bf16 %v140
  %v173 = vunpack.c.l.bf16 %v141
  %v174 = vunpack.c.l.bf16 %v142
  %v175 = vunpack.c.l.bf16 %v143
  %v176 = vunpack.c.l.bf16 %v144
  %v177 = vunpack.c.l.bf16 %v145
  %v178 = vunpack.c.l.bf16 %v146
  %v179 = vunpack.c.l.bf16 %v147
  %v180 = vunpack.c.l.bf16 %v148
  %v181 = vunpack.c.l.bf16 %v149
  %v182 = vld [vmem:[%s3] sm:$0xff]
  %v183 = vld [vmem:[%s3 + $0x8] sm:$0xff]
  %v184 = vld [vmem:[%s3 + $0x10] sm:$0xff]
  %v185 = vld [vmem:[%s3 + $0x18] sm:$0xff]
  %v186 = vld [vmem:[%s4] sm:$0x7]
  %vm187 = vcmask 23552
  %v189 = vsel %vm187, %v50, 0
  %v192 = vsel %vm187, %v51, 0
  %v195 = vsel %vm187, %v52, 0
  %v198 = vsel %vm187, %v53, 0
  %vm200 = vcmask 1042432
  %v202 = vsel %vm200, %v186, 0
  %204 = vmatprep.subr.mxu0 0.0
  %205 = vmatpush1.msra.mxu0 %v202
  %206 = vmatprep.subr.mxu0 0.0
  %207 = vmatpush1.msra.mxu0 0.0
  %208 = vmatprep.subr.mxu0 0.0
  %209 = vmatpush1.msra.mxu0 0.0
  %210 = vmatprep.subr.mxu0 0.0
  %211 = vmatpush1.msra.mxu0 0.0
  %212 = vmatprep.subr.mxu0 0.0
  %213 = vmatpush1.msra.mxu0 0.0
  %214 = vmatprep.subr.mxu0 0.0
  %215 = vmatpush1.msra.mxu0 0.0
  %216 = vmatprep.subr.mxu0 0.0
  %217 = vmatpush1.msra.mxu0 0.0
  %218 = vmatprep.subr.mxu0 0.0
  %219 = vmatpush1.msra.mxu0 0.0
  %220 = vmatprep.subr.mxu0 0.0
  %221 = vmatpush1.msra.mxu0 0.0
  %222 = vmatprep.subr.mxu0 0.0
  %223 = vmatpush1.msra.mxu0 0.0
  %224 = vmatprep.subr.mxu0 0.0
  %225 = vmatpush1.msra.mxu0 0.0
  %226 = vmatprep.subr.mxu0 0.0
  %227 = vmatpush1.msra.mxu0 0.0
  %228 = vmatprep.subr.mxu0 0.0
  %229 = vmatpush1.msra.mxu0 0.0
  %230 = vmatprep.subr.mxu0 0.0
  %231 = vmatpush1.msra.mxu0 0.0
  %232 = vmatprep.subr.mxu0 0.0
  %233 = vmatpush1.msra.mxu0 0.0
  %234 = vmatprep.subr.mxu0 0.0
  %235 = vmatpush1.msra.mxu0 0.0
  %236 = vmatprep.subr.mxu0 0.0
  %237 = vmatpush1.msra.mxu0 0.0
  %238 = vmatprep.subr.mxu0 0.0
  %239 = vmatpush1.msra.mxu0 0.0
  %240 = vmatprep.subr.mxu0 0.0
  %241 = vmatpush1.msra.mxu0 0.0
  %242 = vmatprep.subr.mxu0 0.0
  %243 = vmatpush1.msra.mxu0 0.0
  %244 = vmatprep.subr.mxu0 0.0
  %245 = vmatpush1.msra.mxu0 0.0
  %246 = vmatprep.subr.mxu0 0.0
  %247 = vmatpush1.msra.mxu0 0.0
  %248 = vmatprep.subr.mxu0 0.0
  %249 = vmatpush1.msra.mxu0 0.0
  %250 = vmatprep.subr.mxu0 0.0
  %251 = vmatpush1.msra.mxu0 0.0
  %252 = vmatprep.subr.mxu0 0.0
  %253 = vmatpush1.msra.mxu0 0.0
  %254 = vmatprep.subr.mxu0 0.0
  %255 = vmatpush1.msra.mxu0 0.0
  %256 = vmatprep.subr.mxu0 0.0
  %257 = vmatpush1.msra.mxu0 0.0
  %258 = vmatprep.subr.mxu0 0.0
  %259 = vmatpush1.msra.mxu0 0.0
  %260 = vmatprep.subr.mxu0 0.0
  %261 = vmatpush1.msra.mxu0 0.0
  %262 = vmatprep.subr.mxu0 0.0
  %263 = vmatpush1.msra.mxu0 0.0
  %264 = vmatprep.subr.mxu0 0.0
  %265 = vmatpush1.msra.mxu0 0.0
  %266 = vmatprep.subr.mxu0 0.0
  %267 = vmatpush1.msra.mxu0 0.0
  %268 = vmatprep.mubr.f32.mxu0 0.0
  %269 = vmatmul.mubr.f32.gmra.mrb[0].mxu0 %v189
  %v270 = vpop.f32.mrb[0].mxu0
  %v271 = vadd.f32 0.0, %v270
  %v272 = vpop.f32.mrb[0].mxu0
  %273 = vmatprep.mubr.f32.mxu0 0.0
  %274 = vmatmul.mubr.f32.gmra.mrb[0].mxu0 %v192
  %v275 = vpop.f32.mrb[0].mxu0
  %v276 = vadd.f32 0.0, %v275
  %v277 = vpop.f32.mrb[0].mxu0
  %278 = vmatprep.mubr.f32.mxu0 0.0
  %279 = vmatmul.mubr.f32.gmra.mrb[0].mxu0 %v195
  %v280 = vpop.f32.mrb[0].mxu0
  %v281 = vadd.f32 0.0, %v280
  %v282 = vpop.f32.mrb[0].mxu0
  %283 = vmatprep.mubr.f32.mxu0 0.0
  %284 = vmatmul.mubr.f32.gmra.mrb[0].mxu0 %v198
  %v285 = vpop.f32.mrb[0].mxu0
  %v286 = vadd.f32 0.0, %v285
  %v287 = vpop.f32.mrb[0].mxu0
  %288 = vdwg.mxu0
  %v289 = vld [vmem:[%s5] sm:$0x7]
  %v291 = vsel %vm187, %v86, 0
  %v294 = vsel %vm187, %v87, 0
  %v297 = vsel %vm187, %v88, 0
  %v300 = vsel %vm187, %v89, 0
  %v303 = vsel %vm187, %v90, 0
  %v306 = vsel %vm187, %v91, 0
  %v309 = vsel %vm187, %v92, 0
  %v312 = vsel %vm187, %v93, 0
  %v315 = vsel %vm187, %v94, 0
  %v318 = vsel %vm187, %v95, 0
  %v321 = vsel %vm187, %v96, 0
  %v324 = vsel %vm187, %v97, 0
  %v327 = vsel %vm187, %v98, 0
  %v330 = vsel %vm187, %v99, 0
  %v333 = vsel %vm187, %v100, 0
  %v336 = vsel %vm187, %v101, 0
  %v339 = vsel %vm187, %v102, 0
  %v342 = vsel %vm187, %v103, 0
  %v345 = vsel %vm187, %v104, 0
  %v348 = vsel %vm187, %v105, 0
  %v351 = vsel %vm187, %v106, 0
  %v354 = vsel %vm187, %v107, 0
  %v357 = vsel %vm187, %v108, 0
  %v360 = vsel %vm187, %v109, 0
  %v363 = vsel %vm187, %v110, 0
  %v366 = vsel %vm187, %v111, 0
  %v369 = vsel %vm187, %v112, 0
  %v372 = vsel %vm187, %v113, 0
  %v375 = vsel %vm187, %v114, 0
  %v378 = vsel %vm187, %v115, 0
  %v381 = vsel %vm187, %v116, 0
  %v384 = vsel %vm187, %v117, 0
  %v387 = vsel %vm200, %v289, 0
  %389 = vmatprep.subr.mxu0 0.0
  %390 = vmatpush1.msra.mxu0 %v387
  %391 = vmatprep.subr.mxu0 0.0
  %392 = vmatpush1.msra.mxu0 0.0
  %393 = vmatprep.subr.mxu0 0.0
  %394 = vmatpush1.msra.mxu0 0.0
  %395 = vmatprep.subr.mxu0 0.0
  %396 = vmatpush1.msra.mxu0 0.0
  %397 = vmatprep.subr.mxu0 0.0
  %398 = vmatpush1.msra.mxu0 0.0
  %399 = vmatprep.subr.mxu0 0.0
  %400 = vmatpush1.msra.mxu0 0.0
  %401 = vmatprep.subr.mxu0 0.0
  %402 = vmatpush1.msra.mxu0 0.0
  %403 = vmatprep.subr.mxu0 0.0
  %404 = vmatpush1.msra.mxu0 0.0
  %405 = vmatprep.subr.mxu0 0.0
  %406 = vmatpush1.msra.mxu0 0.0
  %407 = vmatprep.subr.mxu0 0.0
  %408 = vmatpush1.msra.mxu0 0.0
  %409 = vmatprep.subr.mxu0 0.0
  %410 = vmatpush1.msra.mxu0 0.0
  %411 = vmatprep.subr.mxu0 0.0
  %412 = vmatpush1.msra.mxu0 0.0
  %413 = vmatprep.subr.mxu0 0.0
  %414 = vmatpush1.msra.mxu0 0.0
  %415 = vmatprep.subr.mxu0 0.0
  %416 = vmatpush1.msra.mxu0 0.0
  %417 = vmatprep.subr.mxu0 0.0
  %418 = vmatpush1.msra.mxu0 0.0
  %419 = vmatprep.subr.mxu0 0.0
  %420 = vmatpush1.msra.mxu0 0.0
  %421 = vmatprep.subr.mxu0 0.0
  %422 = vmatpush1.msra.mxu0 0.0
  %423 = vmatprep.subr.mxu0 0.0
  %424 = vmatpush1.msra.mxu0 0.0
  %425 = vmatprep.subr.mxu0 0.0
  %426 = vmatpush1.msra.mxu0 0.0
  %427 = vmatprep.subr.mxu0 0.0
  %428 = vmatpush1.msra.mxu0 0.0
  %429 = vmatprep.subr.mxu0 0.0
  %430 = vmatpush1.msra.mxu0 0.0
  %431 = vmatprep.subr.mxu0 0.0
  %432 = vmatpush1.msra.mxu0 0.0
  %433 = vmatprep.subr.mxu0 0.0
  %434 = vmatpush1.msra.mxu0 0.0
  %435 = vmatprep.subr.mxu0 0.0
  %436 = vmatpush1.msra.mxu0 0.0
  %437 = vmatprep.subr.mxu0 0.0
  %438 = vmatpush1.msra.mxu0 0.0
  %439 = vmatprep.subr.mxu0 0.0
  %440 = vmatpush1.msra.mxu0 0.0
  %441 = vmatprep.subr.mxu0 0.0
  %442 = vmatpush1.msra.mxu0 0.0
  %443 = vmatprep.subr.mxu0 0.0
  %444 = vmatpush1.msra.mxu0 0.0
  %445 = vmatprep.subr.mxu0 0.0
  %446 = vmatpush1.msra.mxu0 0.0
  %447 = vmatprep.subr.mxu0 0.0
  %448 = vmatpush1.msra.mxu0 0.0
  %449 = vmatprep.subr.mxu0 0.0
  %450 = vmatpush1.msra.mxu0 0.0
  %451 = vmatprep.subr.mxu0 0.0
  %452 = vmatpush1.msra.mxu0 0.0
  %453 = vmatprep.mubr.f32.mxu0 0.0
  %454 = vmatmul.mubr.f32.gmra.mrb[0].mxu0 %v291
  %v455 = vpop.f32.mrb[0].mxu0
  %v456 = vadd.f32 0.0, %v455
  %v457 = vpop.f32.mrb[0].mxu0
  %458 = vmatprep.mubr.f32.mxu0 0.0
  %459 = vmatmul.mubr.f32.gmra.mrb[0].mxu0 %v294
  %v460 = vpop.f32.mrb[0].mxu0
  %v461 = vadd.f32 0.0, %v460
  %v462 = vpop.f32.mrb[0].mxu0
  %463 = vmatprep.mubr.f32.mxu0 0.0
  %464 = vmatmul.mubr.f32.gmra.mrb[0].mxu0 %v297
  %v465 = vpop.f32.mrb[0].mxu0
  %v466 = vadd.f32 0.0, %v465
  %v467 = vpop.f32.mrb[0].mxu0
  %468 = vmatprep.mubr.f32.mxu0 0.0
  %469 = vmatmul.mubr.f32.gmra.mrb[0].mxu0 %v300
  %v470 = vpop.f32.mrb[0].mxu0
  %v471 = vadd.f32 0.0, %v470
  %v472 = vpop.f32.mrb[0].mxu0
  %473 = vmatprep.mubr.f32.mxu0 0.0
  %474 = vmatmul.mubr.f32.gmra.mrb[0].mxu0 %v303
  %v475 = vpop.f32.mrb[0].mxu0
  %v476 = vadd.f32 0.0, %v475
  %v477 = vpop.f32.mrb[0].mxu0
  %478 = vmatprep.mubr.f32.mxu0 0.0
  %479 = vmatmul.mubr.f32.gmra.mrb[0].mxu0 %v306
  %v480 = vpop.f32.mrb[0].mxu0
  %v481 = vadd.f32 0.0, %v480
  %v482 = vpop.f32.mrb[0].mxu0
  %483 = vmatprep.mubr.f32.mxu0 0.0
  %484 = vmatmul.mubr.f32.gmra.mrb[0].mxu0 %v309
  %v485 = vpop.f32.mrb[0].mxu0
  %v486 = vadd.f32 0.0, %v485
  %v487 = vpop.f32.mrb[0].mxu0
  %488 = vmatprep.mubr.f32.mxu0 0.0
  %489 = vmatmul.mubr.f32.gmra.mrb[0].mxu0 %v312
  %v490 = vpop.f32.mrb[0].mxu0
  %v491 = vadd.f32 0.0, %v490
  %v492 = vpop.f32.mrb[0].mxu0
  %493 = vmatprep.mubr.f32.mxu0 0.0
  %494 = vmatmul.mubr.f32.gmra.mrb[0].mxu0 %v315
  %v495 = vpop.f32.mrb[0].mxu0
  %v496 = vadd.f32 0.0, %v495
  %v497 = vpop.f32.mrb[0].mxu0
  %498 = vmatprep.mubr.f32.mxu0 0.0
  %499 = vmatmul.mubr.f32.gmra.mrb[0].mxu0 %v318
  %v500 = vpop.f32.mrb[0].mxu0
  %v501 = vadd.f32 0.0, %v500
  %v502 = vpop.f32.mrb[0].mxu0
  %503 = vmatprep.mubr.f32.mxu0 0.0
  %504 = vmatmul.mubr.f32.gmra.mrb[0].mxu0 %v321
  %v505 = vpop.f32.mrb[0].mxu0
  %v506 = vadd.f32 0.0, %v505
  %v507 = vpop.f32.mrb[0].mxu0
  %508 = vmatprep.mubr.f32.mxu0 0.0
  %509 = vmatmul.mubr.f32.gmra.mrb[0].mxu0 %v324
  %v510 = vpop.f32.mrb[0].mxu0
  %v511 = vadd.f32 0.0, %v510
  %v512 = vpop.f32.mrb[0].mxu0
  %513 = vmatprep.mubr.f32.mxu0 0.0
  %514 = vmatmul.mubr.f32.gmra.mrb[0].mxu0 %v327
  %v515 = vpop.f32.mrb[0].mxu0
  %v516 = vadd.f32 0.0, %v515
  %v517 = vpop.f32.mrb[0].mxu0
  %518 = vmatprep.mubr.f32.mxu0 0.0
  %519 = vmatmul.mubr.f32.gmra.mrb[0].mxu0 %v330
  %v520 = vpop.f32.mrb[0].mxu0
  %v521 = vadd.f32 0.0, %v520
  %v522 = vpop.f32.mrb[0].mxu0
  %523 = vmatprep.mubr.f32.mxu0 0.0
  %524 = vmatmul.mubr.f32.gmra.mrb[0].mxu0 %v333
  %v525 = vpop.f32.mrb[0].mxu0
  %v526 = vadd.f32 0.0, %v525
  %v527 = vpop.f32.mrb[0].mxu0
  %528 = vmatprep.mubr.f32.mxu0 0.0
  %529 = vmatmul.mubr.f32.gmra.mrb[0].mxu0 %v336
  %v530 = vpop.f32.mrb[0].mxu0
  %v531 = vadd.f32 0.0, %v530
  %v532 = vpop.f32.mrb[0].mxu0
  %533 = vmatprep.mubr.f32.mxu0 0.0
  %534 = vmatmul.mubr.f32.gmra.mrb[0].mxu0 %v339
  %v535 = vpop.f32.mrb[0].mxu0
  %v536 = vadd.f32 0.0, %v535
  %v537 = vpop.f32.mrb[0].mxu0
  %538 = vmatprep.mubr.f32.mxu0 0.0
  %539 = vmatmul.mubr.f32.gmra.mrb[0].mxu0 %v342
  %v540 = vpop.f32.mrb[0].mxu0
  %v541 = vadd.f32 0.0, %v540
  %v542 = vpop.f32.mrb[0].mxu0
  %543 = vmatprep.mubr.f32.mxu0 0.0
  %544 = vmatmul.mubr.f32.gmra.mrb[0].mxu0 %v345
  %v545 = vpop.f32.mrb[0].mxu0
  %v546 = vadd.f32 0.0, %v545
  %v547 = vpop.f32.mrb[0].mxu0
  %548 = vmatprep.mubr.f32.mxu0 0.0
  %549 = vmatmul.mubr.f32.gmra.mrb[0].mxu0 %v348
  %v550 = vpop.f32.mrb[0].mxu0
  %v551 = vadd.f32 0.0, %v550
  %v552 = vpop.f32.mrb[0].mxu0
  %553 = vmatprep.mubr.f32.mxu0 0.0
  %554 = vmatmul.mubr.f32.gmra.mrb[0].mxu0 %v351
  %v555 = vpop.f32.mrb[0].mxu0
  %v556 = vadd.f32 0.0, %v555
  %v557 = vpop.f32.mrb[0].mxu0
  %558 = vmatprep.mubr.f32.mxu0 0.0
  %559 = vmatmul.mubr.f32.gmra.mrb[0].mxu0 %v354
  %v560 = vpop.f32.mrb[0].mxu0
  %v561 = vadd.f32 0.0, %v560
  %v562 = vpop.f32.mrb[0].mxu0
  %563 = vmatprep.mubr.f32.mxu0 0.0
  %564 = vmatmul.mubr.f32.gmra.mrb[0].mxu0 %v357
  %v565 = vpop.f32.mrb[0].mxu0
  %v566 = vadd.f32 0.0, %v565
  %v567 = vpop.f32.mrb[0].mxu0
  %568 = vmatprep.mubr.f32.mxu0 0.0
  %569 = vmatmul.mubr.f32.gmra.mrb[0].mxu0 %v360
  %v570 = vpop.f32.mrb[0].mxu0
  %v571 = vadd.f32 0.0, %v570
  %v572 = vpop.f32.mrb[0].mxu0
  %573 = vmatprep.mubr.f32.mxu0 0.0
  %574 = vmatmul.mubr.f32.gmra.mrb[0].mxu0 %v363
  %v575 = vpop.f32.mrb[0].mxu0
  %v576 = vadd.f32 0.0, %v575
  %v577 = vpop.f32.mrb[0].mxu0
  %578 = vmatprep.mubr.f32.mxu0 0.0
  %579 = vmatmul.mubr.f32.gmra.mrb[0].mxu0 %v366
  %v580 = vpop.f32.mrb[0].mxu0
  %v581 = vadd.f32 0.0, %v580
  %v582 = vpop.f32.mrb[0].mxu0
  %583 = vmatprep.mubr.f32.mxu0 0.0
  %584 = vmatmul.mubr.f32.gmra.mrb[0].mxu0 %v369
  %v585 = vpop.f32.mrb[0].mxu0
  %v586 = vadd.f32 0.0, %v585
  %v587 = vpop.f32.mrb[0].mxu0
  %588 = vmatprep.mubr.f32.mxu0 0.0
  %589 = vmatmul.mubr.f32.gmra.mrb[0].mxu0 %v372
  %v590 = vpop.f32.mrb[0].mxu0
  %v591 = vadd.f32 0.0, %v590
  %v592 = vpop.f32.mrb[0].mxu0
  %593 = vmatprep.mubr.f32.mxu0 0.0
  %594 = vmatmul.mubr.f32.gmra.mrb[0].mxu0 %v375
  %v595 = vpop.f32.mrb[0].mxu0
  %v596 = vadd.f32 0.0, %v595
  %v597 = vpop.f32.mrb[0].mxu0
  %598 = vmatprep.mubr.f32.mxu0 0.0
  %599 = vmatmul.mubr.f32.gmra.mrb[0].mxu0 %v378
  %v600 = vpop.f32.mrb[0].mxu0
  %v601 = vadd.f32 0.0, %v600
  %v602 = vpop.f32.mrb[0].mxu0
  %603 = vmatprep.mubr.f32.mxu0 0.0
  %604 = vmatmul.mubr.f32.gmra.mrb[0].mxu0 %v381
  %v605 = vpop.f32.mrb[0].mxu0
  %v606 = vadd.f32 0.0, %v605
  %v607 = vpop.f32.mrb[0].mxu0
  %608 = vmatprep.mubr.f32.mxu0 0.0
  %609 = vmatmul.mubr.f32.gmra.mrb[0].mxu0 %v384
  %v610 = vpop.f32.mrb[0].mxu0
  %v611 = vadd.f32 0.0, %v610
  %v612 = vpop.f32.mrb[0].mxu0
  %613 = vdwg.mxu0
  %v618 = vcombine.high %v271, %v271
  %v620 = vunpack.c.l.s4 1966171168
  %v621 = vunpack.c.0.s8 %v620
  %v622 = vlaneseq
  %v623 = vshrl.u32 %v622, 7
  %v624 = vsub.s32 %v621, %v623
  %v625 = vrot.slane %v271, %v624
  %v627 = vunpack.c.l.s4 1966171168
  %v628 = vunpack.c.0.s8 %v627
  %v629 = vlaneseq
  %v630 = vshrl.u32 %v629, 7
  %v631 = vsub.s32 %v628, %v630
  %v632 = vrot.slane %v618, %v631
  %v633 = vcombine.high %v625, %v625
  %v634 = vcombine.high %v632, %v632
  %v636 = vunpack.c.l.s4 1966171168
  %v637 = vunpack.c.0.s8 %v636
  %v638 = vlaneseq
  %v639 = vshrl.u32 %v638, 7
  %v640 = vsub.s32 %v637, %v639
  %v641 = vrot.slane %v625, %v640
  %v643 = vunpack.c.l.s4 1966171168
  %v644 = vunpack.c.0.s8 %v643
  %v645 = vlaneseq
  %v646 = vshrl.u32 %v645, 7
  %v647 = vsub.s32 %v644, %v646
  %v648 = vrot.slane %v632, %v647
  %v650 = vunpack.c.l.s4 1966171168
  %v651 = vunpack.c.0.s8 %v650
  %v652 = vlaneseq
  %v653 = vshrl.u32 %v652, 7
  %v654 = vsub.s32 %v651, %v653
  %v655 = vrot.slane %v633, %v654
  %v657 = vunpack.c.l.s4 1966171168
  %v658 = vunpack.c.0.s8 %v657
  %v659 = vlaneseq
  %v660 = vshrl.u32 %v659, 7
  %v661 = vsub.s32 %v658, %v660
  %v662 = vrot.slane %v634, %v661
  %v663 = vcombine.high %v641, %v641
  %v664 = vcombine.high %v648, %v648
  %v665 = vcombine.high %v655, %v655
  %v666 = vcombine.high %v662, %v662
  %v667 = vcombine.high %v276, %v276
  %v669 = vunpack.c.l.s4 1966171168
  %v670 = vunpack.c.0.s8 %v669
  %v671 = vlaneseq
  %v672 = vshrl.u32 %v671, 7
  %v673 = vsub.s32 %v670, %v672
  %v674 = vrot.slane %v276, %v673
  %v676 = vunpack.c.l.s4 1966171168
  %v677 = vunpack.c.0.s8 %v676
  %v678 = vlaneseq
  %v679 = vshrl.u32 %v678, 7
  %v680 = vsub.s32 %v677, %v679
  %v681 = vrot.slane %v667, %v680
  %v682 = vcombine.high %v674, %v674
  %v683 = vcombine.high %v681, %v681
  %v685 = vunpack.c.l.s4 1966171168
  %v686 = vunpack.c.0.s8 %v685
  %v687 = vlaneseq
  %v688 = vshrl.u32 %v687, 7
  %v689 = vsub.s32 %v686, %v688
  %v690 = vrot.slane %v674, %v689
  %v692 = vunpack.c.l.s4 1966171168
  %v693 = vunpack.c.0.s8 %v692
  %v694 = vlaneseq
  %v695 = vshrl.u32 %v694, 7
  %v696 = vsub.s32 %v693, %v695
  %v697 = vrot.slane %v681, %v696
  %v699 = vunpack.c.l.s4 1966171168
  %v700 = vunpack.c.0.s8 %v699
  %v701 = vlaneseq
  %v702 = vshrl.u32 %v701, 7
  %v703 = vsub.s32 %v700, %v702
  %v704 = vrot.slane %v682, %v703
  %v706 = vunpack.c.l.s4 1966171168
  %v707 = vunpack.c.0.s8 %v706
  %v708 = vlaneseq
  %v709 = vshrl.u32 %v708, 7
  %v710 = vsub.s32 %v707, %v709
  %v711 = vrot.slane %v683, %v710
  %v712 = vcombine.high %v690, %v690
  %v713 = vcombine.high %v697, %v697
  %v714 = vcombine.high %v704, %v704
  %v715 = vcombine.high %v711, %v711
  %v716 = vcombine.high %v281, %v281
  %v718 = vunpack.c.l.s4 1966171168
  %v719 = vunpack.c.0.s8 %v718
  %v720 = vlaneseq
  %v721 = vshrl.u32 %v720, 7
  %v722 = vsub.s32 %v719, %v721
  %v723 = vrot.slane %v281, %v722
  %v725 = vunpack.c.l.s4 1966171168
  %v726 = vunpack.c.0.s8 %v725
  %v727 = vlaneseq
  %v728 = vshrl.u32 %v727, 7
  %v729 = vsub.s32 %v726, %v728
  %v730 = vrot.slane %v716, %v729
  %v731 = vcombine.high %v723, %v723
  %v732 = vcombine.high %v730, %v730
  %v734 = vunpack.c.l.s4 1966171168
  %v735 = vunpack.c.0.s8 %v734
  %v736 = vlaneseq
  %v737 = vshrl.u32 %v736, 7
  %v738 = vsub.s32 %v735, %v737
  %v739 = vrot.slane %v723, %v738
  %v741 = vunpack.c.l.s4 1966171168
  %v742 = vunpack.c.0.s8 %v741
  %v743 = vlaneseq
  %v744 = vshrl.u32 %v743, 7
  %v745 = vsub.s32 %v742, %v744
  %v746 = vrot.slane %v730, %v745
  %v748 = vunpack.c.l.s4 1966171168
  %v749 = vunpack.c.0.s8 %v748
  %v750 = vlaneseq
  %v751 = vshrl.u32 %v750, 7
  %v752 = vsub.s32 %v749, %v751
  %v753 = vrot.slane %v731, %v752
  %v755 = vunpack.c.l.s4 1966171168
  %v756 = vunpack.c.0.s8 %v755
  %v757 = vlaneseq
  %v758 = vshrl.u32 %v757, 7
  %v759 = vsub.s32 %v756, %v758
  %v760 = vrot.slane %v732, %v759
  %v761 = vcombine.high %v739, %v739
  %v762 = vcombine.high %v746, %v746
  %v763 = vcombine.high %v753, %v753
  %v764 = vcombine.high %v760, %v760
  %v765 = vcombine.high %v286, %v286
  %v767 = vunpack.c.l.s4 1966171168
  %v768 = vunpack.c.0.s8 %v767
  %v769 = vlaneseq
  %v770 = vshrl.u32 %v769, 7
  %v771 = vsub.s32 %v768, %v770
  %v772 = vrot.slane %v286, %v771
  %v774 = vunpack.c.l.s4 1966171168
  %v775 = vunpack.c.0.s8 %v774
  %v776 = vlaneseq
  %v777 = vshrl.u32 %v776, 7
  %v778 = vsub.s32 %v775, %v777
  %v779 = vrot.slane %v765, %v778
  %v780 = vcombine.high %v772, %v772
  %v781 = vcombine.high %v779, %v779
  %v783 = vunpack.c.l.s4 1966171168
  %v784 = vunpack.c.0.s8 %v783
  %v785 = vlaneseq
  %v786 = vshrl.u32 %v785, 7
  %v787 = vsub.s32 %v784, %v786
  %v788 = vrot.slane %v772, %v787
  %v790 = vunpack.c.l.s4 1966171168
  %v791 = vunpack.c.0.s8 %v790
  %v792 = vlaneseq
  %v793 = vshrl.u32 %v792, 7
  %v794 = vsub.s32 %v791, %v793
  %v795 = vrot.slane %v779, %v794
  %v797 = vunpack.c.l.s4 1966171168
  %v798 = vunpack.c.0.s8 %v797
  %v799 = vlaneseq
  %v800 = vshrl.u32 %v799, 7
  %v801 = vsub.s32 %v798, %v800
  %v802 = vrot.slane %v780, %v801
  %v804 = vunpack.c.l.s4 1966171168
  %v805 = vunpack.c.0.s8 %v804
  %v806 = vlaneseq
  %v807 = vshrl.u32 %v806, 7
  %v808 = vsub.s32 %v805, %v807
  %v809 = vrot.slane %v781, %v808
  %v810 = vcombine.high %v788, %v788
  %v811 = vcombine.high %v795, %v795
  %v812 = vcombine.high %v802, %v802
  %v813 = vcombine.high %v809, %v809
  %v814 = vlaneseq
  %v815 = vshrl.u32 %v814, 7
  %v816 = vsub.s32 0, %v815
  %v817 = vrot.slane %v641, %v816
  %v818 = vlaneseq
  %v819 = vshrl.u32 %v818, 7
  %v820 = vsub.s32 0, %v819
  %v821 = vrot.slane %v655, %v820
  %v822 = vlaneseq
  %v823 = vshrl.u32 %v822, 7
  %v824 = vsub.s32 0, %v823
  %v825 = vrot.slane %v663, %v824
  %v826 = vlaneseq
  %v827 = vshrl.u32 %v826, 7
  %v828 = vsub.s32 0, %v827
  %v829 = vrot.slane %v665, %v828
  %v830 = vlaneseq
  %v831 = vshrl.u32 %v830, 7
  %v832 = vsub.s32 0, %v831
  %v833 = vrot.slane %v648, %v832
  %v834 = vlaneseq
  %v835 = vshrl.u32 %v834, 7
  %v836 = vsub.s32 0, %v835
  %v837 = vrot.slane %v662, %v836
  %v838 = vlaneseq
  %v839 = vshrl.u32 %v838, 7
  %v840 = vsub.s32 0, %v839
  %v841 = vrot.slane %v664, %v840
  %v842 = vlaneseq
  %v843 = vshrl.u32 %v842, 7
  %v844 = vsub.s32 0, %v843
  %v845 = vrot.slane %v666, %v844
  %v846 = vlaneseq
  %v847 = vshrl.u32 %v846, 7
  %v848 = vsub.s32 0, %v847
  %v849 = vrot.slane %v690, %v848
  %v850 = vlaneseq
  %v851 = vshrl.u32 %v850, 7
  %v852 = vsub.s32 0, %v851
  %v853 = vrot.slane %v704, %v852
  %v854 = vlaneseq
  %v855 = vshrl.u32 %v854, 7
  %v856 = vsub.s32 0, %v855
  %v857 = vrot.slane %v712, %v856
  %v858 = vlaneseq
  %v859 = vshrl.u32 %v858, 7
  %v860 = vsub.s32 0, %v859
  %v861 = vrot.slane %v714, %v860
  %v862 = vlaneseq
  %v863 = vshrl.u32 %v862, 7
  %v864 = vsub.s32 0, %v863
  %v865 = vrot.slane %v697, %v864
  %v866 = vlaneseq
  %v867 = vshrl.u32 %v866, 7
  %v868 = vsub.s32 0, %v867
  %v869 = vrot.slane %v711, %v868
  %v870 = vlaneseq
  %v871 = vshrl.u32 %v870, 7
  %v872 = vsub.s32 0, %v871
  %v873 = vrot.slane %v713, %v872
  %v874 = vlaneseq
  %v875 = vshrl.u32 %v874, 7
  %v876 = vsub.s32 0, %v875
  %v877 = vrot.slane %v715, %v876
  %v878 = vlaneseq
  %v879 = vshrl.u32 %v878, 7
  %v880 = vsub.s32 0, %v879
  %v881 = vrot.slane %v739, %v880
  %v882 = vlaneseq
  %v883 = vshrl.u32 %v882, 7
  %v884 = vsub.s32 0, %v883
  %v885 = vrot.slane %v753, %v884
  %v886 = vlaneseq
  %v887 = vshrl.u32 %v886, 7
  %v888 = vsub.s32 0, %v887
  %v889 = vrot.slane %v761, %v888
  %v890 = vlaneseq
  %v891 = vshrl.u32 %v890, 7
  %v892 = vsub.s32 0, %v891
  %v893 = vrot.slane %v763, %v892
  %v894 = vlaneseq
  %v895 = vshrl.u32 %v894, 7
  %v896 = vsub.s32 0, %v895
  %v897 = vrot.slane %v746, %v896
  %v898 = vlaneseq
  %v899 = vshrl.u32 %v898, 7
  %v900 = vsub.s32 0, %v899
  %v901 = vrot.slane %v760, %v900
  %v902 = vlaneseq
  %v903 = vshrl.u32 %v902, 7
  %v904 = vsub.s32 0, %v903
  %v905 = vrot.slane %v762, %v904
  %v906 = vlaneseq
  %v907 = vshrl.u32 %v906, 7
  %v908 = vsub.s32 0, %v907
  %v909 = vrot.slane %v764, %v908
  %v910 = vlaneseq
  %v911 = vshrl.u32 %v910, 7
  %v912 = vsub.s32 0, %v911
  %v913 = vrot.slane %v788, %v912
  %v914 = vlaneseq
  %v915 = vshrl.u32 %v914, 7
  %v916 = vsub.s32 0, %v915
  %v917 = vrot.slane %v802, %v916
  %v918 = vlaneseq
  %v919 = vshrl.u32 %v918, 7
  %v920 = vsub.s32 0, %v919
  %v921 = vrot.slane %v810, %v920
  %v922 = vlaneseq
  %v923 = vshrl.u32 %v922, 7
  %v924 = vsub.s32 0, %v923
  %v925 = vrot.slane %v812, %v924
  %v926 = vlaneseq
  %v927 = vshrl.u32 %v926, 7
  %v928 = vsub.s32 0, %v927
  %v929 = vrot.slane %v795, %v928
  %v930 = vlaneseq
  %v931 = vshrl.u32 %v930, 7
  %v932 = vsub.s32 0, %v931
  %v933 = vrot.slane %v809, %v932
  %v934 = vlaneseq
  %v935 = vshrl.u32 %v934, 7
  %v936 = vsub.s32 0, %v935
  %v937 = vrot.slane %v811, %v936
  %v938 = vlaneseq
  %v939 = vshrl.u32 %v938, 7
  %v940 = vsub.s32 0, %v939
  %v941 = vrot.slane %v813, %v940
  %v974 = vadd.f32 %v456, %v817
  %v975 = vadd.f32 %v461, %v821
  %v976 = vadd.f32 %v466, %v825
  %v977 = vadd.f32 %v471, %v829
  %v978 = vadd.f32 %v476, %v833
  %v979 = vadd.f32 %v481, %v837
  %v980 = vadd.f32 %v486, %v841
  %v981 = vadd.f32 %v491, %v845
  %v982 = vadd.f32 %v496, %v849
  %v983 = vadd.f32 %v501, %v853
  %v984 = vadd.f32 %v506, %v857
  %v985 = vadd.f32 %v511, %v861
  %v986 = vadd.f32 %v516, %v865
  %v987 = vadd.f32 %v521, %v869
  %v988 = vadd.f32 %v526, %v873
  %v989 = vadd.f32 %v531, %v877
  %v990 = vadd.f32 %v536, %v881
  %v991 = vadd.f32 %v541, %v885
  %v992 = vadd.f32 %v546, %v889
  %v993 = vadd.f32 %v551, %v893
  %v994 = vadd.f32 %v556, %v897
  %v995 = vadd.f32 %v561, %v901
  %v996 = vadd.f32 %v566, %v905
  %v997 = vadd.f32 %v571, %v909
  %v998 = vadd.f32 %v576, %v913
  %v999 = vadd.f32 %v581, %v917
  %v1000 = vadd.f32 %v586, %v921
  %v1001 = vadd.f32 %v591, %v925
  %v1002 = vadd.f32 %v596, %v929
  %v1003 = vadd.f32 %v601, %v933
  %v1004 = vadd.f32 %v606, %v937
  %v1005 = vadd.f32 %v611, %v941
  %v1006 = vld [vmem:[%s6] sm:$0x1]
  %1008 = vset.pattern.permute.xlu0 0
  %1009 = vperm.xlu0 %1008, %v150
  %v1010 = vpop.permute.xlu0 %1009
  %1013 = vset.pattern.permute.xlu0 0
  %1014 = vperm.xlu0 %1013, %v151
  %v1015 = vpop.permute.xlu0 %1014
  %1018 = vset.pattern.permute.xlu0 0
  %1019 = vperm.xlu0 %1018, %v152
  %v1020 = vpop.permute.xlu0 %1019
  %1023 = vset.pattern.permute.xlu0 0
  %1024 = vperm.xlu0 %1023, %v153
  %v1025 = vpop.permute.xlu0 %1024
  %1028 = vset.pattern.permute.xlu0 0
  %1029 = vperm.xlu0 %1028, %v154
  %v1030 = vpop.permute.xlu0 %1029
  %1033 = vset.pattern.permute.xlu0 0
  %1034 = vperm.xlu0 %1033, %v155
  %v1035 = vpop.permute.xlu0 %1034
  %1038 = vset.pattern.permute.xlu0 0
  %1039 = vperm.xlu0 %1038, %v156
  %v1040 = vpop.permute.xlu0 %1039
  %1043 = vset.pattern.permute.xlu0 0
  %1044 = vperm.xlu0 %1043, %v157
  %v1045 = vpop.permute.xlu0 %1044
  %1048 = vset.pattern.permute.xlu0 0
  %1049 = vperm.xlu0 %1048, %v158
  %v1050 = vpop.permute.xlu0 %1049
  %1053 = vset.pattern.permute.xlu0 0
  %1054 = vperm.xlu0 %1053, %v159
  %v1055 = vpop.permute.xlu0 %1054
  %1058 = vset.pattern.permute.xlu0 0
  %1059 = vperm.xlu0 %1058, %v160
  %v1060 = vpop.permute.xlu0 %1059
  %1063 = vset.pattern.permute.xlu0 0
  %1064 = vperm.xlu0 %1063, %v161
  %v1065 = vpop.permute.xlu0 %1064
  %1068 = vset.pattern.permute.xlu0 0
  %1069 = vperm.xlu0 %1068, %v162
  %v1070 = vpop.permute.xlu0 %1069
  %1073 = vset.pattern.permute.xlu0 0
  %1074 = vperm.xlu0 %1073, %v163
  %v1075 = vpop.permute.xlu0 %1074
  %1078 = vset.pattern.permute.xlu0 0
  %1079 = vperm.xlu0 %1078, %v164
  %v1080 = vpop.permute.xlu0 %1079
  %1083 = vset.pattern.permute.xlu0 0
  %1084 = vperm.xlu0 %1083, %v165
  %v1085 = vpop.permute.xlu0 %1084
  %1088 = vset.pattern.permute.xlu0 0
  %1089 = vperm.xlu0 %1088, %v166
  %v1090 = vpop.permute.xlu0 %1089
  %1093 = vset.pattern.permute.xlu0 0
  %1094 = vperm.xlu0 %1093, %v167
  %v1095 = vpop.permute.xlu0 %1094
  %1098 = vset.pattern.permute.xlu0 0
  %1099 = vperm.xlu0 %1098, %v168
  %v1100 = vpop.permute.xlu0 %1099
  %1103 = vset.pattern.permute.xlu0 0
  %1104 = vperm.xlu0 %1103, %v169
  %v1105 = vpop.permute.xlu0 %1104
  %1108 = vset.pattern.permute.xlu0 0
  %1109 = vperm.xlu0 %1108, %v170
  %v1110 = vpop.permute.xlu0 %1109
  %1113 = vset.pattern.permute.xlu0 0
  %1114 = vperm.xlu0 %1113, %v171
  %v1115 = vpop.permute.xlu0 %1114
  %1118 = vset.pattern.permute.xlu0 0
  %1119 = vperm.xlu0 %1118, %v172
  %v1120 = vpop.permute.xlu0 %1119
  %1123 = vset.pattern.permute.xlu0 0
  %1124 = vperm.xlu0 %1123, %v173
  %v1125 = vpop.permute.xlu0 %1124
  %1128 = vset.pattern.permute.xlu0 0
  %1129 = vperm.xlu0 %1128, %v174
  %v1130 = vpop.permute.xlu0 %1129
  %1133 = vset.pattern.permute.xlu0 0
  %1134 = vperm.xlu0 %1133, %v175
  %v1135 = vpop.permute.xlu0 %1134
  %1138 = vset.pattern.permute.xlu0 0
  %1139 = vperm.xlu0 %1138, %v176
  %v1140 = vpop.permute.xlu0 %1139
  %1143 = vset.pattern.permute.xlu0 0
  %1144 = vperm.xlu0 %1143, %v177
  %v1145 = vpop.permute.xlu0 %1144
  %1148 = vset.pattern.permute.xlu0 0
  %1149 = vperm.xlu0 %1148, %v178
  %v1150 = vpop.permute.xlu0 %1149
  %1153 = vset.pattern.permute.xlu0 0
  %1154 = vperm.xlu0 %1153, %v179
  %v1155 = vpop.permute.xlu0 %1154
  %1158 = vset.pattern.permute.xlu0 0
  %1159 = vperm.xlu0 %1158, %v180
  %v1160 = vpop.permute.xlu0 %1159
  %1163 = vset.pattern.permute.xlu0 0
  %1164 = vperm.xlu0 %1163, %v181
  %v1165 = vpop.permute.xlu0 %1164
  %v1168 = vlaneseq
  %v1169 = vshrl.u32 %v1168, 7
  %v1170 = vsub.s32 0, %v1169
  %v1171 = vrot.slane %v1006, %v1170
  %v1173 = vmul.f32 %v1010, %v1171
  %v1174 = vmul.f32 %v1015, %v1171
  %v1175 = vmul.f32 %v1020, %v1171
  %v1176 = vmul.f32 %v1025, %v1171
  %v1177 = vmul.f32 %v1030, %v1171
  %v1178 = vmul.f32 %v1035, %v1171
  %v1179 = vmul.f32 %v1040, %v1171
  %v1180 = vmul.f32 %v1045, %v1171
  %v1181 = vmul.f32 %v1050, %v1171
  %v1182 = vmul.f32 %v1055, %v1171
  %v1183 = vmul.f32 %v1060, %v1171
  %v1184 = vmul.f32 %v1065, %v1171
  %v1185 = vmul.f32 %v1070, %v1171
  %v1186 = vmul.f32 %v1075, %v1171
  %v1187 = vmul.f32 %v1080, %v1171
  %v1188 = vmul.f32 %v1085, %v1171
  %v1189 = vmul.f32 %v1090, %v1171
  %v1190 = vmul.f32 %v1095, %v1171
  %v1191 = vmul.f32 %v1100, %v1171
  %v1192 = vmul.f32 %v1105, %v1171
  %v1193 = vmul.f32 %v1110, %v1171
  %v1194 = vmul.f32 %v1115, %v1171
  %v1195 = vmul.f32 %v1120, %v1171
  %v1196 = vmul.f32 %v1125, %v1171
  %v1197 = vmul.f32 %v1130, %v1171
  %v1198 = vmul.f32 %v1135, %v1171
  %v1199 = vmul.f32 %v1140, %v1171
  %v1200 = vmul.f32 %v1145, %v1171
  %v1201 = vmul.f32 %v1150, %v1171
  %v1202 = vmul.f32 %v1155, %v1171
  %v1203 = vmul.f32 %v1160, %v1171
  %v1204 = vmul.f32 %v1165, %v1171
  %v1205 = vadd.f32 %v974, %v1173
  %v1206 = vadd.f32 %v975, %v1174
  %v1207 = vadd.f32 %v976, %v1175
  %v1208 = vadd.f32 %v977, %v1176
  %v1209 = vadd.f32 %v978, %v1177
  %v1210 = vadd.f32 %v979, %v1178
  %v1211 = vadd.f32 %v980, %v1179
  %v1212 = vadd.f32 %v981, %v1180
  %v1213 = vadd.f32 %v982, %v1181
  %v1214 = vadd.f32 %v983, %v1182
  %v1215 = vadd.f32 %v984, %v1183
  %v1216 = vadd.f32 %v985, %v1184
  %v1217 = vadd.f32 %v986, %v1185
  %v1218 = vadd.f32 %v987, %v1186
  %v1219 = vadd.f32 %v988, %v1187
  %v1220 = vadd.f32 %v989, %v1188
  %v1221 = vadd.f32 %v990, %v1189
  %v1222 = vadd.f32 %v991, %v1190
  %v1223 = vadd.f32 %v992, %v1191
  %v1224 = vadd.f32 %v993, %v1192
  %v1225 = vadd.f32 %v994, %v1193
  %v1226 = vadd.f32 %v995, %v1194
  %v1227 = vadd.f32 %v996, %v1195
  %v1228 = vadd.f32 %v997, %v1196
  %v1229 = vadd.f32 %v998, %v1197
  %v1230 = vadd.f32 %v999, %v1198
  %v1231 = vadd.f32 %v1000, %v1199
  %v1232 = vadd.f32 %v1001, %v1200
  %v1233 = vadd.f32 %v1002, %v1201
  %v1234 = vadd.f32 %v1003, %v1202
  %v1235 = vadd.f32 %v1004, %v1203
  %v1236 = vadd.f32 %v1005, %v1204
  %v1237 = vld [vmem:[%s7] sm:$0x1]
  %v1239 = vlaneseq
  %v1240 = vshrl.u32 %v1239, 7
  %v1241 = vsub.s32 0, %v1240
  %v1242 = vrot.slane %v1237, %v1241
  %v1244 = vadd.f32 %v1205, %v1242
  %v1245 = vadd.f32 %v1206, %v1242
  %v1246 = vadd.f32 %v1207, %v1242
  %v1247 = vadd.f32 %v1208, %v1242
  %v1248 = vadd.f32 %v1209, %v1242
  %v1249 = vadd.f32 %v1210, %v1242
  %v1250 = vadd.f32 %v1211, %v1242
  %v1251 = vadd.f32 %v1212, %v1242
  %v1252 = vadd.f32 %v1213, %v1242
  %v1253 = vadd.f32 %v1214, %v1242
  %v1254 = vadd.f32 %v1215, %v1242
  %v1255 = vadd.f32 %v1216, %v1242
  %v1256 = vadd.f32 %v1217, %v1242
  %v1257 = vadd.f32 %v1218, %v1242
  %v1258 = vadd.f32 %v1219, %v1242
  %v1259 = vadd.f32 %v1220, %v1242
  %v1260 = vadd.f32 %v1221, %v1242
  %v1261 = vadd.f32 %v1222, %v1242
  %v1262 = vadd.f32 %v1223, %v1242
  %v1263 = vadd.f32 %v1224, %v1242
  %v1264 = vadd.f32 %v1225, %v1242
  %v1265 = vadd.f32 %v1226, %v1242
  %v1266 = vadd.f32 %v1227, %v1242
  %v1267 = vadd.f32 %v1228, %v1242
  %v1268 = vadd.f32 %v1229, %v1242
  %v1269 = vadd.f32 %v1230, %v1242
  %v1270 = vadd.f32 %v1231, %v1242
  %v1271 = vadd.f32 %v1232, %v1242
  %v1272 = vadd.f32 %v1233, %v1242
  %v1273 = vadd.f32 %v1234, %v1242
  %v1274 = vadd.f32 %v1235, %v1242
  %v1275 = vadd.f32 %v1236, %v1242
  %v1276 = vmax.f32 %v1244, 0.0
  %v1277 = vmax.f32 %v1245, 0.0
  %v1278 = vmax.f32 %v1246, 0.0
  %v1279 = vmax.f32 %v1247, 0.0
  %v1280 = vmax.f32 %v1248, 0.0
  %v1281 = vmax.f32 %v1249, 0.0
  %v1282 = vmax.f32 %v1250, 0.0
  %v1283 = vmax.f32 %v1251, 0.0
  %v1284 = vmax.f32 %v1252, 0.0
  %v1285 = vmax.f32 %v1253, 0.0
  %v1286 = vmax.f32 %v1254, 0.0
  %v1287 = vmax.f32 %v1255, 0.0
  %v1288 = vmax.f32 %v1256, 0.0
  %v1289 = vmax.f32 %v1257, 0.0
  %v1290 = vmax.f32 %v1258, 0.0
  %v1291 = vmax.f32 %v1259, 0.0
  %v1292 = vmax.f32 %v1260, 0.0
  %v1293 = vmax.f32 %v1261, 0.0
  %v1294 = vmax.f32 %v1262, 0.0
  %v1295 = vmax.f32 %v1263, 0.0
  %v1296 = vmax.f32 %v1264, 0.0
  %v1297 = vmax.f32 %v1265, 0.0
  %v1298 = vmax.f32 %v1266, 0.0
  %v1299 = vmax.f32 %v1267, 0.0
  %v1300 = vmax.f32 %v1268, 0.0
  %v1301 = vmax.f32 %v1269, 0.0
  %v1302 = vmax.f32 %v1270, 0.0
  %v1303 = vmax.f32 %v1271, 0.0
  %v1304 = vmax.f32 %v1272, 0.0
  %v1305 = vmax.f32 %v1273, 0.0
  %v1306 = vmax.f32 %v1274, 0.0
  %v1307 = vmax.f32 %v1275, 0.0
  %v1308 = vld [vmem:[%s8] sm:$0xff]
  %vm1309 = vcmask 64512
  %v1311 = vsel %vm1309, %v1276, 0
  %v1314 = vsel %vm1309, %v1277, 0
  %v1317 = vsel %vm1309, %v1278, 0
  %v1320 = vsel %vm1309, %v1279, 0
  %v1323 = vsel %vm1309, %v1280, 0
  %v1326 = vsel %vm1309, %v1281, 0
  %v1329 = vsel %vm1309, %v1282, 0
  %v1332 = vsel %vm1309, %v1283, 0
  %v1335 = vsel %vm1309, %v1284, 0
  %v1338 = vsel %vm1309, %v1285, 0
  %v1341 = vsel %vm1309, %v1286, 0
  %v1344 = vsel %vm1309, %v1287, 0
  %v1347 = vsel %vm1309, %v1288, 0
  %v1350 = vsel %vm1309, %v1289, 0
  %v1353 = vsel %vm1309, %v1290, 0
  %v1356 = vsel %vm1309, %v1291, 0
  %v1359 = vsel %vm1309, %v1292, 0
  %v1362 = vsel %vm1309, %v1293, 0
  %v1365 = vsel %vm1309, %v1294, 0
  %v1368 = vsel %vm1309, %v1295, 0
  %v1371 = vsel %vm1309, %v1296, 0
  %v1374 = vsel %vm1309, %v1297, 0
  %v1377 = vsel %vm1309, %v1298, 0
  %v1380 = vsel %vm1309, %v1299, 0
  %v1383 = vsel %vm1309, %v1300, 0
  %v1386 = vsel %vm1309, %v1301, 0
  %v1389 = vsel %vm1309, %v1302, 0
  %v1392 = vsel %vm1309, %v1303, 0
  %v1395 = vsel %vm1309, %v1304, 0
  %v1398 = vsel %vm1309, %v1305, 0
  %v1401 = vsel %vm1309, %v1306, 0
  %v1404 = vsel %vm1309, %v1307, 0
  %1406 = vmatprep.subr.mxu0 0.0
  %1407 = vmatpush1.msra.mxu0 %v1308
  %1408 = vmatprep.subr.mxu0 0.0
  %1409 = vmatpush1.msra.mxu0 0.0
  %1410 = vmatprep.subr.mxu0 0.0
  %1411 = vmatpush1.msra.mxu0 0.0
  %1412 = vmatprep.subr.mxu0 0.0
  %1413 = vmatpush1.msra.mxu0 0.0
  %1414 = vmatprep.subr.mxu0 0.0
  %1415 = vmatpush1.msra.mxu0 0.0
  %1416 = vmatprep.subr.mxu0 0.0
  %1417 = vmatpush1.msra.mxu0 0.0
  %1418 = vmatprep.subr.mxu0 0.0
  %1419 = vmatpush1.msra.mxu0 0.0
  %1420 = vmatprep.subr.mxu0 0.0
  %1421 = vmatpush1.msra.mxu0 0.0
  %1422 = vmatprep.subr.mxu0 0.0
  %1423 = vmatpush1.msra.mxu0 0.0
  %1424 = vmatprep.subr.mxu0 0.0
  %1425 = vmatpush1.msra.mxu0 0.0
  %1426 = vmatprep.subr.mxu0 0.0
  %1427 = vmatpush1.msra.mxu0 0.0
  %1428 = vmatprep.subr.mxu0 0.0
  %1429 = vmatpush1.msra.mxu0 0.0
  %1430 = vmatprep.subr.mxu0 0.0
  %1431 = vmatpush1.msra.mxu0 0.0
  %1432 = vmatprep.subr.mxu0 0.0
  %1433 = vmatpush1.msra.mxu0 0.0
  %1434 = vmatprep.subr.mxu0 0.0
  %1435 = vmatpush1.msra.mxu0 0.0
  %1436 = vmatprep.subr.mxu0 0.0
  %1437 = vmatpush1.msra.mxu0 0.0
  %1438 = vmatprep.subr.mxu0 0.0
  %1439 = vmatpush1.msra.mxu0 0.0
  %1440 = vmatprep.subr.mxu0 0.0
  %1441 = vmatpush1.msra.mxu0 0.0
  %1442 = vmatprep.subr.mxu0 0.0
  %1443 = vmatpush1.msra.mxu0 0.0
  %1444 = vmatprep.subr.mxu0 0.0
  %1445 = vmatpush1.msra.mxu0 0.0
  %1446 = vmatprep.subr.mxu0 0.0
  %1447 = vmatpush1.msra.mxu0 0.0
  %1448 = vmatprep.subr.mxu0 0.0
  %1449 = vmatpush1.msra.mxu0 0.0
  %1450 = vmatprep.subr.mxu0 0.0
  %1451 = vmatpush1.msra.mxu0 0.0
  %1452 = vmatprep.subr.mxu0 0.0
  %1453 = vmatpush1.msra.mxu0 0.0
  %1454 = vmatprep.subr.mxu0 0.0
  %1455 = vmatpush1.msra.mxu0 0.0
  %1456 = vmatprep.subr.mxu0 0.0
  %1457 = vmatpush1.msra.mxu0 0.0
  %1458 = vmatprep.subr.mxu0 0.0
  %1459 = vmatpush1.msra.mxu0 0.0
  %1460 = vmatprep.subr.mxu0 0.0
  %1461 = vmatpush1.msra.mxu0 0.0
  %1462 = vmatprep.subr.mxu0 0.0
  %1463 = vmatpush1.msra.mxu0 0.0
  %1464 = vmatprep.subr.mxu0 0.0
  %1465 = vmatpush1.msra.mxu0 0.0
  %1466 = vmatprep.subr.mxu0 0.0
  %1467 = vmatpush1.msra.mxu0 0.0
  %1468 = vmatprep.subr.mxu0 0.0
  %1469 = vmatpush1.msra.mxu0 0.0
  %1470 = vmatprep.mubr.f32.mxu0 0.0
  %1471 = vmatmul.mubr.f32.gmra.mrb[0].mxu0 %v1311
  %v1472 = vpop.f32.mrb[0].mxu0
  %v1473 = vadd.f32 0.0, %v1472
  %v1474 = vpop.f32.mrb[0].mxu0
  %1475 = vmatprep.mubr.f32.mxu0 0.0
  %1476 = vmatmul.mubr.f32.gmra.mrb[0].mxu0 %v1314
  %v1477 = vpop.f32.mrb[0].mxu0
  %v1478 = vadd.f32 0.0, %v1477
  %v1479 = vpop.f32.mrb[0].mxu0
  %1480 = vmatprep.mubr.f32.mxu0 0.0
  %1481 = vmatmul.mubr.f32.gmra.mrb[0].mxu0 %v1317
  %v1482 = vpop.f32.mrb[0].mxu0
  %v1483 = vadd.f32 0.0, %v1482
  %v1484 = vpop.f32.mrb[0].mxu0
  %1485 = vmatprep.mubr.f32.mxu0 0.0
  %1486 = vmatmul.mubr.f32.gmra.mrb[0].mxu0 %v1320
  %v1487 = vpop.f32.mrb[0].mxu0
  %v1488 = vadd.f32 0.0, %v1487
  %v1489 = vpop.f32.mrb[0].mxu0
  %1490 = vmatprep.mubr.f32.mxu0 0.0
  %1491 = vmatmul.mubr.f32.gmra.mrb[0].mxu0 %v1323
  %v1492 = vpop.f32.mrb[0].mxu0
  %v1493 = vadd.f32 0.0, %v1492
  %v1494 = vpop.f32.mrb[0].mxu0
  %1495 = vmatprep.mubr.f32.mxu0 0.0
  %1496 = vmatmul.mubr.f32.gmra.mrb[0].mxu0 %v1326
  %v1497 = vpop.f32.mrb[0].mxu0
  %v1498 = vadd.f32 0.0, %v1497
  %v1499 = vpop.f32.mrb[0].mxu0
  %1500 = vmatprep.mubr.f32.mxu0 0.0
  %1501 = vmatmul.mubr.f32.gmra.mrb[0].mxu0 %v1329
  %v1502 = vpop.f32.mrb[0].mxu0
  %v1503 = vadd.f32 0.0, %v1502
  %v1504 = vpop.f32.mrb[0].mxu0
  %1505 = vmatprep.mubr.f32.mxu0 0.0
  %1506 = vmatmul.mubr.f32.gmra.mrb[0].mxu0 %v1332
  %v1507 = vpop.f32.mrb[0].mxu0
  %v1508 = vadd.f32 0.0, %v1507
  %v1509 = vpop.f32.mrb[0].mxu0
  %1510 = vmatprep.mubr.f32.mxu0 0.0
  %1511 = vmatmul.mubr.f32.gmra.mrb[0].mxu0 %v1335
  %v1512 = vpop.f32.mrb[0].mxu0
  %v1513 = vadd.f32 0.0, %v1512
  %v1514 = vpop.f32.mrb[0].mxu0
  %1515 = vmatprep.mubr.f32.mxu0 0.0
  %1516 = vmatmul.mubr.f32.gmra.mrb[0].mxu0 %v1338
  %v1517 = vpop.f32.mrb[0].mxu0
  %v1518 = vadd.f32 0.0, %v1517
  %v1519 = vpop.f32.mrb[0].mxu0
  %1520 = vmatprep.mubr.f32.mxu0 0.0
  %1521 = vmatmul.mubr.f32.gmra.mrb[0].mxu0 %v1341
  %v1522 = vpop.f32.mrb[0].mxu0
  %v1523 = vadd.f32 0.0, %v1522
  %v1524 = vpop.f32.mrb[0].mxu0
  %1525 = vmatprep.mubr.f32.mxu0 0.0
  %1526 = vmatmul.mubr.f32.gmra.mrb[0].mxu0 %v1344
  %v1527 = vpop.f32.mrb[0].mxu0
  %v1528 = vadd.f32 0.0, %v1527
  %v1529 = vpop.f32.mrb[0].mxu0
  %1530 = vmatprep.mubr.f32.mxu0 0.0
  %1531 = vmatmul.mubr.f32.gmra.mrb[0].mxu0 %v1347
  %v1532 = vpop.f32.mrb[0].mxu0
  %v1533 = vadd.f32 0.0, %v1532
  %v1534 = vpop.f32.mrb[0].mxu0
  %1535 = vmatprep.mubr.f32.mxu0 0.0
  %1536 = vmatmul.mubr.f32.gmra.mrb[0].mxu0 %v1350
  %v1537 = vpop.f32.mrb[0].mxu0
  %v1538 = vadd.f32 0.0, %v1537
  %v1539 = vpop.f32.mrb[0].mxu0
  %1540 = vmatprep.mubr.f32.mxu0 0.0
  %1541 = vmatmul.mubr.f32.gmra.mrb[0].mxu0 %v1353
  %v1542 = vpop.f32.mrb[0].mxu0
  %v1543 = vadd.f32 0.0, %v1542
  %v1544 = vpop.f32.mrb[0].mxu0
  %1545 = vmatprep.mubr.f32.mxu0 0.0
  %1546 = vmatmul.mubr.f32.gmra.mrb[0].mxu0 %v1356
  %v1547 = vpop.f32.mrb[0].mxu0
  %v1548 = vadd.f32 0.0, %v1547
  %v1549 = vpop.f32.mrb[0].mxu0
  %1550 = vmatprep.mubr.f32.mxu0 0.0
  %1551 = vmatmul.mubr.f32.gmra.mrb[0].mxu0 %v1359
  %v1552 = vpop.f32.mrb[0].mxu0
  %v1553 = vadd.f32 0.0, %v1552
  %v1554 = vpop.f32.mrb[0].mxu0
  %1555 = vmatprep.mubr.f32.mxu0 0.0
  %1556 = vmatmul.mubr.f32.gmra.mrb[0].mxu0 %v1362
  %v1557 = vpop.f32.mrb[0].mxu0
  %v1558 = vadd.f32 0.0, %v1557
  %v1559 = vpop.f32.mrb[0].mxu0
  %1560 = vmatprep.mubr.f32.mxu0 0.0
  %1561 = vmatmul.mubr.f32.gmra.mrb[0].mxu0 %v1365
  %v1562 = vpop.f32.mrb[0].mxu0
  %v1563 = vadd.f32 0.0, %v1562
  %v1564 = vpop.f32.mrb[0].mxu0
  %1565 = vmatprep.mubr.f32.mxu0 0.0
  %1566 = vmatmul.mubr.f32.gmra.mrb[0].mxu0 %v1368
  %v1567 = vpop.f32.mrb[0].mxu0
  %v1568 = vadd.f32 0.0, %v1567
  %v1569 = vpop.f32.mrb[0].mxu0
  %1570 = vmatprep.mubr.f32.mxu0 0.0
  %1571 = vmatmul.mubr.f32.gmra.mrb[0].mxu0 %v1371
  %v1572 = vpop.f32.mrb[0].mxu0
  %v1573 = vadd.f32 0.0, %v1572
  %v1574 = vpop.f32.mrb[0].mxu0
  %1575 = vmatprep.mubr.f32.mxu0 0.0
  %1576 = vmatmul.mubr.f32.gmra.mrb[0].mxu0 %v1374
  %v1577 = vpop.f32.mrb[0].mxu0
  %v1578 = vadd.f32 0.0, %v1577
  %v1579 = vpop.f32.mrb[0].mxu0
  %1580 = vmatprep.mubr.f32.mxu0 0.0
  %1581 = vmatmul.mubr.f32.gmra.mrb[0].mxu0 %v1377
  %v1582 = vpop.f32.mrb[0].mxu0
  %v1583 = vadd.f32 0.0, %v1582
  %v1584 = vpop.f32.mrb[0].mxu0
  %1585 = vmatprep.mubr.f32.mxu0 0.0
  %1586 = vmatmul.mubr.f32.gmra.mrb[0].mxu0 %v1380
  %v1587 = vpop.f32.mrb[0].mxu0
  %v1588 = vadd.f32 0.0, %v1587
  %v1589 = vpop.f32.mrb[0].mxu0
  %1590 = vmatprep.mubr.f32.mxu0 0.0
  %1591 = vmatmul.mubr.f32.gmra.mrb[0].mxu0 %v1383
  %v1592 = vpop.f32.mrb[0].mxu0
  %v1593 = vadd.f32 0.0, %v1592
  %v1594 = vpop.f32.mrb[0].mxu0
  %1595 = vmatprep.mubr.f32.mxu0 0.0
  %1596 = vmatmul.mubr.f32.gmra.mrb[0].mxu0 %v1386
  %v1597 = vpop.f32.mrb[0].mxu0
  %v1598 = vadd.f32 0.0, %v1597
  %v1599 = vpop.f32.mrb[0].mxu0
  %1600 = vmatprep.mubr.f32.mxu0 0.0
  %1601 = vmatmul.mubr.f32.gmra.mrb[0].mxu0 %v1389
  %v1602 = vpop.f32.mrb[0].mxu0
  %v1603 = vadd.f32 0.0, %v1602
  %v1604 = vpop.f32.mrb[0].mxu0
  %1605 = vmatprep.mubr.f32.mxu0 0.0
  %1606 = vmatmul.mubr.f32.gmra.mrb[0].mxu0 %v1392
  %v1607 = vpop.f32.mrb[0].mxu0
  %v1608 = vadd.f32 0.0, %v1607
  %v1609 = vpop.f32.mrb[0].mxu0
  %1610 = vmatprep.mubr.f32.mxu0 0.0
  %1611 = vmatmul.mubr.f32.gmra.mrb[0].mxu0 %v1395
  %v1612 = vpop.f32.mrb[0].mxu0
  %v1613 = vadd.f32 0.0, %v1612
  %v1614 = vpop.f32.mrb[0].mxu0
  %1615 = vmatprep.mubr.f32.mxu0 0.0
  %1616 = vmatmul.mubr.f32.gmra.mrb[0].mxu0 %v1398
  %v1617 = vpop.f32.mrb[0].mxu0
  %v1618 = vadd.f32 0.0, %v1617
  %v1619 = vpop.f32.mrb[0].mxu0
  %1620 = vmatprep.mubr.f32.mxu0 0.0
  %1621 = vmatmul.mubr.f32.gmra.mrb[0].mxu0 %v1401
  %v1622 = vpop.f32.mrb[0].mxu0
  %v1623 = vadd.f32 0.0, %v1622
  %v1624 = vpop.f32.mrb[0].mxu0
  %1625 = vmatprep.mubr.f32.mxu0 0.0
  %1626 = vmatmul.mubr.f32.gmra.mrb[0].mxu0 %v1404
  %v1627 = vpop.f32.mrb[0].mxu0
  %v1628 = vadd.f32 0.0, %v1627
  %v1629 = vpop.f32.mrb[0].mxu0
  %1630 = vdwg.mxu0
  %v1631 = vld [vmem:[%s10] sm:$0xff]
  %v1633 = vsel %vm1309, %v182, 0
  %v1636 = vsel %vm1309, %v183, 0
  %v1639 = vsel %vm1309, %v184, 0
  %v1642 = vsel %vm1309, %v185, 0
  %1644 = vmatprep.subr.mxu0 0.0
  %1645 = vmatpush1.msra.mxu0 %v1631
  %1646 = vmatprep.subr.mxu0 0.0
  %1647 = vmatpush1.msra.mxu0 0.0
  %1648 = vmatprep.subr.mxu0 0.0
  %1649 = vmatpush1.msra.mxu0 0.0
  %1650 = vmatprep.subr.mxu0 0.0
  %1651 = vmatpush1.msra.mxu0 0.0
  %1652 = vmatprep.subr.mxu0 0.0
  %1653 = vmatpush1.msra.mxu0 0.0
  %1654 = vmatprep.subr.mxu0 0.0
  %1655 = vmatpush1.msra.mxu0 0.0
  %1656 = vmatprep.subr.mxu0 0.0
  %1657 = vmatpush1.msra.mxu0 0.0
  %1658 = vmatprep.subr.mxu0 0.0
  %1659 = vmatpush1.msra.mxu0 0.0
  %1660 = vmatprep.subr.mxu0 0.0
  %1661 = vmatpush1.msra.mxu0 0.0
  %1662 = vmatprep.subr.mxu0 0.0
  %1663 = vmatpush1.msra.mxu0 0.0
  %1664 = vmatprep.subr.mxu0 0.0
  %1665 = vmatpush1.msra.mxu0 0.0
  %1666 = vmatprep.subr.mxu0 0.0
  %1667 = vmatpush1.msra.mxu0 0.0
  %1668 = vmatprep.subr.mxu0 0.0
  %1669 = vmatpush1.msra.mxu0 0.0
  %1670 = vmatprep.subr.mxu0 0.0
  %1671 = vmatpush1.msra.mxu0 0.0
  %1672 = vmatprep.subr.mxu0 0.0
  %1673 = vmatpush1.msra.mxu0 0.0
  %1674 = vmatprep.subr.mxu0 0.0
  %1675 = vmatpush1.msra.mxu0 0.0
  %1676 = vmatprep.subr.mxu0 0.0
  %1677 = vmatpush1.msra.mxu0 0.0
  %1678 = vmatprep.subr.mxu0 0.0
  %1679 = vmatpush1.msra.mxu0 0.0
  %1680 = vmatprep.subr.mxu0 0.0
  %1681 = vmatpush1.msra.mxu0 0.0
  %1682 = vmatprep.subr.mxu0 0.0
  %1683 = vmatpush1.msra.mxu0 0.0
  %1684 = vmatprep.subr.mxu0 0.0
  %1685 = vmatpush1.msra.mxu0 0.0
  %1686 = vmatprep.subr.mxu0 0.0
  %1687 = vmatpush1.msra.mxu0 0.0
  %1688 = vmatprep.subr.mxu0 0.0
  %1689 = vmatpush1.msra.mxu0 0.0
  %1690 = vmatprep.subr.mxu0 0.0
  %1691 = vmatpush1.msra.mxu0 0.0
  %1692 = vmatprep.subr.mxu0 0.0
  %1693 = vmatpush1.msra.mxu0 0.0
  %1694 = vmatprep.subr.mxu0 0.0
  %1695 = vmatpush1.msra.mxu0 0.0
  %1696 = vmatprep.subr.mxu0 0.0
  %1697 = vmatpush1.msra.mxu0 0.0
  %1698 = vmatprep.subr.mxu0 0.0
  %1699 = vmatpush1.msra.mxu0 0.0
  %1700 = vmatprep.subr.mxu0 0.0
  %1701 = vmatpush1.msra.mxu0 0.0
  %1702 = vmatprep.subr.mxu0 0.0
  %1703 = vmatpush1.msra.mxu0 0.0
  %1704 = vmatprep.subr.mxu0 0.0
  %1705 = vmatpush1.msra.mxu0 0.0
  %1706 = vmatprep.subr.mxu0 0.0
  %1707 = vmatpush1.msra.mxu0 0.0
  %1708 = vmatprep.mubr.f32.mxu0 0.0
  %1709 = vmatmul.mubr.f32.gmra.mrb[0].mxu0 %v1633
  %v1710 = vpop.f32.mrb[0].mxu0
  %v1711 = vadd.f32 0.0, %v1710
  %v1712 = vpop.f32.mrb[0].mxu0
  %1713 = vmatprep.mubr.f32.mxu0 0.0
  %1714 = vmatmul.mubr.f32.gmra.mrb[0].mxu0 %v1636
  %v1715 = vpop.f32.mrb[0].mxu0
  %v1716 = vadd.f32 0.0, %v1715
  %v1717 = vpop.f32.mrb[0].mxu0
  %1718 = vmatprep.mubr.f32.mxu0 0.0
  %1719 = vmatmul.mubr.f32.gmra.mrb[0].mxu0 %v1639
  %v1720 = vpop.f32.mrb[0].mxu0
  %v1721 = vadd.f32 0.0, %v1720
  %v1722 = vpop.f32.mrb[0].mxu0
  %1723 = vmatprep.mubr.f32.mxu0 0.0
  %1724 = vmatmul.mubr.f32.gmra.mrb[0].mxu0 %v1642
  %v1725 = vpop.f32.mrb[0].mxu0
  %v1726 = vadd.f32 0.0, %v1725
  %v1727 = vpop.f32.mrb[0].mxu0
  %1728 = vdwg.mxu0
  %v1733 = vcombine.high %v1711, %v1711
  %v1735 = vunpack.c.l.s4 1966171168
  %v1736 = vunpack.c.0.s8 %v1735
  %v1737 = vlaneseq
  %v1738 = vshrl.u32 %v1737, 7
  %v1739 = vsub.s32 %v1736, %v1738
  %v1740 = vrot.slane %v1711, %v1739
  %v1742 = vunpack.c.l.s4 1966171168
  %v1743 = vunpack.c.0.s8 %v1742
  %v1744 = vlaneseq
  %v1745 = vshrl.u32 %v1744, 7
  %v1746 = vsub.s32 %v1743, %v1745
  %v1747 = vrot.slane %v1733, %v1746
  %v1748 = vcombine.high %v1740, %v1740
  %v1749 = vcombine.high %v1747, %v1747
  %v1751 = vunpack.c.l.s4 1966171168
  %v1752 = vunpack.c.0.s8 %v1751
  %v1753 = vlaneseq
  %v1754 = vshrl.u32 %v1753, 7
  %v1755 = vsub.s32 %v1752, %v1754
  %v1756 = vrot.slane %v1740, %v1755
  %v1758 = vunpack.c.l.s4 1966171168
  %v1759 = vunpack.c.0.s8 %v1758
  %v1760 = vlaneseq
  %v1761 = vshrl.u32 %v1760, 7
  %v1762 = vsub.s32 %v1759, %v1761
  %v1763 = vrot.slane %v1747, %v1762
  %v1765 = vunpack.c.l.s4 1966171168
  %v1766 = vunpack.c.0.s8 %v1765
  %v1767 = vlaneseq
  %v1768 = vshrl.u32 %v1767, 7
  %v1769 = vsub.s32 %v1766, %v1768
  %v1770 = vrot.slane %v1748, %v1769
  %v1772 = vunpack.c.l.s4 1966171168
  %v1773 = vunpack.c.0.s8 %v1772
  %v1774 = vlaneseq
  %v1775 = vshrl.u32 %v1774, 7
  %v1776 = vsub.s32 %v1773, %v1775
  %v1777 = vrot.slane %v1749, %v1776
  %v1778 = vcombine.high %v1756, %v1756
  %v1779 = vcombine.high %v1763, %v1763
  %v1780 = vcombine.high %v1770, %v1770
  %v1781 = vcombine.high %v1777, %v1777
  %v1782 = vcombine.high %v1716, %v1716
  %v1784 = vunpack.c.l.s4 1966171168
  %v1785 = vunpack.c.0.s8 %v1784
  %v1786 = vlaneseq
  %v1787 = vshrl.u32 %v1786, 7
  %v1788 = vsub.s32 %v1785, %v1787
  %v1789 = vrot.slane %v1716, %v1788
  %v1791 = vunpack.c.l.s4 1966171168
  %v1792 = vunpack.c.0.s8 %v1791
  %v1793 = vlaneseq
  %v1794 = vshrl.u32 %v1793, 7
  %v1795 = vsub.s32 %v1792, %v1794
  %v1796 = vrot.slane %v1782, %v1795
  %v1797 = vcombine.high %v1789, %v1789
  %v1798 = vcombine.high %v1796, %v1796
  %v1800 = vunpack.c.l.s4 1966171168
  %v1801 = vunpack.c.0.s8 %v1800
  %v1802 = vlaneseq
  %v1803 = vshrl.u32 %v1802, 7
  %v1804 = vsub.s32 %v1801, %v1803
  %v1805 = vrot.slane %v1789, %v1804
  %v1807 = vunpack.c.l.s4 1966171168
  %v1808 = vunpack.c.0.s8 %v1807
  %v1809 = vlaneseq
  %v1810 = vshrl.u32 %v1809, 7
  %v1811 = vsub.s32 %v1808, %v1810
  %v1812 = vrot.slane %v1796, %v1811
  %v1814 = vunpack.c.l.s4 1966171168
  %v1815 = vunpack.c.0.s8 %v1814
  %v1816 = vlaneseq
  %v1817 = vshrl.u32 %v1816, 7
  %v1818 = vsub.s32 %v1815, %v1817
  %v1819 = vrot.slane %v1797, %v1818
  %v1821 = vunpack.c.l.s4 1966171168
  %v1822 = vunpack.c.0.s8 %v1821
  %v1823 = vlaneseq
  %v1824 = vshrl.u32 %v1823, 7
  %v1825 = vsub.s32 %v1822, %v1824
  %v1826 = vrot.slane %v1798, %v1825
  %v1827 = vcombine.high %v1805, %v1805
  %v1828 = vcombine.high %v1812, %v1812
  %v1829 = vcombine.high %v1819, %v1819
  %v1830 = vcombine.high %v1826, %v1826
  %v1831 = vcombine.high %v1721, %v1721
  %v1833 = vunpack.c.l.s4 1966171168
  %v1834 = vunpack.c.0.s8 %v1833
  %v1835 = vlaneseq
  %v1836 = vshrl.u32 %v1835, 7
  %v1837 = vsub.s32 %v1834, %v1836
  %v1838 = vrot.slane %v1721, %v1837
  %v1840 = vunpack.c.l.s4 1966171168
  %v1841 = vunpack.c.0.s8 %v1840
  %v1842 = vlaneseq
  %v1843 = vshrl.u32 %v1842, 7
  %v1844 = vsub.s32 %v1841, %v1843
  %v1845 = vrot.slane %v1831, %v1844
  %v1846 = vcombine.high %v1838, %v1838
  %v1847 = vcombine.high %v1845, %v1845
  %v1849 = vunpack.c.l.s4 1966171168
  %v1850 = vunpack.c.0.s8 %v1849
  %v1851 = vlaneseq
  %v1852 = vshrl.u32 %v1851, 7
  %v1853 = vsub.s32 %v1850, %v1852
  %v1854 = vrot.slane %v1838, %v1853
  %v1856 = vunpack.c.l.s4 1966171168
  %v1857 = vunpack.c.0.s8 %v1856
  %v1858 = vlaneseq
  %v1859 = vshrl.u32 %v1858, 7
  %v1860 = vsub.s32 %v1857, %v1859
  %v1861 = vrot.slane %v1845, %v1860
  %v1863 = vunpack.c.l.s4 1966171168
  %v1864 = vunpack.c.0.s8 %v1863
  %v1865 = vlaneseq
  %v1866 = vshrl.u32 %v1865, 7
  %v1867 = vsub.s32 %v1864, %v1866
  %v1868 = vrot.slane %v1846, %v1867
  %v1870 = vunpack.c.l.s4 1966171168
  %v1871 = vunpack.c.0.s8 %v1870
  %v1872 = vlaneseq
  %v1873 = vshrl.u32 %v1872, 7
  %v1874 = vsub.s32 %v1871, %v1873
  %v1875 = vrot.slane %v1847, %v1874
  %v1876 = vcombine.high %v1854, %v1854
  %v1877 = vcombine.high %v1861, %v1861
  %v1878 = vcombine.high %v1868, %v1868
  %v1879 = vcombine.high %v1875, %v1875
  %v1880 = vcombine.high %v1726, %v1726
  %v1882 = vunpack.c.l.s4 1966171168
  %v1883 = vunpack.c.0.s8 %v1882
  %v1884 = vlaneseq
  %v1885 = vshrl.u32 %v1884, 7
  %v1886 = vsub.s32 %v1883, %v1885
  %v1887 = vrot.slane %v1726, %v1886
  %v1889 = vunpack.c.l.s4 1966171168
  %v1890 = vunpack.c.0.s8 %v1889
  %v1891 = vlaneseq
  %v1892 = vshrl.u32 %v1891, 7
  %v1893 = vsub.s32 %v1890, %v1892
  %v1894 = vrot.slane %v1880, %v1893
  %v1895 = vcombine.high %v1887, %v1887
  %v1896 = vcombine.high %v1894, %v1894
  %v1898 = vunpack.c.l.s4 1966171168
  %v1899 = vunpack.c.0.s8 %v1898
  %v1900 = vlaneseq
  %v1901 = vshrl.u32 %v1900, 7
  %v1902 = vsub.s32 %v1899, %v1901
  %v1903 = vrot.slane %v1887, %v1902
  %v1905 = vunpack.c.l.s4 1966171168
  %v1906 = vunpack.c.0.s8 %v1905
  %v1907 = vlaneseq
  %v1908 = vshrl.u32 %v1907, 7
  %v1909 = vsub.s32 %v1906, %v1908
  %v1910 = vrot.slane %v1894, %v1909
  %v1912 = vunpack.c.l.s4 1966171168
  %v1913 = vunpack.c.0.s8 %v1912
  %v1914 = vlaneseq
  %v1915 = vshrl.u32 %v1914, 7
  %v1916 = vsub.s32 %v1913, %v1915
  %v1917 = vrot.slane %v1895, %v1916
  %v1919 = vunpack.c.l.s4 1966171168
  %v1920 = vunpack.c.0.s8 %v1919
  %v1921 = vlaneseq
  %v1922 = vshrl.u32 %v1921, 7
  %v1923 = vsub.s32 %v1920, %v1922
  %v1924 = vrot.slane %v1896, %v1923
  %v1925 = vcombine.high %v1903, %v1903
  %v1926 = vcombine.high %v1910, %v1910
  %v1927 = vcombine.high %v1917, %v1917
  %v1928 = vcombine.high %v1924, %v1924
  %v1929 = vlaneseq
  %v1930 = vshrl.u32 %v1929, 7
  %v1931 = vsub.s32 0, %v1930
  %v1932 = vrot.slane %v1756, %v1931
  %v1933 = vlaneseq
  %v1934 = vshrl.u32 %v1933, 7
  %v1935 = vsub.s32 0, %v1934
  %v1936 = vrot.slane %v1770, %v1935
  %v1937 = vlaneseq
  %v1938 = vshrl.u32 %v1937, 7
  %v1939 = vsub.s32 0, %v1938
  %v1940 = vrot.slane %v1778, %v1939
  %v1941 = vlaneseq
  %v1942 = vshrl.u32 %v1941, 7
  %v1943 = vsub.s32 0, %v1942
  %v1944 = vrot.slane %v1780, %v1943
  %v1945 = vlaneseq
  %v1946 = vshrl.u32 %v1945, 7
  %v1947 = vsub.s32 0, %v1946
  %v1948 = vrot.slane %v1763, %v1947
  %v1949 = vlaneseq
  %v1950 = vshrl.u32 %v1949, 7
  %v1951 = vsub.s32 0, %v1950
  %v1952 = vrot.slane %v1777, %v1951
  %v1953 = vlaneseq
  %v1954 = vshrl.u32 %v1953, 7
  %v1955 = vsub.s32 0, %v1954
  %v1956 = vrot.slane %v1779, %v1955
  %v1957 = vlaneseq
  %v1958 = vshrl.u32 %v1957, 7
  %v1959 = vsub.s32 0, %v1958
  %v1960 = vrot.slane %v1781, %v1959
  %v1961 = vlaneseq
  %v1962 = vshrl.u32 %v1961, 7
  %v1963 = vsub.s32 0, %v1962
  %v1964 = vrot.slane %v1805, %v1963
  %v1965 = vlaneseq
  %v1966 = vshrl.u32 %v1965, 7
  %v1967 = vsub.s32 0, %v1966
  %v1968 = vrot.slane %v1819, %v1967
  %v1969 = vlaneseq
  %v1970 = vshrl.u32 %v1969, 7
  %v1971 = vsub.s32 0, %v1970
  %v1972 = vrot.slane %v1827, %v1971
  %v1973 = vlaneseq
  %v1974 = vshrl.u32 %v1973, 7
  %v1975 = vsub.s32 0, %v1974
  %v1976 = vrot.slane %v1829, %v1975
  %v1977 = vlaneseq
  %v1978 = vshrl.u32 %v1977, 7
  %v1979 = vsub.s32 0, %v1978
  %v1980 = vrot.slane %v1812, %v1979
  %v1981 = vlaneseq
  %v1982 = vshrl.u32 %v1981, 7
  %v1983 = vsub.s32 0, %v1982
  %v1984 = vrot.slane %v1826, %v1983
  %v1985 = vlaneseq
  %v1986 = vshrl.u32 %v1985, 7
  %v1987 = vsub.s32 0, %v1986
  %v1988 = vrot.slane %v1828, %v1987
  %v1989 = vlaneseq
  %v1990 = vshrl.u32 %v1989, 7
  %v1991 = vsub.s32 0, %v1990
  %v1992 = vrot.slane %v1830, %v1991
  %v1993 = vlaneseq
  %v1994 = vshrl.u32 %v1993, 7
  %v1995 = vsub.s32 0, %v1994
  %v1996 = vrot.slane %v1854, %v1995
  %v1997 = vlaneseq
  %v1998 = vshrl.u32 %v1997, 7
  %v1999 = vsub.s32 0, %v1998
  %v2000 = vrot.slane %v1868, %v1999
  %v2001 = vlaneseq
  %v2002 = vshrl.u32 %v2001, 7
  %v2003 = vsub.s32 0, %v2002
  %v2004 = vrot.slane %v1876, %v2003
  %v2005 = vlaneseq
  %v2006 = vshrl.u32 %v2005, 7
  %v2007 = vsub.s32 0, %v2006
  %v2008 = vrot.slane %v1878, %v2007
  %v2009 = vlaneseq
  %v2010 = vshrl.u32 %v2009, 7
  %v2011 = vsub.s32 0, %v2010
  %v2012 = vrot.slane %v1861, %v2011
  %v2013 = vlaneseq
  %v2014 = vshrl.u32 %v2013, 7
  %v2015 = vsub.s32 0, %v2014
  %v2016 = vrot.slane %v1875, %v2015
  %v2017 = vlaneseq
  %v2018 = vshrl.u32 %v2017, 7
  %v2019 = vsub.s32 0, %v2018
  %v2020 = vrot.slane %v1877, %v2019
  %v2021 = vlaneseq
  %v2022 = vshrl.u32 %v2021, 7
  %v2023 = vsub.s32 0, %v2022
  %v2024 = vrot.slane %v1879, %v2023
  %v2025 = vlaneseq
  %v2026 = vshrl.u32 %v2025, 7
  %v2027 = vsub.s32 0, %v2026
  %v2028 = vrot.slane %v1903, %v2027
  %v2029 = vlaneseq
  %v2030 = vshrl.u32 %v2029, 7
  %v2031 = vsub.s32 0, %v2030
  %v2032 = vrot.slane %v1917, %v2031
  %v2033 = vlaneseq
  %v2034 = vshrl.u32 %v2033, 7
  %v2035 = vsub.s32 0, %v2034
  %v2036 = vrot.slane %v1925, %v2035
  %v2037 = vlaneseq
  %v2038 = vshrl.u32 %v2037, 7
  %v2039 = vsub.s32 0, %v2038
  %v2040 = vrot.slane %v1927, %v2039
  %v2041 = vlaneseq
  %v2042 = vshrl.u32 %v2041, 7
  %v2043 = vsub.s32 0, %v2042
  %v2044 = vrot.slane %v1910, %v2043
  %v2045 = vlaneseq
  %v2046 = vshrl.u32 %v2045, 7
  %v2047 = vsub.s32 0, %v2046
  %v2048 = vrot.slane %v1924, %v2047
  %v2049 = vlaneseq
  %v2050 = vshrl.u32 %v2049, 7
  %v2051 = vsub.s32 0, %v2050
  %v2052 = vrot.slane %v1926, %v2051
  %v2053 = vlaneseq
  %v2054 = vshrl.u32 %v2053, 7
  %v2055 = vsub.s32 0, %v2054
  %v2056 = vrot.slane %v1928, %v2055
  %v2089 = vadd.f32 %v1473, %v1932
  %v2090 = vadd.f32 %v1478, %v1936
  %v2091 = vadd.f32 %v1483, %v1940
  %v2092 = vadd.f32 %v1488, %v1944
  %v2093 = vadd.f32 %v1493, %v1948
  %v2094 = vadd.f32 %v1498, %v1952
  %v2095 = vadd.f32 %v1503, %v1956
  %v2096 = vadd.f32 %v1508, %v1960
  %v2097 = vadd.f32 %v1513, %v1964
  %v2098 = vadd.f32 %v1518, %v1968
  %v2099 = vadd.f32 %v1523, %v1972
  %v2100 = vadd.f32 %v1528, %v1976
  %v2101 = vadd.f32 %v1533, %v1980
  %v2102 = vadd.f32 %v1538, %v1984
  %v2103 = vadd.f32 %v1543, %v1988
  %v2104 = vadd.f32 %v1548, %v1992
  %v2105 = vadd.f32 %v1553, %v1996
  %v2106 = vadd.f32 %v1558, %v2000
  %v2107 = vadd.f32 %v1563, %v2004
  %v2108 = vadd.f32 %v1568, %v2008
  %v2109 = vadd.f32 %v1573, %v2012
  %v2110 = vadd.f32 %v1578, %v2016
  %v2111 = vadd.f32 %v1583, %v2020
  %v2112 = vadd.f32 %v1588, %v2024
  %v2113 = vadd.f32 %v1593, %v2028
  %v2114 = vadd.f32 %v1598, %v2032
  %v2115 = vadd.f32 %v1603, %v2036
  %v2116 = vadd.f32 %v1608, %v2040
  %v2117 = vadd.f32 %v1613, %v2044
  %v2118 = vadd.f32 %v1618, %v2048
  %v2119 = vadd.f32 %v1623, %v2052
  %v2120 = vadd.f32 %v1628, %v2056
  %v2121 = vld [vmem:[%s9] sm:$0xff]
  %2122 = vmatprep.subr.mxu0 0.0
  %2123 = vmatpush1.msra.mxu0 %v2121
  %2124 = vmatprep.subr.mxu0 0.0
  %2125 = vmatpush1.msra.mxu0 0.0
  %2126 = vmatprep.subr.mxu0 0.0
  %2127 = vmatpush1.msra.mxu0 0.0
  %2128 = vmatprep.subr.mxu0 0.0
  %2129 = vmatpush1.msra.mxu0 0.0
  %2130 = vmatprep.subr.mxu0 0.0
  %2131 = vmatpush1.msra.mxu0 0.0
  %2132 = vmatprep.subr.mxu0 0.0
  %2133 = vmatpush1.msra.mxu0 0.0
  %2134 = vmatprep.subr.mxu0 0.0
  %2135 = vmatpush1.msra.mxu0 0.0
  %2136 = vmatprep.subr.mxu0 0.0
  %2137 = vmatpush1.msra.mxu0 0.0
  %2138 = vmatprep.subr.mxu0 0.0
  %2139 = vmatpush1.msra.mxu0 0.0
  %2140 = vmatprep.subr.mxu0 0.0
  %2141 = vmatpush1.msra.mxu0 0.0
  %2142 = vmatprep.subr.mxu0 0.0
  %2143 = vmatpush1.msra.mxu0 0.0
  %2144 = vmatprep.subr.mxu0 0.0
  %2145 = vmatpush1.msra.mxu0 0.0
  %2146 = vmatprep.subr.mxu0 0.0
  %2147 = vmatpush1.msra.mxu0 0.0
  %2148 = vmatprep.subr.mxu0 0.0
  %2149 = vmatpush1.msra.mxu0 0.0
  %2150 = vmatprep.subr.mxu0 0.0
  %2151 = vmatpush1.msra.mxu0 0.0
  %2152 = vmatprep.subr.mxu0 0.0
  %2153 = vmatpush1.msra.mxu0 0.0
  %2154 = vmatprep.subr.mxu0 0.0
  %2155 = vmatpush1.msra.mxu0 0.0
  %2156 = vmatprep.subr.mxu0 0.0
  %2157 = vmatpush1.msra.mxu0 0.0
  %2158 = vmatprep.subr.mxu0 0.0
  %2159 = vmatpush1.msra.mxu0 0.0
  %2160 = vmatprep.subr.mxu0 0.0
  %2161 = vmatpush1.msra.mxu0 0.0
  %2162 = vmatprep.subr.mxu0 0.0
  %2163 = vmatpush1.msra.mxu0 0.0
  %2164 = vmatprep.subr.mxu0 0.0
  %2165 = vmatpush1.msra.mxu0 0.0
  %2166 = vmatprep.subr.mxu0 0.0
  %2167 = vmatpush1.msra.mxu0 0.0
  %2168 = vmatprep.subr.mxu0 0.0
  %2169 = vmatpush1.msra.mxu0 0.0
  %2170 = vmatprep.subr.mxu0 0.0
  %2171 = vmatpush1.msra.mxu0 0.0
  %2172 = vmatprep.subr.mxu0 0.0
  %2173 = vmatpush1.msra.mxu0 0.0
  %2174 = vmatprep.subr.mxu0 0.0
  %2175 = vmatpush1.msra.mxu0 0.0
  %2176 = vmatprep.subr.mxu0 0.0
  %2177 = vmatpush1.msra.mxu0 0.0
  %2178 = vmatprep.subr.mxu0 0.0
  %2179 = vmatpush1.msra.mxu0 0.0
  %2180 = vmatprep.subr.mxu0 0.0
  %2181 = vmatpush1.msra.mxu0 0.0
  %2182 = vmatprep.subr.mxu0 0.0
  %2183 = vmatpush1.msra.mxu0 0.0
  %2184 = vmatprep.subr.mxu0 0.0
  %2185 = vmatpush1.msra.mxu0 0.0
  %2186 = vmatprep.mubr.f32.mxu0 0.0
  %2187 = vmatmul.mubr.f32.gmra.mrb[0].mxu0 %v1311
  %v2188 = vpop.f32.mrb[0].mxu0
  %v2189 = vadd.f32 0.0, %v2188
  %v2190 = vpop.f32.mrb[0].mxu0
  %2191 = vmatprep.mubr.f32.mxu0 0.0
  %2192 = vmatmul.mubr.f32.gmra.mrb[0].mxu0 %v1314
  %v2193 = vpop.f32.mrb[0].mxu0
  %v2194 = vadd.f32 0.0, %v2193
  %v2195 = vpop.f32.mrb[0].mxu0
  %2196 = vmatprep.mubr.f32.mxu0 0.0
  %2197 = vmatmul.mubr.f32.gmra.mrb[0].mxu0 %v1317
  %v2198 = vpop.f32.mrb[0].mxu0
  %v2199 = vadd.f32 0.0, %v2198
  %v2200 = vpop.f32.mrb[0].mxu0
  %2201 = vmatprep.mubr.f32.mxu0 0.0
  %2202 = vmatmul.mubr.f32.gmra.mrb[0].mxu0 %v1320
  %v2203 = vpop.f32.mrb[0].mxu0
  %v2204 = vadd.f32 0.0, %v2203
  %v2205 = vpop.f32.mrb[0].mxu0
  %2206 = vmatprep.mubr.f32.mxu0 0.0
  %2207 = vmatmul.mubr.f32.gmra.mrb[0].mxu0 %v1323
  %v2208 = vpop.f32.mrb[0].mxu0
  %v2209 = vadd.f32 0.0, %v2208
  %v2210 = vpop.f32.mrb[0].mxu0
  %2211 = vmatprep.mubr.f32.mxu0 0.0
  %2212 = vmatmul.mubr.f32.gmra.mrb[0].mxu0 %v1326
  %v2213 = vpop.f32.mrb[0].mxu0
  %v2214 = vadd.f32 0.0, %v2213
  %v2215 = vpop.f32.mrb[0].mxu0
  %2216 = vmatprep.mubr.f32.mxu0 0.0
  %2217 = vmatmul.mubr.f32.gmra.mrb[0].mxu0 %v1329
  %v2218 = vpop.f32.mrb[0].mxu0
  %v2219 = vadd.f32 0.0, %v2218
  %v2220 = vpop.f32.mrb[0].mxu0
  %2221 = vmatprep.mubr.f32.mxu0 0.0
  %2222 = vmatmul.mubr.f32.gmra.mrb[0].mxu0 %v1332
  %v2223 = vpop.f32.mrb[0].mxu0
  %v2224 = vadd.f32 0.0, %v2223
  %v2225 = vpop.f32.mrb[0].mxu0
  %2226 = vmatprep.mubr.f32.mxu0 0.0
  %2227 = vmatmul.mubr.f32.gmra.mrb[0].mxu0 %v1335
  %v2228 = vpop.f32.mrb[0].mxu0
  %v2229 = vadd.f32 0.0, %v2228
  %v2230 = vpop.f32.mrb[0].mxu0
  %2231 = vmatprep.mubr.f32.mxu0 0.0
  %2232 = vmatmul.mubr.f32.gmra.mrb[0].mxu0 %v1338
  %v2233 = vpop.f32.mrb[0].mxu0
  %v2234 = vadd.f32 0.0, %v2233
  %v2235 = vpop.f32.mrb[0].mxu0
  %2236 = vmatprep.mubr.f32.mxu0 0.0
  %2237 = vmatmul.mubr.f32.gmra.mrb[0].mxu0 %v1341
  %v2238 = vpop.f32.mrb[0].mxu0
  %v2239 = vadd.f32 0.0, %v2238
  %v2240 = vpop.f32.mrb[0].mxu0
  %2241 = vmatprep.mubr.f32.mxu0 0.0
  %2242 = vmatmul.mubr.f32.gmra.mrb[0].mxu0 %v1344
  %v2243 = vpop.f32.mrb[0].mxu0
  %v2244 = vadd.f32 0.0, %v2243
  %v2245 = vpop.f32.mrb[0].mxu0
  %2246 = vmatprep.mubr.f32.mxu0 0.0
  %2247 = vmatmul.mubr.f32.gmra.mrb[0].mxu0 %v1347
  %v2248 = vpop.f32.mrb[0].mxu0
  %v2249 = vadd.f32 0.0, %v2248
  %v2250 = vpop.f32.mrb[0].mxu0
  %2251 = vmatprep.mubr.f32.mxu0 0.0
  %2252 = vmatmul.mubr.f32.gmra.mrb[0].mxu0 %v1350
  %v2253 = vpop.f32.mrb[0].mxu0
  %v2254 = vadd.f32 0.0, %v2253
  %v2255 = vpop.f32.mrb[0].mxu0
  %2256 = vmatprep.mubr.f32.mxu0 0.0
  %2257 = vmatmul.mubr.f32.gmra.mrb[0].mxu0 %v1353
  %v2258 = vpop.f32.mrb[0].mxu0
  %v2259 = vadd.f32 0.0, %v2258
  %v2260 = vpop.f32.mrb[0].mxu0
  %2261 = vmatprep.mubr.f32.mxu0 0.0
  %2262 = vmatmul.mubr.f32.gmra.mrb[0].mxu0 %v1356
  %v2263 = vpop.f32.mrb[0].mxu0
  %v2264 = vadd.f32 0.0, %v2263
  %v2265 = vpop.f32.mrb[0].mxu0
  %2266 = vmatprep.mubr.f32.mxu0 0.0
  %2267 = vmatmul.mubr.f32.gmra.mrb[0].mxu0 %v1359
  %v2268 = vpop.f32.mrb[0].mxu0
  %v2269 = vadd.f32 0.0, %v2268
  %v2270 = vpop.f32.mrb[0].mxu0
  %2271 = vmatprep.mubr.f32.mxu0 0.0
  %2272 = vmatmul.mubr.f32.gmra.mrb[0].mxu0 %v1362
  %v2273 = vpop.f32.mrb[0].mxu0
  %v2274 = vadd.f32 0.0, %v2273
  %v2275 = vpop.f32.mrb[0].mxu0
  %2276 = vmatprep.mubr.f32.mxu0 0.0
  %2277 = vmatmul.mubr.f32.gmra.mrb[0].mxu0 %v1365
  %v2278 = vpop.f32.mrb[0].mxu0
  %v2279 = vadd.f32 0.0, %v2278
  %v2280 = vpop.f32.mrb[0].mxu0
  %2281 = vmatprep.mubr.f32.mxu0 0.0
  %2282 = vmatmul.mubr.f32.gmra.mrb[0].mxu0 %v1368
  %v2283 = vpop.f32.mrb[0].mxu0
  %v2284 = vadd.f32 0.0, %v2283
  %v2285 = vpop.f32.mrb[0].mxu0
  %2286 = vmatprep.mubr.f32.mxu0 0.0
  %2287 = vmatmul.mubr.f32.gmra.mrb[0].mxu0 %v1371
  %v2288 = vpop.f32.mrb[0].mxu0
  %v2289 = vadd.f32 0.0, %v2288
  %v2290 = vpop.f32.mrb[0].mxu0
  %2291 = vmatprep.mubr.f32.mxu0 0.0
  %2292 = vmatmul.mubr.f32.gmra.mrb[0].mxu0 %v1374
  %v2293 = vpop.f32.mrb[0].mxu0
  %v2294 = vadd.f32 0.0, %v2293
  %v2295 = vpop.f32.mrb[0].mxu0
  %2296 = vmatprep.mubr.f32.mxu0 0.0
  %2297 = vmatmul.mubr.f32.gmra.mrb[0].mxu0 %v1377
  %v2298 = vpop.f32.mrb[0].mxu0
  %v2299 = vadd.f32 0.0, %v2298
  %v2300 = vpop.f32.mrb[0].mxu0
  %2301 = vmatprep.mubr.f32.mxu0 0.0
  %2302 = vmatmul.mubr.f32.gmra.mrb[0].mxu0 %v1380
  %v2303 = vpop.f32.mrb[0].mxu0
  %v2304 = vadd.f32 0.0, %v2303
  %v2305 = vpop.f32.mrb[0].mxu0
  %2306 = vmatprep.mubr.f32.mxu0 0.0
  %2307 = vmatmul.mubr.f32.gmra.mrb[0].mxu0 %v1383
  %v2308 = vpop.f32.mrb[0].mxu0
  %v2309 = vadd.f32 0.0, %v2308
  %v2310 = vpop.f32.mrb[0].mxu0
  %2311 = vmatprep.mubr.f32.mxu0 0.0
  %2312 = vmatmul.mubr.f32.gmra.mrb[0].mxu0 %v1386
  %v2313 = vpop.f32.mrb[0].mxu0
  %v2314 = vadd.f32 0.0, %v2313
  %v2315 = vpop.f32.mrb[0].mxu0
  %2316 = vmatprep.mubr.f32.mxu0 0.0
  %2317 = vmatmul.mubr.f32.gmra.mrb[0].mxu0 %v1389
  %v2318 = vpop.f32.mrb[0].mxu0
  %v2319 = vadd.f32 0.0, %v2318
  %v2320 = vpop.f32.mrb[0].mxu0
  %2321 = vmatprep.mubr.f32.mxu0 0.0
  %2322 = vmatmul.mubr.f32.gmra.mrb[0].mxu0 %v1392
  %v2323 = vpop.f32.mrb[0].mxu0
  %v2324 = vadd.f32 0.0, %v2323
  %v2325 = vpop.f32.mrb[0].mxu0
  %2326 = vmatprep.mubr.f32.mxu0 0.0
  %2327 = vmatmul.mubr.f32.gmra.mrb[0].mxu0 %v1395
  %v2328 = vpop.f32.mrb[0].mxu0
  %v2329 = vadd.f32 0.0, %v2328
  %v2330 = vpop.f32.mrb[0].mxu0
  %2331 = vmatprep.mubr.f32.mxu0 0.0
  %2332 = vmatmul.mubr.f32.gmra.mrb[0].mxu0 %v1398
  %v2333 = vpop.f32.mrb[0].mxu0
  %v2334 = vadd.f32 0.0, %v2333
  %v2335 = vpop.f32.mrb[0].mxu0
  %2336 = vmatprep.mubr.f32.mxu0 0.0
  %2337 = vmatmul.mubr.f32.gmra.mrb[0].mxu0 %v1401
  %v2338 = vpop.f32.mrb[0].mxu0
  %v2339 = vadd.f32 0.0, %v2338
  %v2340 = vpop.f32.mrb[0].mxu0
  %2341 = vmatprep.mubr.f32.mxu0 0.0
  %2342 = vmatmul.mubr.f32.gmra.mrb[0].mxu0 %v1404
  %v2343 = vpop.f32.mrb[0].mxu0
  %v2344 = vadd.f32 0.0, %v2343
  %v2345 = vpop.f32.mrb[0].mxu0
  %2346 = vdwg.mxu0
  %v2347 = vld [vmem:[%s11] sm:$0xff]
  %2348 = vmatprep.subr.mxu0 0.0
  %2349 = vmatpush1.msra.mxu0 %v2347
  %2350 = vmatprep.subr.mxu0 0.0
  %2351 = vmatpush1.msra.mxu0 0.0
  %2352 = vmatprep.subr.mxu0 0.0
  %2353 = vmatpush1.msra.mxu0 0.0
  %2354 = vmatprep.subr.mxu0 0.0
  %2355 = vmatpush1.msra.mxu0 0.0
  %2356 = vmatprep.subr.mxu0 0.0
  %2357 = vmatpush1.msra.mxu0 0.0
  %2358 = vmatprep.subr.mxu0 0.0
  %2359 = vmatpush1.msra.mxu0 0.0
  %2360 = vmatprep.subr.mxu0 0.0
  %2361 = vmatpush1.msra.mxu0 0.0
  %2362 = vmatprep.subr.mxu0 0.0
  %2363 = vmatpush1.msra.mxu0 0.0
  %2364 = vmatprep.subr.mxu0 0.0
  %2365 = vmatpush1.msra.mxu0 0.0
  %2366 = vmatprep.subr.mxu0 0.0
  %2367 = vmatpush1.msra.mxu0 0.0
  %2368 = vmatprep.subr.mxu0 0.0
  %2369 = vmatpush1.msra.mxu0 0.0
  %2370 = vmatprep.subr.mxu0 0.0
  %2371 = vmatpush1.msra.mxu0 0.0
  %2372 = vmatprep.subr.mxu0 0.0
  %2373 = vmatpush1.msra.mxu0 0.0
  %2374 = vmatprep.subr.mxu0 0.0
  %2375 = vmatpush1.msra.mxu0 0.0
  %2376 = vmatprep.subr.mxu0 0.0
  %2377 = vmatpush1.msra.mxu0 0.0
  %2378 = vmatprep.subr.mxu0 0.0
  %2379 = vmatpush1.msra.mxu0 0.0
  %2380 = vmatprep.subr.mxu0 0.0
  %2381 = vmatpush1.msra.mxu0 0.0
  %2382 = vmatprep.subr.mxu0 0.0
  %2383 = vmatpush1.msra.mxu0 0.0
  %2384 = vmatprep.subr.mxu0 0.0
  %2385 = vmatpush1.msra.mxu0 0.0
  %2386 = vmatprep.subr.mxu0 0.0
  %2387 = vmatpush1.msra.mxu0 0.0
  %2388 = vmatprep.subr.mxu0 0.0
  %2389 = vmatpush1.msra.mxu0 0.0
  %2390 = vmatprep.subr.mxu0 0.0
  %2391 = vmatpush1.msra.mxu0 0.0
  %2392 = vmatprep.subr.mxu0 0.0
  %2393 = vmatpush1.msra.mxu0 0.0
  %2394 = vmatprep.subr.mxu0 0.0
  %2395 = vmatpush1.msra.mxu0 0.0
  %2396 = vmatprep.subr.mxu0 0.0
  %2397 = vmatpush1.msra.mxu0 0.0
  %2398 = vmatprep.subr.mxu0 0.0
  %2399 = vmatpush1.msra.mxu0 0.0
  %2400 = vmatprep.subr.mxu0 0.0
  %2401 = vmatpush1.msra.mxu0 0.0
  %2402 = vmatprep.subr.mxu0 0.0
  %2403 = vmatpush1.msra.mxu0 0.0
  %2404 = vmatprep.subr.mxu0 0.0
  %2405 = vmatpush1.msra.mxu0 0.0
  %2406 = vmatprep.subr.mxu0 0.0
  %2407 = vmatpush1.msra.mxu0 0.0
  %2408 = vmatprep.subr.mxu0 0.0
  %2409 = vmatpush1.msra.mxu0 0.0
  %2410 = vmatprep.subr.mxu0 0.0
  %2411 = vmatpush1.msra.mxu0 0.0
  %2412 = vmatprep.mubr.f32.mxu0 0.0
  %2413 = vmatmul.mubr.f32.gmra.mrb[0].mxu0 %v1633
  %v2414 = vpop.f32.mrb[0].mxu0
  %v2415 = vadd.f32 0.0, %v2414
  %v2416 = vpop.f32.mrb[0].mxu0
  %2417 = vmatprep.mubr.f32.mxu0 0.0
  %2418 = vmatmul.mubr.f32.gmra.mrb[0].mxu0 %v1636
  %v2419 = vpop.f32.mrb[0].mxu0
  %v2420 = vadd.f32 0.0, %v2419
  %v2421 = vpop.f32.mrb[0].mxu0
  %2422 = vmatprep.mubr.f32.mxu0 0.0
  %2423 = vmatmul.mubr.f32.gmra.mrb[0].mxu0 %v1639
  %v2424 = vpop.f32.mrb[0].mxu0
  %v2425 = vadd.f32 0.0, %v2424
  %v2426 = vpop.f32.mrb[0].mxu0
  %2427 = vmatprep.mubr.f32.mxu0 0.0
  %2428 = vmatmul.mubr.f32.gmra.mrb[0].mxu0 %v1642
  %v2429 = vpop.f32.mrb[0].mxu0
  %v2430 = vadd.f32 0.0, %v2429
  %v2431 = vpop.f32.mrb[0].mxu0
  %2432 = vdwg.mxu0
  %v2437 = vcombine.high %v2415, %v2415
  %v2439 = vunpack.c.l.s4 1966171168
  %v2440 = vunpack.c.0.s8 %v2439
  %v2441 = vlaneseq
  %v2442 = vshrl.u32 %v2441, 7
  %v2443 = vsub.s32 %v2440, %v2442
  %v2444 = vrot.slane %v2415, %v2443
  %v2446 = vunpack.c.l.s4 1966171168
  %v2447 = vunpack.c.0.s8 %v2446
  %v2448 = vlaneseq
  %v2449 = vshrl.u32 %v2448, 7
  %v2450 = vsub.s32 %v2447, %v2449
  %v2451 = vrot.slane %v2437, %v2450
  %v2452 = vcombine.high %v2444, %v2444
  %v2453 = vcombine.high %v2451, %v2451
  %v2455 = vunpack.c.l.s4 1966171168
  %v2456 = vunpack.c.0.s8 %v2455
  %v2457 = vlaneseq
  %v2458 = vshrl.u32 %v2457, 7
  %v2459 = vsub.s32 %v2456, %v2458
  %v2460 = vrot.slane %v2444, %v2459
  %v2462 = vunpack.c.l.s4 1966171168
  %v2463 = vunpack.c.0.s8 %v2462
  %v2464 = vlaneseq
  %v2465 = vshrl.u32 %v2464, 7
  %v2466 = vsub.s32 %v2463, %v2465
  %v2467 = vrot.slane %v2451, %v2466
  %v2469 = vunpack.c.l.s4 1966171168
  %v2470 = vunpack.c.0.s8 %v2469
  %v2471 = vlaneseq
  %v2472 = vshrl.u32 %v2471, 7
  %v2473 = vsub.s32 %v2470, %v2472
  %v2474 = vrot.slane %v2452, %v2473
  %v2476 = vunpack.c.l.s4 1966171168
  %v2477 = vunpack.c.0.s8 %v2476
  %v2478 = vlaneseq
  %v2479 = vshrl.u32 %v2478, 7
  %v2480 = vsub.s32 %v2477, %v2479
  %v2481 = vrot.slane %v2453, %v2480
  %v2482 = vcombine.high %v2460, %v2460
  %v2483 = vcombine.high %v2467, %v2467
  %v2484 = vcombine.high %v2474, %v2474
  %v2485 = vcombine.high %v2481, %v2481
  %v2486 = vcombine.high %v2420, %v2420
  %v2488 = vunpack.c.l.s4 1966171168
  %v2489 = vunpack.c.0.s8 %v2488
  %v2490 = vlaneseq
  %v2491 = vshrl.u32 %v2490, 7
  %v2492 = vsub.s32 %v2489, %v2491
  %v2493 = vrot.slane %v2420, %v2492
  %v2495 = vunpack.c.l.s4 1966171168
  %v2496 = vunpack.c.0.s8 %v2495
  %v2497 = vlaneseq
  %v2498 = vshrl.u32 %v2497, 7
  %v2499 = vsub.s32 %v2496, %v2498
  %v2500 = vrot.slane %v2486, %v2499
  %v2501 = vcombine.high %v2493, %v2493
  %v2502 = vcombine.high %v2500, %v2500
  %v2504 = vunpack.c.l.s4 1966171168
  %v2505 = vunpack.c.0.s8 %v2504
  %v2506 = vlaneseq
  %v2507 = vshrl.u32 %v2506, 7
  %v2508 = vsub.s32 %v2505, %v2507
  %v2509 = vrot.slane %v2493, %v2508
  %v2511 = vunpack.c.l.s4 1966171168
  %v2512 = vunpack.c.0.s8 %v2511
  %v2513 = vlaneseq
  %v2514 = vshrl.u32 %v2513, 7
  %v2515 = vsub.s32 %v2512, %v2514
  %v2516 = vrot.slane %v2500, %v2515
  %v2518 = vunpack.c.l.s4 1966171168
  %v2519 = vunpack.c.0.s8 %v2518
  %v2520 = vlaneseq
  %v2521 = vshrl.u32 %v2520, 7
  %v2522 = vsub.s32 %v2519, %v2521
  %v2523 = vrot.slane %v2501, %v2522
  %v2525 = vunpack.c.l.s4 1966171168
  %v2526 = vunpack.c.0.s8 %v2525
  %v2527 = vlaneseq
  %v2528 = vshrl.u32 %v2527, 7
  %v2529 = vsub.s32 %v2526, %v2528
  %v2530 = vrot.slane %v2502, %v2529
  %v2531 = vcombine.high %v2509, %v2509
  %v2532 = vcombine.high %v2516, %v2516
  %v2533 = vcombine.high %v2523, %v2523
  %v2534 = vcombine.high %v2530, %v2530
  %v2535 = vcombine.high %v2425, %v2425
  %v2537 = vunpack.c.l.s4 1966171168
  %v2538 = vunpack.c.0.s8 %v2537
  %v2539 = vlaneseq
  %v2540 = vshrl.u32 %v2539, 7
  %v2541 = vsub.s32 %v2538, %v2540
  %v2542 = vrot.slane %v2425, %v2541
  %v2544 = vunpack.c.l.s4 1966171168
  %v2545 = vunpack.c.0.s8 %v2544
  %v2546 = vlaneseq
  %v2547 = vshrl.u32 %v2546, 7
  %v2548 = vsub.s32 %v2545, %v2547
  %v2549 = vrot.slane %v2535, %v2548
  %v2550 = vcombine.high %v2542, %v2542
  %v2551 = vcombine.high %v2549, %v2549
  %v2553 = vunpack.c.l.s4 1966171168
  %v2554 = vunpack.c.0.s8 %v2553
  %v2555 = vlaneseq
  %v2556 = vshrl.u32 %v2555, 7
  %v2557 = vsub.s32 %v2554, %v2556
  %v2558 = vrot.slane %v2542, %v2557
  %v2560 = vunpack.c.l.s4 1966171168
  %v2561 = vunpack.c.0.s8 %v2560
  %v2562 = vlaneseq
  %v2563 = vshrl.u32 %v2562, 7
  %v2564 = vsub.s32 %v2561, %v2563
  %v2565 = vrot.slane %v2549, %v2564
  %v2567 = vunpack.c.l.s4 1966171168
  %v2568 = vunpack.c.0.s8 %v2567
  %v2569 = vlaneseq
  %v2570 = vshrl.u32 %v2569, 7
  %v2571 = vsub.s32 %v2568, %v2570
  %v2572 = vrot.slane %v2550, %v2571
  %v2574 = vunpack.c.l.s4 1966171168
  %v2575 = vunpack.c.0.s8 %v2574
  %v2576 = vlaneseq
  %v2577 = vshrl.u32 %v2576, 7
  %v2578 = vsub.s32 %v2575, %v2577
  %v2579 = vrot.slane %v2551, %v2578
  %v2580 = vcombine.high %v2558, %v2558
  %v2581 = vcombine.high %v2565, %v2565
  %v2582 = vcombine.high %v2572, %v2572
  %v2583 = vcombine.high %v2579, %v2579
  %v2584 = vcombine.high %v2430, %v2430
  %v2586 = vunpack.c.l.s4 1966171168
  %v2587 = vunpack.c.0.s8 %v2586
  %v2588 = vlaneseq
  %v2589 = vshrl.u32 %v2588, 7
  %v2590 = vsub.s32 %v2587, %v2589
  %v2591 = vrot.slane %v2430, %v2590
  %v2593 = vunpack.c.l.s4 1966171168
  %v2594 = vunpack.c.0.s8 %v2593
  %v2595 = vlaneseq
  %v2596 = vshrl.u32 %v2595, 7
  %v2597 = vsub.s32 %v2594, %v2596
  %v2598 = vrot.slane %v2584, %v2597
  %v2599 = vcombine.high %v2591, %v2591
  %v2600 = vcombine.high %v2598, %v2598
  %v2602 = vunpack.c.l.s4 1966171168
  %v2603 = vunpack.c.0.s8 %v2602
  %v2604 = vlaneseq
  %v2605 = vshrl.u32 %v2604, 7
  %v2606 = vsub.s32 %v2603, %v2605
  %v2607 = vrot.slane %v2591, %v2606
  %v2609 = vunpack.c.l.s4 1966171168
  %v2610 = vunpack.c.0.s8 %v2609
  %v2611 = vlaneseq
  %v2612 = vshrl.u32 %v2611, 7
  %v2613 = vsub.s32 %v2610, %v2612
  %v2614 = vrot.slane %v2598, %v2613
  %v2616 = vunpack.c.l.s4 1966171168
  %v2617 = vunpack.c.0.s8 %v2616
  %v2618 = vlaneseq
  %v2619 = vshrl.u32 %v2618, 7
  %v2620 = vsub.s32 %v2617, %v2619
  %v2621 = vrot.slane %v2599, %v2620
  %v2623 = vunpack.c.l.s4 1966171168
  %v2624 = vunpack.c.0.s8 %v2623
  %v2625 = vlaneseq
  %v2626 = vshrl.u32 %v2625, 7
  %v2627 = vsub.s32 %v2624, %v2626
  %v2628 = vrot.slane %v2600, %v2627
  %v2629 = vcombine.high %v2607, %v2607
  %v2630 = vcombine.high %v2614, %v2614
  %v2631 = vcombine.high %v2621, %v2621
  %v2632 = vcombine.high %v2628, %v2628
  %v2633 = vlaneseq
  %v2634 = vshrl.u32 %v2633, 7
  %v2635 = vsub.s32 0, %v2634
  %v2636 = vrot.slane %v2460, %v2635
  %v2637 = vlaneseq
  %v2638 = vshrl.u32 %v2637, 7
  %v2639 = vsub.s32 0, %v2638
  %v2640 = vrot.slane %v2474, %v2639
  %v2641 = vlaneseq
  %v2642 = vshrl.u32 %v2641, 7
  %v2643 = vsub.s32 0, %v2642
  %v2644 = vrot.slane %v2482, %v2643
  %v2645 = vlaneseq
  %v2646 = vshrl.u32 %v2645, 7
  %v2647 = vsub.s32 0, %v2646
  %v2648 = vrot.slane %v2484, %v2647
  %v2649 = vlaneseq
  %v2650 = vshrl.u32 %v2649, 7
  %v2651 = vsub.s32 0, %v2650
  %v2652 = vrot.slane %v2467, %v2651
  %v2653 = vlaneseq
  %v2654 = vshrl.u32 %v2653, 7
  %v2655 = vsub.s32 0, %v2654
  %v2656 = vrot.slane %v2481, %v2655
  %v2657 = vlaneseq
  %v2658 = vshrl.u32 %v2657, 7
  %v2659 = vsub.s32 0, %v2658
  %v2660 = vrot.slane %v2483, %v2659
  %v2661 = vlaneseq
  %v2662 = vshrl.u32 %v2661, 7
  %v2663 = vsub.s32 0, %v2662
  %v2664 = vrot.slane %v2485, %v2663
  %v2665 = vlaneseq
  %v2666 = vshrl.u32 %v2665, 7
  %v2667 = vsub.s32 0, %v2666
  %v2668 = vrot.slane %v2509, %v2667
  %v2669 = vlaneseq
  %v2670 = vshrl.u32 %v2669, 7
  %v2671 = vsub.s32 0, %v2670
  %v2672 = vrot.slane %v2523, %v2671
  %v2673 = vlaneseq
  %v2674 = vshrl.u32 %v2673, 7
  %v2675 = vsub.s32 0, %v2674
  %v2676 = vrot.slane %v2531, %v2675
  %v2677 = vlaneseq
  %v2678 = vshrl.u32 %v2677, 7
  %v2679 = vsub.s32 0, %v2678
  %v2680 = vrot.slane %v2533, %v2679
  %v2681 = vlaneseq
  %v2682 = vshrl.u32 %v2681, 7
  %v2683 = vsub.s32 0, %v2682
  %v2684 = vrot.slane %v2516, %v2683
  %v2685 = vlaneseq
  %v2686 = vshrl.u32 %v2685, 7
  %v2687 = vsub.s32 0, %v2686
  %v2688 = vrot.slane %v2530, %v2687
  %v2689 = vlaneseq
  %v2690 = vshrl.u32 %v2689, 7
  %v2691 = vsub.s32 0, %v2690
  %v2692 = vrot.slane %v2532, %v2691
  %v2693 = vlaneseq
  %v2694 = vshrl.u32 %v2693, 7
  %v2695 = vsub.s32 0, %v2694
  %v2696 = vrot.slane %v2534, %v2695
  %v2697 = vlaneseq
  %v2698 = vshrl.u32 %v2697, 7
  %v2699 = vsub.s32 0, %v2698
  %v2700 = vrot.slane %v2558, %v2699
  %v2701 = vlaneseq
  %v2702 = vshrl.u32 %v2701, 7
  %v2703 = vsub.s32 0, %v2702
  %v2704 = vrot.slane %v2572, %v2703
  %v2705 = vlaneseq
  %v2706 = vshrl.u32 %v2705, 7
  %v2707 = vsub.s32 0, %v2706
  %v2708 = vrot.slane %v2580, %v2707
  %v2709 = vlaneseq
  %v2710 = vshrl.u32 %v2709, 7
  %v2711 = vsub.s32 0, %v2710
  %v2712 = vrot.slane %v2582, %v2711
  %v2713 = vlaneseq
  %v2714 = vshrl.u32 %v2713, 7
  %v2715 = vsub.s32 0, %v2714
  %v2716 = vrot.slane %v2565, %v2715
  %v2717 = vlaneseq
  %v2718 = vshrl.u32 %v2717, 7
  %v2719 = vsub.s32 0, %v2718
  %v2720 = vrot.slane %v2579, %v2719
  %v2721 = vlaneseq
  %v2722 = vshrl.u32 %v2721, 7
  %v2723 = vsub.s32 0, %v2722
  %v2724 = vrot.slane %v2581, %v2723
  %v2725 = vlaneseq
  %v2726 = vshrl.u32 %v2725, 7
  %v2727 = vsub.s32 0, %v2726
  %v2728 = vrot.slane %v2583, %v2727
  %v2729 = vlaneseq
  %v2730 = vshrl.u32 %v2729, 7
  %v2731 = vsub.s32 0, %v2730
  %v2732 = vrot.slane %v2607, %v2731
  %v2733 = vlaneseq
  %v2734 = vshrl.u32 %v2733, 7
  %v2735 = vsub.s32 0, %v2734
  %v2736 = vrot.slane %v2621, %v2735
  %v2737 = vlaneseq
  %v2738 = vshrl.u32 %v2737, 7
  %v2739 = vsub.s32 0, %v2738
  %v2740 = vrot.slane %v2629, %v2739
  %v2741 = vlaneseq
  %v2742 = vshrl.u32 %v2741, 7
  %v2743 = vsub.s32 0, %v2742
  %v2744 = vrot.slane %v2631, %v2743
  %v2745 = vlaneseq
  %v2746 = vshrl.u32 %v2745, 7
  %v2747 = vsub.s32 0, %v2746
  %v2748 = vrot.slane %v2614, %v2747
  %v2749 = vlaneseq
  %v2750 = vshrl.u32 %v2749, 7
  %v2751 = vsub.s32 0, %v2750
  %v2752 = vrot.slane %v2628, %v2751
  %v2753 = vlaneseq
  %v2754 = vshrl.u32 %v2753, 7
  %v2755 = vsub.s32 0, %v2754
  %v2756 = vrot.slane %v2630, %v2755
  %v2757 = vlaneseq
  %v2758 = vshrl.u32 %v2757, 7
  %v2759 = vsub.s32 0, %v2758
  %v2760 = vrot.slane %v2632, %v2759
  %v2793 = vadd.f32 %v2189, %v2636
  %v2794 = vadd.f32 %v2194, %v2640
  %v2795 = vadd.f32 %v2199, %v2644
  %v2796 = vadd.f32 %v2204, %v2648
  %v2797 = vadd.f32 %v2209, %v2652
  %v2798 = vadd.f32 %v2214, %v2656
  %v2799 = vadd.f32 %v2219, %v2660
  %v2800 = vadd.f32 %v2224, %v2664
  %v2801 = vadd.f32 %v2229, %v2668
  %v2802 = vadd.f32 %v2234, %v2672
  %v2803 = vadd.f32 %v2239, %v2676
  %v2804 = vadd.f32 %v2244, %v2680
  %v2805 = vadd.f32 %v2249, %v2684
  %v2806 = vadd.f32 %v2254, %v2688
  %v2807 = vadd.f32 %v2259, %v2692
  %v2808 = vadd.f32 %v2264, %v2696
  %v2809 = vadd.f32 %v2269, %v2700
  %v2810 = vadd.f32 %v2274, %v2704
  %v2811 = vadd.f32 %v2279, %v2708
  %v2812 = vadd.f32 %v2284, %v2712
  %v2813 = vadd.f32 %v2289, %v2716
  %v2814 = vadd.f32 %v2294, %v2720
  %v2815 = vadd.f32 %v2299, %v2724
  %v2816 = vadd.f32 %v2304, %v2728
  %v2817 = vadd.f32 %v2309, %v2732
  %v2818 = vadd.f32 %v2314, %v2736
  %v2819 = vadd.f32 %v2319, %v2740
  %v2820 = vadd.f32 %v2324, %v2744
  %v2821 = vadd.f32 %v2329, %v2748
  %v2822 = vadd.f32 %v2334, %v2752
  %v2823 = vadd.f32 %v2339, %v2756
  %v2824 = vadd.f32 %v2344, %v2760
  %v2825 = vsel %vm1309, %v2089, -inf
  %v2826 = vrot.slane %v2825, 4
  %v2827 = vmax.f32 %v2825, %v2826
  %v2828 = vrot.slane %v2827, 2
  %v2829 = vmax.f32 %v2827, %v2828
  %v2830 = vrot.slane %v2829, 1
  %v2831 = vmax.f32 %v2829, %v2830
  %v2832 = vsel %vm1309, %v2090, -inf
  %v2833 = vrot.slane %v2832, 4
  %v2834 = vmax.f32 %v2832, %v2833
  %v2835 = vrot.slane %v2834, 2
  %v2836 = vmax.f32 %v2834, %v2835
  %v2837 = vrot.slane %v2836, 1
  %v2838 = vmax.f32 %v2836, %v2837
  %v2839 = vsel %vm1309, %v2091, -inf
  %v2840 = vrot.slane %v2839, 4
  %v2841 = vmax.f32 %v2839, %v2840
  %v2842 = vrot.slane %v2841, 2
  %v2843 = vmax.f32 %v2841, %v2842
  %v2844 = vrot.slane %v2843, 1
  %v2845 = vmax.f32 %v2843, %v2844
  %v2846 = vsel %vm1309, %v2092, -inf
  %v2847 = vrot.slane %v2846, 4
  %v2848 = vmax.f32 %v2846, %v2847
  %v2849 = vrot.slane %v2848, 2
  %v2850 = vmax.f32 %v2848, %v2849
  %v2851 = vrot.slane %v2850, 1
  %v2852 = vmax.f32 %v2850, %v2851
  %v2853 = vsel %vm1309, %v2093, -inf
  %v2854 = vrot.slane %v2853, 4
  %v2855 = vmax.f32 %v2853, %v2854
  %v2856 = vrot.slane %v2855, 2
  %v2857 = vmax.f32 %v2855, %v2856
  %v2858 = vrot.slane %v2857, 1
  %v2859 = vmax.f32 %v2857, %v2858
  %v2860 = vsel %vm1309, %v2094, -inf
  %v2861 = vrot.slane %v2860, 4
  %v2862 = vmax.f32 %v2860, %v2861
  %v2863 = vrot.slane %v2862, 2
  %v2864 = vmax.f32 %v2862, %v2863
  %v2865 = vrot.slane %v2864, 1
  %v2866 = vmax.f32 %v2864, %v2865
  %v2867 = vsel %vm1309, %v2095, -inf
  %v2868 = vrot.slane %v2867, 4
  %v2869 = vmax.f32 %v2867, %v2868
  %v2870 = vrot.slane %v2869, 2
  %v2871 = vmax.f32 %v2869, %v2870
  %v2872 = vrot.slane %v2871, 1
  %v2873 = vmax.f32 %v2871, %v2872
  %v2874 = vsel %vm1309, %v2096, -inf
  %v2875 = vrot.slane %v2874, 4
  %v2876 = vmax.f32 %v2874, %v2875
  %v2877 = vrot.slane %v2876, 2
  %v2878 = vmax.f32 %v2876, %v2877
  %v2879 = vrot.slane %v2878, 1
  %v2880 = vmax.f32 %v2878, %v2879
  %v2881 = vsel %vm1309, %v2097, -inf
  %v2882 = vrot.slane %v2881, 4
  %v2883 = vmax.f32 %v2881, %v2882
  %v2884 = vrot.slane %v2883, 2
  %v2885 = vmax.f32 %v2883, %v2884
  %v2886 = vrot.slane %v2885, 1
  %v2887 = vmax.f32 %v2885, %v2886
  %v2888 = vsel %vm1309, %v2098, -inf
  %v2889 = vrot.slane %v2888, 4
  %v2890 = vmax.f32 %v2888, %v2889
  %v2891 = vrot.slane %v2890, 2
  %v2892 = vmax.f32 %v2890, %v2891
  %v2893 = vrot.slane %v2892, 1
  %v2894 = vmax.f32 %v2892, %v2893
  %v2895 = vsel %vm1309, %v2099, -inf
  %v2896 = vrot.slane %v2895, 4
  %v2897 = vmax.f32 %v2895, %v2896
  %v2898 = vrot.slane %v2897, 2
  %v2899 = vmax.f32 %v2897, %v2898
  %v2900 = vrot.slane %v2899, 1
  %v2901 = vmax.f32 %v2899, %v2900
  %v2902 = vsel %vm1309, %v2100, -inf
  %v2903 = vrot.slane %v2902, 4
  %v2904 = vmax.f32 %v2902, %v2903
  %v2905 = vrot.slane %v2904, 2
  %v2906 = vmax.f32 %v2904, %v2905
  %v2907 = vrot.slane %v2906, 1
  %v2908 = vmax.f32 %v2906, %v2907
  %v2909 = vsel %vm1309, %v2101, -inf
  %v2910 = vrot.slane %v2909, 4
  %v2911 = vmax.f32 %v2909, %v2910
  %v2912 = vrot.slane %v2911, 2
  %v2913 = vmax.f32 %v2911, %v2912
  %v2914 = vrot.slane %v2913, 1
  %v2915 = vmax.f32 %v2913, %v2914
  %v2916 = vsel %vm1309, %v2102, -inf
  %v2917 = vrot.slane %v2916, 4
  %v2918 = vmax.f32 %v2916, %v2917
  %v2919 = vrot.slane %v2918, 2
  %v2920 = vmax.f32 %v2918, %v2919
  %v2921 = vrot.slane %v2920, 1
  %v2922 = vmax.f32 %v2920, %v2921
  %v2923 = vsel %vm1309, %v2103, -inf
  %v2924 = vrot.slane %v2923, 4
  %v2925 = vmax.f32 %v2923, %v2924
  %v2926 = vrot.slane %v2925, 2
  %v2927 = vmax.f32 %v2925, %v2926
  %v2928 = vrot.slane %v2927, 1
  %v2929 = vmax.f32 %v2927, %v2928
  %v2930 = vsel %vm1309, %v2104, -inf
  %v2931 = vrot.slane %v2930, 4
  %v2932 = vmax.f32 %v2930, %v2931
  %v2933 = vrot.slane %v2932, 2
  %v2934 = vmax.f32 %v2932, %v2933
  %v2935 = vrot.slane %v2934, 1
  %v2936 = vmax.f32 %v2934, %v2935
  %v2937 = vsel %vm1309, %v2105, -inf
  %v2938 = vrot.slane %v2937, 4
  %v2939 = vmax.f32 %v2937, %v2938
  %v2940 = vrot.slane %v2939, 2
  %v2941 = vmax.f32 %v2939, %v2940
  %v2942 = vrot.slane %v2941, 1
  %v2943 = vmax.f32 %v2941, %v2942
  %v2944 = vsel %vm1309, %v2106, -inf
  %v2945 = vrot.slane %v2944, 4
  %v2946 = vmax.f32 %v2944, %v2945
  %v2947 = vrot.slane %v2946, 2
  %v2948 = vmax.f32 %v2946, %v2947
  %v2949 = vrot.slane %v2948, 1
  %v2950 = vmax.f32 %v2948, %v2949
  %v2951 = vsel %vm1309, %v2107, -inf
  %v2952 = vrot.slane %v2951, 4
  %v2953 = vmax.f32 %v2951, %v2952
  %v2954 = vrot.slane %v2953, 2
  %v2955 = vmax.f32 %v2953, %v2954
  %v2956 = vrot.slane %v2955, 1
  %v2957 = vmax.f32 %v2955, %v2956
  %v2958 = vsel %vm1309, %v2108, -inf
  %v2959 = vrot.slane %v2958, 4
  %v2960 = vmax.f32 %v2958, %v2959
  %v2961 = vrot.slane %v2960, 2
  %v2962 = vmax.f32 %v2960, %v2961
  %v2963 = vrot.slane %v2962, 1
  %v2964 = vmax.f32 %v2962, %v2963
  %v2965 = vsel %vm1309, %v2109, -inf
  %v2966 = vrot.slane %v2965, 4
  %v2967 = vmax.f32 %v2965, %v2966
  %v2968 = vrot.slane %v2967, 2
  %v2969 = vmax.f32 %v2967, %v2968
  %v2970 = vrot.slane %v2969, 1
  %v2971 = vmax.f32 %v2969, %v2970
  %v2972 = vsel %vm1309, %v2110, -inf
  %v2973 = vrot.slane %v2972, 4
  %v2974 = vmax.f32 %v2972, %v2973
  %v2975 = vrot.slane %v2974, 2
  %v2976 = vmax.f32 %v2974, %v2975
  %v2977 = vrot.slane %v2976, 1
  %v2978 = vmax.f32 %v2976, %v2977
  %v2979 = vsel %vm1309, %v2111, -inf
  %v2980 = vrot.slane %v2979, 4
  %v2981 = vmax.f32 %v2979, %v2980
  %v2982 = vrot.slane %v2981, 2
  %v2983 = vmax.f32 %v2981, %v2982
  %v2984 = vrot.slane %v2983, 1
  %v2985 = vmax.f32 %v2983, %v2984
  %v2986 = vsel %vm1309, %v2112, -inf
  %v2987 = vrot.slane %v2986, 4
  %v2988 = vmax.f32 %v2986, %v2987
  %v2989 = vrot.slane %v2988, 2
  %v2990 = vmax.f32 %v2988, %v2989
  %v2991 = vrot.slane %v2990, 1
  %v2992 = vmax.f32 %v2990, %v2991
  %v2993 = vsel %vm1309, %v2113, -inf
  %v2994 = vrot.slane %v2993, 4
  %v2995 = vmax.f32 %v2993, %v2994
  %v2996 = vrot.slane %v2995, 2
  %v2997 = vmax.f32 %v2995, %v2996
  %v2998 = vrot.slane %v2997, 1
  %v2999 = vmax.f32 %v2997, %v2998
  %v3000 = vsel %vm1309, %v2114, -inf
  %v3001 = vrot.slane %v3000, 4
  %v3002 = vmax.f32 %v3000, %v3001
  %v3003 = vrot.slane %v3002, 2
  %v3004 = vmax.f32 %v3002, %v3003
  %v3005 = vrot.slane %v3004, 1
  %v3006 = vmax.f32 %v3004, %v3005
  %v3007 = vsel %vm1309, %v2115, -inf
  %v3008 = vrot.slane %v3007, 4
  %v3009 = vmax.f32 %v3007, %v3008
  %v3010 = vrot.slane %v3009, 2
  %v3011 = vmax.f32 %v3009, %v3010
  %v3012 = vrot.slane %v3011, 1
  %v3013 = vmax.f32 %v3011, %v3012
  %v3014 = vsel %vm1309, %v2116, -inf
  %v3015 = vrot.slane %v3014, 4
  %v3016 = vmax.f32 %v3014, %v3015
  %v3017 = vrot.slane %v3016, 2
  %v3018 = vmax.f32 %v3016, %v3017
  %v3019 = vrot.slane %v3018, 1
  %v3020 = vmax.f32 %v3018, %v3019
  %v3021 = vsel %vm1309, %v2117, -inf
  %v3022 = vrot.slane %v3021, 4
  %v3023 = vmax.f32 %v3021, %v3022
  %v3024 = vrot.slane %v3023, 2
  %v3025 = vmax.f32 %v3023, %v3024
  %v3026 = vrot.slane %v3025, 1
  %v3027 = vmax.f32 %v3025, %v3026
  %v3028 = vsel %vm1309, %v2118, -inf
  %v3029 = vrot.slane %v3028, 4
  %v3030 = vmax.f32 %v3028, %v3029
  %v3031 = vrot.slane %v3030, 2
  %v3032 = vmax.f32 %v3030, %v3031
  %v3033 = vrot.slane %v3032, 1
  %v3034 = vmax.f32 %v3032, %v3033
  %v3035 = vsel %vm1309, %v2119, -inf
  %v3036 = vrot.slane %v3035, 4
  %v3037 = vmax.f32 %v3035, %v3036
  %v3038 = vrot.slane %v3037, 2
  %v3039 = vmax.f32 %v3037, %v3038
  %v3040 = vrot.slane %v3039, 1
  %v3041 = vmax.f32 %v3039, %v3040
  %v3042 = vsel %vm1309, %v2120, -inf
  %v3043 = vrot.slane %v3042, 4
  %v3044 = vmax.f32 %v3042, %v3043
  %v3045 = vrot.slane %v3044, 2
  %v3046 = vmax.f32 %v3044, %v3045
  %v3047 = vrot.slane %v3046, 1
  %v3048 = vmax.f32 %v3046, %v3047
  %v3049 = vsub.f32 %v2089, %v2831
  %v3050 = vsub.f32 %v2090, %v2838
  %v3051 = vsub.f32 %v2091, %v2845
  %v3052 = vsub.f32 %v2092, %v2852
  %v3053 = vsub.f32 %v2093, %v2859
  %v3054 = vsub.f32 %v2094, %v2866
  %v3055 = vsub.f32 %v2095, %v2873
  %v3056 = vsub.f32 %v2096, %v2880
  %v3057 = vsub.f32 %v2097, %v2887
  %v3058 = vsub.f32 %v2098, %v2894
  %v3059 = vsub.f32 %v2099, %v2901
  %v3060 = vsub.f32 %v2100, %v2908
  %v3061 = vsub.f32 %v2101, %v2915
  %v3062 = vsub.f32 %v2102, %v2922
  %v3063 = vsub.f32 %v2103, %v2929
  %v3064 = vsub.f32 %v2104, %v2936
  %v3065 = vsub.f32 %v2105, %v2943
  %v3066 = vsub.f32 %v2106, %v2950
  %v3067 = vsub.f32 %v2107, %v2957
  %v3068 = vsub.f32 %v2108, %v2964
  %v3069 = vsub.f32 %v2109, %v2971
  %v3070 = vsub.f32 %v2110, %v2978
  %v3071 = vsub.f32 %v2111, %v2985
  %v3072 = vsub.f32 %v2112, %v2992
  %v3073 = vsub.f32 %v2113, %v2999
  %v3074 = vsub.f32 %v2114, %v3006
  %v3075 = vsub.f32 %v2115, %v3013
  %v3076 = vsub.f32 %v2116, %v3020
  %v3077 = vsub.f32 %v2117, %v3027
  %v3078 = vsub.f32 %v2118, %v3034
  %v3079 = vsub.f32 %v2119, %v3041
  %v3080 = vsub.f32 %v2120, %v3048
  %v3081 = vmul.f32 %v3049, 1.442695
  %v3082 = vpow.pop %v3081
  %v3083 = vmul.f32 %v3050, 1.442695
  %v3084 = vpow.pop %v3083
  %v3085 = vmul.f32 %v3051, 1.442695
  %v3086 = vpow.pop %v3085
  %v3087 = vmul.f32 %v3052, 1.442695
  %v3088 = vpow.pop %v3087
  %v3089 = vmul.f32 %v3053, 1.442695
  %v3090 = vpow.pop %v3089
  %v3091 = vmul.f32 %v3054, 1.442695
  %v3092 = vpow.pop %v3091
  %v3093 = vmul.f32 %v3055, 1.442695
  %v3094 = vpow.pop %v3093
  %v3095 = vmul.f32 %v3056, 1.442695
  %v3096 = vpow.pop %v3095
  %v3097 = vmul.f32 %v3057, 1.442695
  %v3098 = vpow.pop %v3097
  %v3099 = vmul.f32 %v3058, 1.442695
  %v3100 = vpow.pop %v3099
  %v3101 = vmul.f32 %v3059, 1.442695
  %v3102 = vpow.pop %v3101
  %v3103 = vmul.f32 %v3060, 1.442695
  %v3104 = vpow.pop %v3103
  %v3105 = vmul.f32 %v3061, 1.442695
  %v3106 = vpow.pop %v3105
  %v3107 = vmul.f32 %v3062, 1.442695
  %v3108 = vpow.pop %v3107
  %v3109 = vmul.f32 %v3063, 1.442695
  %v3110 = vpow.pop %v3109
  %v3111 = vmul.f32 %v3064, 1.442695
  %v3112 = vpow.pop %v3111
  %v3113 = vmul.f32 %v3065, 1.442695
  %v3114 = vpow.pop %v3113
  %v3115 = vmul.f32 %v3066, 1.442695
  %v3116 = vpow.pop %v3115
  %v3117 = vmul.f32 %v3067, 1.442695
  %v3118 = vpow.pop %v3117
  %v3119 = vmul.f32 %v3068, 1.442695
  %v3120 = vpow.pop %v3119
  %v3121 = vmul.f32 %v3069, 1.442695
  %v3122 = vpow.pop %v3121
  %v3123 = vmul.f32 %v3070, 1.442695
  %v3124 = vpow.pop %v3123
  %v3125 = vmul.f32 %v3071, 1.442695
  %v3126 = vpow.pop %v3125
  %v3127 = vmul.f32 %v3072, 1.442695
  %v3128 = vpow.pop %v3127
  %v3129 = vmul.f32 %v3073, 1.442695
  %v3130 = vpow.pop %v3129
  %v3131 = vmul.f32 %v3074, 1.442695
  %v3132 = vpow.pop %v3131
  %v3133 = vmul.f32 %v3075, 1.442695
  %v3134 = vpow.pop %v3133
  %v3135 = vmul.f32 %v3076, 1.442695
  %v3136 = vpow.pop %v3135
  %v3137 = vmul.f32 %v3077, 1.442695
  %v3138 = vpow.pop %v3137
  %v3139 = vmul.f32 %v3078, 1.442695
  %v3140 = vpow.pop %v3139
  %v3141 = vmul.f32 %v3079, 1.442695
  %v3142 = vpow.pop %v3141
  %v3143 = vmul.f32 %v3080, 1.442695
  %v3144 = vpow.pop %v3143
  %v3145 = vsel %vm1309, %v3082, 0.0
  %v3146 = vrot.slane %v3145, 4
  %v3147 = vadd.f32 %v3145, %v3146
  %v3148 = vrot.slane %v3147, 2
  %v3149 = vadd.f32 %v3147, %v3148
  %v3150 = vrot.slane %v3149, 1
  %v3151 = vadd.f32 %v3149, %v3150
  %v3152 = vsel %vm1309, %v3084, 0.0
  %v3153 = vrot.slane %v3152, 4
  %v3154 = vadd.f32 %v3152, %v3153
  %v3155 = vrot.slane %v3154, 2
  %v3156 = vadd.f32 %v3154, %v3155
  %v3157 = vrot.slane %v3156, 1
  %v3158 = vadd.f32 %v3156, %v3157
  %v3159 = vsel %vm1309, %v3086, 0.0
  %v3160 = vrot.slane %v3159, 4
  %v3161 = vadd.f32 %v3159, %v3160
  %v3162 = vrot.slane %v3161, 2
  %v3163 = vadd.f32 %v3161, %v3162
  %v3164 = vrot.slane %v3163, 1
  %v3165 = vadd.f32 %v3163, %v3164
  %v3166 = vsel %vm1309, %v3088, 0.0
  %v3167 = vrot.slane %v3166, 4
  %v3168 = vadd.f32 %v3166, %v3167
  %v3169 = vrot.slane %v3168, 2
  %v3170 = vadd.f32 %v3168, %v3169
  %v3171 = vrot.slane %v3170, 1
  %v3172 = vadd.f32 %v3170, %v3171
  %v3173 = vsel %vm1309, %v3090, 0.0
  %v3174 = vrot.slane %v3173, 4
  %v3175 = vadd.f32 %v3173, %v3174
  %v3176 = vrot.slane %v3175, 2
  %v3177 = vadd.f32 %v3175, %v3176
  %v3178 = vrot.slane %v3177, 1
  %v3179 = vadd.f32 %v3177, %v3178
  %v3180 = vsel %vm1309, %v3092, 0.0
  %v3181 = vrot.slane %v3180, 4
  %v3182 = vadd.f32 %v3180, %v3181
  %v3183 = vrot.slane %v3182, 2
  %v3184 = vadd.f32 %v3182, %v3183
  %v3185 = vrot.slane %v3184, 1
  %v3186 = vadd.f32 %v3184, %v3185
  %v3187 = vsel %vm1309, %v3094, 0.0
  %v3188 = vrot.slane %v3187, 4
  %v3189 = vadd.f32 %v3187, %v3188
  %v3190 = vrot.slane %v3189, 2
  %v3191 = vadd.f32 %v3189, %v3190
  %v3192 = vrot.slane %v3191, 1
  %v3193 = vadd.f32 %v3191, %v3192
  %v3194 = vsel %vm1309, %v3096, 0.0
  %v3195 = vrot.slane %v3194, 4
  %v3196 = vadd.f32 %v3194, %v3195
  %v3197 = vrot.slane %v3196, 2
  %v3198 = vadd.f32 %v3196, %v3197
  %v3199 = vrot.slane %v3198, 1
  %v3200 = vadd.f32 %v3198, %v3199
  %v3201 = vsel %vm1309, %v3098, 0.0
  %v3202 = vrot.slane %v3201, 4
  %v3203 = vadd.f32 %v3201, %v3202
  %v3204 = vrot.slane %v3203, 2
  %v3205 = vadd.f32 %v3203, %v3204
  %v3206 = vrot.slane %v3205, 1
  %v3207 = vadd.f32 %v3205, %v3206
  %v3208 = vsel %vm1309, %v3100, 0.0
  %v3209 = vrot.slane %v3208, 4
  %v3210 = vadd.f32 %v3208, %v3209
  %v3211 = vrot.slane %v3210, 2
  %v3212 = vadd.f32 %v3210, %v3211
  %v3213 = vrot.slane %v3212, 1
  %v3214 = vadd.f32 %v3212, %v3213
  %v3215 = vsel %vm1309, %v3102, 0.0
  %v3216 = vrot.slane %v3215, 4
  %v3217 = vadd.f32 %v3215, %v3216
  %v3218 = vrot.slane %v3217, 2
  %v3219 = vadd.f32 %v3217, %v3218
  %v3220 = vrot.slane %v3219, 1
  %v3221 = vadd.f32 %v3219, %v3220
  %v3222 = vsel %vm1309, %v3104, 0.0
  %v3223 = vrot.slane %v3222, 4
  %v3224 = vadd.f32 %v3222, %v3223
  %v3225 = vrot.slane %v3224, 2
  %v3226 = vadd.f32 %v3224, %v3225
  %v3227 = vrot.slane %v3226, 1
  %v3228 = vadd.f32 %v3226, %v3227
  %v3229 = vsel %vm1309, %v3106, 0.0
  %v3230 = vrot.slane %v3229, 4
  %v3231 = vadd.f32 %v3229, %v3230
  %v3232 = vrot.slane %v3231, 2
  %v3233 = vadd.f32 %v3231, %v3232
  %v3234 = vrot.slane %v3233, 1
  %v3235 = vadd.f32 %v3233, %v3234
  %v3236 = vsel %vm1309, %v3108, 0.0
  %v3237 = vrot.slane %v3236, 4
  %v3238 = vadd.f32 %v3236, %v3237
  %v3239 = vrot.slane %v3238, 2
  %v3240 = vadd.f32 %v3238, %v3239
  %v3241 = vrot.slane %v3240, 1
  %v3242 = vadd.f32 %v3240, %v3241
  %v3243 = vsel %vm1309, %v3110, 0.0
  %v3244 = vrot.slane %v3243, 4
  %v3245 = vadd.f32 %v3243, %v3244
  %v3246 = vrot.slane %v3245, 2
  %v3247 = vadd.f32 %v3245, %v3246
  %v3248 = vrot.slane %v3247, 1
  %v3249 = vadd.f32 %v3247, %v3248
  %v3250 = vsel %vm1309, %v3112, 0.0
  %v3251 = vrot.slane %v3250, 4
  %v3252 = vadd.f32 %v3250, %v3251
  %v3253 = vrot.slane %v3252, 2
  %v3254 = vadd.f32 %v3252, %v3253
  %v3255 = vrot.slane %v3254, 1
  %v3256 = vadd.f32 %v3254, %v3255
  %v3257 = vsel %vm1309, %v3114, 0.0
  %v3258 = vrot.slane %v3257, 4
  %v3259 = vadd.f32 %v3257, %v3258
  %v3260 = vrot.slane %v3259, 2
  %v3261 = vadd.f32 %v3259, %v3260
  %v3262 = vrot.slane %v3261, 1
  %v3263 = vadd.f32 %v3261, %v3262
  %v3264 = vsel %vm1309, %v3116, 0.0
  %v3265 = vrot.slane %v3264, 4
  %v3266 = vadd.f32 %v3264, %v3265
  %v3267 = vrot.slane %v3266, 2
  %v3268 = vadd.f32 %v3266, %v3267
  %v3269 = vrot.slane %v3268, 1
  %v3270 = vadd.f32 %v3268, %v3269
  %v3271 = vsel %vm1309, %v3118, 0.0
  %v3272 = vrot.slane %v3271, 4
  %v3273 = vadd.f32 %v3271, %v3272
  %v3274 = vrot.slane %v3273, 2
  %v3275 = vadd.f32 %v3273, %v3274
  %v3276 = vrot.slane %v3275, 1
  %v3277 = vadd.f32 %v3275, %v3276
  %v3278 = vsel %vm1309, %v3120, 0.0
  %v3279 = vrot.slane %v3278, 4
  %v3280 = vadd.f32 %v3278, %v3279
  %v3281 = vrot.slane %v3280, 2
  %v3282 = vadd.f32 %v3280, %v3281
  %v3283 = vrot.slane %v3282, 1
  %v3284 = vadd.f32 %v3282, %v3283
  %v3285 = vsel %vm1309, %v3122, 0.0
  %v3286 = vrot.slane %v3285, 4
  %v3287 = vadd.f32 %v3285, %v3286
  %v3288 = vrot.slane %v3287, 2
  %v3289 = vadd.f32 %v3287, %v3288
  %v3290 = vrot.slane %v3289, 1
  %v3291 = vadd.f32 %v3289, %v3290
  %v3292 = vsel %vm1309, %v3124, 0.0
  %v3293 = vrot.slane %v3292, 4
  %v3294 = vadd.f32 %v3292, %v3293
  %v3295 = vrot.slane %v3294, 2
  %v3296 = vadd.f32 %v3294, %v3295
  %v3297 = vrot.slane %v3296, 1
  %v3298 = vadd.f32 %v3296, %v3297
  %v3299 = vsel %vm1309, %v3126, 0.0
  %v3300 = vrot.slane %v3299, 4
  %v3301 = vadd.f32 %v3299, %v3300
  %v3302 = vrot.slane %v3301, 2
  %v3303 = vadd.f32 %v3301, %v3302
  %v3304 = vrot.slane %v3303, 1
  %v3305 = vadd.f32 %v3303, %v3304
  %v3306 = vsel %vm1309, %v3128, 0.0
  %v3307 = vrot.slane %v3306, 4
  %v3308 = vadd.f32 %v3306, %v3307
  %v3309 = vrot.slane %v3308, 2
  %v3310 = vadd.f32 %v3308, %v3309
  %v3311 = vrot.slane %v3310, 1
  %v3312 = vadd.f32 %v3310, %v3311
  %v3313 = vsel %vm1309, %v3130, 0.0
  %v3314 = vrot.slane %v3313, 4
  %v3315 = vadd.f32 %v3313, %v3314
  %v3316 = vrot.slane %v3315, 2
  %v3317 = vadd.f32 %v3315, %v3316
  %v3318 = vrot.slane %v3317, 1
  %v3319 = vadd.f32 %v3317, %v3318
  %v3320 = vsel %vm1309, %v3132, 0.0
  %v3321 = vrot.slane %v3320, 4
  %v3322 = vadd.f32 %v3320, %v3321
  %v3323 = vrot.slane %v3322, 2
  %v3324 = vadd.f32 %v3322, %v3323
  %v3325 = vrot.slane %v3324, 1
  %v3326 = vadd.f32 %v3324, %v3325
  %v3327 = vsel %vm1309, %v3134, 0.0
  %v3328 = vrot.slane %v3327, 4
  %v3329 = vadd.f32 %v3327, %v3328
  %v3330 = vrot.slane %v3329, 2
  %v3331 = vadd.f32 %v3329, %v3330
  %v3332 = vrot.slane %v3331, 1
  %v3333 = vadd.f32 %v3331, %v3332
  %v3334 = vsel %vm1309, %v3136, 0.0
  %v3335 = vrot.slane %v3334, 4
  %v3336 = vadd.f32 %v3334, %v3335
  %v3337 = vrot.slane %v3336, 2
  %v3338 = vadd.f32 %v3336, %v3337
  %v3339 = vrot.slane %v3338, 1
  %v3340 = vadd.f32 %v3338, %v3339
  %v3341 = vsel %vm1309, %v3138, 0.0
  %v3342 = vrot.slane %v3341, 4
  %v3343 = vadd.f32 %v3341, %v3342
  %v3344 = vrot.slane %v3343, 2
  %v3345 = vadd.f32 %v3343, %v3344
  %v3346 = vrot.slane %v3345, 1
  %v3347 = vadd.f32 %v3345, %v3346
  %v3348 = vsel %vm1309, %v3140, 0.0
  %v3349 = vrot.slane %v3348, 4
  %v3350 = vadd.f32 %v3348, %v3349
  %v3351 = vrot.slane %v3350, 2
  %v3352 = vadd.f32 %v3350, %v3351
  %v3353 = vrot.slane %v3352, 1
  %v3354 = vadd.f32 %v3352, %v3353
  %v3355 = vsel %vm1309, %v3142, 0.0
  %v3356 = vrot.slane %v3355, 4
  %v3357 = vadd.f32 %v3355, %v3356
  %v3358 = vrot.slane %v3357, 2
  %v3359 = vadd.f32 %v3357, %v3358
  %v3360 = vrot.slane %v3359, 1
  %v3361 = vadd.f32 %v3359, %v3360
  %v3362 = vsel %vm1309, %v3144, 0.0
  %v3363 = vrot.slane %v3362, 4
  %v3364 = vadd.f32 %v3362, %v3363
  %v3365 = vrot.slane %v3364, 2
  %v3366 = vadd.f32 %v3364, %v3365
  %v3367 = vrot.slane %v3366, 1
  %v3368 = vadd.f32 %v3366, %v3367
  %v3369 = vrcp.pop %v3151
  %v3370 = vrcp.pop %v3158
  %v3371 = vrcp.pop %v3165
  %v3372 = vrcp.pop %v3172
  %v3373 = vrcp.pop %v3179
  %v3374 = vrcp.pop %v3186
  %v3375 = vrcp.pop %v3193
  %v3376 = vrcp.pop %v3200
  %v3377 = vrcp.pop %v3207
  %v3378 = vrcp.pop %v3214
  %v3379 = vrcp.pop %v3221
  %v3380 = vrcp.pop %v3228
  %v3381 = vrcp.pop %v3235
  %v3382 = vrcp.pop %v3242
  %v3383 = vrcp.pop %v3249
  %v3384 = vrcp.pop %v3256
  %v3385 = vrcp.pop %v3263
  %v3386 = vrcp.pop %v3270
  %v3387 = vrcp.pop %v3277
  %v3388 = vrcp.pop %v3284
  %v3389 = vrcp.pop %v3291
  %v3390 = vrcp.pop %v3298
  %v3391 = vrcp.pop %v3305
  %v3392 = vrcp.pop %v3312
  %v3393 = vrcp.pop %v3319
  %v3394 = vrcp.pop %v3326
  %v3395 = vrcp.pop %v3333
  %v3396 = vrcp.pop %v3340
  %v3397 = vrcp.pop %v3347
  %v3398 = vrcp.pop %v3354
  %v3399 = vrcp.pop %v3361
  %v3400 = vrcp.pop %v3368
  %v3401 = vmul.f32 %v3082, %v3369
  %v3402 = vmul.f32 %v3084, %v3370
  %v3403 = vmul.f32 %v3086, %v3371
  %v3404 = vmul.f32 %v3088, %v3372
  %v3405 = vmul.f32 %v3090, %v3373
  %v3406 = vmul.f32 %v3092, %v3374
  %v3407 = vmul.f32 %v3094, %v3375
  %v3408 = vmul.f32 %v3096, %v3376
  %v3409 = vmul.f32 %v3098, %v3377
  %v3410 = vmul.f32 %v3100, %v3378
  %v3411 = vmul.f32 %v3102, %v3379
  %v3412 = vmul.f32 %v3104, %v3380
  %v3413 = vmul.f32 %v3106, %v3381
  %v3414 = vmul.f32 %v3108, %v3382
  %v3415 = vmul.f32 %v3110, %v3383
  %v3416 = vmul.f32 %v3112, %v3384
  %v3417 = vmul.f32 %v3114, %v3385
  %v3418 = vmul.f32 %v3116, %v3386
  %v3419 = vmul.f32 %v3118, %v3387
  %v3420 = vmul.f32 %v3120, %v3388
  %v3421 = vmul.f32 %v3122, %v3389
  %v3422 = vmul.f32 %v3124, %v3390
  %v3423 = vmul.f32 %v3126, %v3391
  %v3424 = vmul.f32 %v3128, %v3392
  %v3425 = vmul.f32 %v3130, %v3393
  %v3426 = vmul.f32 %v3132, %v3394
  %v3427 = vmul.f32 %v3134, %v3395
  %v3428 = vmul.f32 %v3136, %v3396
  %v3429 = vmul.f32 %v3138, %v3397
  %v3430 = vmul.f32 %v3140, %v3398
  %v3431 = vmul.f32 %v3142, %v3399
  %v3432 = vmul.f32 %v3144, %v3400
  %v3433 = vsel %vm1309, %v2793, -inf
  %v3434 = vrot.slane %v3433, 4
  %v3435 = vmax.f32 %v3433, %v3434
  %v3436 = vrot.slane %v3435, 2
  %v3437 = vmax.f32 %v3435, %v3436
  %v3438 = vrot.slane %v3437, 1
  %v3439 = vmax.f32 %v3437, %v3438
  %v3440 = vsel %vm1309, %v2794, -inf
  %v3441 = vrot.slane %v3440, 4
  %v3442 = vmax.f32 %v3440, %v3441
  %v3443 = vrot.slane %v3442, 2
  %v3444 = vmax.f32 %v3442, %v3443
  %v3445 = vrot.slane %v3444, 1
  %v3446 = vmax.f32 %v3444, %v3445
  %v3447 = vsel %vm1309, %v2795, -inf
  %v3448 = vrot.slane %v3447, 4
  %v3449 = vmax.f32 %v3447, %v3448
  %v3450 = vrot.slane %v3449, 2
  %v3451 = vmax.f32 %v3449, %v3450
  %v3452 = vrot.slane %v3451, 1
  %v3453 = vmax.f32 %v3451, %v3452
  %v3454 = vsel %vm1309, %v2796, -inf
  %v3455 = vrot.slane %v3454, 4
  %v3456 = vmax.f32 %v3454, %v3455
  %v3457 = vrot.slane %v3456, 2
  %v3458 = vmax.f32 %v3456, %v3457
  %v3459 = vrot.slane %v3458, 1
  %v3460 = vmax.f32 %v3458, %v3459
  %v3461 = vsel %vm1309, %v2797, -inf
  %v3462 = vrot.slane %v3461, 4
  %v3463 = vmax.f32 %v3461, %v3462
  %v3464 = vrot.slane %v3463, 2
  %v3465 = vmax.f32 %v3463, %v3464
  %v3466 = vrot.slane %v3465, 1
  %v3467 = vmax.f32 %v3465, %v3466
  %v3468 = vsel %vm1309, %v2798, -inf
  %v3469 = vrot.slane %v3468, 4
  %v3470 = vmax.f32 %v3468, %v3469
  %v3471 = vrot.slane %v3470, 2
  %v3472 = vmax.f32 %v3470, %v3471
  %v3473 = vrot.slane %v3472, 1
  %v3474 = vmax.f32 %v3472, %v3473
  %v3475 = vsel %vm1309, %v2799, -inf
  %v3476 = vrot.slane %v3475, 4
  %v3477 = vmax.f32 %v3475, %v3476
  %v3478 = vrot.slane %v3477, 2
  %v3479 = vmax.f32 %v3477, %v3478
  %v3480 = vrot.slane %v3479, 1
  %v3481 = vmax.f32 %v3479, %v3480
  %v3482 = vsel %vm1309, %v2800, -inf
  %v3483 = vrot.slane %v3482, 4
  %v3484 = vmax.f32 %v3482, %v3483
  %v3485 = vrot.slane %v3484, 2
  %v3486 = vmax.f32 %v3484, %v3485
  %v3487 = vrot.slane %v3486, 1
  %v3488 = vmax.f32 %v3486, %v3487
  %v3489 = vsel %vm1309, %v2801, -inf
  %v3490 = vrot.slane %v3489, 4
  %v3491 = vmax.f32 %v3489, %v3490
  %v3492 = vrot.slane %v3491, 2
  %v3493 = vmax.f32 %v3491, %v3492
  %v3494 = vrot.slane %v3493, 1
  %v3495 = vmax.f32 %v3493, %v3494
  %v3496 = vsel %vm1309, %v2802, -inf
  %v3497 = vrot.slane %v3496, 4
  %v3498 = vmax.f32 %v3496, %v3497
  %v3499 = vrot.slane %v3498, 2
  %v3500 = vmax.f32 %v3498, %v3499
  %v3501 = vrot.slane %v3500, 1
  %v3502 = vmax.f32 %v3500, %v3501
  %v3503 = vsel %vm1309, %v2803, -inf
  %v3504 = vrot.slane %v3503, 4
  %v3505 = vmax.f32 %v3503, %v3504
  %v3506 = vrot.slane %v3505, 2
  %v3507 = vmax.f32 %v3505, %v3506
  %v3508 = vrot.slane %v3507, 1
  %v3509 = vmax.f32 %v3507, %v3508
  %v3510 = vsel %vm1309, %v2804, -inf
  %v3511 = vrot.slane %v3510, 4
  %v3512 = vmax.f32 %v3510, %v3511
  %v3513 = vrot.slane %v3512, 2
  %v3514 = vmax.f32 %v3512, %v3513
  %v3515 = vrot.slane %v3514, 1
  %v3516 = vmax.f32 %v3514, %v3515
  %v3517 = vsel %vm1309, %v2805, -inf
  %v3518 = vrot.slane %v3517, 4
  %v3519 = vmax.f32 %v3517, %v3518
  %v3520 = vrot.slane %v3519, 2
  %v3521 = vmax.f32 %v3519, %v3520
  %v3522 = vrot.slane %v3521, 1
  %v3523 = vmax.f32 %v3521, %v3522
  %v3524 = vsel %vm1309, %v2806, -inf
  %v3525 = vrot.slane %v3524, 4
  %v3526 = vmax.f32 %v3524, %v3525
  %v3527 = vrot.slane %v3526, 2
  %v3528 = vmax.f32 %v3526, %v3527
  %v3529 = vrot.slane %v3528, 1
  %v3530 = vmax.f32 %v3528, %v3529
  %v3531 = vsel %vm1309, %v2807, -inf
  %v3532 = vrot.slane %v3531, 4
  %v3533 = vmax.f32 %v3531, %v3532
  %v3534 = vrot.slane %v3533, 2
  %v3535 = vmax.f32 %v3533, %v3534
  %v3536 = vrot.slane %v3535, 1
  %v3537 = vmax.f32 %v3535, %v3536
  %v3538 = vsel %vm1309, %v2808, -inf
  %v3539 = vrot.slane %v3538, 4
  %v3540 = vmax.f32 %v3538, %v3539
  %v3541 = vrot.slane %v3540, 2
  %v3542 = vmax.f32 %v3540, %v3541
  %v3543 = vrot.slane %v3542, 1
  %v3544 = vmax.f32 %v3542, %v3543
  %v3545 = vsel %vm1309, %v2809, -inf
  %v3546 = vrot.slane %v3545, 4
  %v3547 = vmax.f32 %v3545, %v3546
  %v3548 = vrot.slane %v3547, 2
  %v3549 = vmax.f32 %v3547, %v3548
  %v3550 = vrot.slane %v3549, 1
  %v3551 = vmax.f32 %v3549, %v3550
  %v3552 = vsel %vm1309, %v2810, -inf
  %v3553 = vrot.slane %v3552, 4
  %v3554 = vmax.f32 %v3552, %v3553
  %v3555 = vrot.slane %v3554, 2
  %v3556 = vmax.f32 %v3554, %v3555
  %v3557 = vrot.slane %v3556, 1
  %v3558 = vmax.f32 %v3556, %v3557
  %v3559 = vsel %vm1309, %v2811, -inf
  %v3560 = vrot.slane %v3559, 4
  %v3561 = vmax.f32 %v3559, %v3560
  %v3562 = vrot.slane %v3561, 2
  %v3563 = vmax.f32 %v3561, %v3562
  %v3564 = vrot.slane %v3563, 1
  %v3565 = vmax.f32 %v3563, %v3564
  %v3566 = vsel %vm1309, %v2812, -inf
  %v3567 = vrot.slane %v3566, 4
  %v3568 = vmax.f32 %v3566, %v3567
  %v3569 = vrot.slane %v3568, 2
  %v3570 = vmax.f32 %v3568, %v3569
  %v3571 = vrot.slane %v3570, 1
  %v3572 = vmax.f32 %v3570, %v3571
  %v3573 = vsel %vm1309, %v2813, -inf
  %v3574 = vrot.slane %v3573, 4
  %v3575 = vmax.f32 %v3573, %v3574
  %v3576 = vrot.slane %v3575, 2
  %v3577 = vmax.f32 %v3575, %v3576
  %v3578 = vrot.slane %v3577, 1
  %v3579 = vmax.f32 %v3577, %v3578
  %v3580 = vsel %vm1309, %v2814, -inf
  %v3581 = vrot.slane %v3580, 4
  %v3582 = vmax.f32 %v3580, %v3581
  %v3583 = vrot.slane %v3582, 2
  %v3584 = vmax.f32 %v3582, %v3583
  %v3585 = vrot.slane %v3584, 1
  %v3586 = vmax.f32 %v3584, %v3585
  %v3587 = vsel %vm1309, %v2815, -inf
  %v3588 = vrot.slane %v3587, 4
  %v3589 = vmax.f32 %v3587, %v3588
  %v3590 = vrot.slane %v3589, 2
  %v3591 = vmax.f32 %v3589, %v3590
  %v3592 = vrot.slane %v3591, 1
  %v3593 = vmax.f32 %v3591, %v3592
  %v3594 = vsel %vm1309, %v2816, -inf
  %v3595 = vrot.slane %v3594, 4
  %v3596 = vmax.f32 %v3594, %v3595
  %v3597 = vrot.slane %v3596, 2
  %v3598 = vmax.f32 %v3596, %v3597
  %v3599 = vrot.slane %v3598, 1
  %v3600 = vmax.f32 %v3598, %v3599
  %v3601 = vsel %vm1309, %v2817, -inf
  %v3602 = vrot.slane %v3601, 4
  %v3603 = vmax.f32 %v3601, %v3602
  %v3604 = vrot.slane %v3603, 2
  %v3605 = vmax.f32 %v3603, %v3604
  %v3606 = vrot.slane %v3605, 1
  %v3607 = vmax.f32 %v3605, %v3606
  %v3608 = vsel %vm1309, %v2818, -inf
  %v3609 = vrot.slane %v3608, 4
  %v3610 = vmax.f32 %v3608, %v3609
  %v3611 = vrot.slane %v3610, 2
  %v3612 = vmax.f32 %v3610, %v3611
  %v3613 = vrot.slane %v3612, 1
  %v3614 = vmax.f32 %v3612, %v3613
  %v3615 = vsel %vm1309, %v2819, -inf
  %v3616 = vrot.slane %v3615, 4
  %v3617 = vmax.f32 %v3615, %v3616
  %v3618 = vrot.slane %v3617, 2
  %v3619 = vmax.f32 %v3617, %v3618
  %v3620 = vrot.slane %v3619, 1
  %v3621 = vmax.f32 %v3619, %v3620
  %v3622 = vsel %vm1309, %v2820, -inf
  %v3623 = vrot.slane %v3622, 4
  %v3624 = vmax.f32 %v3622, %v3623
  %v3625 = vrot.slane %v3624, 2
  %v3626 = vmax.f32 %v3624, %v3625
  %v3627 = vrot.slane %v3626, 1
  %v3628 = vmax.f32 %v3626, %v3627
  %v3629 = vsel %vm1309, %v2821, -inf
  %v3630 = vrot.slane %v3629, 4
  %v3631 = vmax.f32 %v3629, %v3630
  %v3632 = vrot.slane %v3631, 2
  %v3633 = vmax.f32 %v3631, %v3632
  %v3634 = vrot.slane %v3633, 1
  %v3635 = vmax.f32 %v3633, %v3634
  %v3636 = vsel %vm1309, %v2822, -inf
  %v3637 = vrot.slane %v3636, 4
  %v3638 = vmax.f32 %v3636, %v3637
  %v3639 = vrot.slane %v3638, 2
  %v3640 = vmax.f32 %v3638, %v3639
  %v3641 = vrot.slane %v3640, 1
  %v3642 = vmax.f32 %v3640, %v3641
  %v3643 = vsel %vm1309, %v2823, -inf
  %v3644 = vrot.slane %v3643, 4
  %v3645 = vmax.f32 %v3643, %v3644
  %v3646 = vrot.slane %v3645, 2
  %v3647 = vmax.f32 %v3645, %v3646
  %v3648 = vrot.slane %v3647, 1
  %v3649 = vmax.f32 %v3647, %v3648
  %v3650 = vsel %vm1309, %v2824, -inf
  %v3651 = vrot.slane %v3650, 4
  %v3652 = vmax.f32 %v3650, %v3651
  %v3653 = vrot.slane %v3652, 2
  %v3654 = vmax.f32 %v3652, %v3653
  %v3655 = vrot.slane %v3654, 1
  %v3656 = vmax.f32 %v3654, %v3655
  %v3657 = vsub.f32 %v2793, %v3439
  %v3658 = vsub.f32 %v2794, %v3446
  %v3659 = vsub.f32 %v2795, %v3453
  %v3660 = vsub.f32 %v2796, %v3460
  %v3661 = vsub.f32 %v2797, %v3467
  %v3662 = vsub.f32 %v2798, %v3474
  %v3663 = vsub.f32 %v2799, %v3481
  %v3664 = vsub.f32 %v2800, %v3488
  %v3665 = vsub.f32 %v2801, %v3495
  %v3666 = vsub.f32 %v2802, %v3502
  %v3667 = vsub.f32 %v2803, %v3509
  %v3668 = vsub.f32 %v2804, %v3516
  %v3669 = vsub.f32 %v2805, %v3523
  %v3670 = vsub.f32 %v2806, %v3530
  %v3671 = vsub.f32 %v2807, %v3537
  %v3672 = vsub.f32 %v2808, %v3544
  %v3673 = vsub.f32 %v2809, %v3551
  %v3674 = vsub.f32 %v2810, %v3558
  %v3675 = vsub.f32 %v2811, %v3565
  %v3676 = vsub.f32 %v2812, %v3572
  %v3677 = vsub.f32 %v2813, %v3579
  %v3678 = vsub.f32 %v2814, %v3586
  %v3679 = vsub.f32 %v2815, %v3593
  %v3680 = vsub.f32 %v2816, %v3600
  %v3681 = vsub.f32 %v2817, %v3607
  %v3682 = vsub.f32 %v2818, %v3614
  %v3683 = vsub.f32 %v2819, %v3621
  %v3684 = vsub.f32 %v2820, %v3628
  %v3685 = vsub.f32 %v2821, %v3635
  %v3686 = vsub.f32 %v2822, %v3642
  %v3687 = vsub.f32 %v2823, %v3649
  %v3688 = vsub.f32 %v2824, %v3656
  %v3689 = vmul.f32 %v3657, 1.442695
  %v3690 = vpow.pop %v3689
  %v3691 = vmul.f32 %v3658, 1.442695
  %v3692 = vpow.pop %v3691
  %v3693 = vmul.f32 %v3659, 1.442695
  %v3694 = vpow.pop %v3693
  %v3695 = vmul.f32 %v3660, 1.442695
  %v3696 = vpow.pop %v3695
  %v3697 = vmul.f32 %v3661, 1.442695
  %v3698 = vpow.pop %v3697
  %v3699 = vmul.f32 %v3662, 1.442695
  %v3700 = vpow.pop %v3699
  %v3701 = vmul.f32 %v3663, 1.442695
  %v3702 = vpow.pop %v3701
  %v3703 = vmul.f32 %v3664, 1.442695
  %v3704 = vpow.pop %v3703
  %v3705 = vmul.f32 %v3665, 1.442695
  %v3706 = vpow.pop %v3705
  %v3707 = vmul.f32 %v3666, 1.442695
  %v3708 = vpow.pop %v3707
  %v3709 = vmul.f32 %v3667, 1.442695
  %v3710 = vpow.pop %v3709
  %v3711 = vmul.f32 %v3668, 1.442695
  %v3712 = vpow.pop %v3711
  %v3713 = vmul.f32 %v3669, 1.442695
  %v3714 = vpow.pop %v3713
  %v3715 = vmul.f32 %v3670, 1.442695
  %v3716 = vpow.pop %v3715
  %v3717 = vmul.f32 %v3671, 1.442695
  %v3718 = vpow.pop %v3717
  %v3719 = vmul.f32 %v3672, 1.442695
  %v3720 = vpow.pop %v3719
  %v3721 = vmul.f32 %v3673, 1.442695
  %v3722 = vpow.pop %v3721
  %v3723 = vmul.f32 %v3674, 1.442695
  %v3724 = vpow.pop %v3723
  %v3725 = vmul.f32 %v3675, 1.442695
  %v3726 = vpow.pop %v3725
  %v3727 = vmul.f32 %v3676, 1.442695
  %v3728 = vpow.pop %v3727
  %v3729 = vmul.f32 %v3677, 1.442695
  %v3730 = vpow.pop %v3729
  %v3731 = vmul.f32 %v3678, 1.442695
  %v3732 = vpow.pop %v3731
  %v3733 = vmul.f32 %v3679, 1.442695
  %v3734 = vpow.pop %v3733
  %v3735 = vmul.f32 %v3680, 1.442695
  %v3736 = vpow.pop %v3735
  %v3737 = vmul.f32 %v3681, 1.442695
  %v3738 = vpow.pop %v3737
  %v3739 = vmul.f32 %v3682, 1.442695
  %v3740 = vpow.pop %v3739
  %v3741 = vmul.f32 %v3683, 1.442695
  %v3742 = vpow.pop %v3741
  %v3743 = vmul.f32 %v3684, 1.442695
  %v3744 = vpow.pop %v3743
  %v3745 = vmul.f32 %v3685, 1.442695
  %v3746 = vpow.pop %v3745
  %v3747 = vmul.f32 %v3686, 1.442695
  %v3748 = vpow.pop %v3747
  %v3749 = vmul.f32 %v3687, 1.442695
  %v3750 = vpow.pop %v3749
  %v3751 = vmul.f32 %v3688, 1.442695
  %v3752 = vpow.pop %v3751
  %v3753 = vsel %vm1309, %v3690, 0.0
  %v3754 = vrot.slane %v3753, 4
  %v3755 = vadd.f32 %v3753, %v3754
  %v3756 = vrot.slane %v3755, 2
  %v3757 = vadd.f32 %v3755, %v3756
  %v3758 = vrot.slane %v3757, 1
  %v3759 = vadd.f32 %v3757, %v3758
  %v3760 = vsel %vm1309, %v3692, 0.0
  %v3761 = vrot.slane %v3760, 4
  %v3762 = vadd.f32 %v3760, %v3761
  %v3763 = vrot.slane %v3762, 2
  %v3764 = vadd.f32 %v3762, %v3763
  %v3765 = vrot.slane %v3764, 1
  %v3766 = vadd.f32 %v3764, %v3765
  %v3767 = vsel %vm1309, %v3694, 0.0
  %v3768 = vrot.slane %v3767, 4
  %v3769 = vadd.f32 %v3767, %v3768
  %v3770 = vrot.slane %v3769, 2
  %v3771 = vadd.f32 %v3769, %v3770
  %v3772 = vrot.slane %v3771, 1
  %v3773 = vadd.f32 %v3771, %v3772
  %v3774 = vsel %vm1309, %v3696, 0.0
  %v3775 = vrot.slane %v3774, 4
  %v3776 = vadd.f32 %v3774, %v3775
  %v3777 = vrot.slane %v3776, 2
  %v3778 = vadd.f32 %v3776, %v3777
  %v3779 = vrot.slane %v3778, 1
  %v3780 = vadd.f32 %v3778, %v3779
  %v3781 = vsel %vm1309, %v3698, 0.0
  %v3782 = vrot.slane %v3781, 4
  %v3783 = vadd.f32 %v3781, %v3782
  %v3784 = vrot.slane %v3783, 2
  %v3785 = vadd.f32 %v3783, %v3784
  %v3786 = vrot.slane %v3785, 1
  %v3787 = vadd.f32 %v3785, %v3786
  %v3788 = vsel %vm1309, %v3700, 0.0
  %v3789 = vrot.slane %v3788, 4
  %v3790 = vadd.f32 %v3788, %v3789
  %v3791 = vrot.slane %v3790, 2
  %v3792 = vadd.f32 %v3790, %v3791
  %v3793 = vrot.slane %v3792, 1
  %v3794 = vadd.f32 %v3792, %v3793
  %v3795 = vsel %vm1309, %v3702, 0.0
  %v3796 = vrot.slane %v3795, 4
  %v3797 = vadd.f32 %v3795, %v3796
  %v3798 = vrot.slane %v3797, 2
  %v3799 = vadd.f32 %v3797, %v3798
  %v3800 = vrot.slane %v3799, 1
  %v3801 = vadd.f32 %v3799, %v3800
  %v3802 = vsel %vm1309, %v3704, 0.0
  %v3803 = vrot.slane %v3802, 4
  %v3804 = vadd.f32 %v3802, %v3803
  %v3805 = vrot.slane %v3804, 2
  %v3806 = vadd.f32 %v3804, %v3805
  %v3807 = vrot.slane %v3806, 1
  %v3808 = vadd.f32 %v3806, %v3807
  %v3809 = vsel %vm1309, %v3706, 0.0
  %v3810 = vrot.slane %v3809, 4
  %v3811 = vadd.f32 %v3809, %v3810
  %v3812 = vrot.slane %v3811, 2
  %v3813 = vadd.f32 %v3811, %v3812
  %v3814 = vrot.slane %v3813, 1
  %v3815 = vadd.f32 %v3813, %v3814
  %v3816 = vsel %vm1309, %v3708, 0.0
  %v3817 = vrot.slane %v3816, 4
  %v3818 = vadd.f32 %v3816, %v3817
  %v3819 = vrot.slane %v3818, 2
  %v3820 = vadd.f32 %v3818, %v3819
  %v3821 = vrot.slane %v3820, 1
  %v3822 = vadd.f32 %v3820, %v3821
  %v3823 = vsel %vm1309, %v3710, 0.0
  %v3824 = vrot.slane %v3823, 4
  %v3825 = vadd.f32 %v3823, %v3824
  %v3826 = vrot.slane %v3825, 2
  %v3827 = vadd.f32 %v3825, %v3826
  %v3828 = vrot.slane %v3827, 1
  %v3829 = vadd.f32 %v3827, %v3828
  %v3830 = vsel %vm1309, %v3712, 0.0
  %v3831 = vrot.slane %v3830, 4
  %v3832 = vadd.f32 %v3830, %v3831
  %v3833 = vrot.slane %v3832, 2
  %v3834 = vadd.f32 %v3832, %v3833
  %v3835 = vrot.slane %v3834, 1
  %v3836 = vadd.f32 %v3834, %v3835
  %v3837 = vsel %vm1309, %v3714, 0.0
  %v3838 = vrot.slane %v3837, 4
  %v3839 = vadd.f32 %v3837, %v3838
  %v3840 = vrot.slane %v3839, 2
  %v3841 = vadd.f32 %v3839, %v3840
  %v3842 = vrot.slane %v3841, 1
  %v3843 = vadd.f32 %v3841, %v3842
  %v3844 = vsel %vm1309, %v3716, 0.0
  %v3845 = vrot.slane %v3844, 4
  %v3846 = vadd.f32 %v3844, %v3845
  %v3847 = vrot.slane %v3846, 2
  %v3848 = vadd.f32 %v3846, %v3847
  %v3849 = vrot.slane %v3848, 1
  %v3850 = vadd.f32 %v3848, %v3849
  %v3851 = vsel %vm1309, %v3718, 0.0
  %v3852 = vrot.slane %v3851, 4
  %v3853 = vadd.f32 %v3851, %v3852
  %v3854 = vrot.slane %v3853, 2
  %v3855 = vadd.f32 %v3853, %v3854
  %v3856 = vrot.slane %v3855, 1
  %v3857 = vadd.f32 %v3855, %v3856
  %v3858 = vsel %vm1309, %v3720, 0.0
  %v3859 = vrot.slane %v3858, 4
  %v3860 = vadd.f32 %v3858, %v3859
  %v3861 = vrot.slane %v3860, 2
  %v3862 = vadd.f32 %v3860, %v3861
  %v3863 = vrot.slane %v3862, 1
  %v3864 = vadd.f32 %v3862, %v3863
  %v3865 = vsel %vm1309, %v3722, 0.0
  %v3866 = vrot.slane %v3865, 4
  %v3867 = vadd.f32 %v3865, %v3866
  %v3868 = vrot.slane %v3867, 2
  %v3869 = vadd.f32 %v3867, %v3868
  %v3870 = vrot.slane %v3869, 1
  %v3871 = vadd.f32 %v3869, %v3870
  %v3872 = vsel %vm1309, %v3724, 0.0
  %v3873 = vrot.slane %v3872, 4
  %v3874 = vadd.f32 %v3872, %v3873
  %v3875 = vrot.slane %v3874, 2
  %v3876 = vadd.f32 %v3874, %v3875
  %v3877 = vrot.slane %v3876, 1
  %v3878 = vadd.f32 %v3876, %v3877
  %v3879 = vsel %vm1309, %v3726, 0.0
  %v3880 = vrot.slane %v3879, 4
  %v3881 = vadd.f32 %v3879, %v3880
  %v3882 = vrot.slane %v3881, 2
  %v3883 = vadd.f32 %v3881, %v3882
  %v3884 = vrot.slane %v3883, 1
  %v3885 = vadd.f32 %v3883, %v3884
  %v3886 = vsel %vm1309, %v3728, 0.0
  %v3887 = vrot.slane %v3886, 4
  %v3888 = vadd.f32 %v3886, %v3887
  %v3889 = vrot.slane %v3888, 2
  %v3890 = vadd.f32 %v3888, %v3889
  %v3891 = vrot.slane %v3890, 1
  %v3892 = vadd.f32 %v3890, %v3891
  %v3893 = vsel %vm1309, %v3730, 0.0
  %v3894 = vrot.slane %v3893, 4
  %v3895 = vadd.f32 %v3893, %v3894
  %v3896 = vrot.slane %v3895, 2
  %v3897 = vadd.f32 %v3895, %v3896
  %v3898 = vrot.slane %v3897, 1
  %v3899 = vadd.f32 %v3897, %v3898
  %v3900 = vsel %vm1309, %v3732, 0.0
  %v3901 = vrot.slane %v3900, 4
  %v3902 = vadd.f32 %v3900, %v3901
  %v3903 = vrot.slane %v3902, 2
  %v3904 = vadd.f32 %v3902, %v3903
  %v3905 = vrot.slane %v3904, 1
  %v3906 = vadd.f32 %v3904, %v3905
  %v3907 = vsel %vm1309, %v3734, 0.0
  %v3908 = vrot.slane %v3907, 4
  %v3909 = vadd.f32 %v3907, %v3908
  %v3910 = vrot.slane %v3909, 2
  %v3911 = vadd.f32 %v3909, %v3910
  %v3912 = vrot.slane %v3911, 1
  %v3913 = vadd.f32 %v3911, %v3912
  %v3914 = vsel %vm1309, %v3736, 0.0
  %v3915 = vrot.slane %v3914, 4
  %v3916 = vadd.f32 %v3914, %v3915
  %v3917 = vrot.slane %v3916, 2
  %v3918 = vadd.f32 %v3916, %v3917
  %v3919 = vrot.slane %v3918, 1
  %v3920 = vadd.f32 %v3918, %v3919
  %v3921 = vsel %vm1309, %v3738, 0.0
  %v3922 = vrot.slane %v3921, 4
  %v3923 = vadd.f32 %v3921, %v3922
  %v3924 = vrot.slane %v3923, 2
  %v3925 = vadd.f32 %v3923, %v3924
  %v3926 = vrot.slane %v3925, 1
  %v3927 = vadd.f32 %v3925, %v3926
  %v3928 = vsel %vm1309, %v3740, 0.0
  %v3929 = vrot.slane %v3928, 4
  %v3930 = vadd.f32 %v3928, %v3929
  %v3931 = vrot.slane %v3930, 2
  %v3932 = vadd.f32 %v3930, %v3931
  %v3933 = vrot.slane %v3932, 1
  %v3934 = vadd.f32 %v3932, %v3933
  %v3935 = vsel %vm1309, %v3742, 0.0
  %v3936 = vrot.slane %v3935, 4
  %v3937 = vadd.f32 %v3935, %v3936
  %v3938 = vrot.slane %v3937, 2
  %v3939 = vadd.f32 %v3937, %v3938
  %v3940 = vrot.slane %v3939, 1
  %v3941 = vadd.f32 %v3939, %v3940
  %v3942 = vsel %vm1309, %v3744, 0.0
  %v3943 = vrot.slane %v3942, 4
  %v3944 = vadd.f32 %v3942, %v3943
  %v3945 = vrot.slane %v3944, 2
  %v3946 = vadd.f32 %v3944, %v3945
  %v3947 = vrot.slane %v3946, 1
  %v3948 = vadd.f32 %v3946, %v3947
  %v3949 = vsel %vm1309, %v3746, 0.0
  %v3950 = vrot.slane %v3949, 4
  %v3951 = vadd.f32 %v3949, %v3950
  %v3952 = vrot.slane %v3951, 2
  %v3953 = vadd.f32 %v3951, %v3952
  %v3954 = vrot.slane %v3953, 1
  %v3955 = vadd.f32 %v3953, %v3954
  %v3956 = vsel %vm1309, %v3748, 0.0
  %v3957 = vrot.slane %v3956, 4
  %v3958 = vadd.f32 %v3956, %v3957
  %v3959 = vrot.slane %v3958, 2
  %v3960 = vadd.f32 %v3958, %v3959
  %v3961 = vrot.slane %v3960, 1
  %v3962 = vadd.f32 %v3960, %v3961
  %v3963 = vsel %vm1309, %v3750, 0.0
  %v3964 = vrot.slane %v3963, 4
  %v3965 = vadd.f32 %v3963, %v3964
  %v3966 = vrot.slane %v3965, 2
  %v3967 = vadd.f32 %v3965, %v3966
  %v3968 = vrot.slane %v3967, 1
  %v3969 = vadd.f32 %v3967, %v3968
  %v3970 = vsel %vm1309, %v3752, 0.0
  %v3971 = vrot.slane %v3970, 4
  %v3972 = vadd.f32 %v3970, %v3971
  %v3973 = vrot.slane %v3972, 2
  %v3974 = vadd.f32 %v3972, %v3973
  %v3975 = vrot.slane %v3974, 1
  %v3976 = vadd.f32 %v3974, %v3975
  %v3977 = vrcp.pop %v3759
  %v3978 = vrcp.pop %v3766
  %v3979 = vrcp.pop %v3773
  %v3980 = vrcp.pop %v3780
  %v3981 = vrcp.pop %v3787
  %v3982 = vrcp.pop %v3794
  %v3983 = vrcp.pop %v3801
  %v3984 = vrcp.pop %v3808
  %v3985 = vrcp.pop %v3815
  %v3986 = vrcp.pop %v3822
  %v3987 = vrcp.pop %v3829
  %v3988 = vrcp.pop %v3836
  %v3989 = vrcp.pop %v3843
  %v3990 = vrcp.pop %v3850
  %v3991 = vrcp.pop %v3857
  %v3992 = vrcp.pop %v3864
  %v3993 = vrcp.pop %v3871
  %v3994 = vrcp.pop %v3878
  %v3995 = vrcp.pop %v3885
  %v3996 = vrcp.pop %v3892
  %v3997 = vrcp.pop %v3899
  %v3998 = vrcp.pop %v3906
  %v3999 = vrcp.pop %v3913
  %v4000 = vrcp.pop %v3920
  %v4001 = vrcp.pop %v3927
  %v4002 = vrcp.pop %v3934
  %v4003 = vrcp.pop %v3941
  %v4004 = vrcp.pop %v3948
  %v4005 = vrcp.pop %v3955
  %v4006 = vrcp.pop %v3962
  %v4007 = vrcp.pop %v3969
  %v4008 = vrcp.pop %v3976
  %v4009 = vmul.f32 %v3690, %v3977
  %v4010 = vmul.f32 %v3692, %v3978
  %v4011 = vmul.f32 %v3694, %v3979
  %v4012 = vmul.f32 %v3696, %v3980
  %v4013 = vmul.f32 %v3698, %v3981
  %v4014 = vmul.f32 %v3700, %v3982
  %v4015 = vmul.f32 %v3702, %v3983
  %v4016 = vmul.f32 %v3704, %v3984
  %v4017 = vmul.f32 %v3706, %v3985
  %v4018 = vmul.f32 %v3708, %v3986
  %v4019 = vmul.f32 %v3710, %v3987
  %v4020 = vmul.f32 %v3712, %v3988
  %v4021 = vmul.f32 %v3714, %v3989
  %v4022 = vmul.f32 %v3716, %v3990
  %v4023 = vmul.f32 %v3718, %v3991
  %v4024 = vmul.f32 %v3720, %v3992
  %v4025 = vmul.f32 %v3722, %v3993
  %v4026 = vmul.f32 %v3724, %v3994
  %v4027 = vmul.f32 %v3726, %v3995
  %v4028 = vmul.f32 %v3728, %v3996
  %v4029 = vmul.f32 %v3730, %v3997
  %v4030 = vmul.f32 %v3732, %v3998
  %v4031 = vmul.f32 %v3734, %v3999
  %v4032 = vmul.f32 %v3736, %v4000
  %v4033 = vmul.f32 %v3738, %v4001
  %v4034 = vmul.f32 %v3740, %v4002
  %v4035 = vmul.f32 %v3742, %v4003
  %v4036 = vmul.f32 %v3744, %v4004
  %v4037 = vmul.f32 %v3746, %v4005
  %v4038 = vmul.f32 %v3748, %v4006
  %v4039 = vmul.f32 %v3750, %v4007
  %v4040 = vmul.f32 %v3752, %v4008
  %v4041 = vmul.f32 %v3401, %v1276
  %v4042 = vmul.f32 %v3402, %v1277
  %v4043 = vmul.f32 %v3403, %v1278
  %v4044 = vmul.f32 %v3404, %v1279
  %v4045 = vmul.f32 %v3405, %v1280
  %v4046 = vmul.f32 %v3406, %v1281
  %v4047 = vmul.f32 %v3407, %v1282
  %v4048 = vmul.f32 %v3408, %v1283
  %v4049 = vmul.f32 %v3409, %v1284
  %v4050 = vmul.f32 %v3410, %v1285
  %v4051 = vmul.f32 %v3411, %v1286
  %v4052 = vmul.f32 %v3412, %v1287
  %v4053 = vmul.f32 %v3413, %v1288
  %v4054 = vmul.f32 %v3414, %v1289
  %v4055 = vmul.f32 %v3415, %v1290
  %v4056 = vmul.f32 %v3416, %v1291
  %v4057 = vmul.f32 %v3417, %v1292
  %v4058 = vmul.f32 %v3418, %v1293
  %v4059 = vmul.f32 %v3419, %v1294
  %v4060 = vmul.f32 %v3420, %v1295
  %v4061 = vmul.f32 %v3421, %v1296
  %v4062 = vmul.f32 %v3422, %v1297
  %v4063 = vmul.f32 %v3423, %v1298
  %v4064 = vmul.f32 %v3424, %v1299
  %v4065 = vmul.f32 %v3425, %v1300
  %v4066 = vmul.f32 %v3426, %v1301
  %v4067 = vmul.f32 %v3427, %v1302
  %v4068 = vmul.f32 %v3428, %v1303
  %v4069 = vmul.f32 %v3429, %v1304
  %v4070 = vmul.f32 %v3430, %v1305
  %v4071 = vmul.f32 %v3431, %v1306
  %v4072 = vmul.f32 %v3432, %v1307
  %v4073 = vsel %vm1309, %v4041, 0.0
  %v4074 = vrot.slane %v4073, 4
  %v4075 = vadd.f32 %v4073, %v4074
  %v4076 = vrot.slane %v4075, 2
  %v4077 = vadd.f32 %v4075, %v4076
  %v4078 = vrot.slane %v4077, 1
  %v4079 = vadd.f32 %v4077, %v4078
  %v4080 = vsel %vm1309, %v4042, 0.0
  %v4081 = vrot.slane %v4080, 4
  %v4082 = vadd.f32 %v4080, %v4081
  %v4083 = vrot.slane %v4082, 2
  %v4084 = vadd.f32 %v4082, %v4083
  %v4085 = vrot.slane %v4084, 1
  %v4086 = vadd.f32 %v4084, %v4085
  %v4087 = vsel %vm1309, %v4043, 0.0
  %v4088 = vrot.slane %v4087, 4
  %v4089 = vadd.f32 %v4087, %v4088
  %v4090 = vrot.slane %v4089, 2
  %v4091 = vadd.f32 %v4089, %v4090
  %v4092 = vrot.slane %v4091, 1
  %v4093 = vadd.f32 %v4091, %v4092
  %v4094 = vsel %vm1309, %v4044, 0.0
  %v4095 = vrot.slane %v4094, 4
  %v4096 = vadd.f32 %v4094, %v4095
  %v4097 = vrot.slane %v4096, 2
  %v4098 = vadd.f32 %v4096, %v4097
  %v4099 = vrot.slane %v4098, 1
  %v4100 = vadd.f32 %v4098, %v4099
  %v4101 = vsel %vm1309, %v4045, 0.0
  %v4102 = vrot.slane %v4101, 4
  %v4103 = vadd.f32 %v4101, %v4102
  %v4104 = vrot.slane %v4103, 2
  %v4105 = vadd.f32 %v4103, %v4104
  %v4106 = vrot.slane %v4105, 1
  %v4107 = vadd.f32 %v4105, %v4106
  %v4108 = vsel %vm1309, %v4046, 0.0
  %v4109 = vrot.slane %v4108, 4
  %v4110 = vadd.f32 %v4108, %v4109
  %v4111 = vrot.slane %v4110, 2
  %v4112 = vadd.f32 %v4110, %v4111
  %v4113 = vrot.slane %v4112, 1
  %v4114 = vadd.f32 %v4112, %v4113
  %v4115 = vsel %vm1309, %v4047, 0.0
  %v4116 = vrot.slane %v4115, 4
  %v4117 = vadd.f32 %v4115, %v4116
  %v4118 = vrot.slane %v4117, 2
  %v4119 = vadd.f32 %v4117, %v4118
  %v4120 = vrot.slane %v4119, 1
  %v4121 = vadd.f32 %v4119, %v4120
  %v4122 = vsel %vm1309, %v4048, 0.0
  %v4123 = vrot.slane %v4122, 4
  %v4124 = vadd.f32 %v4122, %v4123
  %v4125 = vrot.slane %v4124, 2
  %v4126 = vadd.f32 %v4124, %v4125
  %v4127 = vrot.slane %v4126, 1
  %v4128 = vadd.f32 %v4126, %v4127
  %v4129 = vsel %vm1309, %v4049, 0.0
  %v4130 = vrot.slane %v4129, 4
  %v4131 = vadd.f32 %v4129, %v4130
  %v4132 = vrot.slane %v4131, 2
  %v4133 = vadd.f32 %v4131, %v4132
  %v4134 = vrot.slane %v4133, 1
  %v4135 = vadd.f32 %v4133, %v4134
  %v4136 = vsel %vm1309, %v4050, 0.0
  %v4137 = vrot.slane %v4136, 4
  %v4138 = vadd.f32 %v4136, %v4137
  %v4139 = vrot.slane %v4138, 2
  %v4140 = vadd.f32 %v4138, %v4139
  %v4141 = vrot.slane %v4140, 1
  %v4142 = vadd.f32 %v4140, %v4141
  %v4143 = vsel %vm1309, %v4051, 0.0
  %v4144 = vrot.slane %v4143, 4
  %v4145 = vadd.f32 %v4143, %v4144
  %v4146 = vrot.slane %v4145, 2
  %v4147 = vadd.f32 %v4145, %v4146
  %v4148 = vrot.slane %v4147, 1
  %v4149 = vadd.f32 %v4147, %v4148
  %v4150 = vsel %vm1309, %v4052, 0.0
  %v4151 = vrot.slane %v4150, 4
  %v4152 = vadd.f32 %v4150, %v4151
  %v4153 = vrot.slane %v4152, 2
  %v4154 = vadd.f32 %v4152, %v4153
  %v4155 = vrot.slane %v4154, 1
  %v4156 = vadd.f32 %v4154, %v4155
  %v4157 = vsel %vm1309, %v4053, 0.0
  %v4158 = vrot.slane %v4157, 4
  %v4159 = vadd.f32 %v4157, %v4158
  %v4160 = vrot.slane %v4159, 2
  %v4161 = vadd.f32 %v4159, %v4160
  %v4162 = vrot.slane %v4161, 1
  %v4163 = vadd.f32 %v4161, %v4162
  %v4164 = vsel %vm1309, %v4054, 0.0
  %v4165 = vrot.slane %v4164, 4
  %v4166 = vadd.f32 %v4164, %v4165
  %v4167 = vrot.slane %v4166, 2
  %v4168 = vadd.f32 %v4166, %v4167
  %v4169 = vrot.slane %v4168, 1
  %v4170 = vadd.f32 %v4168, %v4169
  %v4171 = vsel %vm1309, %v4055, 0.0
  %v4172 = vrot.slane %v4171, 4
  %v4173 = vadd.f32 %v4171, %v4172
  %v4174 = vrot.slane %v4173, 2
  %v4175 = vadd.f32 %v4173, %v4174
  %v4176 = vrot.slane %v4175, 1
  %v4177 = vadd.f32 %v4175, %v4176
  %v4178 = vsel %vm1309, %v4056, 0.0
  %v4179 = vrot.slane %v4178, 4
  %v4180 = vadd.f32 %v4178, %v4179
  %v4181 = vrot.slane %v4180, 2
  %v4182 = vadd.f32 %v4180, %v4181
  %v4183 = vrot.slane %v4182, 1
  %v4184 = vadd.f32 %v4182, %v4183
  %v4185 = vsel %vm1309, %v4057, 0.0
  %v4186 = vrot.slane %v4185, 4
  %v4187 = vadd.f32 %v4185, %v4186
  %v4188 = vrot.slane %v4187, 2
  %v4189 = vadd.f32 %v4187, %v4188
  %v4190 = vrot.slane %v4189, 1
  %v4191 = vadd.f32 %v4189, %v4190
  %v4192 = vsel %vm1309, %v4058, 0.0
  %v4193 = vrot.slane %v4192, 4
  %v4194 = vadd.f32 %v4192, %v4193
  %v4195 = vrot.slane %v4194, 2
  %v4196 = vadd.f32 %v4194, %v4195
  %v4197 = vrot.slane %v4196, 1
  %v4198 = vadd.f32 %v4196, %v4197
  %v4199 = vsel %vm1309, %v4059, 0.0
  %v4200 = vrot.slane %v4199, 4
  %v4201 = vadd.f32 %v4199, %v4200
  %v4202 = vrot.slane %v4201, 2
  %v4203 = vadd.f32 %v4201, %v4202
  %v4204 = vrot.slane %v4203, 1
  %v4205 = vadd.f32 %v4203, %v4204
  %v4206 = vsel %vm1309, %v4060, 0.0
  %v4207 = vrot.slane %v4206, 4
  %v4208 = vadd.f32 %v4206, %v4207
  %v4209 = vrot.slane %v4208, 2
  %v4210 = vadd.f32 %v4208, %v4209
  %v4211 = vrot.slane %v4210, 1
  %v4212 = vadd.f32 %v4210, %v4211
  %v4213 = vsel %vm1309, %v4061, 0.0
  %v4214 = vrot.slane %v4213, 4
  %v4215 = vadd.f32 %v4213, %v4214
  %v4216 = vrot.slane %v4215, 2
  %v4217 = vadd.f32 %v4215, %v4216
  %v4218 = vrot.slane %v4217, 1
  %v4219 = vadd.f32 %v4217, %v4218
  %v4220 = vsel %vm1309, %v4062, 0.0
  %v4221 = vrot.slane %v4220, 4
  %v4222 = vadd.f32 %v4220, %v4221
  %v4223 = vrot.slane %v4222, 2
  %v4224 = vadd.f32 %v4222, %v4223
  %v4225 = vrot.slane %v4224, 1
  %v4226 = vadd.f32 %v4224, %v4225
  %v4227 = vsel %vm1309, %v4063, 0.0
  %v4228 = vrot.slane %v4227, 4
  %v4229 = vadd.f32 %v4227, %v4228
  %v4230 = vrot.slane %v4229, 2
  %v4231 = vadd.f32 %v4229, %v4230
  %v4232 = vrot.slane %v4231, 1
  %v4233 = vadd.f32 %v4231, %v4232
  %v4234 = vsel %vm1309, %v4064, 0.0
  %v4235 = vrot.slane %v4234, 4
  %v4236 = vadd.f32 %v4234, %v4235
  %v4237 = vrot.slane %v4236, 2
  %v4238 = vadd.f32 %v4236, %v4237
  %v4239 = vrot.slane %v4238, 1
  %v4240 = vadd.f32 %v4238, %v4239
  %v4241 = vsel %vm1309, %v4065, 0.0
  %v4242 = vrot.slane %v4241, 4
  %v4243 = vadd.f32 %v4241, %v4242
  %v4244 = vrot.slane %v4243, 2
  %v4245 = vadd.f32 %v4243, %v4244
  %v4246 = vrot.slane %v4245, 1
  %v4247 = vadd.f32 %v4245, %v4246
  %v4248 = vsel %vm1309, %v4066, 0.0
  %v4249 = vrot.slane %v4248, 4
  %v4250 = vadd.f32 %v4248, %v4249
  %v4251 = vrot.slane %v4250, 2
  %v4252 = vadd.f32 %v4250, %v4251
  %v4253 = vrot.slane %v4252, 1
  %v4254 = vadd.f32 %v4252, %v4253
  %v4255 = vsel %vm1309, %v4067, 0.0
  %v4256 = vrot.slane %v4255, 4
  %v4257 = vadd.f32 %v4255, %v4256
  %v4258 = vrot.slane %v4257, 2
  %v4259 = vadd.f32 %v4257, %v4258
  %v4260 = vrot.slane %v4259, 1
  %v4261 = vadd.f32 %v4259, %v4260
  %v4262 = vsel %vm1309, %v4068, 0.0
  %v4263 = vrot.slane %v4262, 4
  %v4264 = vadd.f32 %v4262, %v4263
  %v4265 = vrot.slane %v4264, 2
  %v4266 = vadd.f32 %v4264, %v4265
  %v4267 = vrot.slane %v4266, 1
  %v4268 = vadd.f32 %v4266, %v4267
  %v4269 = vsel %vm1309, %v4069, 0.0
  %v4270 = vrot.slane %v4269, 4
  %v4271 = vadd.f32 %v4269, %v4270
  %v4272 = vrot.slane %v4271, 2
  %v4273 = vadd.f32 %v4271, %v4272
  %v4274 = vrot.slane %v4273, 1
  %v4275 = vadd.f32 %v4273, %v4274
  %v4276 = vsel %vm1309, %v4070, 0.0
  %v4277 = vrot.slane %v4276, 4
  %v4278 = vadd.f32 %v4276, %v4277
  %v4279 = vrot.slane %v4278, 2
  %v4280 = vadd.f32 %v4278, %v4279
  %v4281 = vrot.slane %v4280, 1
  %v4282 = vadd.f32 %v4280, %v4281
  %v4283 = vsel %vm1309, %v4071, 0.0
  %v4284 = vrot.slane %v4283, 4
  %v4285 = vadd.f32 %v4283, %v4284
  %v4286 = vrot.slane %v4285, 2
  %v4287 = vadd.f32 %v4285, %v4286
  %v4288 = vrot.slane %v4287, 1
  %v4289 = vadd.f32 %v4287, %v4288
  %v4290 = vsel %vm1309, %v4072, 0.0
  %v4291 = vrot.slane %v4290, 4
  %v4292 = vadd.f32 %v4290, %v4291
  %v4293 = vrot.slane %v4292, 2
  %v4294 = vadd.f32 %v4292, %v4293
  %v4295 = vrot.slane %v4294, 1
  %v4296 = vadd.f32 %v4294, %v4295
  %v4297 = vsel %vm1309, %v4009, 0.0
  %v4298 = vrot.slane %v4297, 4
  %v4299 = vadd.f32 %v4297, %v4298
  %v4300 = vrot.slane %v4299, 2
  %v4301 = vadd.f32 %v4299, %v4300
  %v4302 = vrot.slane %v4301, 1
  %v4303 = vadd.f32 %v4301, %v4302
  %v4304 = vsel %vm1309, %v4010, 0.0
  %v4305 = vrot.slane %v4304, 4
  %v4306 = vadd.f32 %v4304, %v4305
  %v4307 = vrot.slane %v4306, 2
  %v4308 = vadd.f32 %v4306, %v4307
  %v4309 = vrot.slane %v4308, 1
  %v4310 = vadd.f32 %v4308, %v4309
  %v4311 = vsel %vm1309, %v4011, 0.0
  %v4312 = vrot.slane %v4311, 4
  %v4313 = vadd.f32 %v4311, %v4312
  %v4314 = vrot.slane %v4313, 2
  %v4315 = vadd.f32 %v4313, %v4314
  %v4316 = vrot.slane %v4315, 1
  %v4317 = vadd.f32 %v4315, %v4316
  %v4318 = vsel %vm1309, %v4012, 0.0
  %v4319 = vrot.slane %v4318, 4
  %v4320 = vadd.f32 %v4318, %v4319
  %v4321 = vrot.slane %v4320, 2
  %v4322 = vadd.f32 %v4320, %v4321
  %v4323 = vrot.slane %v4322, 1
  %v4324 = vadd.f32 %v4322, %v4323
  %v4325 = vsel %vm1309, %v4013, 0.0
  %v4326 = vrot.slane %v4325, 4
  %v4327 = vadd.f32 %v4325, %v4326
  %v4328 = vrot.slane %v4327, 2
  %v4329 = vadd.f32 %v4327, %v4328
  %v4330 = vrot.slane %v4329, 1
  %v4331 = vadd.f32 %v4329, %v4330
  %v4332 = vsel %vm1309, %v4014, 0.0
  %v4333 = vrot.slane %v4332, 4
  %v4334 = vadd.f32 %v4332, %v4333
  %v4335 = vrot.slane %v4334, 2
  %v4336 = vadd.f32 %v4334, %v4335
  %v4337 = vrot.slane %v4336, 1
  %v4338 = vadd.f32 %v4336, %v4337
  %v4339 = vsel %vm1309, %v4015, 0.0
  %v4340 = vrot.slane %v4339, 4
  %v4341 = vadd.f32 %v4339, %v4340
  %v4342 = vrot.slane %v4341, 2
  %v4343 = vadd.f32 %v4341, %v4342
  %v4344 = vrot.slane %v4343, 1
  %v4345 = vadd.f32 %v4343, %v4344
  %v4346 = vsel %vm1309, %v4016, 0.0
  %v4347 = vrot.slane %v4346, 4
  %v4348 = vadd.f32 %v4346, %v4347
  %v4349 = vrot.slane %v4348, 2
  %v4350 = vadd.f32 %v4348, %v4349
  %v4351 = vrot.slane %v4350, 1
  %v4352 = vadd.f32 %v4350, %v4351
  %v4353 = vsel %vm1309, %v4017, 0.0
  %v4354 = vrot.slane %v4353, 4
  %v4355 = vadd.f32 %v4353, %v4354
  %v4356 = vrot.slane %v4355, 2
  %v4357 = vadd.f32 %v4355, %v4356
  %v4358 = vrot.slane %v4357, 1
  %v4359 = vadd.f32 %v4357, %v4358
  %v4360 = vsel %vm1309, %v4018, 0.0
  %v4361 = vrot.slane %v4360, 4
  %v4362 = vadd.f32 %v4360, %v4361
  %v4363 = vrot.slane %v4362, 2
  %v4364 = vadd.f32 %v4362, %v4363
  %v4365 = vrot.slane %v4364, 1
  %v4366 = vadd.f32 %v4364, %v4365
  %v4367 = vsel %vm1309, %v4019, 0.0
  %v4368 = vrot.slane %v4367, 4
  %v4369 = vadd.f32 %v4367, %v4368
  %v4370 = vrot.slane %v4369, 2
  %v4371 = vadd.f32 %v4369, %v4370
  %v4372 = vrot.slane %v4371, 1
  %v4373 = vadd.f32 %v4371, %v4372
  %v4374 = vsel %vm1309, %v4020, 0.0
  %v4375 = vrot.slane %v4374, 4
  %v4376 = vadd.f32 %v4374, %v4375
  %v4377 = vrot.slane %v4376, 2
  %v4378 = vadd.f32 %v4376, %v4377
  %v4379 = vrot.slane %v4378, 1
  %v4380 = vadd.f32 %v4378, %v4379
  %v4381 = vsel %vm1309, %v4021, 0.0
  %v4382 = vrot.slane %v4381, 4
  %v4383 = vadd.f32 %v4381, %v4382
  %v4384 = vrot.slane %v4383, 2
  %v4385 = vadd.f32 %v4383, %v4384
  %v4386 = vrot.slane %v4385, 1
  %v4387 = vadd.f32 %v4385, %v4386
  %v4388 = vsel %vm1309, %v4022, 0.0
  %v4389 = vrot.slane %v4388, 4
  %v4390 = vadd.f32 %v4388, %v4389
  %v4391 = vrot.slane %v4390, 2
  %v4392 = vadd.f32 %v4390, %v4391
  %v4393 = vrot.slane %v4392, 1
  %v4394 = vadd.f32 %v4392, %v4393
  %v4395 = vsel %vm1309, %v4023, 0.0
  %v4396 = vrot.slane %v4395, 4
  %v4397 = vadd.f32 %v4395, %v4396
  %v4398 = vrot.slane %v4397, 2
  %v4399 = vadd.f32 %v4397, %v4398
  %v4400 = vrot.slane %v4399, 1
  %v4401 = vadd.f32 %v4399, %v4400
  %v4402 = vsel %vm1309, %v4024, 0.0
  %v4403 = vrot.slane %v4402, 4
  %v4404 = vadd.f32 %v4402, %v4403
  %v4405 = vrot.slane %v4404, 2
  %v4406 = vadd.f32 %v4404, %v4405
  %v4407 = vrot.slane %v4406, 1
  %v4408 = vadd.f32 %v4406, %v4407
  %v4409 = vsel %vm1309, %v4025, 0.0
  %v4410 = vrot.slane %v4409, 4
  %v4411 = vadd.f32 %v4409, %v4410
  %v4412 = vrot.slane %v4411, 2
  %v4413 = vadd.f32 %v4411, %v4412
  %v4414 = vrot.slane %v4413, 1
  %v4415 = vadd.f32 %v4413, %v4414
  %v4416 = vsel %vm1309, %v4026, 0.0
  %v4417 = vrot.slane %v4416, 4
  %v4418 = vadd.f32 %v4416, %v4417
  %v4419 = vrot.slane %v4418, 2
  %v4420 = vadd.f32 %v4418, %v4419
  %v4421 = vrot.slane %v4420, 1
  %v4422 = vadd.f32 %v4420, %v4421
  %v4423 = vsel %vm1309, %v4027, 0.0
  %v4424 = vrot.slane %v4423, 4
  %v4425 = vadd.f32 %v4423, %v4424
  %v4426 = vrot.slane %v4425, 2
  %v4427 = vadd.f32 %v4425, %v4426
  %v4428 = vrot.slane %v4427, 1
  %v4429 = vadd.f32 %v4427, %v4428
  %v4430 = vsel %vm1309, %v4028, 0.0
  %v4431 = vrot.slane %v4430, 4
  %v4432 = vadd.f32 %v4430, %v4431
  %v4433 = vrot.slane %v4432, 2
  %v4434 = vadd.f32 %v4432, %v4433
  %v4435 = vrot.slane %v4434, 1
  %v4436 = vadd.f32 %v4434, %v4435
  %v4437 = vsel %vm1309, %v4029, 0.0
  %v4438 = vrot.slane %v4437, 4
  %v4439 = vadd.f32 %v4437, %v4438
  %v4440 = vrot.slane %v4439, 2
  %v4441 = vadd.f32 %v4439, %v4440
  %v4442 = vrot.slane %v4441, 1
  %v4443 = vadd.f32 %v4441, %v4442
  %v4444 = vsel %vm1309, %v4030, 0.0
  %v4445 = vrot.slane %v4444, 4
  %v4446 = vadd.f32 %v4444, %v4445
  %v4447 = vrot.slane %v4446, 2
  %v4448 = vadd.f32 %v4446, %v4447
  %v4449 = vrot.slane %v4448, 1
  %v4450 = vadd.f32 %v4448, %v4449
  %v4451 = vsel %vm1309, %v4031, 0.0
  %v4452 = vrot.slane %v4451, 4
  %v4453 = vadd.f32 %v4451, %v4452
  %v4454 = vrot.slane %v4453, 2
  %v4455 = vadd.f32 %v4453, %v4454
  %v4456 = vrot.slane %v4455, 1
  %v4457 = vadd.f32 %v4455, %v4456
  %v4458 = vsel %vm1309, %v4032, 0.0
  %v4459 = vrot.slane %v4458, 4
  %v4460 = vadd.f32 %v4458, %v4459
  %v4461 = vrot.slane %v4460, 2
  %v4462 = vadd.f32 %v4460, %v4461
  %v4463 = vrot.slane %v4462, 1
  %v4464 = vadd.f32 %v4462, %v4463
  %v4465 = vsel %vm1309, %v4033, 0.0
  %v4466 = vrot.slane %v4465, 4
  %v4467 = vadd.f32 %v4465, %v4466
  %v4468 = vrot.slane %v4467, 2
  %v4469 = vadd.f32 %v4467, %v4468
  %v4470 = vrot.slane %v4469, 1
  %v4471 = vadd.f32 %v4469, %v4470
  %v4472 = vsel %vm1309, %v4034, 0.0
  %v4473 = vrot.slane %v4472, 4
  %v4474 = vadd.f32 %v4472, %v4473
  %v4475 = vrot.slane %v4474, 2
  %v4476 = vadd.f32 %v4474, %v4475
  %v4477 = vrot.slane %v4476, 1
  %v4478 = vadd.f32 %v4476, %v4477
  %v4479 = vsel %vm1309, %v4035, 0.0
  %v4480 = vrot.slane %v4479, 4
  %v4481 = vadd.f32 %v4479, %v4480
  %v4482 = vrot.slane %v4481, 2
  %v4483 = vadd.f32 %v4481, %v4482
  %v4484 = vrot.slane %v4483, 1
  %v4485 = vadd.f32 %v4483, %v4484
  %v4486 = vsel %vm1309, %v4036, 0.0
  %v4487 = vrot.slane %v4486, 4
  %v4488 = vadd.f32 %v4486, %v4487
  %v4489 = vrot.slane %v4488, 2
  %v4490 = vadd.f32 %v4488, %v4489
  %v4491 = vrot.slane %v4490, 1
  %v4492 = vadd.f32 %v4490, %v4491
  %v4493 = vsel %vm1309, %v4037, 0.0
  %v4494 = vrot.slane %v4493, 4
  %v4495 = vadd.f32 %v4493, %v4494
  %v4496 = vrot.slane %v4495, 2
  %v4497 = vadd.f32 %v4495, %v4496
  %v4498 = vrot.slane %v4497, 1
  %v4499 = vadd.f32 %v4497, %v4498
  %v4500 = vsel %vm1309, %v4038, 0.0
  %v4501 = vrot.slane %v4500, 4
  %v4502 = vadd.f32 %v4500, %v4501
  %v4503 = vrot.slane %v4502, 2
  %v4504 = vadd.f32 %v4502, %v4503
  %v4505 = vrot.slane %v4504, 1
  %v4506 = vadd.f32 %v4504, %v4505
  %v4507 = vsel %vm1309, %v4039, 0.0
  %v4508 = vrot.slane %v4507, 4
  %v4509 = vadd.f32 %v4507, %v4508
  %v4510 = vrot.slane %v4509, 2
  %v4511 = vadd.f32 %v4509, %v4510
  %v4512 = vrot.slane %v4511, 1
  %v4513 = vadd.f32 %v4511, %v4512
  %v4514 = vsel %vm1309, %v4040, 0.0
  %v4515 = vrot.slane %v4514, 4
  %v4516 = vadd.f32 %v4514, %v4515
  %v4517 = vrot.slane %v4516, 2
  %v4518 = vadd.f32 %v4516, %v4517
  %v4519 = vrot.slane %v4518, 1
  %v4520 = vadd.f32 %v4518, %v4519
  %vm4553 = vcmask 1041409
  %v4554 = vsel %vm4553, %v4310, %v4303
  %vm4555 = vcmask 1042434
  %v4556 = vsel %vm4555, %v4317, %v4554
  %vm4557 = vcmask 1043459
  %v4558 = vsel %vm4557, %v4324, %v4556
  %vm4559 = vcmask 1044484
  %v4560 = vsel %vm4559, %v4331, %v4558
  %vm4561 = vcmask 1045509
  %v4562 = vsel %vm4561, %v4338, %v4560
  %vm4563 = vcmask 1046534
  %v4564 = vsel %vm4563, %v4345, %v4562
  %vm4565 = vcmask 1047559
  %v4566 = vsel %vm4565, %v4352, %v4564
  %v4567 = vsel %vm4553, %v4366, %v4359
  %v4568 = vsel %vm4555, %v4373, %v4567
  %v4569 = vsel %vm4557, %v4380, %v4568
  %v4570 = vsel %vm4559, %v4387, %v4569
  %v4571 = vsel %vm4561, %v4394, %v4570
  %v4572 = vsel %vm4563, %v4401, %v4571
  %v4573 = vsel %vm4565, %v4408, %v4572
  %v4574 = vsel %vm4553, %v4422, %v4415
  %v4575 = vsel %vm4555, %v4429, %v4574
  %v4576 = vsel %vm4557, %v4436, %v4575
  %v4577 = vsel %vm4559, %v4443, %v4576
  %v4578 = vsel %vm4561, %v4450, %v4577
  %v4579 = vsel %vm4563, %v4457, %v4578
  %v4580 = vsel %vm4565, %v4464, %v4579
  %v4581 = vsel %vm4553, %v4478, %v4471
  %v4582 = vsel %vm4555, %v4485, %v4581
  %v4583 = vsel %vm4557, %v4492, %v4582
  %v4584 = vsel %vm4559, %v4499, %v4583
  %v4585 = vsel %vm4561, %v4506, %v4584
  %v4586 = vsel %vm4563, %v4513, %v4585
  %v4587 = vsel %vm4565, %v4520, %v4586
  %v4592 = vmul.f32 %v182, %v4566
  %v4593 = vmul.f32 %v183, %v4573
  %v4594 = vmul.f32 %v184, %v4580
  %v4595 = vmul.f32 %v185, %v4587
  %v4596 = vld [vmem:[%s12] sm:$0xff]
  %v4597 = vld [vmem:[%s13] sm:$0xff]
  %v4599 = vsel %vm1309, %v4592, 0
  %v4602 = vsel %vm1309, %v4593, 0
  %v4605 = vsel %vm1309, %v4594, 0
  %v4608 = vsel %vm1309, %v4595, 0
  %4610 = vmatprep.subr.mxu0 0.0
  %4611 = vmatpush1.msra.mxu0 %v4597
  %4612 = vmatprep.subr.mxu0 0.0
  %4613 = vmatpush1.msra.mxu0 0.0
  %4614 = vmatprep.subr.mxu0 0.0
  %4615 = vmatpush1.msra.mxu0 0.0
  %4616 = vmatprep.subr.mxu0 0.0
  %4617 = vmatpush1.msra.mxu0 0.0
  %4618 = vmatprep.subr.mxu0 0.0
  %4619 = vmatpush1.msra.mxu0 0.0
  %4620 = vmatprep.subr.mxu0 0.0
  %4621 = vmatpush1.msra.mxu0 0.0
  %4622 = vmatprep.subr.mxu0 0.0
  %4623 = vmatpush1.msra.mxu0 0.0
  %4624 = vmatprep.subr.mxu0 0.0
  %4625 = vmatpush1.msra.mxu0 0.0
  %4626 = vmatprep.subr.mxu0 0.0
  %4627 = vmatpush1.msra.mxu0 0.0
  %4628 = vmatprep.subr.mxu0 0.0
  %4629 = vmatpush1.msra.mxu0 0.0
  %4630 = vmatprep.subr.mxu0 0.0
  %4631 = vmatpush1.msra.mxu0 0.0
  %4632 = vmatprep.subr.mxu0 0.0
  %4633 = vmatpush1.msra.mxu0 0.0
  %4634 = vmatprep.subr.mxu0 0.0
  %4635 = vmatpush1.msra.mxu0 0.0
  %4636 = vmatprep.subr.mxu0 0.0
  %4637 = vmatpush1.msra.mxu0 0.0
  %4638 = vmatprep.subr.mxu0 0.0
  %4639 = vmatpush1.msra.mxu0 0.0
  %4640 = vmatprep.subr.mxu0 0.0
  %4641 = vmatpush1.msra.mxu0 0.0
  %4642 = vmatprep.subr.mxu0 0.0
  %4643 = vmatpush1.msra.mxu0 0.0
  %4644 = vmatprep.subr.mxu0 0.0
  %4645 = vmatpush1.msra.mxu0 0.0
  %4646 = vmatprep.subr.mxu0 0.0
  %4647 = vmatpush1.msra.mxu0 0.0
  %4648 = vmatprep.subr.mxu0 0.0
  %4649 = vmatpush1.msra.mxu0 0.0
  %4650 = vmatprep.subr.mxu0 0.0
  %4651 = vmatpush1.msra.mxu0 0.0
  %4652 = vmatprep.subr.mxu0 0.0
  %4653 = vmatpush1.msra.mxu0 0.0
  %4654 = vmatprep.subr.mxu0 0.0
  %4655 = vmatpush1.msra.mxu0 0.0
  %4656 = vmatprep.subr.mxu0 0.0
  %4657 = vmatpush1.msra.mxu0 0.0
  %4658 = vmatprep.subr.mxu0 0.0
  %4659 = vmatpush1.msra.mxu0 0.0
  %4660 = vmatprep.subr.mxu0 0.0
  %4661 = vmatpush1.msra.mxu0 0.0
  %4662 = vmatprep.subr.mxu0 0.0
  %4663 = vmatpush1.msra.mxu0 0.0
  %4664 = vmatprep.subr.mxu0 0.0
  %4665 = vmatpush1.msra.mxu0 0.0
  %4666 = vmatprep.subr.mxu0 0.0
  %4667 = vmatpush1.msra.mxu0 0.0
  %4668 = vmatprep.subr.mxu0 0.0
  %4669 = vmatpush1.msra.mxu0 0.0
  %4670 = vmatprep.subr.mxu0 0.0
  %4671 = vmatpush1.msra.mxu0 0.0
  %4672 = vmatprep.subr.mxu0 0.0
  %4673 = vmatpush1.msra.mxu0 0.0
  %4674 = vmatprep.mubr.f32.mxu0 0.0
  %4675 = vmatmul.mubr.f32.gmra.mrb[0].mxu0 %v4599
  %v4676 = vpop.f32.mrb[0].mxu0
  %v4677 = vadd.f32 0.0, %v4676
  %v4678 = vpop.f32.mrb[0].mxu0
  %4679 = vmatprep.mubr.f32.mxu0 0.0
  %4680 = vmatmul.mubr.f32.gmra.mrb[0].mxu0 %v4602
  %v4681 = vpop.f32.mrb[0].mxu0
  %v4682 = vadd.f32 0.0, %v4681
  %v4683 = vpop.f32.mrb[0].mxu0
  %4684 = vmatprep.mubr.f32.mxu0 0.0
  %4685 = vmatmul.mubr.f32.gmra.mrb[0].mxu0 %v4605
  %v4686 = vpop.f32.mrb[0].mxu0
  %v4687 = vadd.f32 0.0, %v4686
  %v4688 = vpop.f32.mrb[0].mxu0
  %4689 = vmatprep.mubr.f32.mxu0 0.0
  %4690 = vmatmul.mubr.f32.gmra.mrb[0].mxu0 %v4608
  %v4691 = vpop.f32.mrb[0].mxu0
  %v4692 = vadd.f32 0.0, %v4691
  %v4693 = vpop.f32.mrb[0].mxu0
  %4694 = vdwg.mxu0
  %v4727 = vsel %vm4553, %v4086, %v4079
  %v4728 = vsel %vm4555, %v4093, %v4727
  %v4729 = vsel %vm4557, %v4100, %v4728
  %v4730 = vsel %vm4559, %v4107, %v4729
  %v4731 = vsel %vm4561, %v4114, %v4730
  %v4732 = vsel %vm4563, %v4121, %v4731
  %v4733 = vsel %vm4565, %v4128, %v4732
  %v4734 = vsel %vm4553, %v4142, %v4135
  %v4735 = vsel %vm4555, %v4149, %v4734
  %v4736 = vsel %vm4557, %v4156, %v4735
  %v4737 = vsel %vm4559, %v4163, %v4736
  %v4738 = vsel %vm4561, %v4170, %v4737
  %v4739 = vsel %vm4563, %v4177, %v4738
  %v4740 = vsel %vm4565, %v4184, %v4739
  %v4741 = vsel %vm4553, %v4198, %v4191
  %v4742 = vsel %vm4555, %v4205, %v4741
  %v4743 = vsel %vm4557, %v4212, %v4742
  %v4744 = vsel %vm4559, %v4219, %v4743
  %v4745 = vsel %vm4561, %v4226, %v4744
  %v4746 = vsel %vm4563, %v4233, %v4745
  %v4747 = vsel %vm4565, %v4240, %v4746
  %v4748 = vsel %vm4553, %v4254, %v4247
  %v4749 = vsel %vm4555, %v4261, %v4748
  %v4750 = vsel %vm4557, %v4268, %v4749
  %v4751 = vsel %vm4559, %v4275, %v4750
  %v4752 = vsel %vm4561, %v4282, %v4751
  %v4753 = vsel %vm4563, %v4289, %v4752
  %v4754 = vsel %vm4565, %v4296, %v4753
  %v4755 = vsel %vm1309, %v4733, 0
  %v4757 = vsel %vm1309, %v4740, 0
  %v4759 = vsel %vm1309, %v4747, 0
  %v4761 = vsel %vm1309, %v4754, 0
  %4763 = vmatprep.subr.mxu0 0.0
  %4764 = vmatpush1.msra.mxu0 %v4596
  %4765 = vmatprep.subr.mxu0 0.0
  %4766 = vmatpush1.msra.mxu0 0.0
  %4767 = vmatprep.subr.mxu0 0.0
  %4768 = vmatpush1.msra.mxu0 0.0
  %4769 = vmatprep.subr.mxu0 0.0
  %4770 = vmatpush1.msra.mxu0 0.0
  %4771 = vmatprep.subr.mxu0 0.0
  %4772 = vmatpush1.msra.mxu0 0.0
  %4773 = vmatprep.subr.mxu0 0.0
  %4774 = vmatpush1.msra.mxu0 0.0
  %4775 = vmatprep.subr.mxu0 0.0
  %4776 = vmatpush1.msra.mxu0 0.0
  %4777 = vmatprep.subr.mxu0 0.0
  %4778 = vmatpush1.msra.mxu0 0.0
  %4779 = vmatprep.subr.mxu0 0.0
  %4780 = vmatpush1.msra.mxu0 0.0
  %4781 = vmatprep.subr.mxu0 0.0
  %4782 = vmatpush1.msra.mxu0 0.0
  %4783 = vmatprep.subr.mxu0 0.0
  %4784 = vmatpush1.msra.mxu0 0.0
  %4785 = vmatprep.subr.mxu0 0.0
  %4786 = vmatpush1.msra.mxu0 0.0
  %4787 = vmatprep.subr.mxu0 0.0
  %4788 = vmatpush1.msra.mxu0 0.0
  %4789 = vmatprep.subr.mxu0 0.0
  %4790 = vmatpush1.msra.mxu0 0.0
  %4791 = vmatprep.subr.mxu0 0.0
  %4792 = vmatpush1.msra.mxu0 0.0
  %4793 = vmatprep.subr.mxu0 0.0
  %4794 = vmatpush1.msra.mxu0 0.0
  %4795 = vmatprep.subr.mxu0 0.0
  %4796 = vmatpush1.msra.mxu0 0.0
  %4797 = vmatprep.subr.mxu0 0.0
  %4798 = vmatpush1.msra.mxu0 0.0
  %4799 = vmatprep.subr.mxu0 0.0
  %4800 = vmatpush1.msra.mxu0 0.0
  %4801 = vmatprep.subr.mxu0 0.0
  %4802 = vmatpush1.msra.mxu0 0.0
  %4803 = vmatprep.subr.mxu0 0.0
  %4804 = vmatpush1.msra.mxu0 0.0
  %4805 = vmatprep.subr.mxu0 0.0
  %4806 = vmatpush1.msra.mxu0 0.0
  %4807 = vmatprep.subr.mxu0 0.0
  %4808 = vmatpush1.msra.mxu0 0.0
  %4809 = vmatprep.subr.mxu0 0.0
  %4810 = vmatpush1.msra.mxu0 0.0
  %4811 = vmatprep.subr.mxu0 0.0
  %4812 = vmatpush1.msra.mxu0 0.0
  %4813 = vmatprep.subr.mxu0 0.0
  %4814 = vmatpush1.msra.mxu0 0.0
  %4815 = vmatprep.subr.mxu0 0.0
  %4816 = vmatpush1.msra.mxu0 0.0
  %4817 = vmatprep.subr.mxu0 0.0
  %4818 = vmatpush1.msra.mxu0 0.0
  %4819 = vmatprep.subr.mxu0 0.0
  %4820 = vmatpush1.msra.mxu0 0.0
  %4821 = vmatprep.subr.mxu0 0.0
  %4822 = vmatpush1.msra.mxu0 0.0
  %4823 = vmatprep.subr.mxu0 0.0
  %4824 = vmatpush1.msra.mxu0 0.0
  %4825 = vmatprep.subr.mxu0 0.0
  %4826 = vmatpush1.msra.mxu0 0.0
  %4827 = vmatprep.mubr.f32.mxu0 0.0
  %4828 = vmatmul.mubr.f32.gmra.mrb[0].mxu0 %v4755
  %v4829 = vpop.f32.mrb[0].mxu0
  %v4830 = vadd.f32 %v4677, %v4829
  %v4831 = vpop.f32.mrb[0].mxu0
  %4832 = vmatprep.mubr.f32.mxu0 0.0
  %4833 = vmatmul.mubr.f32.gmra.mrb[0].mxu0 %v4757
  %v4834 = vpop.f32.mrb[0].mxu0
  %v4835 = vadd.f32 %v4682, %v4834
  %v4836 = vpop.f32.mrb[0].mxu0
  %4837 = vmatprep.mubr.f32.mxu0 0.0
  %4838 = vmatmul.mubr.f32.gmra.mrb[0].mxu0 %v4759
  %v4839 = vpop.f32.mrb[0].mxu0
  %v4840 = vadd.f32 %v4687, %v4839
  %v4841 = vpop.f32.mrb[0].mxu0
  %4842 = vmatprep.mubr.f32.mxu0 0.0
  %4843 = vmatmul.mubr.f32.gmra.mrb[0].mxu0 %v4761
  %v4844 = vpop.f32.mrb[0].mxu0
  %v4845 = vadd.f32 %v4692, %v4844
  %v4846 = vpop.f32.mrb[0].mxu0
  %4847 = vdwg.mxu0
  %v4848 = vld [vmem:[%s14] sm:$0x1]
  %v4850 = vlaneseq
  %v4851 = vshrl.u32 %v4850, 7
  %v4852 = vsub.s32 0, %v4851
  %v4853 = vrot.slane %v4848, %v4852
  %v4855 = vadd.f32 %v4830, %v4853
  %v4856 = vadd.f32 %v4835, %v4853
  %v4857 = vadd.f32 %v4840, %v4853
  %v4858 = vadd.f32 %v4845, %v4853
  %v4859 = vmax.f32 %v4855, 0.0
  %v4860 = vmax.f32 %v4856, 0.0
  %v4861 = vmax.f32 %v4857, 0.0
  %v4862 = vmax.f32 %v4858, 0.0
  %4863 = vst.msk [vmem:[%s15] sm:$0xff] %vm1309, %v4859
  %4864 = vst.msk [vmem:[%s15 + $0x8] sm:$0xff] %vm1309, %v4860
  %4865 = vst.msk [vmem:[%s15 + $0x10] sm:$0xff] %vm1309, %v4861
  %4866 = vst.msk [vmem:[%s15 + $0x18] sm:$0xff] %vm1309, %v4862
  // Predicated region
  $region62: #{local_feature_aggregation.5} parent=0 // pred_check
    _
  $region63: #{local_feature_aggregation.5} parent=0 // pred_check_branch
    %4868 = sbr.rel (0) target = $region65
  $region64: #{local_feature_aggregation.5} parent=0 // pred_region
    _
  $region65: #{local_feature_aggregation.5} parent=0 // pred_fallthru
    _
  // Predicated region
  $region66: #{local_feature_aggregation.5} parent=0 // pred_check
    _
  $region67: #{local_feature_aggregation.5} parent=0 // pred_check_branch
    %4870 = sbr.rel (0) target = $region69
  $region68: #{local_feature_aggregation.5} parent=0 // pred_region
    _
  $region69: #{local_feature_aggregation.5} parent=0 // pred_fallthru
    _

</llo_original>
